<compile_context>
chip_gen: v7x
topology: tpu7x:2x2x1
jax: 0.10.0
libtpu: 0.0.40
codegen_flags: <defaults>
</compile_context>

<pallas_src>
import math

import jax
import jax.numpy as jnp
from jax import lax
from jax.experimental import pallas as pl
from jax.experimental.pallas import tpu as pltpu

BN_EPS = 1e-5
LANE = 128   # lane width: Cout is padded to a multiple of this for dense stores.
_COL0 = 8    # column where the un-padded tile starts inside the padded VMEM scratch
             # (a full sublane-tile of left margin keeps the interior store aligned).


def _round_up(x, m):
    return (x + m - 1) // m * m


# ---------------------------------------------------------------------------
# In-kernel helpers: padded VMEM scratch + 9-tap 3x3 convolution on the MXU
# ---------------------------------------------------------------------------
def _fill_padded(pad_ref, x):
    """Write x (H, W, C) into the zero-padded scratch (H+2, W+2*_COL0, C)."""
    H, W, _ = x.shape
    pad_ref[...] = jnp.zeros(pad_ref.shape, pad_ref.dtype)
    pad_ref[pl.ds(1, H), pl.ds(_COL0, W), :] = x.astype(pad_ref.dtype)


def _conv3x3(pad_ref, w_ref, H, W):
    """3x3 'same' conv from a padded scratch.  w_ref: (9, C, Co).  -> (H*W, Co) f32."""
    co = w_ref.shape[-1]
    acc = jnp.zeros((H * W, co), jnp.float32)
    for t in range(9):
        dy, dx = t // 3, t % 3
        win = pad_ref[pl.ds(dy, H), pl.ds(_COL0 - 1 + dx, W), :]      # (H, W, C)
        acc = acc + jnp.dot(win.reshape(H * W, -1).astype(jnp.bfloat16),
                            w_ref[t], preferred_element_type=jnp.float32)
    return acc


# ---------------------------------------------------------------------------
# Kernels
# ---------------------------------------------------------------------------
def _fused_block_kernel(x_ref, w1_ref, s1_ref, b1_ref, w2_ref, s2_ref, b2_ref,
                        wr_ref, sr_ref, br_ref, o_ref, xpad_ref, hpad_ref):
    """Whole residual block for one batch image (stride=1): conv1/BN1/ReLU ->
    conv2/BN2 -> (+ residual: identity-as-eye or 1x1 projection + BN) -> ReLU."""
    x = x_ref[0]                                          # (H, W, Cin) bf16
    H, W, _ = x.shape
    _fill_padded(xpad_ref, x)
    out1 = jnp.maximum(_conv3x3(xpad_ref, w1_ref, H, W) * s1_ref[...] + b1_ref[...],
                       0.0)                               # (H*W, Cp) f32, stays in VMEM
    _fill_padded(hpad_ref, out1.reshape(H, W, -1))
    y = _conv3x3(hpad_ref, w2_ref, H, W) * s2_ref[...] + b2_ref[...]
    r = jnp.dot(x.reshape(H * W, -1), wr_ref[...],
                preferred_element_type=jnp.float32) * sr_ref[...] + br_ref[...]
    o_ref[0] = jnp.maximum(y + r, 0.0).reshape(H, W, -1).astype(o_ref.dtype)


def _conv1_kernel(x_ref, w1_ref, s1_ref, b1_ref, o_ref, xpad_ref):
    """conv1 (3x3, stride 1) + BN1 + ReLU only (used on the stride>1 path)."""
    x = x_ref[0]
    H, W, _ = x.shape
    _fill_padded(xpad_ref, x)
    y = jnp.maximum(_conv3x3(xpad_ref, w1_ref, H, W) * s1_ref[...] + b1_ref[...], 0.0)
    o_ref[0] = y.reshape(H, W, -1).astype(o_ref.dtype)


def _conv2_res_kernel(h_ref, xr_ref, w2_ref, s2_ref, b2_ref,
                      wr_ref, sr_ref, br_ref, o_ref, hpad_ref):
    """conv2 (3x3) + BN2, fused with the (projected) residual add + ReLU."""
    h = h_ref[0]
    H, W, _ = h.shape
    _fill_padded(hpad_ref, h)
    y = _conv3x3(hpad_ref, w2_ref, H, W) * s2_ref[...] + b2_ref[...]
    xr = xr_ref[0]
    r = jnp.dot(xr.reshape(H * W, -1), wr_ref[...],
                preferred_element_type=jnp.float32) * sr_ref[...] + br_ref[...]
    o_ref[0] = jnp.maximum(y + r, 0.0).reshape(H, W, -1).astype(o_ref.dtype)


# ---------------------------------------------------------------------------
# pallas_call plumbing
# ---------------------------------------------------------------------------
def _pallas_conv_call(kernel, inputs, out_shape, out_dtype, scratch_specs):
    """inputs: list of (array, batched). Batched arrays are tiled over the leading
    batch dim (one image per grid step); the rest stay resident in VMEM."""
    n = out_shape[0]
    in_specs, args = [], []
    blk_bytes, res_bytes = 0, 0
    for arr, batched in inputs:
        args.append(arr)
        if batched:
            blk = (1,) + arr.shape[1:]
            in_specs.append(pl.BlockSpec(blk, lambda i, _nd=arr.ndim - 1: (i,) + (0,) * _nd))
            blk_bytes += 2 * math.prod(blk) * arr.dtype.itemsize        # double-buffered
        else:
            in_specs.append(pl.BlockSpec(arr.shape, lambda i, _nd=arr.ndim: (0,) * _nd))
            res_bytes += 2 * arr.size * arr.dtype.itemsize
    out_block = (1,) + out_shape[1:]
    out_specs = pl.BlockSpec(out_block, lambda i: (i,) + (0,) * (len(out_shape) - 1))
    blk_bytes += 2 * math.prod(out_block) * jnp.dtype(out_dtype).itemsize

    scratch_shapes = [pltpu.VMEM(s, d) for s, d in scratch_specs]
    scr_bytes = sum(math.prod(s) * jnp.dtype(d).itemsize for s, d in scratch_specs)

    # Explicit VMEM budget (review item 3): blocks + residents + scratch with
    # headroom for in-kernel temporaries, clamped to stay safe on v7x (64 MiB).
    vmem_limit = int(min(max(4 * (blk_bytes + res_bytes + scr_bytes) + (8 << 20),
                             16 << 20), 48 << 20))

    return pl.pallas_call(
        kernel,
        out_shape=jax.ShapeDtypeStruct(out_shape, out_dtype),
        grid=(n,),
        in_specs=in_specs,
        out_specs=out_specs,
        scratch_shapes=scratch_shapes,
        compiler_params=pltpu.CompilerParams(
            dimension_semantics=("parallel",),
            vmem_limit_bytes=vmem_limit,
        ),
    )(*args)


# ---------------------------------------------------------------------------
# Plain-JAX glue: BN folding and channel padding (Cout -> multiple of 128)
# ---------------------------------------------------------------------------
def _pad_last(a, target):
    pad = target - a.shape[-1]
    if pad == 0:
        return a
    return jnp.pad(a, [(0, 0)] * (a.ndim - 1) + [(0, pad)])


def _fold_bn(bn, cp):
    scale = bn["gamma"] / jnp.sqrt(bn["var"] + BN_EPS)
    bias = bn["beta"] - bn["mean"] * scale
    return (_pad_last(scale.reshape(1, -1).astype(jnp.float32), cp),
            _pad_last(bias.reshape(1, -1).astype(jnp.float32), cp))


# ---------------------------------------------------------------------------
# Forward pass (ResidualBlock.forward semantics, inference BN)
# ---------------------------------------------------------------------------
def residual_block_forward(x_nchw, params, stride=1):
    x = jnp.transpose(x_nchw, (0, 2, 3, 1))                  # -> NHWC
    N, H, W, Cin = x.shape
    Cout = params["w1"].shape[-1]
    Cp = _round_up(Cout, LANE)                               # lane-dense / MXU-native N

    xb = x.astype(jnp.bfloat16)

    s1, b1 = _fold_bn(params["bn1"], Cp)
    s2, b2 = _fold_bn(params["bn2"], Cp)
    w1 = _pad_last(params["w1"], Cp).reshape(9, Cin, Cp).astype(jnp.bfloat16)
    w2 = jnp.pad(params["w2"], ((0, 0), (0, 0), (0, Cp - Cout), (0, Cp - Cout)))
    w2 = w2.reshape(9, Cp, Cp).astype(jnp.bfloat16)

    identity_res = (stride == 1) and (Cin == Cout)
    if identity_res:
        # Identity residual expressed as a 1x1 matmul with an (exact) eye matrix so
        # the add is fused on the same padded, lane-dense path.
        wr = jnp.eye(Cin, Cp, dtype=jnp.float32).astype(jnp.bfloat16)
        sr = _pad_last(jnp.ones((1, Cout), jnp.float32), Cp)
        br = jnp.zeros((1, Cp), jnp.float32)
    else:
        wr = _pad_last(params["w_res"].reshape(Cin, Cout), Cp).astype(jnp.bfloat16)
        sr, br = _fold_bn(params["bn_res"], Cp)

    H1 = (H + 2 - 3) // stride + 1
    W1 = (W + 2 - 3) // stride + 1

    if stride == 1:
        inputs = [(xb, True), (w1, False), (s1, False), (b1, False),
                  (w2, False), (s2, False), (b2, False),
                  (wr, False), (sr, False), (br, False)]
        scratch = [((H + 2, W + 2 * _COL0, Cin), jnp.float32),
                   ((H + 2, W + 2 * _COL0, Cp), jnp.float32)]
        out = _pallas_conv_call(_fused_block_kernel, inputs, (N, H, W, Cp),
                                jnp.bfloat16, scratch)
    else:
        # Strided conv == stride-1 conv sampled at (s*h, s*w): run conv1 at stride 1
        # in one kernel, decimate in XLA, then fuse conv2 + projection residual.
        inputs1 = [(xb, True), (w1, False), (s1, False), (b1, False)]
        scratch1 = [((H + 2, W + 2 * _COL0, Cin), jnp.float32)]
        out1_full = _pallas_conv_call(_conv1_kernel, inputs1, (N, H, W, Cp),
                                      jnp.bfloat16, scratch1)
        out1 = out1_full[:, ::stride, ::stride, :]
        xres = xb[:, ::stride, ::stride, :]
        inputs2 = [(out1, True), (xres, True), (w2, False), (s2, False), (b2, False),
                   (wr, False), (sr, False), (br, False)]
        scratch2 = [((H1 + 2, W1 + 2 * _COL0, Cp), jnp.float32)]
        out = _pallas_conv_call(_conv2_res_kernel, inputs2, (N, H1, W1, Cp),
                                jnp.bfloat16, scratch2)

    out = out[..., :Cout].astype(jnp.float32)                # drop padded channels
    return jnp.transpose(out, (0, 3, 1, 2))                  # -> NCHW


# ---------------------------------------------------------------------------
# Pure-JAX reference (mirrors the bf16-operand / f32-accumulate numerics)
# ---------------------------------------------------------------------------
def reference_forward(x_nchw, params, stride=1):
    x = jnp.transpose(x_nchw, (0, 2, 3, 1)).astype(jnp.float32)

    def conv(inp, w, s, pad):
        return lax.conv_general_dilated(
            inp.astype(jnp.bfloat16), w.astype(jnp.bfloat16), (s, s),
            [(pad, pad), (pad, pad)],
            dimension_numbers=("NHWC", "HWIO", "NHWC"),
            preferred_element_type=jnp.float32,
        )

    def bn(inp, p):
        scale = p["gamma"] / jnp.sqrt(p["var"] + BN_EPS)
        return inp * scale + (p["beta"] - p["mean"] * scale)

    out1 = jnp.maximum(bn(conv(x, params["w1"], stride, 1), params["bn1"]), 0.0)
    out1 = out1.astype(jnp.bfloat16).astype(jnp.float32)      # kernel holds out1 in bf16
    out = bn(conv(out1, params["w2"], 1, 1), params["bn2"])
    residual = x
    if out.shape != residual.shape:
        residual = bn(conv(residual, params["w_res"], stride, 0), params["bn_res"])
    out = jnp.maximum(out + residual, 0.0)
    out = out.astype(jnp.bfloat16).astype(jnp.float32)        # kernel stores out in bf16
    return jnp.transpose(out, (0, 3, 1, 2))


# ---------------------------------------------------------------------------
if __name__ == "__main__":
    def fresh_bn(key, c):
        kg, kb, km, kv = jax.random.split(key, 4)
        return dict(
            gamma=1.0 + 0.1 * jax.random.normal(kg, (c,), jnp.float32),
            beta=0.1 * jax.random.normal(kb, (c,), jnp.float32),
            mean=0.1 * jax.random.normal(km, (c,), jnp.float32),
            var=1.0 + 0.1 * jnp.abs(jax.random.normal(kv, (c,), jnp.float32)),
        )

    def make_params(key, cin, cout):
        k1, k2, kr, kb1, kb2, kbr = jax.random.split(key, 6)
        return {
            "w1": 0.2 * jax.random.normal(k1, (3, 3, cin, cout), jnp.float32),
            "w2": 0.2 * jax.random.normal(k2, (3, 3, cout, cout), jnp.float32),
            "w_res": 0.2 * jax.random.normal(kr, (1, 1, cin, cout), jnp.float32),
            "bn1": fresh_bn(kb1, cout),
            "bn2": fresh_bn(kb2, cout),
            "bn_res": fresh_bn(kbr, cout),
        }

    fwd = jax.jit(residual_block_forward, static_argnames=("stride",))

    #         (name,                           N, Cin, Cout, H,  W, stride)
    cases = [("projection residual, stride=1", 8, 4, 8, 16, 16, 1),
             ("identity residual,   stride=1", 8, 8, 8, 16, 16, 1),
             ("projection residual, stride=2", 8, 4, 8, 16, 16, 2)]

    key = jax.random.PRNGKey(0)
    for name, n, cin, cout, h, w, s in cases:
        key, kp, kx = jax.random.split(key, 3)
        params = make_params(kp, cin, cout)
        x = jax.random.normal(kx, (n, cin, h, w), jnp.float32)

        out = jax.block_until_ready(fwd(x, params, stride=s))

        h1 = (h + 2 - 3) // s + 1
        w1 = (w + 2 - 3) // s + 1
        assert out.shape == (n, cout, h1, w1), (name, out.shape)

        ref = reference_forward(x, params, stride=s)
        if not jnp.allclose(out, ref, atol=3e-2, rtol=3e-2):
            err = float(jnp.max(jnp.abs(out - ref)))
            raise AssertionError(f"{name}: mismatch vs reference (max abs err {err})")

    print("KERNEL_OK")
</pallas_src>

<mosaic_0001>
module attributes {stable_mosaic.version = 11 : i64} {
  func.func @_fused_block_kernel(%arg0: i32, %arg1: memref<1x16x16x4xbf16, #tpu.memory_space<vmem>>, %arg2: memref<9x4x128xbf16, #tpu.memory_space<vmem>>, %arg3: memref<1x128xf32, #tpu.memory_space<vmem>>, %arg4: memref<1x128xf32, #tpu.memory_space<vmem>>, %arg5: memref<9x128x128xbf16, #tpu.memory_space<vmem>>, %arg6: memref<1x128xf32, #tpu.memory_space<vmem>>, %arg7: memref<1x128xf32, #tpu.memory_space<vmem>>, %arg8: memref<4x128xbf16, #tpu.memory_space<vmem>>, %arg9: memref<1x128xf32, #tpu.memory_space<vmem>>, %arg10: memref<1x128xf32, #tpu.memory_space<vmem>>, %arg11: memref<1x16x16x128xbf16, #tpu.memory_space<vmem>>, %arg12: memref<18x32x4xf32, #tpu.memory_space<vmem>>, %arg13: memref<18x32x128xf32, #tpu.memory_space<vmem>>) attributes {dimension_semantics = [#tpu.dimension_semantics<parallel>], iteration_bounds = array<i64: 8>, scalar_prefetch = 0 : i64, scratch_operands = 2 : i64, tpu.core_type = #tpu.core_type<tc>, window_params = [{transform_indices = @transform_0, window_bounds = array<i64: 1, 16, 16, 4>}, {pipeline_mode = #tpu.pipeline_mode<synchronous>, transform_indices = @transform_1, window_bounds = array<i64: 9, 4, 128>}, {pipeline_mode = #tpu.pipeline_mode<synchronous>, transform_indices = @transform_2, window_bounds = array<i64: 1, 128>}, {pipeline_mode = #tpu.pipeline_mode<synchronous>, transform_indices = @transform_3, window_bounds = array<i64: 1, 128>}, {pipeline_mode = #tpu.pipeline_mode<synchronous>, transform_indices = @transform_4, window_bounds = array<i64: 9, 128, 128>}, {pipeline_mode = #tpu.pipeline_mode<synchronous>, transform_indices = @transform_5, window_bounds = array<i64: 1, 128>}, {pipeline_mode = #tpu.pipeline_mode<synchronous>, transform_indices = @transform_6, window_bounds = array<i64: 1, 128>}, {pipeline_mode = #tpu.pipeline_mode<synchronous>, transform_indices = @transform_7, window_bounds = array<i64: 4, 128>}, {pipeline_mode = #tpu.pipeline_mode<synchronous>, transform_indices = @transform_8, window_bounds = array<i64: 1, 128>}, {pipeline_mode = #tpu.pipeline_mode<synchronous>, transform_indices = @transform_9, window_bounds = array<i64: 1, 128>}, {transform_indices = @transform_10, window_bounds = array<i64: 1, 16, 16, 128>}]} {
    %c0 = arith.constant 0 : index
    %c0_0 = arith.constant 0 : index
    %c0_1 = arith.constant 0 : index
    %c0_2 = arith.constant 0 : index
    %0 = vector.load %arg1[%c0, %c0_0, %c0_1, %c0_2] : memref<1x16x16x4xbf16, #tpu.memory_space<vmem>>, vector<1x16x16x4xbf16>
    %1 = vector.shape_cast %0 : vector<1x16x16x4xbf16> to vector<16x16x4xbf16>
    %cst = arith.constant 0.000000e+00 : f32
    %2 = vector.broadcast %cst : f32 to vector<18x32x4xf32>
    %c0_3 = arith.constant 0 : index
    %c0_4 = arith.constant 0 : index
    %c0_5 = arith.constant 0 : index
    %3 = vector.load %arg12[%c0_3, %c0_4, %c0_5] : memref<18x32x4xf32, #tpu.memory_space<vmem>>, vector<18x32x4xf32>
    tpu.vector_store %arg12[%c0_3, %c0_4, %c0_5], %2 {strides = array<i32>} : memref<18x32x4xf32, #tpu.memory_space<vmem>>, vector<18x32x4xf32>,
    %4 = arith.extf %1 : vector<16x16x4xbf16> to vector<16x16x4xf32>
    %c1 = arith.constant 1 : index
    %c8 = arith.constant 8 : index
    %c0_6 = arith.constant 0 : index
    %5 = vector.load %arg12[%c1, %c8, %c0_6] : memref<18x32x4xf32, #tpu.memory_space<vmem>>, vector<16x16x4xf32>
    tpu.vector_store %arg12[%c1, %c8, %c0_6], %4 {strides = array<i32>} : memref<18x32x4xf32, #tpu.memory_space<vmem>>, vector<16x16x4xf32>,
    %cst_7 = arith.constant 0.000000e+00 : f32
    %6 = vector.broadcast %cst_7 : f32 to vector<256x128xf32>
    %c0_8 = arith.constant 0 : index
    %c7 = arith.constant 7 : index
    %c0_9 = arith.constant 0 : index
    %7 = vector.load %arg12[%c0_8, %c7, %c0_9] : memref<18x32x4xf32, #tpu.memory_space<vmem>>, vector<16x16x4xf32>
    %8 = vector.shape_cast %7 : vector<16x16x4xf32> to vector<256x4xf32>
    %9 = arith.truncf %8 : vector<256x4xf32> to vector<256x4xbf16>
    %c0_10 = arith.constant 0 : index
    %c0_11 = arith.constant 0 : index
    %c0_12 = arith.constant 0 : index
    %10 = vector.load %arg2[%c0_10, %c0_11, %c0_12] : memref<9x4x128xbf16, #tpu.memory_space<vmem>>, vector<1x4x128xbf16>
    %11 = vector.shape_cast %10 : vector<1x4x128xbf16> to vector<4x128xbf16>
    %cst_13 = arith.constant dense<0.000000e+00> : vector<256x128xf32>
    %12 = tpu.matmul %9, %11, %cst_13 {dimension_numbers = #tpu.dot_dimension_numbers<[1], [0], [0], [1], [0, 0, 1, 1], [], []>} : vector<256x4xbf16>, vector<4x128xbf16>, vector<256x128xf32> -> vector<256x128xf32>
    %13 = arith.addf %6, %12 : vector<256x128xf32>
    %c0_14 = arith.constant 0 : index
    %c8_15 = arith.constant 8 : index
    %c0_16 = arith.constant 0 : index
    %14 = vector.load %arg12[%c0_14, %c8_15, %c0_16] : memref<18x32x4xf32, #tpu.memory_space<vmem>>, vector<16x16x4xf32>
    %15 = vector.shape_cast %14 : vector<16x16x4xf32> to vector<256x4xf32>
    %16 = arith.truncf %15 : vector<256x4xf32> to vector<256x4xbf16>
    %c1_17 = arith.constant 1 : index
    %c0_18 = arith.constant 0 : index
    %c0_19 = arith.constant 0 : index
    %17 = vector.load %arg2[%c1_17, %c0_18, %c0_19] : memref<9x4x128xbf16, #tpu.memory_space<vmem>>, vector<1x4x128xbf16>
    %18 = vector.shape_cast %17 : vector<1x4x128xbf16> to vector<4x128xbf16>
    %cst_20 = arith.constant dense<0.000000e+00> : vector<256x128xf32>
    %19 = tpu.matmul %16, %18, %cst_20 {dimension_numbers = #tpu.dot_dimension_numbers<[1], [0], [0], [1], [0, 0, 1, 1], [], []>} : vector<256x4xbf16>, vector<4x128xbf16>, vector<256x128xf32> -> vector<256x128xf32>
    %20 = arith.addf %13, %19 : vector<256x128xf32>
    %c0_21 = arith.constant 0 : index
    %c9 = arith.constant 9 : index
    %c0_22 = arith.constant 0 : index
    %21 = vector.load %arg12[%c0_21, %c9, %c0_22] : memref<18x32x4xf32, #tpu.memory_space<vmem>>, vector<16x16x4xf32>
    %22 = vector.shape_cast %21 : vector<16x16x4xf32> to vector<256x4xf32>
    %23 = arith.truncf %22 : vector<256x4xf32> to vector<256x4xbf16>
    %c2 = arith.constant 2 : index
    %c0_23 = arith.constant 0 : index
    %c0_24 = arith.constant 0 : index
    %24 = vector.load %arg2[%c2, %c0_23, %c0_24] : memref<9x4x128xbf16, #tpu.memory_space<vmem>>, vector<1x4x128xbf16>
    %25 = vector.shape_cast %24 : vector<1x4x128xbf16> to vector<4x128xbf16>
    %cst_25 = arith.constant dense<0.000000e+00> : vector<256x128xf32>
    %26 = tpu.matmul %23, %25, %cst_25 {dimension_numbers = #tpu.dot_dimension_numbers<[1], [0], [0], [1], [0, 0, 1, 1], [], []>} : vector<256x4xbf16>, vector<4x128xbf16>, vector<256x128xf32> -> vector<256x128xf32>
    %27 = arith.addf %20, %26 : vector<256x128xf32>
    %c1_26 = arith.constant 1 : index
    %c7_27 = arith.constant 7 : index
    %c0_28 = arith.constant 0 : index
    %28 = vector.load %arg12[%c1_26, %c7_27, %c0_28] : memref<18x32x4xf32, #tpu.memory_space<vmem>>, vector<16x16x4xf32>
    %29 = vector.shape_cast %28 : vector<16x16x4xf32> to vector<256x4xf32>
    %30 = arith.truncf %29 : vector<256x4xf32> to vector<256x4xbf16>
    %c3 = arith.constant 3 : index
    %c0_29 = arith.constant 0 : index
    %c0_30 = arith.constant 0 : index
    %31 = vector.load %arg2[%c3, %c0_29, %c0_30] : memref<9x4x128xbf16, #tpu.memory_space<vmem>>, vector<1x4x128xbf16>
    %32 = vector.shape_cast %31 : vector<1x4x128xbf16> to vector<4x128xbf16>
    %cst_31 = arith.constant dense<0.000000e+00> : vector<256x128xf32>
    %33 = tpu.matmul %30, %32, %cst_31 {dimension_numbers = #tpu.dot_dimension_numbers<[1], [0], [0], [1], [0, 0, 1, 1], [], []>} : vector<256x4xbf16>, vector<4x128xbf16>, vector<256x128xf32> -> vector<256x128xf32>
    %34 = arith.addf %27, %33 : vector<256x128xf32>
    %c1_32 = arith.constant 1 : index
    %c8_33 = arith.constant 8 : index
    %c0_34 = arith.constant 0 : index
    %35 = vector.load %arg12[%c1_32, %c8_33, %c0_34] : memref<18x32x4xf32, #tpu.memory_space<vmem>>, vector<16x16x4xf32>
    %36 = vector.shape_cast %35 : vector<16x16x4xf32> to vector<256x4xf32>
    %37 = arith.truncf %36 : vector<256x4xf32> to vector<256x4xbf16>
    %c4 = arith.constant 4 : index
    %c0_35 = arith.constant 0 : index
    %c0_36 = arith.constant 0 : index
    %38 = vector.load %arg2[%c4, %c0_35, %c0_36] : memref<9x4x128xbf16, #tpu.memory_space<vmem>>, vector<1x4x128xbf16>
    %39 = vector.shape_cast %38 : vector<1x4x128xbf16> to vector<4x128xbf16>
    %cst_37 = arith.constant dense<0.000000e+00> : vector<256x128xf32>
    %40 = tpu.matmul %37, %39, %cst_37 {dimension_numbers = #tpu.dot_dimension_numbers<[1], [0], [0], [1], [0, 0, 1, 1], [], []>} : vector<256x4xbf16>, vector<4x128xbf16>, vector<256x128xf32> -> vector<256x128xf32>
    %41 = arith.addf %34, %40 : vector<256x128xf32>
    %c1_38 = arith.constant 1 : index
    %c9_39 = arith.constant 9 : index
    %c0_40 = arith.constant 0 : index
    %42 = vector.load %arg12[%c1_38, %c9_39, %c0_40] : memref<18x32x4xf32, #tpu.memory_space<vmem>>, vector<16x16x4xf32>
    %43 = vector.shape_cast %42 : vector<16x16x4xf32> to vector<256x4xf32>
    %44 = arith.truncf %43 : vector<256x4xf32> to vector<256x4xbf16>
    %c5 = arith.constant 5 : index
    %c0_41 = arith.constant 0 : index
    %c0_42 = arith.constant 0 : index
    %45 = vector.load %arg2[%c5, %c0_41, %c0_42] : memref<9x4x128xbf16, #tpu.memory_space<vmem>>, vector<1x4x128xbf16>
    %46 = vector.shape_cast %45 : vector<1x4x128xbf16> to vector<4x128xbf16>
    %cst_43 = arith.constant dense<0.000000e+00> : vector<256x128xf32>
    %47 = tpu.matmul %44, %46, %cst_43 {dimension_numbers = #tpu.dot_dimension_numbers<[1], [0], [0], [1], [0, 0, 1, 1], [], []>} : vector<256x4xbf16>, vector<4x128xbf16>, vector<256x128xf32> -> vector<256x128xf32>
    %48 = arith.addf %41, %47 : vector<256x128xf32>
    %c2_44 = arith.constant 2 : index
    %c7_45 = arith.constant 7 : index
    %c0_46 = arith.constant 0 : index
    %49 = vector.load %arg12[%c2_44, %c7_45, %c0_46] : memref<18x32x4xf32, #tpu.memory_space<vmem>>, vector<16x16x4xf32>
    %50 = vector.shape_cast %49 : vector<16x16x4xf32> to vector<256x4xf32>
    %51 = arith.truncf %50 : vector<256x4xf32> to vector<256x4xbf16>
    %c6 = arith.constant 6 : index
    %c0_47 = arith.constant 0 : index
    %c0_48 = arith.constant 0 : index
    %52 = vector.load %arg2[%c6, %c0_47, %c0_48] : memref<9x4x128xbf16, #tpu.memory_space<vmem>>, vector<1x4x128xbf16>
    %53 = vector.shape_cast %52 : vector<1x4x128xbf16> to vector<4x128xbf16>
    %cst_49 = arith.constant dense<0.000000e+00> : vector<256x128xf32>
    %54 = tpu.matmul %51, %53, %cst_49 {dimension_numbers = #tpu.dot_dimension_numbers<[1], [0], [0], [1], [0, 0, 1, 1], [], []>} : vector<256x4xbf16>, vector<4x128xbf16>, vector<256x128xf32> -> vector<256x128xf32>
    %55 = arith.addf %48, %54 : vector<256x128xf32>
    %c2_50 = arith.constant 2 : index
    %c8_51 = arith.constant 8 : index
    %c0_52 = arith.constant 0 : index
    %56 = vector.load %arg12[%c2_50, %c8_51, %c0_52] : memref<18x32x4xf32, #tpu.memory_space<vmem>>, vector<16x16x4xf32>
    %57 = vector.shape_cast %56 : vector<16x16x4xf32> to vector<256x4xf32>
    %58 = arith.truncf %57 : vector<256x4xf32> to vector<256x4xbf16>
    %c7_53 = arith.constant 7 : index
    %c0_54 = arith.constant 0 : index
    %c0_55 = arith.constant 0 : index
    %59 = vector.load %arg2[%c7_53, %c0_54, %c0_55] : memref<9x4x128xbf16, #tpu.memory_space<vmem>>, vector<1x4x128xbf16>
    %60 = vector.shape_cast %59 : vector<1x4x128xbf16> to vector<4x128xbf16>
    %cst_56 = arith.constant dense<0.000000e+00> : vector<256x128xf32>
    %61 = tpu.matmul %58, %60, %cst_56 {dimension_numbers = #tpu.dot_dimension_numbers<[1], [0], [0], [1], [0, 0, 1, 1], [], []>} : vector<256x4xbf16>, vector<4x128xbf16>, vector<256x128xf32> -> vector<256x128xf32>
    %62 = arith.addf %55, %61 : vector<256x128xf32>
    %c2_57 = arith.constant 2 : index
    %c9_58 = arith.constant 9 : index
    %c0_59 = arith.constant 0 : index
    %63 = vector.load %arg12[%c2_57, %c9_58, %c0_59] : memref<18x32x4xf32, #tpu.memory_space<vmem>>, vector<16x16x4xf32>
    %64 = vector.shape_cast %63 : vector<16x16x4xf32> to vector<256x4xf32>
    %65 = arith.truncf %64 : vector<256x4xf32> to vector<256x4xbf16>
    %c8_60 = arith.constant 8 : index
    %c0_61 = arith.constant 0 : index
    %c0_62 = arith.constant 0 : index
    %66 = vector.load %arg2[%c8_60, %c0_61, %c0_62] : memref<9x4x128xbf16, #tpu.memory_space<vmem>>, vector<1x4x128xbf16>
    %67 = vector.shape_cast %66 : vector<1x4x128xbf16> to vector<4x128xbf16>
    %cst_63 = arith.constant dense<0.000000e+00> : vector<256x128xf32>
    %68 = tpu.matmul %65, %67, %cst_63 {dimension_numbers = #tpu.dot_dimension_numbers<[1], [0], [0], [1], [0, 0, 1, 1], [], []>} : vector<256x4xbf16>, vector<4x128xbf16>, vector<256x128xf32> -> vector<256x128xf32>
    %69 = arith.addf %62, %68 : vector<256x128xf32>
    %c0_64 = arith.constant 0 : index
    %c0_65 = arith.constant 0 : index
    %70 = vector.load %arg3[%c0_64, %c0_65] : memref<1x128xf32, #tpu.memory_space<vmem>>, vector<1x128xf32>
    %71 = vector.broadcast %70 : vector<1x128xf32> to vector<256x128xf32>
    %72 = arith.mulf %69, %71 : vector<256x128xf32>
    %c0_66 = arith.constant 0 : index
    %c0_67 = arith.constant 0 : index
    %73 = vector.load %arg4[%c0_66, %c0_67] : memref<1x128xf32, #tpu.memory_space<vmem>>, vector<1x128xf32>
    %74 = vector.broadcast %73 : vector<1x128xf32> to vector<256x128xf32>
    %75 = arith.addf %72, %74 : vector<256x128xf32>
    %cst_68 = arith.constant 0.000000e+00 : f32
    %76 = vector.broadcast %cst_68 : f32 to vector<256x128xf32>
    %77 = arith.maximumf %75, %76 : vector<256x128xf32>
    %78 = vector.shape_cast %77 : vector<256x128xf32> to vector<16x16x128xf32>
    %cst_69 = arith.constant 0.000000e+00 : f32
    %79 = vector.broadcast %cst_69 : f32 to vector<18x32x128xf32>
    %c0_70 = arith.constant 0 : index
    %c0_71 = arith.constant 0 : index
    %c0_72 = arith.constant 0 : index
    %80 = vector.load %arg13[%c0_70, %c0_71, %c0_72] : memref<18x32x128xf32, #tpu.memory_space<vmem>>, vector<18x32x128xf32>
    tpu.vector_store %arg13[%c0_70, %c0_71, %c0_72], %79 {strides = array<i32>} : memref<18x32x128xf32, #tpu.memory_space<vmem>>, vector<18x32x128xf32>,
    %c1_73 = arith.constant 1 : index
    %c8_74 = arith.constant 8 : index
    %c0_75 = arith.constant 0 : index
    %81 = vector.load %arg13[%c1_73, %c8_74, %c0_75] : memref<18x32x128xf32, #tpu.memory_space<vmem>>, vector<16x16x128xf32>
    tpu.vector_store %arg13[%c1_73, %c8_74, %c0_75], %78 {strides = array<i32>} : memref<18x32x128xf32, #tpu.memory_space<vmem>>, vector<16x16x128xf32>,
    %cst_76 = arith.constant 0.000000e+00 : f32
    %82 = vector.broadcast %cst_76 : f32 to vector<256x128xf32>
    %c0_77 = arith.constant 0 : index
    %c7_78 = arith.constant 7 : index
    %c0_79 = arith.constant 0 : index
    %83 = vector.load %arg13[%c0_77, %c7_78, %c0_79] : memref<18x32x128xf32, #tpu.memory_space<vmem>>, vector<16x16x128xf32>
    %84 = vector.shape_cast %83 : vector<16x16x128xf32> to vector<256x128xf32>
    %85 = arith.truncf %84 : vector<256x128xf32> to vector<256x128xbf16>
    %c0_80 = arith.constant 0 : index
    %c0_81 = arith.constant 0 : index
    %c0_82 = arith.constant 0 : index
    %86 = vector.load %arg5[%c0_80, %c0_81, %c0_82] : memref<9x128x128xbf16, #tpu.memory_space<vmem>>, vector<1x128x128xbf16>
    %87 = vector.shape_cast %86 : vector<1x128x128xbf16> to vector<128x128xbf16>
    %cst_83 = arith.constant dense<0.000000e+00> : vector<256x128xf32>
    %88 = tpu.matmul %85, %87, %cst_83 {dimension_numbers = #tpu.dot_dimension_numbers<[1], [0], [0], [1], [0, 0, 1, 1], [], []>} : vector<256x128xbf16>, vector<128x128xbf16>, vector<256x128xf32> -> vector<256x128xf32>
    %89 = arith.addf %82, %88 : vector<256x128xf32>
    %c0_84 = arith.constant 0 : index
    %c8_85 = arith.constant 8 : index
    %c0_86 = arith.constant 0 : index
    %90 = vector.load %arg13[%c0_84, %c8_85, %c0_86] : memref<18x32x128xf32, #tpu.memory_space<vmem>>, vector<16x16x128xf32>
    %91 = vector.shape_cast %90 : vector<16x16x128xf32> to vector<256x128xf32>
    %92 = arith.truncf %91 : vector<256x128xf32> to vector<256x128xbf16>
    %c1_87 = arith.constant 1 : index
    %c0_88 = arith.constant 0 : index
    %c0_89 = arith.constant 0 : index
    %93 = vector.load %arg5[%c1_87, %c0_88, %c0_89] : memref<9x128x128xbf16, #tpu.memory_space<vmem>>, vector<1x128x128xbf16>
    %94 = vector.shape_cast %93 : vector<1x128x128xbf16> to vector<128x128xbf16>
    %cst_90 = arith.constant dense<0.000000e+00> : vector<256x128xf32>
    %95 = tpu.matmul %92, %94, %cst_90 {dimension_numbers = #tpu.dot_dimension_numbers<[1], [0], [0], [1], [0, 0, 1, 1], [], []>} : vector<256x128xbf16>, vector<128x128xbf16>, vector<256x128xf32> -> vector<256x128xf32>
    %96 = arith.addf %89, %95 : vector<256x128xf32>
    %c0_91 = arith.constant 0 : index
    %c9_92 = arith.constant 9 : index
    %c0_93 = arith.constant 0 : index
    %97 = vector.load %arg13[%c0_91, %c9_92, %c0_93] : memref<18x32x128xf32, #tpu.memory_space<vmem>>, vector<16x16x128xf32>
    %98 = vector.shape_cast %97 : vector<16x16x128xf32> to vector<256x128xf32>
    %99 = arith.truncf %98 : vector<256x128xf32> to vector<256x128xbf16>
    %c2_94 = arith.constant 2 : index
    %c0_95 = arith.constant 0 : index
    %c0_96 = arith.constant 0 : index
    %100 = vector.load %arg5[%c2_94, %c0_95, %c0_96] : memref<9x128x128xbf16, #tpu.memory_space<vmem>>, vector<1x128x128xbf16>
    %101 = vector.shape_cast %100 : vector<1x128x128xbf16> to vector<128x128xbf16>
    %cst_97 = arith.constant dense<0.000000e+00> : vector<256x128xf32>
    %102 = tpu.matmul %99, %101, %cst_97 {dimension_numbers = #tpu.dot_dimension_numbers<[1], [0], [0], [1], [0, 0, 1, 1], [], []>} : vector<256x128xbf16>, vector<128x128xbf16>, vector<256x128xf32> -> vector<256x128xf32>
    %103 = arith.addf %96, %102 : vector<256x128xf32>
    %c1_98 = arith.constant 1 : index
    %c7_99 = arith.constant 7 : index
    %c0_100 = arith.constant 0 : index
    %104 = vector.load %arg13[%c1_98, %c7_99, %c0_100] : memref<18x32x128xf32, #tpu.memory_space<vmem>>, vector<16x16x128xf32>
    %105 = vector.shape_cast %104 : vector<16x16x128xf32> to vector<256x128xf32>
    %106 = arith.truncf %105 : vector<256x128xf32> to vector<256x128xbf16>
    %c3_101 = arith.constant 3 : index
    %c0_102 = arith.constant 0 : index
    %c0_103 = arith.constant 0 : index
    %107 = vector.load %arg5[%c3_101, %c0_102, %c0_103] : memref<9x128x128xbf16, #tpu.memory_space<vmem>>, vector<1x128x128xbf16>
    %108 = vector.shape_cast %107 : vector<1x128x128xbf16> to vector<128x128xbf16>
    %cst_104 = arith.constant dense<0.000000e+00> : vector<256x128xf32>
    %109 = tpu.matmul %106, %108, %cst_104 {dimension_numbers = #tpu.dot_dimension_numbers<[1], [0], [0], [1], [0, 0, 1, 1], [], []>} : vector<256x128xbf16>, vector<128x128xbf16>, vector<256x128xf32> -> vector<256x128xf32>
    %110 = arith.addf %103, %109 : vector<256x128xf32>
    %c1_105 = arith.constant 1 : index
    %c8_106 = arith.constant 8 : index
    %c0_107 = arith.constant 0 : index
    %111 = vector.load %arg13[%c1_105, %c8_106, %c0_107] : memref<18x32x128xf32, #tpu.memory_space<vmem>>, vector<16x16x128xf32>
    %112 = vector.shape_cast %111 : vector<16x16x128xf32> to vector<256x128xf32>
    %113 = arith.truncf %112 : vector<256x128xf32> to vector<256x128xbf16>
    %c4_108 = arith.constant 4 : index
    %c0_109 = arith.constant 0 : index
    %c0_110 = arith.constant 0 : index
    %114 = vector.load %arg5[%c4_108, %c0_109, %c0_110] : memref<9x128x128xbf16, #tpu.memory_space<vmem>>, vector<1x128x128xbf16>
    %115 = vector.shape_cast %114 : vector<1x128x128xbf16> to vector<128x128xbf16>
    %cst_111 = arith.constant dense<0.000000e+00> : vector<256x128xf32>
    %116 = tpu.matmul %113, %115, %cst_111 {dimension_numbers = #tpu.dot_dimension_numbers<[1], [0], [0], [1], [0, 0, 1, 1], [], []>} : vector<256x128xbf16>, vector<128x128xbf16>, vector<256x128xf32> -> vector<256x128xf32>
    %117 = arith.addf %110, %116 : vector<256x128xf32>
    %c1_112 = arith.constant 1 : index
    %c9_113 = arith.constant 9 : index
    %c0_114 = arith.constant 0 : index
    %118 = vector.load %arg13[%c1_112, %c9_113, %c0_114] : memref<18x32x128xf32, #tpu.memory_space<vmem>>, vector<16x16x128xf32>
    %119 = vector.shape_cast %118 : vector<16x16x128xf32> to vector<256x128xf32>
    %120 = arith.truncf %119 : vector<256x128xf32> to vector<256x128xbf16>
    %c5_115 = arith.constant 5 : index
    %c0_116 = arith.constant 0 : index
    %c0_117 = arith.constant 0 : index
    %121 = vector.load %arg5[%c5_115, %c0_116, %c0_117] : memref<9x128x128xbf16, #tpu.memory_space<vmem>>, vector<1x128x128xbf16>
    %122 = vector.shape_cast %121 : vector<1x128x128xbf16> to vector<128x128xbf16>
    %cst_118 = arith.constant dense<0.000000e+00> : vector<256x128xf32>
    %123 = tpu.matmul %120, %122, %cst_118 {dimension_numbers = #tpu.dot_dimension_numbers<[1], [0], [0], [1], [0, 0, 1, 1], [], []>} : vector<256x128xbf16>, vector<128x128xbf16>, vector<256x128xf32> -> vector<256x128xf32>
    %124 = arith.addf %117, %123 : vector<256x128xf32>
    %c2_119 = arith.constant 2 : index
    %c7_120 = arith.constant 7 : index
    %c0_121 = arith.constant 0 : index
    %125 = vector.load %arg13[%c2_119, %c7_120, %c0_121] : memref<18x32x128xf32, #tpu.memory_space<vmem>>, vector<16x16x128xf32>
    %126 = vector.shape_cast %125 : vector<16x16x128xf32> to vector<256x128xf32>
    %127 = arith.truncf %126 : vector<256x128xf32> to vector<256x128xbf16>
    %c6_122 = arith.constant 6 : index
    %c0_123 = arith.constant 0 : index
    %c0_124 = arith.constant 0 : index
    %128 = vector.load %arg5[%c6_122, %c0_123, %c0_124] : memref<9x128x128xbf16, #tpu.memory_space<vmem>>, vector<1x128x128xbf16>
    %129 = vector.shape_cast %128 : vector<1x128x128xbf16> to vector<128x128xbf16>
    %cst_125 = arith.constant dense<0.000000e+00> : vector<256x128xf32>
    %130 = tpu.matmul %127, %129, %cst_125 {dimension_numbers = #tpu.dot_dimension_numbers<[1], [0], [0], [1], [0, 0, 1, 1], [], []>} : vector<256x128xbf16>, vector<128x128xbf16>, vector<256x128xf32> -> vector<256x128xf32>
    %131 = arith.addf %124, %130 : vector<256x128xf32>
    %c2_126 = arith.constant 2 : index
    %c8_127 = arith.constant 8 : index
    %c0_128 = arith.constant 0 : index
    %132 = vector.load %arg13[%c2_126, %c8_127, %c0_128] : memref<18x32x128xf32, #tpu.memory_space<vmem>>, vector<16x16x128xf32>
    %133 = vector.shape_cast %132 : vector<16x16x128xf32> to vector<256x128xf32>
    %134 = arith.truncf %133 : vector<256x128xf32> to vector<256x128xbf16>
    %c7_129 = arith.constant 7 : index
    %c0_130 = arith.constant 0 : index
    %c0_131 = arith.constant 0 : index
    %135 = vector.load %arg5[%c7_129, %c0_130, %c0_131] : memref<9x128x128xbf16, #tpu.memory_space<vmem>>, vector<1x128x128xbf16>
    %136 = vector.shape_cast %135 : vector<1x128x128xbf16> to vector<128x128xbf16>
    %cst_132 = arith.constant dense<0.000000e+00> : vector<256x128xf32>
    %137 = tpu.matmul %134, %136, %cst_132 {dimension_numbers = #tpu.dot_dimension_numbers<[1], [0], [0], [1], [0, 0, 1, 1], [], []>} : vector<256x128xbf16>, vector<128x128xbf16>, vector<256x128xf32> -> vector<256x128xf32>
    %138 = arith.addf %131, %137 : vector<256x128xf32>
    %c2_133 = arith.constant 2 : index
    %c9_134 = arith.constant 9 : index
    %c0_135 = arith.constant 0 : index
    %139 = vector.load %arg13[%c2_133, %c9_134, %c0_135] : memref<18x32x128xf32, #tpu.memory_space<vmem>>, vector<16x16x128xf32>
    %140 = vector.shape_cast %139 : vector<16x16x128xf32> to vector<256x128xf32>
    %141 = arith.truncf %140 : vector<256x128xf32> to vector<256x128xbf16>
    %c8_136 = arith.constant 8 : index
    %c0_137 = arith.constant 0 : index
    %c0_138 = arith.constant 0 : index
    %142 = vector.load %arg5[%c8_136, %c0_137, %c0_138] : memref<9x128x128xbf16, #tpu.memory_space<vmem>>, vector<1x128x128xbf16>
    %143 = vector.shape_cast %142 : vector<1x128x128xbf16> to vector<128x128xbf16>
    %cst_139 = arith.constant dense<0.000000e+00> : vector<256x128xf32>
    %144 = tpu.matmul %141, %143, %cst_139 {dimension_numbers = #tpu.dot_dimension_numbers<[1], [0], [0], [1], [0, 0, 1, 1], [], []>} : vector<256x128xbf16>, vector<128x128xbf16>, vector<256x128xf32> -> vector<256x128xf32>
    %145 = arith.addf %138, %144 : vector<256x128xf32>
    %c0_140 = arith.constant 0 : index
    %c0_141 = arith.constant 0 : index
    %146 = vector.load %arg6[%c0_140, %c0_141] : memref<1x128xf32, #tpu.memory_space<vmem>>, vector<1x128xf32>
    %147 = vector.broadcast %146 : vector<1x128xf32> to vector<256x128xf32>
    %148 = arith.mulf %145, %147 : vector<256x128xf32>
    %c0_142 = arith.constant 0 : index
    %c0_143 = arith.constant 0 : index
    %149 = vector.load %arg7[%c0_142, %c0_143] : memref<1x128xf32, #tpu.memory_space<vmem>>, vector<1x128xf32>
    %150 = vector.broadcast %149 : vector<1x128xf32> to vector<256x128xf32>
    %151 = arith.addf %148, %150 : vector<256x128xf32>
    %152 = vector.shape_cast %1 : vector<16x16x4xbf16> to vector<256x4xbf16>
    %c0_144 = arith.constant 0 : index
    %c0_145 = arith.constant 0 : index
    %153 = vector.load %arg8[%c0_144, %c0_145] : memref<4x128xbf16, #tpu.memory_space<vmem>>, vector<4x128xbf16>
    %cst_146 = arith.constant dense<0.000000e+00> : vector<256x128xf32>
    %154 = tpu.matmul %152, %153, %cst_146 {dimension_numbers = #tpu.dot_dimension_numbers<[1], [0], [0], [1], [0, 0, 1, 1], [], []>} : vector<256x4xbf16>, vector<4x128xbf16>, vector<256x128xf32> -> vector<256x128xf32>
    %c0_147 = arith.constant 0 : index
    %c0_148 = arith.constant 0 : index
    %155 = vector.load %arg9[%c0_147, %c0_148] : memref<1x128xf32, #tpu.memory_space<vmem>>, vector<1x128xf32>
    %156 = vector.broadcast %155 : vector<1x128xf32> to vector<256x128xf32>
    %157 = arith.mulf %154, %156 : vector<256x128xf32>
    %c0_149 = arith.constant 0 : index
    %c0_150 = arith.constant 0 : index
    %158 = vector.load %arg10[%c0_149, %c0_150] : memref<1x128xf32, #tpu.memory_space<vmem>>, vector<1x128xf32>
    %159 = vector.broadcast %158 : vector<1x128xf32> to vector<256x128xf32>
    %160 = arith.addf %157, %159 : vector<256x128xf32>
    %161 = arith.addf %151, %160 : vector<256x128xf32>
    %cst_151 = arith.constant 0.000000e+00 : f32
    %162 = vector.broadcast %cst_151 : f32 to vector<256x128xf32>
    %163 = arith.maximumf %161, %162 : vector<256x128xf32>
    %164 = vector.shape_cast %163 : vector<256x128xf32> to vector<16x16x128xf32>
    %165 = arith.truncf %164 : vector<16x16x128xf32> to vector<16x16x128xbf16>
    %c0_152 = arith.constant 0 : index
    %c0_153 = arith.constant 0 : index
    %c0_154 = arith.constant 0 : index
    %c0_155 = arith.constant 0 : index
    %166 = vector.load %arg11[%c0_152, %c0_153, %c0_154, %c0_155] : memref<1x16x16x128xbf16, #tpu.memory_space<vmem>>, vector<1x16x16x128xbf16>
    %167 = vector.shape_cast %166 : vector<1x16x16x128xbf16> to vector<16x16x128xbf16>
    %168 = vector.shape_cast %165 : vector<16x16x128xbf16> to vector<1x16x16x128xbf16>
    tpu.vector_store %arg11[%c0_152, %c0_153, %c0_154, %c0_155], %168 {strides = array<i32>} : memref<1x16x16x128xbf16, #tpu.memory_space<vmem>>, vector<1x16x16x128xbf16>,
    return
  }
  func.func @transform_0(%arg0: i32) -> (i32, i32, i32, i32) {
    %c0_i32 = arith.constant 0 : i32
    %c0_i32_0 = arith.constant 0 : i32
    %c0_i32_1 = arith.constant 0 : i32
    %c0_i32_2 = arith.constant 0 : i32
    return %arg0, %c0_i32, %c0_i32_0, %c0_i32_1 : i32, i32, i32, i32
  }
  func.func @transform_1(%arg0: i32) -> (i32, i32, i32) {
    %c0_i32 = arith.constant 0 : i32
    %c0_i32_0 = arith.constant 0 : i32
    %c0_i32_1 = arith.constant 0 : i32
    %c0_i32_2 = arith.constant 0 : i32
    return %c0_i32, %c0_i32_0, %c0_i32_1 : i32, i32, i32
  }
  func.func @transform_2(%arg0: i32) -> (i32, i32) {
    %c0_i32 = arith.constant 0 : i32
    %c0_i32_0 = arith.constant 0 : i32
    %c0_i32_1 = arith.constant 0 : i32
    return %c0_i32, %c0_i32_0 : i32, i32
  }
  func.func @transform_3(%arg0: i32) -> (i32, i32) {
    %c0_i32 = arith.constant 0 : i32
    %c0_i32_0 = arith.constant 0 : i32
    %c0_i32_1 = arith.constant 0 : i32
    return %c0_i32, %c0_i32_0 : i32, i32
  }
  func.func @transform_4(%arg0: i32) -> (i32, i32, i32) {
    %c0_i32 = arith.constant 0 : i32
    %c0_i32_0 = arith.constant 0 : i32
    %c0_i32_1 = arith.constant 0 : i32
    %c0_i32_2 = arith.constant 0 : i32
    return %c0_i32, %c0_i32_0, %c0_i32_1 : i32, i32, i32
  }
  func.func @transform_5(%arg0: i32) -> (i32, i32) {
    %c0_i32 = arith.constant 0 : i32
    %c0_i32_0 = arith.constant 0 : i32
    %c0_i32_1 = arith.constant 0 : i32
    return %c0_i32, %c0_i32_0 : i32, i32
  }
  func.func @transform_6(%arg0: i32) -> (i32, i32) {
    %c0_i32 = arith.constant 0 : i32
    %c0_i32_0 = arith.constant 0 : i32
    %c0_i32_1 = arith.constant 0 : i32
    return %c0_i32, %c0_i32_0 : i32, i32
  }
  func.func @transform_7(%arg0: i32) -> (i32, i32) {
    %c0_i32 = arith.constant 0 : i32
    %c0_i32_0 = arith.constant 0 : i32
    %c0_i32_1 = arith.constant 0 : i32
    return %c0_i32, %c0_i32_0 : i32, i32
  }
  func.func @transform_8(%arg0: i32) -> (i32, i32) {
    %c0_i32 = arith.constant 0 : i32
    %c0_i32_0 = arith.constant 0 : i32
    %c0_i32_1 = arith.constant 0 : i32
    return %c0_i32, %c0_i32_0 : i32, i32
  }
  func.func @transform_9(%arg0: i32) -> (i32, i32) {
    %c0_i32 = arith.constant 0 : i32
    %c0_i32_0 = arith.constant 0 : i32
    %c0_i32_1 = arith.constant 0 : i32
    return %c0_i32, %c0_i32_0 : i32, i32
  }
  func.func @transform_10(%arg0: i32) -> (i32, i32, i32, i32) {
    %c0_i32 = arith.constant 0 : i32
    %c0_i32_0 = arith.constant 0 : i32
    %c0_i32_1 = arith.constant 0 : i32
    %c0_i32_2 = arith.constant 0 : i32
    return %arg0, %c0_i32, %c0_i32_0, %c0_i32_1 : i32, i32, i32, i32
  }
}

</mosaic_0001>

<llo_original>
// kernel: residual_block_forward.1
$region0: #{residual_block_forward.1}
  #allocation0 [shape = 'u32[]', space=smem, size = 0x4, offset = 0x4, fixed_abs, tag = 'smem constant byte address 0x4 - core index']
  #allocation1 [shape = 'u32[144,128]{1,0:T(1,128)}', space=vmem, size = 0x12000, scoped, tag = 'internal scratch']
  #allocation2 [shape = 'f32[18,32,4]{2,1,0:T(8,128)}', space=vmem, size = 0x48000, scoped, tag = 'scratch operand']
  #allocation3 [shape = 'f32[18,32,128]{2,1,0:T(8,128)}', space=vmem, size = 0x48000, scoped, tag = 'scratch operand']
  %s0 = inlined_call_operand.vmem [shape: bf16[8,16,16,4], index: 0, kind: input, shape index: {}]
  %s1 = inlined_call_operand.vmem [shape: bf16[9,4,128], index: 1, kind: input, shape index: {}]
  %s2 = inlined_call_operand.vmem [shape: f32[1,128], index: 2, kind: input, shape index: {}]
  %s3 = inlined_call_operand.vmem [shape: f32[1,128], index: 3, kind: input, shape index: {}]
  %s4 = inlined_call_operand.vmem [shape: bf16[9,128,128], index: 4, kind: input, shape index: {}]
  %s5 = inlined_call_operand.vmem [shape: f32[1,128], index: 5, kind: input, shape index: {}]
  %s6 = inlined_call_operand.vmem [shape: f32[1,128], index: 6, kind: input, shape index: {}]
  %s7 = inlined_call_operand.vmem [shape: bf16[4,128], index: 7, kind: input, shape index: {}]
  %s8 = inlined_call_operand.vmem [shape: f32[1,128], index: 8, kind: input, shape index: {}]
  %s9 = inlined_call_operand.vmem [shape: f32[1,128], index: 9, kind: input, shape index: {}]
  %s10 = inlined_call_operand.vmem [shape: bf16[8,16,16,128], index: 10, kind: output, shape index: {}]
  %s11 = sld [smem:[#allocation0]]
  $region73: #{residual_block_forward.1} parent=0
    _
  %s13 = ssub.s32 1, %s11
  %s14 = scalar_select 0, %s13, %s11
  loop: start=0, step=1, limit=10
  $region2: #{residual_block_forward.1} parent=0 // loop_pre_header
    _
  $region3: #{residual_block_forward.1} parent=0 // loop_header
    %s16 = sphi 0, %s20
    %p17 = scmp.ge.s32.totalorder %s16, 10
    %s26 = sphi 0, %s28
    %s29 = sphi 0, %s26
    %s30 = sphi 0, %s29
    %s46 = sphi 0, %s30
    %s50 = sphi 0, %s50
    %s52 = sphi 0, %s50
    %s53 = sphi 0, %s52
    %s67 = sphi 0, %s53
    %s71 = sphi 0, %s71
    %s73 = sphi 0, %s71
    %s74 = sphi 0, %s73
    %s88 = sphi 0, %s74
    %s92 = sphi 0, %s92
    %s94 = sphi 0, %s92
    %s95 = sphi 0, %s94
    %s109 = sphi 0, %s95
    %s113 = sphi 0, %s113
    %s115 = sphi 0, %s113
    %s116 = sphi 0, %s115
    %s130 = sphi 0, %s116
    %s134 = sphi 0, %s134
    %s136 = sphi 0, %s134
    %s137 = sphi 0, %s136
    %s151 = sphi 0, %s137
    %s155 = sphi 0, %s155
    %s157 = sphi 0, %s155
    %s158 = sphi 0, %s157
    %s172 = sphi 0, %s158
    %s176 = sphi 0, %s176
    %s178 = sphi 0, %s176
    %s179 = sphi 0, %s178
    %s193 = sphi 0, %s179
    %s197 = sphi 0, %s197
    %s199 = sphi 0, %s197
    %s200 = sphi 0, %s199
    %s214 = sphi 0, %s200
    %s218 = sphi 0, %s218
    %s220 = sphi 0, %s218
    %s221 = sphi 0, %s220
    %s235 = sphi 0, %s221
    %s241 = sphi 0, %s243
    %s244 = sphi 0, %s241
    %s245 = sphi 0, %s244
    %s261 = sphi 0, %s245
  $region4: #{residual_block_forward.1} parent=0 // loop_header_branch
    %19 = sbr.rel (%p17) target = $region8
  $region5: #{residual_block_forward.1} parent=0 // loop_body
    %s21 = ssub.s32 %s16, 1
    %s22 = ssub.s32 %s16, 2
    %s23 = sadd.s32 %s16, 1
    %s24 = ssub.s32 %s16, %s23
    %p25 = scmp.eq.s32.totalorder %s24, 0
    %s27 = sadd.s32 %s26, 1
    %s28 = scalar_select %p25, %s26, %s27
    %p31 = pneg %p25
    %p32 = scmp.eq.s32.totalorder %s16, 7
    %p33 = por %p31, %p32
    %p34 = scmp.ne.s32.totalorder %s26, %s29
    %p35 = scmp.eq.s32.totalorder %s16, 0
    %p36 = por %p34, %p35
    %p37 = scmp.ne.s32.totalorder %s26, %s29
    %p38 = scmp.eq.s32.totalorder %s21, 7
    %p39 = por %p37, %p38
    %p40 = scmp.ne.s32.totalorder %s29, %s30
    %p41 = scmp.eq.s32.totalorder %s21, 0
    %p42 = por %p40, %p41
    %p43 = scmp.ne.s32.totalorder %s29, %s30
    %p44 = scmp.eq.s32.totalorder %s22, 7
    %p45 = por %p43, %p44
    %p47 = scmp.ne.s32.totalorder %s30, %s46
    %p48 = scmp.eq.s32.totalorder %s22, 0
    %p49 = por %p47, %p48
    %s51 = sadd.s32 %s50, 1
    %p54 = scmp.eq.s32.totalorder %s16, 7
    %p55 = scmp.ne.s32.totalorder %s50, %s52
    %p56 = scmp.eq.s32.totalorder %s16, 0
    %p57 = por %p55, %p56
    %p58 = scmp.ne.s32.totalorder %s50, %s52
    %p59 = scmp.eq.s32.totalorder %s21, 7
    %p60 = por %p58, %p59
    %p61 = scmp.ne.s32.totalorder %s52, %s53
    %p62 = scmp.eq.s32.totalorder %s21, 0
    %p63 = por %p61, %p62
    %p64 = scmp.ne.s32.totalorder %s52, %s53
    %p65 = scmp.eq.s32.totalorder %s22, 7
    %p66 = por %p64, %p65
    %p68 = scmp.ne.s32.totalorder %s53, %s67
    %p69 = scmp.eq.s32.totalorder %s22, 0
    %p70 = por %p68, %p69
    %s72 = sadd.s32 %s71, 1
    %p75 = scmp.eq.s32.totalorder %s16, 7
    %p76 = scmp.ne.s32.totalorder %s71, %s73
    %p77 = scmp.eq.s32.totalorder %s16, 0
    %p78 = por %p76, %p77
    %p79 = scmp.ne.s32.totalorder %s71, %s73
    %p80 = scmp.eq.s32.totalorder %s21, 7
    %p81 = por %p79, %p80
    %p82 = scmp.ne.s32.totalorder %s73, %s74
    %p83 = scmp.eq.s32.totalorder %s21, 0
    %p84 = por %p82, %p83
    %p85 = scmp.ne.s32.totalorder %s73, %s74
    %p86 = scmp.eq.s32.totalorder %s22, 7
    %p87 = por %p85, %p86
    %p89 = scmp.ne.s32.totalorder %s74, %s88
    %p90 = scmp.eq.s32.totalorder %s22, 0
    %p91 = por %p89, %p90
    %s93 = sadd.s32 %s92, 1
    %p96 = scmp.eq.s32.totalorder %s16, 7
    %p97 = scmp.ne.s32.totalorder %s92, %s94
    %p98 = scmp.eq.s32.totalorder %s16, 0
    %p99 = por %p97, %p98
    %p100 = scmp.ne.s32.totalorder %s92, %s94
    %p101 = scmp.eq.s32.totalorder %s21, 7
    %p102 = por %p100, %p101
    %p103 = scmp.ne.s32.totalorder %s94, %s95
    %p104 = scmp.eq.s32.totalorder %s21, 0
    %p105 = por %p103, %p104
    %p106 = scmp.ne.s32.totalorder %s94, %s95
    %p107 = scmp.eq.s32.totalorder %s22, 7
    %p108 = por %p106, %p107
    %p110 = scmp.ne.s32.totalorder %s95, %s109
    %p111 = scmp.eq.s32.totalorder %s22, 0
    %p112 = por %p110, %p111
    %s114 = sadd.s32 %s113, 1
    %p117 = scmp.eq.s32.totalorder %s16, 7
    %p118 = scmp.ne.s32.totalorder %s113, %s115
    %p119 = scmp.eq.s32.totalorder %s16, 0
    %p120 = por %p118, %p119
    %p121 = scmp.ne.s32.totalorder %s113, %s115
    %p122 = scmp.eq.s32.totalorder %s21, 7
    %p123 = por %p121, %p122
    %p124 = scmp.ne.s32.totalorder %s115, %s116
    %p125 = scmp.eq.s32.totalorder %s21, 0
    %p126 = por %p124, %p125
    %p127 = scmp.ne.s32.totalorder %s115, %s116
    %p128 = scmp.eq.s32.totalorder %s22, 7
    %p129 = por %p127, %p128
    %p131 = scmp.ne.s32.totalorder %s116, %s130
    %p132 = scmp.eq.s32.totalorder %s22, 0
    %p133 = por %p131, %p132
    %s135 = sadd.s32 %s134, 1
    %p138 = scmp.eq.s32.totalorder %s16, 7
    %p139 = scmp.ne.s32.totalorder %s134, %s136
    %p140 = scmp.eq.s32.totalorder %s16, 0
    %p141 = por %p139, %p140
    %p142 = scmp.ne.s32.totalorder %s134, %s136
    %p143 = scmp.eq.s32.totalorder %s21, 7
    %p144 = por %p142, %p143
    %p145 = scmp.ne.s32.totalorder %s136, %s137
    %p146 = scmp.eq.s32.totalorder %s21, 0
    %p147 = por %p145, %p146
    %p148 = scmp.ne.s32.totalorder %s136, %s137
    %p149 = scmp.eq.s32.totalorder %s22, 7
    %p150 = por %p148, %p149
    %p152 = scmp.ne.s32.totalorder %s137, %s151
    %p153 = scmp.eq.s32.totalorder %s22, 0
    %p154 = por %p152, %p153
    %s156 = sadd.s32 %s155, 1
    %p159 = scmp.eq.s32.totalorder %s16, 7
    %p160 = scmp.ne.s32.totalorder %s155, %s157
    %p161 = scmp.eq.s32.totalorder %s16, 0
    %p162 = por %p160, %p161
    %p163 = scmp.ne.s32.totalorder %s155, %s157
    %p164 = scmp.eq.s32.totalorder %s21, 7
    %p165 = por %p163, %p164
    %p166 = scmp.ne.s32.totalorder %s157, %s158
    %p167 = scmp.eq.s32.totalorder %s21, 0
    %p168 = por %p166, %p167
    %p169 = scmp.ne.s32.totalorder %s157, %s158
    %p170 = scmp.eq.s32.totalorder %s22, 7
    %p171 = por %p169, %p170
    %p173 = scmp.ne.s32.totalorder %s158, %s172
    %p174 = scmp.eq.s32.totalorder %s22, 0
    %p175 = por %p173, %p174
    %s177 = sadd.s32 %s176, 1
    %p180 = scmp.eq.s32.totalorder %s16, 7
    %p181 = scmp.ne.s32.totalorder %s176, %s178
    %p182 = scmp.eq.s32.totalorder %s16, 0
    %p183 = por %p181, %p182
    %p184 = scmp.ne.s32.totalorder %s176, %s178
    %p185 = scmp.eq.s32.totalorder %s21, 7
    %p186 = por %p184, %p185
    %p187 = scmp.ne.s32.totalorder %s178, %s179
    %p188 = scmp.eq.s32.totalorder %s21, 0
    %p189 = por %p187, %p188
    %p190 = scmp.ne.s32.totalorder %s178, %s179
    %p191 = scmp.eq.s32.totalorder %s22, 7
    %p192 = por %p190, %p191
    %p194 = scmp.ne.s32.totalorder %s179, %s193
    %p195 = scmp.eq.s32.totalorder %s22, 0
    %p196 = por %p194, %p195
    %s198 = sadd.s32 %s197, 1
    %p201 = scmp.eq.s32.totalorder %s16, 7
    %p202 = scmp.ne.s32.totalorder %s197, %s199
    %p203 = scmp.eq.s32.totalorder %s16, 0
    %p204 = por %p202, %p203
    %p205 = scmp.ne.s32.totalorder %s197, %s199
    %p206 = scmp.eq.s32.totalorder %s21, 7
    %p207 = por %p205, %p206
    %p208 = scmp.ne.s32.totalorder %s199, %s200
    %p209 = scmp.eq.s32.totalorder %s21, 0
    %p210 = por %p208, %p209
    %p211 = scmp.ne.s32.totalorder %s199, %s200
    %p212 = scmp.eq.s32.totalorder %s22, 7
    %p213 = por %p211, %p212
    %p215 = scmp.ne.s32.totalorder %s200, %s214
    %p216 = scmp.eq.s32.totalorder %s22, 0
    %p217 = por %p215, %p216
    %s219 = sadd.s32 %s218, 1
    %p222 = scmp.eq.s32.totalorder %s16, 7
    %p223 = scmp.ne.s32.totalorder %s218, %s220
    %p224 = scmp.eq.s32.totalorder %s16, 0
    %p225 = por %p223, %p224
    %p226 = scmp.ne.s32.totalorder %s218, %s220
    %p227 = scmp.eq.s32.totalorder %s21, 7
    %p228 = por %p226, %p227
    %p229 = scmp.ne.s32.totalorder %s220, %s221
    %p230 = scmp.eq.s32.totalorder %s21, 0
    %p231 = por %p229, %p230
    %p232 = scmp.ne.s32.totalorder %s220, %s221
    %p233 = scmp.eq.s32.totalorder %s22, 7
    %p234 = por %p232, %p233
    %p236 = scmp.ne.s32.totalorder %s221, %s235
    %p237 = scmp.eq.s32.totalorder %s22, 0
    %p238 = por %p236, %p237
    %s239 = ssub.s32 %s16, %s23
    %p240 = scmp.eq.s32.totalorder %s239, 0
    %s242 = sadd.s32 %s241, 1
    %s243 = scalar_select %p240, %s241, %s242
    %p246 = pneg %p240
    %p247 = scmp.eq.s32.totalorder %s16, 7
    %p248 = por %p246, %p247
    %p249 = scmp.ne.s32.totalorder %s241, %s244
    %p250 = scmp.eq.s32.totalorder %s16, 0
    %p251 = por %p249, %p250
    %p252 = scmp.ne.s32.totalorder %s241, %s244
    %p253 = scmp.eq.s32.totalorder %s21, 7
    %p254 = por %p252, %p253
    %p255 = scmp.ne.s32.totalorder %s244, %s245
    %p256 = scmp.eq.s32.totalorder %s21, 0
    %p257 = por %p255, %p256
    %p258 = scmp.ne.s32.totalorder %s244, %s245
    %p259 = scmp.eq.s32.totalorder %s22, 7
    %p260 = por %p258, %p259
    %p262 = scmp.ne.s32.totalorder %s245, %s261
    %p263 = scmp.eq.s32.totalorder %s22, 0
    %p264 = por %p262, %p263
    %p265 = scmp.le.s32.totalorder 1, %s16
    %p266 = scmp.lt.s32.totalorder %s16, 9
    %p267 = pnand %p265, %p266
    %p268 = pneg %p267
    // Predicated region
    $region9: #{residual_block_forward.1} parent=5 // pred_check
      _
    $region10: #{residual_block_forward.1} parent=5 // pred_check_branch
      %270 = sbr.rel (%p267) target = $region12
    $region11: #{residual_block_forward.1} parent=5 // pred_region
      %s271 = ssub.s32 %s16, 1
      // Predicated region
      $region13: #{residual_block_forward.1} parent=11 // pred_check
        %p272 = pneg %p63
      $region14: #{residual_block_forward.1} parent=11 // pred_check_branch
        %274 = sbr.rel (%p272) target = $region16
      $region15: #{residual_block_forward.1} parent=11 // pred_region
        _
      $region16: #{residual_block_forward.1} parent=11 // pred_fallthru
        _
      // Predicated region
      $region17: #{residual_block_forward.1} parent=11 // pred_check
        %p275 = pneg %p84
      $region18: #{residual_block_forward.1} parent=11 // pred_check_branch
        %277 = sbr.rel (%p275) target = $region20
      $region19: #{residual_block_forward.1} parent=11 // pred_region
        _
      $region20: #{residual_block_forward.1} parent=11 // pred_fallthru
        _
      // Predicated region
      $region21: #{residual_block_forward.1} parent=11 // pred_check
        %p278 = pneg %p105
      $region22: #{residual_block_forward.1} parent=11 // pred_check_branch
        %280 = sbr.rel (%p278) target = $region24
      $region23: #{residual_block_forward.1} parent=11 // pred_region
        _
      $region24: #{residual_block_forward.1} parent=11 // pred_fallthru
        _
      // Predicated region
      $region25: #{residual_block_forward.1} parent=11 // pred_check
        %p281 = pneg %p126
      $region26: #{residual_block_forward.1} parent=11 // pred_check_branch
        %283 = sbr.rel (%p281) target = $region28
      $region27: #{residual_block_forward.1} parent=11 // pred_region
        _
      $region28: #{residual_block_forward.1} parent=11 // pred_fallthru
        _
      // Predicated region
      $region29: #{residual_block_forward.1} parent=11 // pred_check
        %p284 = pneg %p147
      $region30: #{residual_block_forward.1} parent=11 // pred_check_branch
        %286 = sbr.rel (%p284) target = $region32
      $region31: #{residual_block_forward.1} parent=11 // pred_region
        _
      $region32: #{residual_block_forward.1} parent=11 // pred_fallthru
        _
      // Predicated region
      $region33: #{residual_block_forward.1} parent=11 // pred_check
        %p287 = pneg %p168
      $region34: #{residual_block_forward.1} parent=11 // pred_check_branch
        %289 = sbr.rel (%p287) target = $region36
      $region35: #{residual_block_forward.1} parent=11 // pred_region
        _
      $region36: #{residual_block_forward.1} parent=11 // pred_fallthru
        _
      // Predicated region
      $region37: #{residual_block_forward.1} parent=11 // pred_check
        %p290 = pneg %p189
      $region38: #{residual_block_forward.1} parent=11 // pred_check_branch
        %292 = sbr.rel (%p290) target = $region40
      $region39: #{residual_block_forward.1} parent=11 // pred_region
        _
      $region40: #{residual_block_forward.1} parent=11 // pred_fallthru
        _
      // Predicated region
      $region41: #{residual_block_forward.1} parent=11 // pred_check
        %p293 = pneg %p210
      $region42: #{residual_block_forward.1} parent=11 // pred_check_branch
        %295 = sbr.rel (%p293) target = $region44
      $region43: #{residual_block_forward.1} parent=11 // pred_region
        _
      $region44: #{residual_block_forward.1} parent=11 // pred_fallthru
        _
      // Predicated region
      $region45: #{residual_block_forward.1} parent=11 // pred_check
        %p296 = pneg %p231
      $region46: #{residual_block_forward.1} parent=11 // pred_check_branch
        %298 = sbr.rel (%p296) target = $region48
      $region47: #{residual_block_forward.1} parent=11 // pred_region
        _
      $region48: #{residual_block_forward.1} parent=11 // pred_fallthru
        _
    $region12: #{residual_block_forward.1} parent=5 // pred_fallthru
      _
    %p299 = scmp.lt.s32.totalorder %s16, 8
    // Predicated region
    $region49: #{residual_block_forward.1} parent=5 // pred_check
      %p300 = pneg %p299
    $region50: #{residual_block_forward.1} parent=5 // pred_check_branch
      %302 = sbr.rel (%p300) target = $region52
    $region51: #{residual_block_forward.1} parent=5 // pred_region
      // Predicated region
      $region53: #{residual_block_forward.1} parent=51 // pred_check
        %p303 = pneg %p36
      $region54: #{residual_block_forward.1} parent=51 // pred_check_branch
        %305 = sbr.rel (%p303) target = $region56
      $region55: #{residual_block_forward.1} parent=51 // pred_region
        %p306 = scmp.lt.s32.totalorder %s16, 7
        %s307 = scalar_select %p306, %s16, 7
        %s308 = smul.addr %s307, 32
        %s309 = smul.addr %s308, 4
        %s310 = scalar_lea.vmem %s0, %s309
      $region56: #{residual_block_forward.1} parent=51 // pred_fallthru
        _
    $region52: #{residual_block_forward.1} parent=5 // pred_fallthru
      _
    %p311 = scmp.le.s32.totalorder 1, %s16
    %p312 = scmp.lt.s32.totalorder %s16, 9
    %p313 = pnand %p311, %p312
    %p314 = pneg %p313
    // Predicated region
    $region57: #{residual_block_forward.1} parent=5 // pred_check
      _
    $region58: #{residual_block_forward.1} parent=5 // pred_check_branch
      %316 = sbr.rel (%p313) target = $region60
    $region59: #{residual_block_forward.1} parent=5 // pred_region
      %s317 = ssub.s32 %s16, 1
      %p318 = scmp.lt.s32.totalorder %s21, 7
      %s319 = scalar_select %p318, %s21, 7
      %s320 = smul.addr %s319, 32
      %s321 = smul.addr %s320, 4
      %s322 = scalar_lea.vmem %s0, %s321
      %p323 = pneg %p42
      %p324 = pneg %p39
      %p325 = pneg %p63
      %p326 = pneg %p60
      %p327 = pneg %p84
      %p328 = pneg %p81
      %p329 = pneg %p105
      %p330 = pneg %p102
      %p331 = pneg %p126
      %p332 = pneg %p123
      %p333 = pneg %p147
      %p334 = pneg %p144
      %p335 = pneg %p168
      %p336 = pneg %p165
      %p337 = pneg %p189
      %p338 = pneg %p186
      %p339 = pneg %p210
      %p340 = pneg %p207
      %p341 = pneg %p231
      %p342 = pneg %p228
      %p343 = pneg %p257
      %p344 = pneg %p254
      %p345 = scmp.lt.s32.totalorder %s21, 7
      %s346 = scalar_select %p345, %s21, 7
      %s347 = smul.addr %s346, 32
      %s348 = smul.addr %s347, 4
      %s349 = scalar_lea.vmem %s10, %s348
      %p350 = scmp.lt.s32.totalorder %s21, 7
      %s351 = scalar_select %p350, %s21, 7
      %s352 = smul.addr %s351, 32
      %s353 = smul.addr %s352, 4
      %s354 = scalar_lea.vmem %s0, %s353
      %p355 = scmp.lt.s32.totalorder %s21, 7
      %s356 = scalar_select %p355, %s21, 7
      %s357 = smul.addr %s356, 32
      %s358 = smul.addr %s357, 4
      %s359 = scalar_lea.vmem %s10, %s358
      %v361 = vld [vmem:[%s354] sm:$0xf]
      %v362 = vld [vmem:[%s354 + $0x4] sm:$0xf]
      %v363 = vld [vmem:[%s354 + $0x8] sm:$0xf]
      %v364 = vld [vmem:[%s354 + $0xc] sm:$0xf]
      %v365 = vld [vmem:[%s354 + $0x10] sm:$0xf]
      %v366 = vld [vmem:[%s354 + $0x14] sm:$0xf]
      %v367 = vld [vmem:[%s354 + $0x18] sm:$0xf]
      %v368 = vld [vmem:[%s354 + $0x1c] sm:$0xf]
      %v369 = vld [vmem:[%s354 + $0x20] sm:$0xf]
      %v370 = vld [vmem:[%s354 + $0x24] sm:$0xf]
      %v371 = vld [vmem:[%s354 + $0x28] sm:$0xf]
      %v372 = vld [vmem:[%s354 + $0x2c] sm:$0xf]
      %v373 = vld [vmem:[%s354 + $0x30] sm:$0xf]
      %v374 = vld [vmem:[%s354 + $0x34] sm:$0xf]
      %v375 = vld [vmem:[%s354 + $0x38] sm:$0xf]
      %v376 = vld [vmem:[%s354 + $0x3c] sm:$0xf]
      %v377 = vld [vmem:[%s354 + $0x40] sm:$0xf]
      %v378 = vld [vmem:[%s354 + $0x44] sm:$0xf]
      %v379 = vld [vmem:[%s354 + $0x48] sm:$0xf]
      %v380 = vld [vmem:[%s354 + $0x4c] sm:$0xf]
      %v381 = vld [vmem:[%s354 + $0x50] sm:$0xf]
      %v382 = vld [vmem:[%s354 + $0x54] sm:$0xf]
      %v383 = vld [vmem:[%s354 + $0x58] sm:$0xf]
      %v384 = vld [vmem:[%s354 + $0x5c] sm:$0xf]
      %v385 = vld [vmem:[%s354 + $0x60] sm:$0xf]
      %v386 = vld [vmem:[%s354 + $0x64] sm:$0xf]
      %v387 = vld [vmem:[%s354 + $0x68] sm:$0xf]
      %v388 = vld [vmem:[%s354 + $0x6c] sm:$0xf]
      %v389 = vld [vmem:[%s354 + $0x70] sm:$0xf]
      %v390 = vld [vmem:[%s354 + $0x74] sm:$0xf]
      %v391 = vld [vmem:[%s354 + $0x78] sm:$0xf]
      %v392 = vld [vmem:[%s354 + $0x7c] sm:$0xf]
      %vm393 = vcmask 31744
      %394 = vst.msk [vmem:[#allocation2] sm:$0xff] %vm393, 0.0
      %395 = vst.msk [vmem:[#allocation2 + $0x8] sm:$0xff] %vm393, 0.0
      %396 = vst.msk [vmem:[#allocation2 + $0x10] sm:$0xff] %vm393, 0.0
      %397 = vst.msk [vmem:[#allocation2 + $0x18] sm:$0xff] %vm393, 0.0
      %398 = vst.msk [vmem:[#allocation2 + $0x20] sm:$0xff] %vm393, 0.0
      %399 = vst.msk [vmem:[#allocation2 + $0x28] sm:$0xff] %vm393, 0.0
      %400 = vst.msk [vmem:[#allocation2 + $0x30] sm:$0xff] %vm393, 0.0
      %401 = vst.msk [vmem:[#allocation2 + $0x38] sm:$0xff] %vm393, 0.0
      %402 = vst.msk [vmem:[#allocation2 + $0x40] sm:$0xff] %vm393, 0.0
      %403 = vst.msk [vmem:[#allocation2 + $0x48] sm:$0xff] %vm393, 0.0
      %404 = vst.msk [vmem:[#allocation2 + $0x50] sm:$0xff] %vm393, 0.0
      %405 = vst.msk [vmem:[#allocation2 + $0x58] sm:$0xff] %vm393, 0.0
      %406 = vst.msk [vmem:[#allocation2 + $0x60] sm:$0xff] %vm393, 0.0
      %407 = vst.msk [vmem:[#allocation2 + $0x68] sm:$0xff] %vm393, 0.0
      %408 = vst.msk [vmem:[#allocation2 + $0x70] sm:$0xff] %vm393, 0.0
      %409 = vst.msk [vmem:[#allocation2 + $0x78] sm:$0xff] %vm393, 0.0
      %410 = vst.msk [vmem:[#allocation2 + $0x80] sm:$0xff] %vm393, 0.0
      %411 = vst.msk [vmem:[#allocation2 + $0x88] sm:$0xff] %vm393, 0.0
      %412 = vst.msk [vmem:[#allocation2 + $0x90] sm:$0xff] %vm393, 0.0
      %413 = vst.msk [vmem:[#allocation2 + $0x98] sm:$0xff] %vm393, 0.0
      %414 = vst.msk [vmem:[#allocation2 + $0xa0] sm:$0xff] %vm393, 0.0
      %415 = vst.msk [vmem:[#allocation2 + $0xa8] sm:$0xff] %vm393, 0.0
      %416 = vst.msk [vmem:[#allocation2 + $0xb0] sm:$0xff] %vm393, 0.0
      %417 = vst.msk [vmem:[#allocation2 + $0xb8] sm:$0xff] %vm393, 0.0
      %418 = vst.msk [vmem:[#allocation2 + $0xc0] sm:$0xff] %vm393, 0.0
      %419 = vst.msk [vmem:[#allocation2 + $0xc8] sm:$0xff] %vm393, 0.0
      %420 = vst.msk [vmem:[#allocation2 + $0xd0] sm:$0xff] %vm393, 0.0
      %421 = vst.msk [vmem:[#allocation2 + $0xd8] sm:$0xff] %vm393, 0.0
      %422 = vst.msk [vmem:[#allocation2 + $0xe0] sm:$0xff] %vm393, 0.0
      %423 = vst.msk [vmem:[#allocation2 + $0xe8] sm:$0xff] %vm393, 0.0
      %424 = vst.msk [vmem:[#allocation2 + $0xf0] sm:$0xff] %vm393, 0.0
      %425 = vst.msk [vmem:[#allocation2 + $0xf8] sm:$0xff] %vm393, 0.0
      %426 = vst.msk [vmem:[#allocation2 + $0x100] sm:$0xff] %vm393, 0.0
      %427 = vst.msk [vmem:[#allocation2 + $0x108] sm:$0xff] %vm393, 0.0
      %428 = vst.msk [vmem:[#allocation2 + $0x110] sm:$0xff] %vm393, 0.0
      %429 = vst.msk [vmem:[#allocation2 + $0x118] sm:$0xff] %vm393, 0.0
      %430 = vst.msk [vmem:[#allocation2 + $0x120] sm:$0xff] %vm393, 0.0
      %431 = vst.msk [vmem:[#allocation2 + $0x128] sm:$0xff] %vm393, 0.0
      %432 = vst.msk [vmem:[#allocation2 + $0x130] sm:$0xff] %vm393, 0.0
      %433 = vst.msk [vmem:[#allocation2 + $0x138] sm:$0xff] %vm393, 0.0
      %434 = vst.msk [vmem:[#allocation2 + $0x140] sm:$0xff] %vm393, 0.0
      %435 = vst.msk [vmem:[#allocation2 + $0x148] sm:$0xff] %vm393, 0.0
      %436 = vst.msk [vmem:[#allocation2 + $0x150] sm:$0xff] %vm393, 0.0
      %437 = vst.msk [vmem:[#allocation2 + $0x158] sm:$0xff] %vm393, 0.0
      %438 = vst.msk [vmem:[#allocation2 + $0x160] sm:$0xff] %vm393, 0.0
      %439 = vst.msk [vmem:[#allocation2 + $0x168] sm:$0xff] %vm393, 0.0
      %440 = vst.msk [vmem:[#allocation2 + $0x170] sm:$0xff] %vm393, 0.0
      %441 = vst.msk [vmem:[#allocation2 + $0x178] sm:$0xff] %vm393, 0.0
      %442 = vst.msk [vmem:[#allocation2 + $0x180] sm:$0xff] %vm393, 0.0
      %443 = vst.msk [vmem:[#allocation2 + $0x188] sm:$0xff] %vm393, 0.0
      %444 = vst.msk [vmem:[#allocation2 + $0x190] sm:$0xff] %vm393, 0.0
      %445 = vst.msk [vmem:[#allocation2 + $0x198] sm:$0xff] %vm393, 0.0
      %446 = vst.msk [vmem:[#allocation2 + $0x1a0] sm:$0xff] %vm393, 0.0
      %447 = vst.msk [vmem:[#allocation2 + $0x1a8] sm:$0xff] %vm393, 0.0
      %448 = vst.msk [vmem:[#allocation2 + $0x1b0] sm:$0xff] %vm393, 0.0
      %449 = vst.msk [vmem:[#allocation2 + $0x1b8] sm:$0xff] %vm393, 0.0
      %450 = vst.msk [vmem:[#allocation2 + $0x1c0] sm:$0xff] %vm393, 0.0
      %451 = vst.msk [vmem:[#allocation2 + $0x1c8] sm:$0xff] %vm393, 0.0
      %452 = vst.msk [vmem:[#allocation2 + $0x1d0] sm:$0xff] %vm393, 0.0
      %453 = vst.msk [vmem:[#allocation2 + $0x1d8] sm:$0xff] %vm393, 0.0
      %454 = vst.msk [vmem:[#allocation2 + $0x1e0] sm:$0xff] %vm393, 0.0
      %455 = vst.msk [vmem:[#allocation2 + $0x1e8] sm:$0xff] %vm393, 0.0
      %456 = vst.msk [vmem:[#allocation2 + $0x1f0] sm:$0xff] %vm393, 0.0
      %457 = vst.msk [vmem:[#allocation2 + $0x1f8] sm:$0xff] %vm393, 0.0
      %458 = vst.msk [vmem:[#allocation2 + $0x200] sm:$0xff] %vm393, 0.0
      %459 = vst.msk [vmem:[#allocation2 + $0x208] sm:$0xff] %vm393, 0.0
      %460 = vst.msk [vmem:[#allocation2 + $0x210] sm:$0xff] %vm393, 0.0
      %461 = vst.msk [vmem:[#allocation2 + $0x218] sm:$0xff] %vm393, 0.0
      %462 = vst.msk [vmem:[#allocation2 + $0x220] sm:$0xff] %vm393, 0.0
      %463 = vst.msk [vmem:[#allocation2 + $0x228] sm:$0xff] %vm393, 0.0
      %464 = vst.msk [vmem:[#allocation2 + $0x230] sm:$0xff] %vm393, 0.0
      %465 = vst.msk [vmem:[#allocation2 + $0x238] sm:$0xff] %vm393, 0.0
      %v466 = vunpack.c.l.bf16 %v361
      %v467 = vunpack.c.l.bf16 %v362
      %v468 = vunpack.c.l.bf16 %v363
      %v469 = vunpack.c.l.bf16 %v364
      %v470 = vunpack.c.l.bf16 %v365
      %v471 = vunpack.c.l.bf16 %v366
      %v472 = vunpack.c.l.bf16 %v367
      %v473 = vunpack.c.l.bf16 %v368
      %v474 = vunpack.c.l.bf16 %v369
      %v475 = vunpack.c.l.bf16 %v370
      %v476 = vunpack.c.l.bf16 %v371
      %v477 = vunpack.c.l.bf16 %v372
      %v478 = vunpack.c.l.bf16 %v373
      %v479 = vunpack.c.l.bf16 %v374
      %v480 = vunpack.c.l.bf16 %v375
      %v481 = vunpack.c.l.bf16 %v376
      %v482 = vunpack.c.l.bf16 %v377
      %v483 = vunpack.c.l.bf16 %v378
      %v484 = vunpack.c.l.bf16 %v379
      %v485 = vunpack.c.l.bf16 %v380
      %v486 = vunpack.c.l.bf16 %v381
      %v487 = vunpack.c.l.bf16 %v382
      %v488 = vunpack.c.l.bf16 %v383
      %v489 = vunpack.c.l.bf16 %v384
      %v490 = vunpack.c.l.bf16 %v385
      %v491 = vunpack.c.l.bf16 %v386
      %v492 = vunpack.c.l.bf16 %v387
      %v493 = vunpack.c.l.bf16 %v388
      %v494 = vunpack.c.l.bf16 %v389
      %v495 = vunpack.c.l.bf16 %v390
      %v496 = vunpack.c.l.bf16 %v391
      %v497 = vunpack.c.l.bf16 %v392
      %s498 = scalar_lea.vmem [#allocation2], 32
      %499 = vst.msk [vmem:[%s498 + $0x8] sm:$0xff] %vm393, %v466
      %500 = vst.msk [vmem:[%s498 + $0x10] sm:$0xff] %vm393, %v467
      %501 = vst.msk [vmem:[%s498 + $0x28] sm:$0xff] %vm393, %v468
      %502 = vst.msk [vmem:[%s498 + $0x30] sm:$0xff] %vm393, %v469
      %503 = vst.msk [vmem:[%s498 + $0x48] sm:$0xff] %vm393, %v470
      %504 = vst.msk [vmem:[%s498 + $0x50] sm:$0xff] %vm393, %v471
      %505 = vst.msk [vmem:[%s498 + $0x68] sm:$0xff] %vm393, %v472
      %506 = vst.msk [vmem:[%s498 + $0x70] sm:$0xff] %vm393, %v473
      %507 = vst.msk [vmem:[%s498 + $0x88] sm:$0xff] %vm393, %v474
      %508 = vst.msk [vmem:[%s498 + $0x90] sm:$0xff] %vm393, %v475
      %509 = vst.msk [vmem:[%s498 + $0xa8] sm:$0xff] %vm393, %v476
      %510 = vst.msk [vmem:[%s498 + $0xb0] sm:$0xff] %vm393, %v477
      %511 = vst.msk [vmem:[%s498 + $0xc8] sm:$0xff] %vm393, %v478
      %512 = vst.msk [vmem:[%s498 + $0xd0] sm:$0xff] %vm393, %v479
      %513 = vst.msk [vmem:[%s498 + $0xe8] sm:$0xff] %vm393, %v480
      %514 = vst.msk [vmem:[%s498 + $0xf0] sm:$0xff] %vm393, %v481
      %515 = vst.msk [vmem:[%s498 + $0x108] sm:$0xff] %vm393, %v482
      %516 = vst.msk [vmem:[%s498 + $0x110] sm:$0xff] %vm393, %v483
      %517 = vst.msk [vmem:[%s498 + $0x128] sm:$0xff] %vm393, %v484
      %518 = vst.msk [vmem:[%s498 + $0x130] sm:$0xff] %vm393, %v485
      %519 = vst.msk [vmem:[%s498 + $0x148] sm:$0xff] %vm393, %v486
      %520 = vst.msk [vmem:[%s498 + $0x150] sm:$0xff] %vm393, %v487
      %521 = vst.msk [vmem:[%s498 + $0x168] sm:$0xff] %vm393, %v488
      %522 = vst.msk [vmem:[%s498 + $0x170] sm:$0xff] %vm393, %v489
      %523 = vst.msk [vmem:[%s498 + $0x188] sm:$0xff] %vm393, %v490
      %524 = vst.msk [vmem:[%s498 + $0x190] sm:$0xff] %vm393, %v491
      %525 = vst.msk [vmem:[%s498 + $0x1a8] sm:$0xff] %vm393, %v492
      %526 = vst.msk [vmem:[%s498 + $0x1b0] sm:$0xff] %vm393, %v493
      %527 = vst.msk [vmem:[%s498 + $0x1c8] sm:$0xff] %vm393, %v494
      %528 = vst.msk [vmem:[%s498 + $0x1d0] sm:$0xff] %vm393, %v495
      %529 = vst.msk [vmem:[%s498 + $0x1e8] sm:$0xff] %vm393, %v496
      %530 = vst.msk [vmem:[%s498 + $0x1f0] sm:$0xff] %vm393, %v497
      %v531 = vld [vmem:[#allocation2 + $0x7] sm:$0xff]
      %v532 = vld [vmem:[#allocation2 + $0xf] sm:$0xff]
      %v533 = vld [vmem:[#allocation2 + $0x27] sm:$0xff]
      %v534 = vld [vmem:[#allocation2 + $0x2f] sm:$0xff]
      %v535 = vld [vmem:[#allocation2 + $0x47] sm:$0xff]
      %v536 = vld [vmem:[#allocation2 + $0x4f] sm:$0xff]
      %v537 = vld [vmem:[#allocation2 + $0x67] sm:$0xff]
      %v538 = vld [vmem:[#allocation2 + $0x6f] sm:$0xff]
      %v539 = vld [vmem:[#allocation2 + $0x87] sm:$0xff]
      %v540 = vld [vmem:[#allocation2 + $0x8f] sm:$0xff]
      %v541 = vld [vmem:[#allocation2 + $0xa7] sm:$0xff]
      %v542 = vld [vmem:[#allocation2 + $0xaf] sm:$0xff]
      %v543 = vld [vmem:[#allocation2 + $0xc7] sm:$0xff]
      %v544 = vld [vmem:[#allocation2 + $0xcf] sm:$0xff]
      %v545 = vld [vmem:[#allocation2 + $0xe7] sm:$0xff]
      %v546 = vld [vmem:[#allocation2 + $0xef] sm:$0xff]
      %v547 = vld [vmem:[#allocation2 + $0x107] sm:$0xff]
      %v548 = vld [vmem:[#allocation2 + $0x10f] sm:$0xff]
      %v549 = vld [vmem:[#allocation2 + $0x127] sm:$0xff]
      %v550 = vld [vmem:[#allocation2 + $0x12f] sm:$0xff]
      %v551 = vld [vmem:[#allocation2 + $0x147] sm:$0xff]
      %v552 = vld [vmem:[#allocation2 + $0x14f] sm:$0xff]
      %v553 = vld [vmem:[#allocation2 + $0x167] sm:$0xff]
      %v554 = vld [vmem:[#allocation2 + $0x16f] sm:$0xff]
      %v555 = vld [vmem:[#allocation2 + $0x187] sm:$0xff]
      %v556 = vld [vmem:[#allocation2 + $0x18f] sm:$0xff]
      %v557 = vld [vmem:[#allocation2 + $0x1a7] sm:$0xff]
      %v558 = vld [vmem:[#allocation2 + $0x1af] sm:$0xff]
      %v559 = vld [vmem:[#allocation2 + $0x1c7] sm:$0xff]
      %v560 = vld [vmem:[#allocation2 + $0x1cf] sm:$0xff]
      %v561 = vld [vmem:[#allocation2 + $0x1e7] sm:$0xff]
      %v562 = vld [vmem:[#allocation2 + $0x1ef] sm:$0xff]
      %v563 = vpack.c.bf16 %v532, %v531
      %v564 = vpack.c.bf16 %v534, %v533
      %v565 = vpack.c.bf16 %v536, %v535
      %v566 = vpack.c.bf16 %v538, %v537
      %v567 = vpack.c.bf16 %v540, %v539
      %v568 = vpack.c.bf16 %v542, %v541
      %v569 = vpack.c.bf16 %v544, %v543
      %v570 = vpack.c.bf16 %v546, %v545
      %v571 = vpack.c.bf16 %v548, %v547
      %v572 = vpack.c.bf16 %v550, %v549
      %v573 = vpack.c.bf16 %v552, %v551
      %v574 = vpack.c.bf16 %v554, %v553
      %v575 = vpack.c.bf16 %v556, %v555
      %v576 = vpack.c.bf16 %v558, %v557
      %v577 = vpack.c.bf16 %v560, %v559
      %v578 = vpack.c.bf16 %v562, %v561
      %v579 = vld [vmem:[%s1] sm:$0x3]
      %v580 = vld [vmem:[#allocation2 + $0x8] sm:$0xff]
      %v581 = vld [vmem:[#allocation2 + $0x10] sm:$0xff]
      %v582 = vld [vmem:[#allocation2 + $0x28] sm:$0xff]
      %v583 = vld [vmem:[#allocation2 + $0x30] sm:$0xff]
      %v584 = vld [vmem:[#allocation2 + $0x48] sm:$0xff]
      %v585 = vld [vmem:[#allocation2 + $0x50] sm:$0xff]
      %v586 = vld [vmem:[#allocation2 + $0x68] sm:$0xff]
      %v587 = vld [vmem:[#allocation2 + $0x70] sm:$0xff]
      %v588 = vld [vmem:[#allocation2 + $0x88] sm:$0xff]
      %v589 = vld [vmem:[#allocation2 + $0x90] sm:$0xff]
      %v590 = vld [vmem:[#allocation2 + $0xa8] sm:$0xff]
      %v591 = vld [vmem:[#allocation2 + $0xb0] sm:$0xff]
      %v592 = vld [vmem:[#allocation2 + $0xc8] sm:$0xff]
      %v593 = vld [vmem:[#allocation2 + $0xd0] sm:$0xff]
      %v594 = vld [vmem:[#allocation2 + $0xe8] sm:$0xff]
      %v595 = vld [vmem:[#allocation2 + $0xf0] sm:$0xff]
      %v596 = vld [vmem:[#allocation2 + $0x108] sm:$0xff]
      %v597 = vld [vmem:[#allocation2 + $0x110] sm:$0xff]
      %v598 = vld [vmem:[#allocation2 + $0x128] sm:$0xff]
      %v599 = vld [vmem:[#allocation2 + $0x130] sm:$0xff]
      %v600 = vld [vmem:[#allocation2 + $0x148] sm:$0xff]
      %v601 = vld [vmem:[#allocation2 + $0x150] sm:$0xff]
      %v602 = vld [vmem:[#allocation2 + $0x168] sm:$0xff]
      %v603 = vld [vmem:[#allocation2 + $0x170] sm:$0xff]
      %v604 = vld [vmem:[#allocation2 + $0x188] sm:$0xff]
      %v605 = vld [vmem:[#allocation2 + $0x190] sm:$0xff]
      %v606 = vld [vmem:[#allocation2 + $0x1a8] sm:$0xff]
      %v607 = vld [vmem:[#allocation2 + $0x1b0] sm:$0xff]
      %v608 = vld [vmem:[#allocation2 + $0x1c8] sm:$0xff]
      %v609 = vld [vmem:[#allocation2 + $0x1d0] sm:$0xff]
      %v610 = vld [vmem:[#allocation2 + $0x1e8] sm:$0xff]
      %v611 = vld [vmem:[#allocation2 + $0x1f0] sm:$0xff]
      %v612 = vpack.c.bf16 %v581, %v580
      %v613 = vpack.c.bf16 %v583, %v582
      %v614 = vpack.c.bf16 %v585, %v584
      %v615 = vpack.c.bf16 %v587, %v586
      %v616 = vpack.c.bf16 %v589, %v588
      %v617 = vpack.c.bf16 %v591, %v590
      %v618 = vpack.c.bf16 %v593, %v592
      %v619 = vpack.c.bf16 %v595, %v594
      %v620 = vpack.c.bf16 %v597, %v596
      %v621 = vpack.c.bf16 %v599, %v598
      %v622 = vpack.c.bf16 %v601, %v600
      %v623 = vpack.c.bf16 %v603, %v602
      %v624 = vpack.c.bf16 %v605, %v604
      %v625 = vpack.c.bf16 %v607, %v606
      %v626 = vpack.c.bf16 %v609, %v608
      %v627 = vpack.c.bf16 %v611, %v610
      %s628 = scalar_lea.vmem %s1, 2
      %v629 = vld [vmem:[%s628] sm:$0x3]
      %v631 = vsel %vm393, %v612, 0
      %v634 = vsel %vm393, %v613, 0
      %v637 = vsel %vm393, %v614, 0
      %v640 = vsel %vm393, %v615, 0
      %v643 = vsel %vm393, %v616, 0
      %v646 = vsel %vm393, %v617, 0
      %v649 = vsel %vm393, %v618, 0
      %v652 = vsel %vm393, %v619, 0
      %v655 = vsel %vm393, %v620, 0
      %v658 = vsel %vm393, %v621, 0
      %v661 = vsel %vm393, %v622, 0
      %v664 = vsel %vm393, %v623, 0
      %v667 = vsel %vm393, %v624, 0
      %v670 = vsel %vm393, %v625, 0
      %v673 = vsel %vm393, %v626, 0
      %v676 = vsel %vm393, %v627, 0
      %vm678 = vcmask 1041408
      %v680 = vsel %vm678, %v629, 0
      %682 = vmatprep.subr.bf16.mxu0 0
      %683 = vmatpush1.bf16.msra.mxu0 %v680
      %684 = vmatprep.subr.bf16.mxu0 0
      %685 = vmatpush1.bf16.msra.mxu0 0
      %686 = vmatprep.subr.bf16.mxu0 0
      %687 = vmatpush1.bf16.msra.mxu0 0
      %688 = vmatprep.subr.bf16.mxu0 0
      %689 = vmatpush1.bf16.msra.mxu0 0
      %690 = vmatprep.subr.bf16.mxu0 0
      %691 = vmatpush1.bf16.msra.mxu0 0
      %692 = vmatprep.subr.bf16.mxu0 0
      %693 = vmatpush1.bf16.msra.mxu0 0
      %694 = vmatprep.subr.bf16.mxu0 0
      %695 = vmatpush1.bf16.msra.mxu0 0
      %696 = vmatprep.subr.bf16.mxu0 0
      %697 = vmatpush1.bf16.msra.mxu0 0
      %698 = vmatprep.subr.bf16.mxu0 0
      %699 = vmatpush1.bf16.msra.mxu0 0
      %700 = vmatprep.subr.bf16.mxu0 0
      %701 = vmatpush1.bf16.msra.mxu0 0
      %702 = vmatprep.subr.bf16.mxu0 0
      %703 = vmatpush1.bf16.msra.mxu0 0
      %704 = vmatprep.subr.bf16.mxu0 0
      %705 = vmatpush1.bf16.msra.mxu0 0
      %706 = vmatprep.subr.bf16.mxu0 0
      %707 = vmatpush1.bf16.msra.mxu0 0
      %708 = vmatprep.subr.bf16.mxu0 0
      %709 = vmatpush1.bf16.msra.mxu0 0
      %710 = vmatprep.subr.bf16.mxu0 0
      %711 = vmatpush1.bf16.msra.mxu0 0
      %712 = vmatprep.subr.bf16.mxu0 0
      %713 = vmatpush1.bf16.msra.mxu0 0
      %714 = vmatprep.mubr.bf16.mxu0 0
      %715 = vmatmul.mubr.bf16.gmra.mrb[0].mxu0 %v631
      %v716 = vpop.f32.mrb[0].mxu0
      %v717 = vadd.f32 0.0, %v716
      %v718 = vpop.f32.mrb[0].mxu0
      %v719 = vpop.f32.mrb[0].mxu0
      %v720 = vadd.f32 0.0, %v719
      %v721 = vpop.f32.mrb[0].mxu0
      %722 = vmatprep.mubr.bf16.mxu0 0
      %723 = vmatmul.mubr.bf16.gmra.mrb[0].mxu0 %v634
      %v724 = vpop.f32.mrb[0].mxu0
      %v725 = vadd.f32 0.0, %v724
      %v726 = vpop.f32.mrb[0].mxu0
      %v727 = vpop.f32.mrb[0].mxu0
      %v728 = vadd.f32 0.0, %v727
      %v729 = vpop.f32.mrb[0].mxu0
      %730 = vmatprep.mubr.bf16.mxu0 0
      %731 = vmatmul.mubr.bf16.gmra.mrb[0].mxu0 %v637
      %v732 = vpop.f32.mrb[0].mxu0
      %v733 = vadd.f32 0.0, %v732
      %v734 = vpop.f32.mrb[0].mxu0
      %v735 = vpop.f32.mrb[0].mxu0
      %v736 = vadd.f32 0.0, %v735
      %v737 = vpop.f32.mrb[0].mxu0
      %738 = vmatprep.mubr.bf16.mxu0 0
      %739 = vmatmul.mubr.bf16.gmra.mrb[0].mxu0 %v640
      %v740 = vpop.f32.mrb[0].mxu0
      %v741 = vadd.f32 0.0, %v740
      %v742 = vpop.f32.mrb[0].mxu0
      %v743 = vpop.f32.mrb[0].mxu0
      %v744 = vadd.f32 0.0, %v743
      %v745 = vpop.f32.mrb[0].mxu0
      %746 = vmatprep.mubr.bf16.mxu0 0
      %747 = vmatmul.mubr.bf16.gmra.mrb[0].mxu0 %v643
      %v748 = vpop.f32.mrb[0].mxu0
      %v749 = vadd.f32 0.0, %v748
      %v750 = vpop.f32.mrb[0].mxu0
      %v751 = vpop.f32.mrb[0].mxu0
      %v752 = vadd.f32 0.0, %v751
      %v753 = vpop.f32.mrb[0].mxu0
      %754 = vmatprep.mubr.bf16.mxu0 0
      %755 = vmatmul.mubr.bf16.gmra.mrb[0].mxu0 %v646
      %v756 = vpop.f32.mrb[0].mxu0
      %v757 = vadd.f32 0.0, %v756
      %v758 = vpop.f32.mrb[0].mxu0
      %v759 = vpop.f32.mrb[0].mxu0
      %v760 = vadd.f32 0.0, %v759
      %v761 = vpop.f32.mrb[0].mxu0
      %762 = vmatprep.mubr.bf16.mxu0 0
      %763 = vmatmul.mubr.bf16.gmra.mrb[0].mxu0 %v649
      %v764 = vpop.f32.mrb[0].mxu0
      %v765 = vadd.f32 0.0, %v764
      %v766 = vpop.f32.mrb[0].mxu0
      %v767 = vpop.f32.mrb[0].mxu0
      %v768 = vadd.f32 0.0, %v767
      %v769 = vpop.f32.mrb[0].mxu0
      %770 = vmatprep.mubr.bf16.mxu0 0
      %771 = vmatmul.mubr.bf16.gmra.mrb[0].mxu0 %v652
      %v772 = vpop.f32.mrb[0].mxu0
      %v773 = vadd.f32 0.0, %v772
      %v774 = vpop.f32.mrb[0].mxu0
      %v775 = vpop.f32.mrb[0].mxu0
      %v776 = vadd.f32 0.0, %v775
      %v777 = vpop.f32.mrb[0].mxu0
      %778 = vmatprep.mubr.bf16.mxu0 0
      %779 = vmatmul.mubr.bf16.gmra.mrb[0].mxu0 %v655
      %v780 = vpop.f32.mrb[0].mxu0
      %v781 = vadd.f32 0.0, %v780
      %v782 = vpop.f32.mrb[0].mxu0
      %v783 = vpop.f32.mrb[0].mxu0
      %v784 = vadd.f32 0.0, %v783
      %v785 = vpop.f32.mrb[0].mxu0
      %786 = vmatprep.mubr.bf16.mxu0 0
      %787 = vmatmul.mubr.bf16.gmra.mrb[0].mxu0 %v658
      %v788 = vpop.f32.mrb[0].mxu0
      %v789 = vadd.f32 0.0, %v788
      %v790 = vpop.f32.mrb[0].mxu0
      %v791 = vpop.f32.mrb[0].mxu0
      %v792 = vadd.f32 0.0, %v791
      %v793 = vpop.f32.mrb[0].mxu0
      %794 = vmatprep.mubr.bf16.mxu0 0
      %795 = vmatmul.mubr.bf16.gmra.mrb[0].mxu0 %v661
      %v796 = vpop.f32.mrb[0].mxu0
      %v797 = vadd.f32 0.0, %v796
      %v798 = vpop.f32.mrb[0].mxu0
      %v799 = vpop.f32.mrb[0].mxu0
      %v800 = vadd.f32 0.0, %v799
      %v801 = vpop.f32.mrb[0].mxu0
      %802 = vmatprep.mubr.bf16.mxu0 0
      %803 = vmatmul.mubr.bf16.gmra.mrb[0].mxu0 %v664
      %v804 = vpop.f32.mrb[0].mxu0
      %v805 = vadd.f32 0.0, %v804
      %v806 = vpop.f32.mrb[0].mxu0
      %v807 = vpop.f32.mrb[0].mxu0
      %v808 = vadd.f32 0.0, %v807
      %v809 = vpop.f32.mrb[0].mxu0
      %810 = vmatprep.mubr.bf16.mxu0 0
      %811 = vmatmul.mubr.bf16.gmra.mrb[0].mxu0 %v667
      %v812 = vpop.f32.mrb[0].mxu0
      %v813 = vadd.f32 0.0, %v812
      %v814 = vpop.f32.mrb[0].mxu0
      %v815 = vpop.f32.mrb[0].mxu0
      %v816 = vadd.f32 0.0, %v815
      %v817 = vpop.f32.mrb[0].mxu0
      %818 = vmatprep.mubr.bf16.mxu0 0
      %819 = vmatmul.mubr.bf16.gmra.mrb[0].mxu0 %v670
      %v820 = vpop.f32.mrb[0].mxu0
      %v821 = vadd.f32 0.0, %v820
      %v822 = vpop.f32.mrb[0].mxu0
      %v823 = vpop.f32.mrb[0].mxu0
      %v824 = vadd.f32 0.0, %v823
      %v825 = vpop.f32.mrb[0].mxu0
      %826 = vmatprep.mubr.bf16.mxu0 0
      %827 = vmatmul.mubr.bf16.gmra.mrb[0].mxu0 %v673
      %v828 = vpop.f32.mrb[0].mxu0
      %v829 = vadd.f32 0.0, %v828
      %v830 = vpop.f32.mrb[0].mxu0
      %v831 = vpop.f32.mrb[0].mxu0
      %v832 = vadd.f32 0.0, %v831
      %v833 = vpop.f32.mrb[0].mxu0
      %834 = vmatprep.mubr.bf16.mxu0 0
      %835 = vmatmul.mubr.bf16.gmra.mrb[0].mxu0 %v676
      %v836 = vpop.f32.mrb[0].mxu0
      %v837 = vadd.f32 0.0, %v836
      %v838 = vpop.f32.mrb[0].mxu0
      %v839 = vpop.f32.mrb[0].mxu0
      %v840 = vadd.f32 0.0, %v839
      %v841 = vpop.f32.mrb[0].mxu0
      %842 = vdwg.mxu0
      %v844 = vsel %vm393, %v563, 0
      %v847 = vsel %vm393, %v564, 0
      %v850 = vsel %vm393, %v565, 0
      %v853 = vsel %vm393, %v566, 0
      %v856 = vsel %vm393, %v567, 0
      %v859 = vsel %vm393, %v568, 0
      %v862 = vsel %vm393, %v569, 0
      %v865 = vsel %vm393, %v570, 0
      %v868 = vsel %vm393, %v571, 0
      %v871 = vsel %vm393, %v572, 0
      %v874 = vsel %vm393, %v573, 0
      %v877 = vsel %vm393, %v574, 0
      %v880 = vsel %vm393, %v575, 0
      %v883 = vsel %vm393, %v576, 0
      %v886 = vsel %vm393, %v577, 0
      %v889 = vsel %vm393, %v578, 0
      %v892 = vsel %vm678, %v579, 0
      %894 = vmatprep.subr.bf16.mxu0 0
      %895 = vmatpush1.bf16.msra.mxu0 %v892
      %896 = vmatprep.subr.bf16.mxu0 0
      %897 = vmatpush1.bf16.msra.mxu0 0
      %898 = vmatprep.subr.bf16.mxu0 0
      %899 = vmatpush1.bf16.msra.mxu0 0
      %900 = vmatprep.subr.bf16.mxu0 0
      %901 = vmatpush1.bf16.msra.mxu0 0
      %902 = vmatprep.subr.bf16.mxu0 0
      %903 = vmatpush1.bf16.msra.mxu0 0
      %904 = vmatprep.subr.bf16.mxu0 0
      %905 = vmatpush1.bf16.msra.mxu0 0
      %906 = vmatprep.subr.bf16.mxu0 0
      %907 = vmatpush1.bf16.msra.mxu0 0
      %908 = vmatprep.subr.bf16.mxu0 0
      %909 = vmatpush1.bf16.msra.mxu0 0
      %910 = vmatprep.subr.bf16.mxu0 0
      %911 = vmatpush1.bf16.msra.mxu0 0
      %912 = vmatprep.subr.bf16.mxu0 0
      %913 = vmatpush1.bf16.msra.mxu0 0
      %914 = vmatprep.subr.bf16.mxu0 0
      %915 = vmatpush1.bf16.msra.mxu0 0
      %916 = vmatprep.subr.bf16.mxu0 0
      %917 = vmatpush1.bf16.msra.mxu0 0
      %918 = vmatprep.subr.bf16.mxu0 0
      %919 = vmatpush1.bf16.msra.mxu0 0
      %920 = vmatprep.subr.bf16.mxu0 0
      %921 = vmatpush1.bf16.msra.mxu0 0
      %922 = vmatprep.subr.bf16.mxu0 0
      %923 = vmatpush1.bf16.msra.mxu0 0
      %924 = vmatprep.subr.bf16.mxu0 0
      %925 = vmatpush1.bf16.msra.mxu0 0
      %926 = vmatprep.mubr.bf16.mxu0 0
      %927 = vmatmul.mubr.bf16.gmra.mrb[0].mxu0 %v844
      %v928 = vpop.f32.mrb[0].mxu0
      %v929 = vadd.f32 %v717, %v928
      %v930 = vpop.f32.mrb[0].mxu0
      %v931 = vpop.f32.mrb[0].mxu0
      %v932 = vadd.f32 %v720, %v931
      %v933 = vpop.f32.mrb[0].mxu0
      %934 = vmatprep.mubr.bf16.mxu0 0
      %935 = vmatmul.mubr.bf16.gmra.mrb[0].mxu0 %v847
      %v936 = vpop.f32.mrb[0].mxu0
      %v937 = vadd.f32 %v725, %v936
      %v938 = vpop.f32.mrb[0].mxu0
      %v939 = vpop.f32.mrb[0].mxu0
      %v940 = vadd.f32 %v728, %v939
      %v941 = vpop.f32.mrb[0].mxu0
      %942 = vmatprep.mubr.bf16.mxu0 0
      %943 = vmatmul.mubr.bf16.gmra.mrb[0].mxu0 %v850
      %v944 = vpop.f32.mrb[0].mxu0
      %v945 = vadd.f32 %v733, %v944
      %v946 = vpop.f32.mrb[0].mxu0
      %v947 = vpop.f32.mrb[0].mxu0
      %v948 = vadd.f32 %v736, %v947
      %v949 = vpop.f32.mrb[0].mxu0
      %950 = vmatprep.mubr.bf16.mxu0 0
      %951 = vmatmul.mubr.bf16.gmra.mrb[0].mxu0 %v853
      %v952 = vpop.f32.mrb[0].mxu0
      %v953 = vadd.f32 %v741, %v952
      %v954 = vpop.f32.mrb[0].mxu0
      %v955 = vpop.f32.mrb[0].mxu0
      %v956 = vadd.f32 %v744, %v955
      %v957 = vpop.f32.mrb[0].mxu0
      %958 = vmatprep.mubr.bf16.mxu0 0
      %959 = vmatmul.mubr.bf16.gmra.mrb[0].mxu0 %v856
      %v960 = vpop.f32.mrb[0].mxu0
      %v961 = vadd.f32 %v749, %v960
      %v962 = vpop.f32.mrb[0].mxu0
      %v963 = vpop.f32.mrb[0].mxu0
      %v964 = vadd.f32 %v752, %v963
      %v965 = vpop.f32.mrb[0].mxu0
      %966 = vmatprep.mubr.bf16.mxu0 0
      %967 = vmatmul.mubr.bf16.gmra.mrb[0].mxu0 %v859
      %v968 = vpop.f32.mrb[0].mxu0
      %v969 = vadd.f32 %v757, %v968
      %v970 = vpop.f32.mrb[0].mxu0
      %v971 = vpop.f32.mrb[0].mxu0
      %v972 = vadd.f32 %v760, %v971
      %v973 = vpop.f32.mrb[0].mxu0
      %974 = vmatprep.mubr.bf16.mxu0 0
      %975 = vmatmul.mubr.bf16.gmra.mrb[0].mxu0 %v862
      %v976 = vpop.f32.mrb[0].mxu0
      %v977 = vadd.f32 %v765, %v976
      %v978 = vpop.f32.mrb[0].mxu0
      %v979 = vpop.f32.mrb[0].mxu0
      %v980 = vadd.f32 %v768, %v979
      %v981 = vpop.f32.mrb[0].mxu0
      %982 = vmatprep.mubr.bf16.mxu0 0
      %983 = vmatmul.mubr.bf16.gmra.mrb[0].mxu0 %v865
      %v984 = vpop.f32.mrb[0].mxu0
      %v985 = vadd.f32 %v773, %v984
      %v986 = vpop.f32.mrb[0].mxu0
      %v987 = vpop.f32.mrb[0].mxu0
      %v988 = vadd.f32 %v776, %v987
      %v989 = vpop.f32.mrb[0].mxu0
      %990 = vmatprep.mubr.bf16.mxu0 0
      %991 = vmatmul.mubr.bf16.gmra.mrb[0].mxu0 %v868
      %v992 = vpop.f32.mrb[0].mxu0
      %v993 = vadd.f32 %v781, %v992
      %v994 = vpop.f32.mrb[0].mxu0
      %v995 = vpop.f32.mrb[0].mxu0
      %v996 = vadd.f32 %v784, %v995
      %v997 = vpop.f32.mrb[0].mxu0
      %998 = vmatprep.mubr.bf16.mxu0 0
      %999 = vmatmul.mubr.bf16.gmra.mrb[0].mxu0 %v871
      %v1000 = vpop.f32.mrb[0].mxu0
      %v1001 = vadd.f32 %v789, %v1000
      %v1002 = vpop.f32.mrb[0].mxu0
      %v1003 = vpop.f32.mrb[0].mxu0
      %v1004 = vadd.f32 %v792, %v1003
      %v1005 = vpop.f32.mrb[0].mxu0
      %1006 = vmatprep.mubr.bf16.mxu0 0
      %1007 = vmatmul.mubr.bf16.gmra.mrb[0].mxu0 %v874
      %v1008 = vpop.f32.mrb[0].mxu0
      %v1009 = vadd.f32 %v797, %v1008
      %v1010 = vpop.f32.mrb[0].mxu0
      %v1011 = vpop.f32.mrb[0].mxu0
      %v1012 = vadd.f32 %v800, %v1011
      %v1013 = vpop.f32.mrb[0].mxu0
      %1014 = vmatprep.mubr.bf16.mxu0 0
      %1015 = vmatmul.mubr.bf16.gmra.mrb[0].mxu0 %v877
      %v1016 = vpop.f32.mrb[0].mxu0
      %v1017 = vadd.f32 %v805, %v1016
      %v1018 = vpop.f32.mrb[0].mxu0
      %v1019 = vpop.f32.mrb[0].mxu0
      %v1020 = vadd.f32 %v808, %v1019
      %v1021 = vpop.f32.mrb[0].mxu0
      %1022 = vmatprep.mubr.bf16.mxu0 0
      %1023 = vmatmul.mubr.bf16.gmra.mrb[0].mxu0 %v880
      %v1024 = vpop.f32.mrb[0].mxu0
      %v1025 = vadd.f32 %v813, %v1024
      %v1026 = vpop.f32.mrb[0].mxu0
      %v1027 = vpop.f32.mrb[0].mxu0
      %v1028 = vadd.f32 %v816, %v1027
      %v1029 = vpop.f32.mrb[0].mxu0
      %1030 = vmatprep.mubr.bf16.mxu0 0
      %1031 = vmatmul.mubr.bf16.gmra.mrb[0].mxu0 %v883
      %v1032 = vpop.f32.mrb[0].mxu0
      %v1033 = vadd.f32 %v821, %v1032
      %v1034 = vpop.f32.mrb[0].mxu0
      %v1035 = vpop.f32.mrb[0].mxu0
      %v1036 = vadd.f32 %v824, %v1035
      %v1037 = vpop.f32.mrb[0].mxu0
      %1038 = vmatprep.mubr.bf16.mxu0 0
      %1039 = vmatmul.mubr.bf16.gmra.mrb[0].mxu0 %v886
      %v1040 = vpop.f32.mrb[0].mxu0
      %v1041 = vadd.f32 %v829, %v1040
      %v1042 = vpop.f32.mrb[0].mxu0
      %v1043 = vpop.f32.mrb[0].mxu0
      %v1044 = vadd.f32 %v832, %v1043
      %v1045 = vpop.f32.mrb[0].mxu0
      %1046 = vmatprep.mubr.bf16.mxu0 0
      %1047 = vmatmul.mubr.bf16.gmra.mrb[0].mxu0 %v889
      %v1048 = vpop.f32.mrb[0].mxu0
      %v1049 = vadd.f32 %v837, %v1048
      %v1050 = vpop.f32.mrb[0].mxu0
      %v1051 = vpop.f32.mrb[0].mxu0
      %v1052 = vadd.f32 %v840, %v1051
      %v1053 = vpop.f32.mrb[0].mxu0
      %1054 = vdwg.mxu0
      %v1055 = vld [vmem:[#allocation2 + $0x9] sm:$0xff]
      %v1056 = vld [vmem:[#allocation2 + $0x11] sm:$0xff]
      %v1057 = vld [vmem:[#allocation2 + $0x29] sm:$0xff]
      %v1058 = vld [vmem:[#allocation2 + $0x31] sm:$0xff]
      %v1059 = vld [vmem:[#allocation2 + $0x49] sm:$0xff]
      %v1060 = vld [vmem:[#allocation2 + $0x51] sm:$0xff]
      %v1061 = vld [vmem:[#allocation2 + $0x69] sm:$0xff]
      %v1062 = vld [vmem:[#allocation2 + $0x71] sm:$0xff]
      %v1063 = vld [vmem:[#allocation2 + $0x89] sm:$0xff]
      %v1064 = vld [vmem:[#allocation2 + $0x91] sm:$0xff]
      %v1065 = vld [vmem:[#allocation2 + $0xa9] sm:$0xff]
      %v1066 = vld [vmem:[#allocation2 + $0xb1] sm:$0xff]
      %v1067 = vld [vmem:[#allocation2 + $0xc9] sm:$0xff]
      %v1068 = vld [vmem:[#allocation2 + $0xd1] sm:$0xff]
      %v1069 = vld [vmem:[#allocation2 + $0xe9] sm:$0xff]
      %v1070 = vld [vmem:[#allocation2 + $0xf1] sm:$0xff]
      %v1071 = vld [vmem:[#allocation2 + $0x109] sm:$0xff]
      %v1072 = vld [vmem:[#allocation2 + $0x111] sm:$0xff]
      %v1073 = vld [vmem:[#allocation2 + $0x129] sm:$0xff]
      %v1074 = vld [vmem:[#allocation2 + $0x131] sm:$0xff]
      %v1075 = vld [vmem:[#allocation2 + $0x149] sm:$0xff]
      %v1076 = vld [vmem:[#allocation2 + $0x151] sm:$0xff]
      %v1077 = vld [vmem:[#allocation2 + $0x169] sm:$0xff]
      %v1078 = vld [vmem:[#allocation2 + $0x171] sm:$0xff]
      %v1079 = vld [vmem:[#allocation2 + $0x189] sm:$0xff]
      %v1080 = vld [vmem:[#allocation2 + $0x191] sm:$0xff]
      %v1081 = vld [vmem:[#allocation2 + $0x1a9] sm:$0xff]
      %v1082 = vld [vmem:[#allocation2 + $0x1b1] sm:$0xff]
      %v1083 = vld [vmem:[#allocation2 + $0x1c9] sm:$0xff]
      %v1084 = vld [vmem:[#allocation2 + $0x1d1] sm:$0xff]
      %v1085 = vld [vmem:[#allocation2 + $0x1e9] sm:$0xff]
      %v1086 = vld [vmem:[#allocation2 + $0x1f1] sm:$0xff]
      %v1087 = vpack.c.bf16 %v1056, %v1055
      %v1088 = vpack.c.bf16 %v1058, %v1057
      %v1089 = vpack.c.bf16 %v1060, %v1059
      %v1090 = vpack.c.bf16 %v1062, %v1061
      %v1091 = vpack.c.bf16 %v1064, %v1063
      %v1092 = vpack.c.bf16 %v1066, %v1065
      %v1093 = vpack.c.bf16 %v1068, %v1067
      %v1094 = vpack.c.bf16 %v1070, %v1069
      %v1095 = vpack.c.bf16 %v1072, %v1071
      %v1096 = vpack.c.bf16 %v1074, %v1073
      %v1097 = vpack.c.bf16 %v1076, %v1075
      %v1098 = vpack.c.bf16 %v1078, %v1077
      %v1099 = vpack.c.bf16 %v1080, %v1079
      %v1100 = vpack.c.bf16 %v1082, %v1081
      %v1101 = vpack.c.bf16 %v1084, %v1083
      %v1102 = vpack.c.bf16 %v1086, %v1085
      %s1103 = scalar_lea.vmem %s1, 4
      %v1104 = vld [vmem:[%s1103] sm:$0x3]
      %v1106 = vsel %vm393, %v1087, 0
      %v1109 = vsel %vm393, %v1088, 0
      %v1112 = vsel %vm393, %v1089, 0
      %v1115 = vsel %vm393, %v1090, 0
      %v1118 = vsel %vm393, %v1091, 0
      %v1121 = vsel %vm393, %v1092, 0
      %v1124 = vsel %vm393, %v1093, 0
      %v1127 = vsel %vm393, %v1094, 0
      %v1130 = vsel %vm393, %v1095, 0
      %v1133 = vsel %vm393, %v1096, 0
      %v1136 = vsel %vm393, %v1097, 0
      %v1139 = vsel %vm393, %v1098, 0
      %v1142 = vsel %vm393, %v1099, 0
      %v1145 = vsel %vm393, %v1100, 0
      %v1148 = vsel %vm393, %v1101, 0
      %v1151 = vsel %vm393, %v1102, 0
      %v1154 = vsel %vm678, %v1104, 0
      %1156 = vmatprep.subr.bf16.mxu0 0
      %1157 = vmatpush1.bf16.msra.mxu0 %v1154
      %1158 = vmatprep.subr.bf16.mxu0 0
      %1159 = vmatpush1.bf16.msra.mxu0 0
      %1160 = vmatprep.subr.bf16.mxu0 0
      %1161 = vmatpush1.bf16.msra.mxu0 0
      %1162 = vmatprep.subr.bf16.mxu0 0
      %1163 = vmatpush1.bf16.msra.mxu0 0
      %1164 = vmatprep.subr.bf16.mxu0 0
      %1165 = vmatpush1.bf16.msra.mxu0 0
      %1166 = vmatprep.subr.bf16.mxu0 0
      %1167 = vmatpush1.bf16.msra.mxu0 0
      %1168 = vmatprep.subr.bf16.mxu0 0
      %1169 = vmatpush1.bf16.msra.mxu0 0
      %1170 = vmatprep.subr.bf16.mxu0 0
      %1171 = vmatpush1.bf16.msra.mxu0 0
      %1172 = vmatprep.subr.bf16.mxu0 0
      %1173 = vmatpush1.bf16.msra.mxu0 0
      %1174 = vmatprep.subr.bf16.mxu0 0
      %1175 = vmatpush1.bf16.msra.mxu0 0
      %1176 = vmatprep.subr.bf16.mxu0 0
      %1177 = vmatpush1.bf16.msra.mxu0 0
      %1178 = vmatprep.subr.bf16.mxu0 0
      %1179 = vmatpush1.bf16.msra.mxu0 0
      %1180 = vmatprep.subr.bf16.mxu0 0
      %1181 = vmatpush1.bf16.msra.mxu0 0
      %1182 = vmatprep.subr.bf16.mxu0 0
      %1183 = vmatpush1.bf16.msra.mxu0 0
      %1184 = vmatprep.subr.bf16.mxu0 0
      %1185 = vmatpush1.bf16.msra.mxu0 0
      %1186 = vmatprep.subr.bf16.mxu0 0
      %1187 = vmatpush1.bf16.msra.mxu0 0
      %1188 = vmatprep.mubr.bf16.mxu0 0
      %1189 = vmatmul.mubr.bf16.gmra.mrb[0].mxu0 %v1106
      %v1190 = vpop.f32.mrb[0].mxu0
      %v1191 = vadd.f32 0.0, %v1190
      %v1192 = vpop.f32.mrb[0].mxu0
      %v1193 = vpop.f32.mrb[0].mxu0
      %v1194 = vadd.f32 0.0, %v1193
      %v1195 = vpop.f32.mrb[0].mxu0
      %1196 = vmatprep.mubr.bf16.mxu0 0
      %1197 = vmatmul.mubr.bf16.gmra.mrb[0].mxu0 %v1109
      %v1198 = vpop.f32.mrb[0].mxu0
      %v1199 = vadd.f32 0.0, %v1198
      %v1200 = vpop.f32.mrb[0].mxu0
      %v1201 = vpop.f32.mrb[0].mxu0
      %v1202 = vadd.f32 0.0, %v1201
      %v1203 = vpop.f32.mrb[0].mxu0
      %1204 = vmatprep.mubr.bf16.mxu0 0
      %1205 = vmatmul.mubr.bf16.gmra.mrb[0].mxu0 %v1112
      %v1206 = vpop.f32.mrb[0].mxu0
      %v1207 = vadd.f32 0.0, %v1206
      %v1208 = vpop.f32.mrb[0].mxu0
      %v1209 = vpop.f32.mrb[0].mxu0
      %v1210 = vadd.f32 0.0, %v1209
      %v1211 = vpop.f32.mrb[0].mxu0
      %1212 = vmatprep.mubr.bf16.mxu0 0
      %1213 = vmatmul.mubr.bf16.gmra.mrb[0].mxu0 %v1115
      %v1214 = vpop.f32.mrb[0].mxu0
      %v1215 = vadd.f32 0.0, %v1214
      %v1216 = vpop.f32.mrb[0].mxu0
      %v1217 = vpop.f32.mrb[0].mxu0
      %v1218 = vadd.f32 0.0, %v1217
      %v1219 = vpop.f32.mrb[0].mxu0
      %1220 = vmatprep.mubr.bf16.mxu0 0
      %1221 = vmatmul.mubr.bf16.gmra.mrb[0].mxu0 %v1118
      %v1222 = vpop.f32.mrb[0].mxu0
      %v1223 = vadd.f32 0.0, %v1222
      %v1224 = vpop.f32.mrb[0].mxu0
      %v1225 = vpop.f32.mrb[0].mxu0
      %v1226 = vadd.f32 0.0, %v1225
      %v1227 = vpop.f32.mrb[0].mxu0
      %1228 = vmatprep.mubr.bf16.mxu0 0
      %1229 = vmatmul.mubr.bf16.gmra.mrb[0].mxu0 %v1121
      %v1230 = vpop.f32.mrb[0].mxu0
      %v1231 = vadd.f32 0.0, %v1230
      %v1232 = vpop.f32.mrb[0].mxu0
      %v1233 = vpop.f32.mrb[0].mxu0
      %v1234 = vadd.f32 0.0, %v1233
      %v1235 = vpop.f32.mrb[0].mxu0
      %1236 = vmatprep.mubr.bf16.mxu0 0
      %1237 = vmatmul.mubr.bf16.gmra.mrb[0].mxu0 %v1124
      %v1238 = vpop.f32.mrb[0].mxu0
      %v1239 = vadd.f32 0.0, %v1238
      %v1240 = vpop.f32.mrb[0].mxu0
      %v1241 = vpop.f32.mrb[0].mxu0
      %v1242 = vadd.f32 0.0, %v1241
      %v1243 = vpop.f32.mrb[0].mxu0
      %1244 = vmatprep.mubr.bf16.mxu0 0
      %1245 = vmatmul.mubr.bf16.gmra.mrb[0].mxu0 %v1127
      %v1246 = vpop.f32.mrb[0].mxu0
      %v1247 = vadd.f32 0.0, %v1246
      %v1248 = vpop.f32.mrb[0].mxu0
      %v1249 = vpop.f32.mrb[0].mxu0
      %v1250 = vadd.f32 0.0, %v1249
      %v1251 = vpop.f32.mrb[0].mxu0
      %1252 = vmatprep.mubr.bf16.mxu0 0
      %1253 = vmatmul.mubr.bf16.gmra.mrb[0].mxu0 %v1130
      %v1254 = vpop.f32.mrb[0].mxu0
      %v1255 = vadd.f32 0.0, %v1254
      %v1256 = vpop.f32.mrb[0].mxu0
      %v1257 = vpop.f32.mrb[0].mxu0
      %v1258 = vadd.f32 0.0, %v1257
      %v1259 = vpop.f32.mrb[0].mxu0
      %1260 = vmatprep.mubr.bf16.mxu0 0
      %1261 = vmatmul.mubr.bf16.gmra.mrb[0].mxu0 %v1133
      %v1262 = vpop.f32.mrb[0].mxu0
      %v1263 = vadd.f32 0.0, %v1262
      %v1264 = vpop.f32.mrb[0].mxu0
      %v1265 = vpop.f32.mrb[0].mxu0
      %v1266 = vadd.f32 0.0, %v1265
      %v1267 = vpop.f32.mrb[0].mxu0
      %1268 = vmatprep.mubr.bf16.mxu0 0
      %1269 = vmatmul.mubr.bf16.gmra.mrb[0].mxu0 %v1136
      %v1270 = vpop.f32.mrb[0].mxu0
      %v1271 = vadd.f32 0.0, %v1270
      %v1272 = vpop.f32.mrb[0].mxu0
      %v1273 = vpop.f32.mrb[0].mxu0
      %v1274 = vadd.f32 0.0, %v1273
      %v1275 = vpop.f32.mrb[0].mxu0
      %1276 = vmatprep.mubr.bf16.mxu0 0
      %1277 = vmatmul.mubr.bf16.gmra.mrb[0].mxu0 %v1139
      %v1278 = vpop.f32.mrb[0].mxu0
      %v1279 = vadd.f32 0.0, %v1278
      %v1280 = vpop.f32.mrb[0].mxu0
      %v1281 = vpop.f32.mrb[0].mxu0
      %v1282 = vadd.f32 0.0, %v1281
      %v1283 = vpop.f32.mrb[0].mxu0
      %1284 = vmatprep.mubr.bf16.mxu0 0
      %1285 = vmatmul.mubr.bf16.gmra.mrb[0].mxu0 %v1142
      %v1286 = vpop.f32.mrb[0].mxu0
      %v1287 = vadd.f32 0.0, %v1286
      %v1288 = vpop.f32.mrb[0].mxu0
      %v1289 = vpop.f32.mrb[0].mxu0
      %v1290 = vadd.f32 0.0, %v1289
      %v1291 = vpop.f32.mrb[0].mxu0
      %1292 = vmatprep.mubr.bf16.mxu0 0
      %1293 = vmatmul.mubr.bf16.gmra.mrb[0].mxu0 %v1145
      %v1294 = vpop.f32.mrb[0].mxu0
      %v1295 = vadd.f32 0.0, %v1294
      %v1296 = vpop.f32.mrb[0].mxu0
      %v1297 = vpop.f32.mrb[0].mxu0
      %v1298 = vadd.f32 0.0, %v1297
      %v1299 = vpop.f32.mrb[0].mxu0
      %1300 = vmatprep.mubr.bf16.mxu0 0
      %1301 = vmatmul.mubr.bf16.gmra.mrb[0].mxu0 %v1148
      %v1302 = vpop.f32.mrb[0].mxu0
      %v1303 = vadd.f32 0.0, %v1302
      %v1304 = vpop.f32.mrb[0].mxu0
      %v1305 = vpop.f32.mrb[0].mxu0
      %v1306 = vadd.f32 0.0, %v1305
      %v1307 = vpop.f32.mrb[0].mxu0
      %1308 = vmatprep.mubr.bf16.mxu0 0
      %1309 = vmatmul.mubr.bf16.gmra.mrb[0].mxu0 %v1151
      %v1310 = vpop.f32.mrb[0].mxu0
      %v1311 = vadd.f32 0.0, %v1310
      %v1312 = vpop.f32.mrb[0].mxu0
      %v1313 = vpop.f32.mrb[0].mxu0
      %v1314 = vadd.f32 0.0, %v1313
      %v1315 = vpop.f32.mrb[0].mxu0
      %1316 = vdwg.mxu0
      %v1317 = vadd.f32 %v929, %v1191
      %v1318 = vadd.f32 %v932, %v1194
      %v1319 = vadd.f32 %v937, %v1199
      %v1320 = vadd.f32 %v940, %v1202
      %v1321 = vadd.f32 %v945, %v1207
      %v1322 = vadd.f32 %v948, %v1210
      %v1323 = vadd.f32 %v953, %v1215
      %v1324 = vadd.f32 %v956, %v1218
      %v1325 = vadd.f32 %v961, %v1223
      %v1326 = vadd.f32 %v964, %v1226
      %v1327 = vadd.f32 %v969, %v1231
      %v1328 = vadd.f32 %v972, %v1234
      %v1329 = vadd.f32 %v977, %v1239
      %v1330 = vadd.f32 %v980, %v1242
      %v1331 = vadd.f32 %v985, %v1247
      %v1332 = vadd.f32 %v988, %v1250
      %v1333 = vadd.f32 %v993, %v1255
      %v1334 = vadd.f32 %v996, %v1258
      %v1335 = vadd.f32 %v1001, %v1263
      %v1336 = vadd.f32 %v1004, %v1266
      %v1337 = vadd.f32 %v1009, %v1271
      %v1338 = vadd.f32 %v1012, %v1274
      %v1339 = vadd.f32 %v1017, %v1279
      %v1340 = vadd.f32 %v1020, %v1282
      %v1341 = vadd.f32 %v1025, %v1287
      %v1342 = vadd.f32 %v1028, %v1290
      %v1343 = vadd.f32 %v1033, %v1295
      %v1344 = vadd.f32 %v1036, %v1298
      %v1345 = vadd.f32 %v1041, %v1303
      %v1346 = vadd.f32 %v1044, %v1306
      %v1347 = vadd.f32 %v1049, %v1311
      %v1348 = vadd.f32 %v1052, %v1314
      %v1349 = vld [vmem:[%s498 + $0x7] sm:$0xff]
      %v1350 = vld [vmem:[%s498 + $0xf] sm:$0xff]
      %v1351 = vld [vmem:[%s498 + $0x27] sm:$0xff]
      %v1352 = vld [vmem:[%s498 + $0x2f] sm:$0xff]
      %v1353 = vld [vmem:[%s498 + $0x47] sm:$0xff]
      %v1354 = vld [vmem:[%s498 + $0x4f] sm:$0xff]
      %v1355 = vld [vmem:[%s498 + $0x67] sm:$0xff]
      %v1356 = vld [vmem:[%s498 + $0x6f] sm:$0xff]
      %v1357 = vld [vmem:[%s498 + $0x87] sm:$0xff]
      %v1358 = vld [vmem:[%s498 + $0x8f] sm:$0xff]
      %v1359 = vld [vmem:[%s498 + $0xa7] sm:$0xff]
      %v1360 = vld [vmem:[%s498 + $0xaf] sm:$0xff]
      %v1361 = vld [vmem:[%s498 + $0xc7] sm:$0xff]
      %v1362 = vld [vmem:[%s498 + $0xcf] sm:$0xff]
      %v1363 = vld [vmem:[%s498 + $0xe7] sm:$0xff]
      %v1364 = vld [vmem:[%s498 + $0xef] sm:$0xff]
      %v1365 = vld [vmem:[%s498 + $0x107] sm:$0xff]
      %v1366 = vld [vmem:[%s498 + $0x10f] sm:$0xff]
      %v1367 = vld [vmem:[%s498 + $0x127] sm:$0xff]
      %v1368 = vld [vmem:[%s498 + $0x12f] sm:$0xff]
      %v1369 = vld [vmem:[%s498 + $0x147] sm:$0xff]
      %v1370 = vld [vmem:[%s498 + $0x14f] sm:$0xff]
      %v1371 = vld [vmem:[%s498 + $0x167] sm:$0xff]
      %v1372 = vld [vmem:[%s498 + $0x16f] sm:$0xff]
      %v1373 = vld [vmem:[%s498 + $0x187] sm:$0xff]
      %v1374 = vld [vmem:[%s498 + $0x18f] sm:$0xff]
      %v1375 = vld [vmem:[%s498 + $0x1a7] sm:$0xff]
      %v1376 = vld [vmem:[%s498 + $0x1af] sm:$0xff]
      %v1377 = vld [vmem:[%s498 + $0x1c7] sm:$0xff]
      %v1378 = vld [vmem:[%s498 + $0x1cf] sm:$0xff]
      %v1379 = vld [vmem:[%s498 + $0x1e7] sm:$0xff]
      %v1380 = vld [vmem:[%s498 + $0x1ef] sm:$0xff]
      %v1381 = vpack.c.bf16 %v1350, %v1349
      %v1382 = vpack.c.bf16 %v1352, %v1351
      %v1383 = vpack.c.bf16 %v1354, %v1353
      %v1384 = vpack.c.bf16 %v1356, %v1355
      %v1385 = vpack.c.bf16 %v1358, %v1357
      %v1386 = vpack.c.bf16 %v1360, %v1359
      %v1387 = vpack.c.bf16 %v1362, %v1361
      %v1388 = vpack.c.bf16 %v1364, %v1363
      %v1389 = vpack.c.bf16 %v1366, %v1365
      %v1390 = vpack.c.bf16 %v1368, %v1367
      %v1391 = vpack.c.bf16 %v1370, %v1369
      %v1392 = vpack.c.bf16 %v1372, %v1371
      %v1393 = vpack.c.bf16 %v1374, %v1373
      %v1394 = vpack.c.bf16 %v1376, %v1375
      %v1395 = vpack.c.bf16 %v1378, %v1377
      %v1396 = vpack.c.bf16 %v1380, %v1379
      %s1397 = scalar_lea.vmem %s1, 6
      %v1398 = vld [vmem:[%s1397] sm:$0x3]
      %v1400 = vsel %vm393, %v1381, 0
      %v1403 = vsel %vm393, %v1382, 0
      %v1406 = vsel %vm393, %v1383, 0
      %v1409 = vsel %vm393, %v1384, 0
      %v1412 = vsel %vm393, %v1385, 0
      %v1415 = vsel %vm393, %v1386, 0
      %v1418 = vsel %vm393, %v1387, 0
      %v1421 = vsel %vm393, %v1388, 0
      %v1424 = vsel %vm393, %v1389, 0
      %v1427 = vsel %vm393, %v1390, 0
      %v1430 = vsel %vm393, %v1391, 0
      %v1433 = vsel %vm393, %v1392, 0
      %v1436 = vsel %vm393, %v1393, 0
      %v1439 = vsel %vm393, %v1394, 0
      %v1442 = vsel %vm393, %v1395, 0
      %v1445 = vsel %vm393, %v1396, 0
      %v1448 = vsel %vm678, %v1398, 0
      %1450 = vmatprep.subr.bf16.mxu0 0
      %1451 = vmatpush1.bf16.msra.mxu0 %v1448
      %1452 = vmatprep.subr.bf16.mxu0 0
      %1453 = vmatpush1.bf16.msra.mxu0 0
      %1454 = vmatprep.subr.bf16.mxu0 0
      %1455 = vmatpush1.bf16.msra.mxu0 0
      %1456 = vmatprep.subr.bf16.mxu0 0
      %1457 = vmatpush1.bf16.msra.mxu0 0
      %1458 = vmatprep.subr.bf16.mxu0 0
      %1459 = vmatpush1.bf16.msra.mxu0 0
      %1460 = vmatprep.subr.bf16.mxu0 0
      %1461 = vmatpush1.bf16.msra.mxu0 0
      %1462 = vmatprep.subr.bf16.mxu0 0
      %1463 = vmatpush1.bf16.msra.mxu0 0
      %1464 = vmatprep.subr.bf16.mxu0 0
      %1465 = vmatpush1.bf16.msra.mxu0 0
      %1466 = vmatprep.subr.bf16.mxu0 0
      %1467 = vmatpush1.bf16.msra.mxu0 0
      %1468 = vmatprep.subr.bf16.mxu0 0
      %1469 = vmatpush1.bf16.msra.mxu0 0
      %1470 = vmatprep.subr.bf16.mxu0 0
      %1471 = vmatpush1.bf16.msra.mxu0 0
      %1472 = vmatprep.subr.bf16.mxu0 0
      %1473 = vmatpush1.bf16.msra.mxu0 0
      %1474 = vmatprep.subr.bf16.mxu0 0
      %1475 = vmatpush1.bf16.msra.mxu0 0
      %1476 = vmatprep.subr.bf16.mxu0 0
      %1477 = vmatpush1.bf16.msra.mxu0 0
      %1478 = vmatprep.subr.bf16.mxu0 0
      %1479 = vmatpush1.bf16.msra.mxu0 0
      %1480 = vmatprep.subr.bf16.mxu0 0
      %1481 = vmatpush1.bf16.msra.mxu0 0
      %1482 = vmatprep.mubr.bf16.mxu0 0
      %1483 = vmatmul.mubr.bf16.gmra.mrb[0].mxu0 %v1400
      %v1484 = vpop.f32.mrb[0].mxu0
      %v1485 = vadd.f32 0.0, %v1484
      %v1486 = vpop.f32.mrb[0].mxu0
      %v1487 = vpop.f32.mrb[0].mxu0
      %v1488 = vadd.f32 0.0, %v1487
      %v1489 = vpop.f32.mrb[0].mxu0
      %1490 = vmatprep.mubr.bf16.mxu0 0
      %1491 = vmatmul.mubr.bf16.gmra.mrb[0].mxu0 %v1403
      %v1492 = vpop.f32.mrb[0].mxu0
      %v1493 = vadd.f32 0.0, %v1492
      %v1494 = vpop.f32.mrb[0].mxu0
      %v1495 = vpop.f32.mrb[0].mxu0
      %v1496 = vadd.f32 0.0, %v1495
      %v1497 = vpop.f32.mrb[0].mxu0
      %1498 = vmatprep.mubr.bf16.mxu0 0
      %1499 = vmatmul.mubr.bf16.gmra.mrb[0].mxu0 %v1406
      %v1500 = vpop.f32.mrb[0].mxu0
      %v1501 = vadd.f32 0.0, %v1500
      %v1502 = vpop.f32.mrb[0].mxu0
      %v1503 = vpop.f32.mrb[0].mxu0
      %v1504 = vadd.f32 0.0, %v1503
      %v1505 = vpop.f32.mrb[0].mxu0
      %1506 = vmatprep.mubr.bf16.mxu0 0
      %1507 = vmatmul.mubr.bf16.gmra.mrb[0].mxu0 %v1409
      %v1508 = vpop.f32.mrb[0].mxu0
      %v1509 = vadd.f32 0.0, %v1508
      %v1510 = vpop.f32.mrb[0].mxu0
      %v1511 = vpop.f32.mrb[0].mxu0
      %v1512 = vadd.f32 0.0, %v1511
      %v1513 = vpop.f32.mrb[0].mxu0
      %1514 = vmatprep.mubr.bf16.mxu0 0
      %1515 = vmatmul.mubr.bf16.gmra.mrb[0].mxu0 %v1412
      %v1516 = vpop.f32.mrb[0].mxu0
      %v1517 = vadd.f32 0.0, %v1516
      %v1518 = vpop.f32.mrb[0].mxu0
      %v1519 = vpop.f32.mrb[0].mxu0
      %v1520 = vadd.f32 0.0, %v1519
      %v1521 = vpop.f32.mrb[0].mxu0
      %1522 = vmatprep.mubr.bf16.mxu0 0
      %1523 = vmatmul.mubr.bf16.gmra.mrb[0].mxu0 %v1415
      %v1524 = vpop.f32.mrb[0].mxu0
      %v1525 = vadd.f32 0.0, %v1524
      %v1526 = vpop.f32.mrb[0].mxu0
      %v1527 = vpop.f32.mrb[0].mxu0
      %v1528 = vadd.f32 0.0, %v1527
      %v1529 = vpop.f32.mrb[0].mxu0
      %1530 = vmatprep.mubr.bf16.mxu0 0
      %1531 = vmatmul.mubr.bf16.gmra.mrb[0].mxu0 %v1418
      %v1532 = vpop.f32.mrb[0].mxu0
      %v1533 = vadd.f32 0.0, %v1532
      %v1534 = vpop.f32.mrb[0].mxu0
      %v1535 = vpop.f32.mrb[0].mxu0
      %v1536 = vadd.f32 0.0, %v1535
      %v1537 = vpop.f32.mrb[0].mxu0
      %1538 = vmatprep.mubr.bf16.mxu0 0
      %1539 = vmatmul.mubr.bf16.gmra.mrb[0].mxu0 %v1421
      %v1540 = vpop.f32.mrb[0].mxu0
      %v1541 = vadd.f32 0.0, %v1540
      %v1542 = vpop.f32.mrb[0].mxu0
      %v1543 = vpop.f32.mrb[0].mxu0
      %v1544 = vadd.f32 0.0, %v1543
      %v1545 = vpop.f32.mrb[0].mxu0
      %1546 = vmatprep.mubr.bf16.mxu0 0
      %1547 = vmatmul.mubr.bf16.gmra.mrb[0].mxu0 %v1424
      %v1548 = vpop.f32.mrb[0].mxu0
      %v1549 = vadd.f32 0.0, %v1548
      %v1550 = vpop.f32.mrb[0].mxu0
      %v1551 = vpop.f32.mrb[0].mxu0
      %v1552 = vadd.f32 0.0, %v1551
      %v1553 = vpop.f32.mrb[0].mxu0
      %1554 = vmatprep.mubr.bf16.mxu0 0
      %1555 = vmatmul.mubr.bf16.gmra.mrb[0].mxu0 %v1427
      %v1556 = vpop.f32.mrb[0].mxu0
      %v1557 = vadd.f32 0.0, %v1556
      %v1558 = vpop.f32.mrb[0].mxu0
      %v1559 = vpop.f32.mrb[0].mxu0
      %v1560 = vadd.f32 0.0, %v1559
      %v1561 = vpop.f32.mrb[0].mxu0
      %1562 = vmatprep.mubr.bf16.mxu0 0
      %1563 = vmatmul.mubr.bf16.gmra.mrb[0].mxu0 %v1430
      %v1564 = vpop.f32.mrb[0].mxu0
      %v1565 = vadd.f32 0.0, %v1564
      %v1566 = vpop.f32.mrb[0].mxu0
      %v1567 = vpop.f32.mrb[0].mxu0
      %v1568 = vadd.f32 0.0, %v1567
      %v1569 = vpop.f32.mrb[0].mxu0
      %1570 = vmatprep.mubr.bf16.mxu0 0
      %1571 = vmatmul.mubr.bf16.gmra.mrb[0].mxu0 %v1433
      %v1572 = vpop.f32.mrb[0].mxu0
      %v1573 = vadd.f32 0.0, %v1572
      %v1574 = vpop.f32.mrb[0].mxu0
      %v1575 = vpop.f32.mrb[0].mxu0
      %v1576 = vadd.f32 0.0, %v1575
      %v1577 = vpop.f32.mrb[0].mxu0
      %1578 = vmatprep.mubr.bf16.mxu0 0
      %1579 = vmatmul.mubr.bf16.gmra.mrb[0].mxu0 %v1436
      %v1580 = vpop.f32.mrb[0].mxu0
      %v1581 = vadd.f32 0.0, %v1580
      %v1582 = vpop.f32.mrb[0].mxu0
      %v1583 = vpop.f32.mrb[0].mxu0
      %v1584 = vadd.f32 0.0, %v1583
      %v1585 = vpop.f32.mrb[0].mxu0
      %1586 = vmatprep.mubr.bf16.mxu0 0
      %1587 = vmatmul.mubr.bf16.gmra.mrb[0].mxu0 %v1439
      %v1588 = vpop.f32.mrb[0].mxu0
      %v1589 = vadd.f32 0.0, %v1588
      %v1590 = vpop.f32.mrb[0].mxu0
      %v1591 = vpop.f32.mrb[0].mxu0
      %v1592 = vadd.f32 0.0, %v1591
      %v1593 = vpop.f32.mrb[0].mxu0
      %1594 = vmatprep.mubr.bf16.mxu0 0
      %1595 = vmatmul.mubr.bf16.gmra.mrb[0].mxu0 %v1442
      %v1596 = vpop.f32.mrb[0].mxu0
      %v1597 = vadd.f32 0.0, %v1596
      %v1598 = vpop.f32.mrb[0].mxu0
      %v1599 = vpop.f32.mrb[0].mxu0
      %v1600 = vadd.f32 0.0, %v1599
      %v1601 = vpop.f32.mrb[0].mxu0
      %1602 = vmatprep.mubr.bf16.mxu0 0
      %1603 = vmatmul.mubr.bf16.gmra.mrb[0].mxu0 %v1445
      %v1604 = vpop.f32.mrb[0].mxu0
      %v1605 = vadd.f32 0.0, %v1604
      %v1606 = vpop.f32.mrb[0].mxu0
      %v1607 = vpop.f32.mrb[0].mxu0
      %v1608 = vadd.f32 0.0, %v1607
      %v1609 = vpop.f32.mrb[0].mxu0
      %1610 = vdwg.mxu0
      %v1611 = vadd.f32 %v1317, %v1485
      %v1612 = vadd.f32 %v1318, %v1488
      %v1613 = vadd.f32 %v1319, %v1493
      %v1614 = vadd.f32 %v1320, %v1496
      %v1615 = vadd.f32 %v1321, %v1501
      %v1616 = vadd.f32 %v1322, %v1504
      %v1617 = vadd.f32 %v1323, %v1509
      %v1618 = vadd.f32 %v1324, %v1512
      %v1619 = vadd.f32 %v1325, %v1517
      %v1620 = vadd.f32 %v1326, %v1520
      %v1621 = vadd.f32 %v1327, %v1525
      %v1622 = vadd.f32 %v1328, %v1528
      %v1623 = vadd.f32 %v1329, %v1533
      %v1624 = vadd.f32 %v1330, %v1536
      %v1625 = vadd.f32 %v1331, %v1541
      %v1626 = vadd.f32 %v1332, %v1544
      %v1627 = vadd.f32 %v1333, %v1549
      %v1628 = vadd.f32 %v1334, %v1552
      %v1629 = vadd.f32 %v1335, %v1557
      %v1630 = vadd.f32 %v1336, %v1560
      %v1631 = vadd.f32 %v1337, %v1565
      %v1632 = vadd.f32 %v1338, %v1568
      %v1633 = vadd.f32 %v1339, %v1573
      %v1634 = vadd.f32 %v1340, %v1576
      %v1635 = vadd.f32 %v1341, %v1581
      %v1636 = vadd.f32 %v1342, %v1584
      %v1637 = vadd.f32 %v1343, %v1589
      %v1638 = vadd.f32 %v1344, %v1592
      %v1639 = vadd.f32 %v1345, %v1597
      %v1640 = vadd.f32 %v1346, %v1600
      %v1641 = vadd.f32 %v1347, %v1605
      %v1642 = vadd.f32 %v1348, %v1608
      %v1643 = vld [vmem:[%s498 + $0x8] sm:$0xff]
      %v1644 = vld [vmem:[%s498 + $0x10] sm:$0xff]
      %v1645 = vld [vmem:[%s498 + $0x28] sm:$0xff]
      %v1646 = vld [vmem:[%s498 + $0x30] sm:$0xff]
      %v1647 = vld [vmem:[%s498 + $0x48] sm:$0xff]
      %v1648 = vld [vmem:[%s498 + $0x50] sm:$0xff]
      %v1649 = vld [vmem:[%s498 + $0x68] sm:$0xff]
      %v1650 = vld [vmem:[%s498 + $0x70] sm:$0xff]
      %v1651 = vld [vmem:[%s498 + $0x88] sm:$0xff]
      %v1652 = vld [vmem:[%s498 + $0x90] sm:$0xff]
      %v1653 = vld [vmem:[%s498 + $0xa8] sm:$0xff]
      %v1654 = vld [vmem:[%s498 + $0xb0] sm:$0xff]
      %v1655 = vld [vmem:[%s498 + $0xc8] sm:$0xff]
      %v1656 = vld [vmem:[%s498 + $0xd0] sm:$0xff]
      %v1657 = vld [vmem:[%s498 + $0xe8] sm:$0xff]
      %v1658 = vld [vmem:[%s498 + $0xf0] sm:$0xff]
      %v1659 = vld [vmem:[%s498 + $0x108] sm:$0xff]
      %v1660 = vld [vmem:[%s498 + $0x110] sm:$0xff]
      %v1661 = vld [vmem:[%s498 + $0x128] sm:$0xff]
      %v1662 = vld [vmem:[%s498 + $0x130] sm:$0xff]
      %v1663 = vld [vmem:[%s498 + $0x148] sm:$0xff]
      %v1664 = vld [vmem:[%s498 + $0x150] sm:$0xff]
      %v1665 = vld [vmem:[%s498 + $0x168] sm:$0xff]
      %v1666 = vld [vmem:[%s498 + $0x170] sm:$0xff]
      %v1667 = vld [vmem:[%s498 + $0x188] sm:$0xff]
      %v1668 = vld [vmem:[%s498 + $0x190] sm:$0xff]
      %v1669 = vld [vmem:[%s498 + $0x1a8] sm:$0xff]
      %v1670 = vld [vmem:[%s498 + $0x1b0] sm:$0xff]
      %v1671 = vld [vmem:[%s498 + $0x1c8] sm:$0xff]
      %v1672 = vld [vmem:[%s498 + $0x1d0] sm:$0xff]
      %v1673 = vld [vmem:[%s498 + $0x1e8] sm:$0xff]
      %v1674 = vld [vmem:[%s498 + $0x1f0] sm:$0xff]
      %v1675 = vpack.c.bf16 %v1644, %v1643
      %v1676 = vpack.c.bf16 %v1646, %v1645
      %v1677 = vpack.c.bf16 %v1648, %v1647
      %v1678 = vpack.c.bf16 %v1650, %v1649
      %v1679 = vpack.c.bf16 %v1652, %v1651
      %v1680 = vpack.c.bf16 %v1654, %v1653
      %v1681 = vpack.c.bf16 %v1656, %v1655
      %v1682 = vpack.c.bf16 %v1658, %v1657
      %v1683 = vpack.c.bf16 %v1660, %v1659
      %v1684 = vpack.c.bf16 %v1662, %v1661
      %v1685 = vpack.c.bf16 %v1664, %v1663
      %v1686 = vpack.c.bf16 %v1666, %v1665
      %v1687 = vpack.c.bf16 %v1668, %v1667
      %v1688 = vpack.c.bf16 %v1670, %v1669
      %v1689 = vpack.c.bf16 %v1672, %v1671
      %v1690 = vpack.c.bf16 %v1674, %v1673
      %s1691 = scalar_lea.vmem %s1, 8
      %v1692 = vld [vmem:[%s1691] sm:$0x3]
      %v1694 = vsel %vm393, %v1675, 0
      %v1697 = vsel %vm393, %v1676, 0
      %v1700 = vsel %vm393, %v1677, 0
      %v1703 = vsel %vm393, %v1678, 0
      %v1706 = vsel %vm393, %v1679, 0
      %v1709 = vsel %vm393, %v1680, 0
      %v1712 = vsel %vm393, %v1681, 0
      %v1715 = vsel %vm393, %v1682, 0
      %v1718 = vsel %vm393, %v1683, 0
      %v1721 = vsel %vm393, %v1684, 0
      %v1724 = vsel %vm393, %v1685, 0
      %v1727 = vsel %vm393, %v1686, 0
      %v1730 = vsel %vm393, %v1687, 0
      %v1733 = vsel %vm393, %v1688, 0
      %v1736 = vsel %vm393, %v1689, 0
      %v1739 = vsel %vm393, %v1690, 0
      %v1742 = vsel %vm678, %v1692, 0
      %1744 = vmatprep.subr.bf16.mxu0 0
      %1745 = vmatpush1.bf16.msra.mxu0 %v1742
      %1746 = vmatprep.subr.bf16.mxu0 0
      %1747 = vmatpush1.bf16.msra.mxu0 0
      %1748 = vmatprep.subr.bf16.mxu0 0
      %1749 = vmatpush1.bf16.msra.mxu0 0
      %1750 = vmatprep.subr.bf16.mxu0 0
      %1751 = vmatpush1.bf16.msra.mxu0 0
      %1752 = vmatprep.subr.bf16.mxu0 0
      %1753 = vmatpush1.bf16.msra.mxu0 0
      %1754 = vmatprep.subr.bf16.mxu0 0
      %1755 = vmatpush1.bf16.msra.mxu0 0
      %1756 = vmatprep.subr.bf16.mxu0 0
      %1757 = vmatpush1.bf16.msra.mxu0 0
      %1758 = vmatprep.subr.bf16.mxu0 0
      %1759 = vmatpush1.bf16.msra.mxu0 0
      %1760 = vmatprep.subr.bf16.mxu0 0
      %1761 = vmatpush1.bf16.msra.mxu0 0
      %1762 = vmatprep.subr.bf16.mxu0 0
      %1763 = vmatpush1.bf16.msra.mxu0 0
      %1764 = vmatprep.subr.bf16.mxu0 0
      %1765 = vmatpush1.bf16.msra.mxu0 0
      %1766 = vmatprep.subr.bf16.mxu0 0
      %1767 = vmatpush1.bf16.msra.mxu0 0
      %1768 = vmatprep.subr.bf16.mxu0 0
      %1769 = vmatpush1.bf16.msra.mxu0 0
      %1770 = vmatprep.subr.bf16.mxu0 0
      %1771 = vmatpush1.bf16.msra.mxu0 0
      %1772 = vmatprep.subr.bf16.mxu0 0
      %1773 = vmatpush1.bf16.msra.mxu0 0
      %1774 = vmatprep.subr.bf16.mxu0 0
      %1775 = vmatpush1.bf16.msra.mxu0 0
      %1776 = vmatprep.mubr.bf16.mxu0 0
      %1777 = vmatmul.mubr.bf16.gmra.mrb[0].mxu0 %v1694
      %v1778 = vpop.f32.mrb[0].mxu0
      %v1779 = vadd.f32 0.0, %v1778
      %v1780 = vpop.f32.mrb[0].mxu0
      %v1781 = vpop.f32.mrb[0].mxu0
      %v1782 = vadd.f32 0.0, %v1781
      %v1783 = vpop.f32.mrb[0].mxu0
      %1784 = vmatprep.mubr.bf16.mxu0 0
      %1785 = vmatmul.mubr.bf16.gmra.mrb[0].mxu0 %v1697
      %v1786 = vpop.f32.mrb[0].mxu0
      %v1787 = vadd.f32 0.0, %v1786
      %v1788 = vpop.f32.mrb[0].mxu0
      %v1789 = vpop.f32.mrb[0].mxu0
      %v1790 = vadd.f32 0.0, %v1789
      %v1791 = vpop.f32.mrb[0].mxu0
      %1792 = vmatprep.mubr.bf16.mxu0 0
      %1793 = vmatmul.mubr.bf16.gmra.mrb[0].mxu0 %v1700
      %v1794 = vpop.f32.mrb[0].mxu0
      %v1795 = vadd.f32 0.0, %v1794
      %v1796 = vpop.f32.mrb[0].mxu0
      %v1797 = vpop.f32.mrb[0].mxu0
      %v1798 = vadd.f32 0.0, %v1797
      %v1799 = vpop.f32.mrb[0].mxu0
      %1800 = vmatprep.mubr.bf16.mxu0 0
      %1801 = vmatmul.mubr.bf16.gmra.mrb[0].mxu0 %v1703
      %v1802 = vpop.f32.mrb[0].mxu0
      %v1803 = vadd.f32 0.0, %v1802
      %v1804 = vpop.f32.mrb[0].mxu0
      %v1805 = vpop.f32.mrb[0].mxu0
      %v1806 = vadd.f32 0.0, %v1805
      %v1807 = vpop.f32.mrb[0].mxu0
      %1808 = vmatprep.mubr.bf16.mxu0 0
      %1809 = vmatmul.mubr.bf16.gmra.mrb[0].mxu0 %v1706
      %v1810 = vpop.f32.mrb[0].mxu0
      %v1811 = vadd.f32 0.0, %v1810
      %v1812 = vpop.f32.mrb[0].mxu0
      %v1813 = vpop.f32.mrb[0].mxu0
      %v1814 = vadd.f32 0.0, %v1813
      %v1815 = vpop.f32.mrb[0].mxu0
      %1816 = vmatprep.mubr.bf16.mxu0 0
      %1817 = vmatmul.mubr.bf16.gmra.mrb[0].mxu0 %v1709
      %v1818 = vpop.f32.mrb[0].mxu0
      %v1819 = vadd.f32 0.0, %v1818
      %v1820 = vpop.f32.mrb[0].mxu0
      %v1821 = vpop.f32.mrb[0].mxu0
      %v1822 = vadd.f32 0.0, %v1821
      %v1823 = vpop.f32.mrb[0].mxu0
      %1824 = vmatprep.mubr.bf16.mxu0 0
      %1825 = vmatmul.mubr.bf16.gmra.mrb[0].mxu0 %v1712
      %v1826 = vpop.f32.mrb[0].mxu0
      %v1827 = vadd.f32 0.0, %v1826
      %v1828 = vpop.f32.mrb[0].mxu0
      %v1829 = vpop.f32.mrb[0].mxu0
      %v1830 = vadd.f32 0.0, %v1829
      %v1831 = vpop.f32.mrb[0].mxu0
      %1832 = vmatprep.mubr.bf16.mxu0 0
      %1833 = vmatmul.mubr.bf16.gmra.mrb[0].mxu0 %v1715
      %v1834 = vpop.f32.mrb[0].mxu0
      %v1835 = vadd.f32 0.0, %v1834
      %v1836 = vpop.f32.mrb[0].mxu0
      %v1837 = vpop.f32.mrb[0].mxu0
      %v1838 = vadd.f32 0.0, %v1837
      %v1839 = vpop.f32.mrb[0].mxu0
      %1840 = vmatprep.mubr.bf16.mxu0 0
      %1841 = vmatmul.mubr.bf16.gmra.mrb[0].mxu0 %v1718
      %v1842 = vpop.f32.mrb[0].mxu0
      %v1843 = vadd.f32 0.0, %v1842
      %v1844 = vpop.f32.mrb[0].mxu0
      %v1845 = vpop.f32.mrb[0].mxu0
      %v1846 = vadd.f32 0.0, %v1845
      %v1847 = vpop.f32.mrb[0].mxu0
      %1848 = vmatprep.mubr.bf16.mxu0 0
      %1849 = vmatmul.mubr.bf16.gmra.mrb[0].mxu0 %v1721
      %v1850 = vpop.f32.mrb[0].mxu0
      %v1851 = vadd.f32 0.0, %v1850
      %v1852 = vpop.f32.mrb[0].mxu0
      %v1853 = vpop.f32.mrb[0].mxu0
      %v1854 = vadd.f32 0.0, %v1853
      %v1855 = vpop.f32.mrb[0].mxu0
      %1856 = vmatprep.mubr.bf16.mxu0 0
      %1857 = vmatmul.mubr.bf16.gmra.mrb[0].mxu0 %v1724
      %v1858 = vpop.f32.mrb[0].mxu0
      %v1859 = vadd.f32 0.0, %v1858
      %v1860 = vpop.f32.mrb[0].mxu0
      %v1861 = vpop.f32.mrb[0].mxu0
      %v1862 = vadd.f32 0.0, %v1861
      %v1863 = vpop.f32.mrb[0].mxu0
      %1864 = vmatprep.mubr.bf16.mxu0 0
      %1865 = vmatmul.mubr.bf16.gmra.mrb[0].mxu0 %v1727
      %v1866 = vpop.f32.mrb[0].mxu0
      %v1867 = vadd.f32 0.0, %v1866
      %v1868 = vpop.f32.mrb[0].mxu0
      %v1869 = vpop.f32.mrb[0].mxu0
      %v1870 = vadd.f32 0.0, %v1869
      %v1871 = vpop.f32.mrb[0].mxu0
      %1872 = vmatprep.mubr.bf16.mxu0 0
      %1873 = vmatmul.mubr.bf16.gmra.mrb[0].mxu0 %v1730
      %v1874 = vpop.f32.mrb[0].mxu0
      %v1875 = vadd.f32 0.0, %v1874
      %v1876 = vpop.f32.mrb[0].mxu0
      %v1877 = vpop.f32.mrb[0].mxu0
      %v1878 = vadd.f32 0.0, %v1877
      %v1879 = vpop.f32.mrb[0].mxu0
      %1880 = vmatprep.mubr.bf16.mxu0 0
      %1881 = vmatmul.mubr.bf16.gmra.mrb[0].mxu0 %v1733
      %v1882 = vpop.f32.mrb[0].mxu0
      %v1883 = vadd.f32 0.0, %v1882
      %v1884 = vpop.f32.mrb[0].mxu0
      %v1885 = vpop.f32.mrb[0].mxu0
      %v1886 = vadd.f32 0.0, %v1885
      %v1887 = vpop.f32.mrb[0].mxu0
      %1888 = vmatprep.mubr.bf16.mxu0 0
      %1889 = vmatmul.mubr.bf16.gmra.mrb[0].mxu0 %v1736
      %v1890 = vpop.f32.mrb[0].mxu0
      %v1891 = vadd.f32 0.0, %v1890
      %v1892 = vpop.f32.mrb[0].mxu0
      %v1893 = vpop.f32.mrb[0].mxu0
      %v1894 = vadd.f32 0.0, %v1893
      %v1895 = vpop.f32.mrb[0].mxu0
      %1896 = vmatprep.mubr.bf16.mxu0 0
      %1897 = vmatmul.mubr.bf16.gmra.mrb[0].mxu0 %v1739
      %v1898 = vpop.f32.mrb[0].mxu0
      %v1899 = vadd.f32 0.0, %v1898
      %v1900 = vpop.f32.mrb[0].mxu0
      %v1901 = vpop.f32.mrb[0].mxu0
      %v1902 = vadd.f32 0.0, %v1901
      %v1903 = vpop.f32.mrb[0].mxu0
      %1904 = vdwg.mxu0
      %v1905 = vadd.f32 %v1611, %v1779
      %v1906 = vadd.f32 %v1612, %v1782
      %v1907 = vadd.f32 %v1613, %v1787
      %v1908 = vadd.f32 %v1614, %v1790
      %v1909 = vadd.f32 %v1615, %v1795
      %v1910 = vadd.f32 %v1616, %v1798
      %v1911 = vadd.f32 %v1617, %v1803
      %v1912 = vadd.f32 %v1618, %v1806
      %v1913 = vadd.f32 %v1619, %v1811
      %v1914 = vadd.f32 %v1620, %v1814
      %v1915 = vadd.f32 %v1621, %v1819
      %v1916 = vadd.f32 %v1622, %v1822
      %v1917 = vadd.f32 %v1623, %v1827
      %v1918 = vadd.f32 %v1624, %v1830
      %v1919 = vadd.f32 %v1625, %v1835
      %v1920 = vadd.f32 %v1626, %v1838
      %v1921 = vadd.f32 %v1627, %v1843
      %v1922 = vadd.f32 %v1628, %v1846
      %v1923 = vadd.f32 %v1629, %v1851
      %v1924 = vadd.f32 %v1630, %v1854
      %v1925 = vadd.f32 %v1631, %v1859
      %v1926 = vadd.f32 %v1632, %v1862
      %v1927 = vadd.f32 %v1633, %v1867
      %v1928 = vadd.f32 %v1634, %v1870
      %v1929 = vadd.f32 %v1635, %v1875
      %v1930 = vadd.f32 %v1636, %v1878
      %v1931 = vadd.f32 %v1637, %v1883
      %v1932 = vadd.f32 %v1638, %v1886
      %v1933 = vadd.f32 %v1639, %v1891
      %v1934 = vadd.f32 %v1640, %v1894
      %v1935 = vadd.f32 %v1641, %v1899
      %v1936 = vadd.f32 %v1642, %v1902
      %v1937 = vld [vmem:[%s498 + $0x9] sm:$0xff]
      %v1938 = vld [vmem:[%s498 + $0x11] sm:$0xff]
      %v1939 = vld [vmem:[%s498 + $0x29] sm:$0xff]
      %v1940 = vld [vmem:[%s498 + $0x31] sm:$0xff]
      %v1941 = vld [vmem:[%s498 + $0x49] sm:$0xff]
      %v1942 = vld [vmem:[%s498 + $0x51] sm:$0xff]
      %v1943 = vld [vmem:[%s498 + $0x69] sm:$0xff]
      %v1944 = vld [vmem:[%s498 + $0x71] sm:$0xff]
      %v1945 = vld [vmem:[%s498 + $0x89] sm:$0xff]
      %v1946 = vld [vmem:[%s498 + $0x91] sm:$0xff]
      %v1947 = vld [vmem:[%s498 + $0xa9] sm:$0xff]
      %v1948 = vld [vmem:[%s498 + $0xb1] sm:$0xff]
      %v1949 = vld [vmem:[%s498 + $0xc9] sm:$0xff]
      %v1950 = vld [vmem:[%s498 + $0xd1] sm:$0xff]
      %v1951 = vld [vmem:[%s498 + $0xe9] sm:$0xff]
      %v1952 = vld [vmem:[%s498 + $0xf1] sm:$0xff]
      %v1953 = vld [vmem:[%s498 + $0x109] sm:$0xff]
      %v1954 = vld [vmem:[%s498 + $0x111] sm:$0xff]
      %v1955 = vld [vmem:[%s498 + $0x129] sm:$0xff]
      %v1956 = vld [vmem:[%s498 + $0x131] sm:$0xff]
      %v1957 = vld [vmem:[%s498 + $0x149] sm:$0xff]
      %v1958 = vld [vmem:[%s498 + $0x151] sm:$0xff]
      %v1959 = vld [vmem:[%s498 + $0x169] sm:$0xff]
      %v1960 = vld [vmem:[%s498 + $0x171] sm:$0xff]
      %v1961 = vld [vmem:[%s498 + $0x189] sm:$0xff]
      %v1962 = vld [vmem:[%s498 + $0x191] sm:$0xff]
      %v1963 = vld [vmem:[%s498 + $0x1a9] sm:$0xff]
      %v1964 = vld [vmem:[%s498 + $0x1b1] sm:$0xff]
      %v1965 = vld [vmem:[%s498 + $0x1c9] sm:$0xff]
      %v1966 = vld [vmem:[%s498 + $0x1d1] sm:$0xff]
      %v1967 = vld [vmem:[%s498 + $0x1e9] sm:$0xff]
      %v1968 = vld [vmem:[%s498 + $0x1f1] sm:$0xff]
      %v1969 = vpack.c.bf16 %v1938, %v1937
      %v1970 = vpack.c.bf16 %v1940, %v1939
      %v1971 = vpack.c.bf16 %v1942, %v1941
      %v1972 = vpack.c.bf16 %v1944, %v1943
      %v1973 = vpack.c.bf16 %v1946, %v1945
      %v1974 = vpack.c.bf16 %v1948, %v1947
      %v1975 = vpack.c.bf16 %v1950, %v1949
      %v1976 = vpack.c.bf16 %v1952, %v1951
      %v1977 = vpack.c.bf16 %v1954, %v1953
      %v1978 = vpack.c.bf16 %v1956, %v1955
      %v1979 = vpack.c.bf16 %v1958, %v1957
      %v1980 = vpack.c.bf16 %v1960, %v1959
      %v1981 = vpack.c.bf16 %v1962, %v1961
      %v1982 = vpack.c.bf16 %v1964, %v1963
      %v1983 = vpack.c.bf16 %v1966, %v1965
      %v1984 = vpack.c.bf16 %v1968, %v1967
      %s1985 = scalar_lea.vmem %s1, 10
      %v1986 = vld [vmem:[%s1985] sm:$0x3]
      %v1988 = vsel %vm393, %v1969, 0
      %v1991 = vsel %vm393, %v1970, 0
      %v1994 = vsel %vm393, %v1971, 0
      %v1997 = vsel %vm393, %v1972, 0
      %v2000 = vsel %vm393, %v1973, 0
      %v2003 = vsel %vm393, %v1974, 0
      %v2006 = vsel %vm393, %v1975, 0
      %v2009 = vsel %vm393, %v1976, 0
      %v2012 = vsel %vm393, %v1977, 0
      %v2015 = vsel %vm393, %v1978, 0
      %v2018 = vsel %vm393, %v1979, 0
      %v2021 = vsel %vm393, %v1980, 0
      %v2024 = vsel %vm393, %v1981, 0
      %v2027 = vsel %vm393, %v1982, 0
      %v2030 = vsel %vm393, %v1983, 0
      %v2033 = vsel %vm393, %v1984, 0
      %v2036 = vsel %vm678, %v1986, 0
      %2038 = vmatprep.subr.bf16.mxu0 0
      %2039 = vmatpush1.bf16.msra.mxu0 %v2036
      %2040 = vmatprep.subr.bf16.mxu0 0
      %2041 = vmatpush1.bf16.msra.mxu0 0
      %2042 = vmatprep.subr.bf16.mxu0 0
      %2043 = vmatpush1.bf16.msra.mxu0 0
      %2044 = vmatprep.subr.bf16.mxu0 0
      %2045 = vmatpush1.bf16.msra.mxu0 0
      %2046 = vmatprep.subr.bf16.mxu0 0
      %2047 = vmatpush1.bf16.msra.mxu0 0
      %2048 = vmatprep.subr.bf16.mxu0 0
      %2049 = vmatpush1.bf16.msra.mxu0 0
      %2050 = vmatprep.subr.bf16.mxu0 0
      %2051 = vmatpush1.bf16.msra.mxu0 0
      %2052 = vmatprep.subr.bf16.mxu0 0
      %2053 = vmatpush1.bf16.msra.mxu0 0
      %2054 = vmatprep.subr.bf16.mxu0 0
      %2055 = vmatpush1.bf16.msra.mxu0 0
      %2056 = vmatprep.subr.bf16.mxu0 0
      %2057 = vmatpush1.bf16.msra.mxu0 0
      %2058 = vmatprep.subr.bf16.mxu0 0
      %2059 = vmatpush1.bf16.msra.mxu0 0
      %2060 = vmatprep.subr.bf16.mxu0 0
      %2061 = vmatpush1.bf16.msra.mxu0 0
      %2062 = vmatprep.subr.bf16.mxu0 0
      %2063 = vmatpush1.bf16.msra.mxu0 0
      %2064 = vmatprep.subr.bf16.mxu0 0
      %2065 = vmatpush1.bf16.msra.mxu0 0
      %2066 = vmatprep.subr.bf16.mxu0 0
      %2067 = vmatpush1.bf16.msra.mxu0 0
      %2068 = vmatprep.subr.bf16.mxu0 0
      %2069 = vmatpush1.bf16.msra.mxu0 0
      %2070 = vmatprep.mubr.bf16.mxu0 0
      %2071 = vmatmul.mubr.bf16.gmra.mrb[0].mxu0 %v1988
      %v2072 = vpop.f32.mrb[0].mxu0
      %v2073 = vadd.f32 0.0, %v2072
      %v2074 = vpop.f32.mrb[0].mxu0
      %v2075 = vpop.f32.mrb[0].mxu0
      %v2076 = vadd.f32 0.0, %v2075
      %v2077 = vpop.f32.mrb[0].mxu0
      %2078 = vmatprep.mubr.bf16.mxu0 0
      %2079 = vmatmul.mubr.bf16.gmra.mrb[0].mxu0 %v1991
      %v2080 = vpop.f32.mrb[0].mxu0
      %v2081 = vadd.f32 0.0, %v2080
      %v2082 = vpop.f32.mrb[0].mxu0
      %v2083 = vpop.f32.mrb[0].mxu0
      %v2084 = vadd.f32 0.0, %v2083
      %v2085 = vpop.f32.mrb[0].mxu0
      %2086 = vmatprep.mubr.bf16.mxu0 0
      %2087 = vmatmul.mubr.bf16.gmra.mrb[0].mxu0 %v1994
      %v2088 = vpop.f32.mrb[0].mxu0
      %v2089 = vadd.f32 0.0, %v2088
      %v2090 = vpop.f32.mrb[0].mxu0
      %v2091 = vpop.f32.mrb[0].mxu0
      %v2092 = vadd.f32 0.0, %v2091
      %v2093 = vpop.f32.mrb[0].mxu0
      %2094 = vmatprep.mubr.bf16.mxu0 0
      %2095 = vmatmul.mubr.bf16.gmra.mrb[0].mxu0 %v1997
      %v2096 = vpop.f32.mrb[0].mxu0
      %v2097 = vadd.f32 0.0, %v2096
      %v2098 = vpop.f32.mrb[0].mxu0
      %v2099 = vpop.f32.mrb[0].mxu0
      %v2100 = vadd.f32 0.0, %v2099
      %v2101 = vpop.f32.mrb[0].mxu0
      %2102 = vmatprep.mubr.bf16.mxu0 0
      %2103 = vmatmul.mubr.bf16.gmra.mrb[0].mxu0 %v2000
      %v2104 = vpop.f32.mrb[0].mxu0
      %v2105 = vadd.f32 0.0, %v2104
      %v2106 = vpop.f32.mrb[0].mxu0
      %v2107 = vpop.f32.mrb[0].mxu0
      %v2108 = vadd.f32 0.0, %v2107
      %v2109 = vpop.f32.mrb[0].mxu0
      %2110 = vmatprep.mubr.bf16.mxu0 0
      %2111 = vmatmul.mubr.bf16.gmra.mrb[0].mxu0 %v2003
      %v2112 = vpop.f32.mrb[0].mxu0
      %v2113 = vadd.f32 0.0, %v2112
      %v2114 = vpop.f32.mrb[0].mxu0
      %v2115 = vpop.f32.mrb[0].mxu0
      %v2116 = vadd.f32 0.0, %v2115
      %v2117 = vpop.f32.mrb[0].mxu0
      %2118 = vmatprep.mubr.bf16.mxu0 0
      %2119 = vmatmul.mubr.bf16.gmra.mrb[0].mxu0 %v2006
      %v2120 = vpop.f32.mrb[0].mxu0
      %v2121 = vadd.f32 0.0, %v2120
      %v2122 = vpop.f32.mrb[0].mxu0
      %v2123 = vpop.f32.mrb[0].mxu0
      %v2124 = vadd.f32 0.0, %v2123
      %v2125 = vpop.f32.mrb[0].mxu0
      %2126 = vmatprep.mubr.bf16.mxu0 0
      %2127 = vmatmul.mubr.bf16.gmra.mrb[0].mxu0 %v2009
      %v2128 = vpop.f32.mrb[0].mxu0
      %v2129 = vadd.f32 0.0, %v2128
      %v2130 = vpop.f32.mrb[0].mxu0
      %v2131 = vpop.f32.mrb[0].mxu0
      %v2132 = vadd.f32 0.0, %v2131
      %v2133 = vpop.f32.mrb[0].mxu0
      %2134 = vmatprep.mubr.bf16.mxu0 0
      %2135 = vmatmul.mubr.bf16.gmra.mrb[0].mxu0 %v2012
      %v2136 = vpop.f32.mrb[0].mxu0
      %v2137 = vadd.f32 0.0, %v2136
      %v2138 = vpop.f32.mrb[0].mxu0
      %v2139 = vpop.f32.mrb[0].mxu0
      %v2140 = vadd.f32 0.0, %v2139
      %v2141 = vpop.f32.mrb[0].mxu0
      %2142 = vmatprep.mubr.bf16.mxu0 0
      %2143 = vmatmul.mubr.bf16.gmra.mrb[0].mxu0 %v2015
      %v2144 = vpop.f32.mrb[0].mxu0
      %v2145 = vadd.f32 0.0, %v2144
      %v2146 = vpop.f32.mrb[0].mxu0
      %v2147 = vpop.f32.mrb[0].mxu0
      %v2148 = vadd.f32 0.0, %v2147
      %v2149 = vpop.f32.mrb[0].mxu0
      %2150 = vmatprep.mubr.bf16.mxu0 0
      %2151 = vmatmul.mubr.bf16.gmra.mrb[0].mxu0 %v2018
      %v2152 = vpop.f32.mrb[0].mxu0
      %v2153 = vadd.f32 0.0, %v2152
      %v2154 = vpop.f32.mrb[0].mxu0
      %v2155 = vpop.f32.mrb[0].mxu0
      %v2156 = vadd.f32 0.0, %v2155
      %v2157 = vpop.f32.mrb[0].mxu0
      %2158 = vmatprep.mubr.bf16.mxu0 0
      %2159 = vmatmul.mubr.bf16.gmra.mrb[0].mxu0 %v2021
      %v2160 = vpop.f32.mrb[0].mxu0
      %v2161 = vadd.f32 0.0, %v2160
      %v2162 = vpop.f32.mrb[0].mxu0
      %v2163 = vpop.f32.mrb[0].mxu0
      %v2164 = vadd.f32 0.0, %v2163
      %v2165 = vpop.f32.mrb[0].mxu0
      %2166 = vmatprep.mubr.bf16.mxu0 0
      %2167 = vmatmul.mubr.bf16.gmra.mrb[0].mxu0 %v2024
      %v2168 = vpop.f32.mrb[0].mxu0
      %v2169 = vadd.f32 0.0, %v2168
      %v2170 = vpop.f32.mrb[0].mxu0
      %v2171 = vpop.f32.mrb[0].mxu0
      %v2172 = vadd.f32 0.0, %v2171
      %v2173 = vpop.f32.mrb[0].mxu0
      %2174 = vmatprep.mubr.bf16.mxu0 0
      %2175 = vmatmul.mubr.bf16.gmra.mrb[0].mxu0 %v2027
      %v2176 = vpop.f32.mrb[0].mxu0
      %v2177 = vadd.f32 0.0, %v2176
      %v2178 = vpop.f32.mrb[0].mxu0
      %v2179 = vpop.f32.mrb[0].mxu0
      %v2180 = vadd.f32 0.0, %v2179
      %v2181 = vpop.f32.mrb[0].mxu0
      %2182 = vmatprep.mubr.bf16.mxu0 0
      %2183 = vmatmul.mubr.bf16.gmra.mrb[0].mxu0 %v2030
      %v2184 = vpop.f32.mrb[0].mxu0
      %v2185 = vadd.f32 0.0, %v2184
      %v2186 = vpop.f32.mrb[0].mxu0
      %v2187 = vpop.f32.mrb[0].mxu0
      %v2188 = vadd.f32 0.0, %v2187
      %v2189 = vpop.f32.mrb[0].mxu0
      %2190 = vmatprep.mubr.bf16.mxu0 0
      %2191 = vmatmul.mubr.bf16.gmra.mrb[0].mxu0 %v2033
      %v2192 = vpop.f32.mrb[0].mxu0
      %v2193 = vadd.f32 0.0, %v2192
      %v2194 = vpop.f32.mrb[0].mxu0
      %v2195 = vpop.f32.mrb[0].mxu0
      %v2196 = vadd.f32 0.0, %v2195
      %v2197 = vpop.f32.mrb[0].mxu0
      %2198 = vdwg.mxu0
      %v2199 = vadd.f32 %v1905, %v2073
      %v2200 = vadd.f32 %v1906, %v2076
      %v2201 = vadd.f32 %v1907, %v2081
      %v2202 = vadd.f32 %v1908, %v2084
      %v2203 = vadd.f32 %v1909, %v2089
      %v2204 = vadd.f32 %v1910, %v2092
      %v2205 = vadd.f32 %v1911, %v2097
      %v2206 = vadd.f32 %v1912, %v2100
      %v2207 = vadd.f32 %v1913, %v2105
      %v2208 = vadd.f32 %v1914, %v2108
      %v2209 = vadd.f32 %v1915, %v2113
      %v2210 = vadd.f32 %v1916, %v2116
      %v2211 = vadd.f32 %v1917, %v2121
      %v2212 = vadd.f32 %v1918, %v2124
      %v2213 = vadd.f32 %v1919, %v2129
      %v2214 = vadd.f32 %v1920, %v2132
      %v2215 = vadd.f32 %v1921, %v2137
      %v2216 = vadd.f32 %v1922, %v2140
      %v2217 = vadd.f32 %v1923, %v2145
      %v2218 = vadd.f32 %v1924, %v2148
      %v2219 = vadd.f32 %v1925, %v2153
      %v2220 = vadd.f32 %v1926, %v2156
      %v2221 = vadd.f32 %v1927, %v2161
      %v2222 = vadd.f32 %v1928, %v2164
      %v2223 = vadd.f32 %v1929, %v2169
      %v2224 = vadd.f32 %v1930, %v2172
      %v2225 = vadd.f32 %v1931, %v2177
      %v2226 = vadd.f32 %v1932, %v2180
      %v2227 = vadd.f32 %v1933, %v2185
      %v2228 = vadd.f32 %v1934, %v2188
      %v2229 = vadd.f32 %v1935, %v2193
      %v2230 = vadd.f32 %v1936, %v2196
      %s2231 = scalar_lea.vmem [#allocation2], 64
      %v2232 = vld [vmem:[%s2231 + $0x7] sm:$0xff]
      %v2233 = vld [vmem:[%s2231 + $0xf] sm:$0xff]
      %v2234 = vld [vmem:[%s2231 + $0x27] sm:$0xff]
      %v2235 = vld [vmem:[%s2231 + $0x2f] sm:$0xff]
      %v2236 = vld [vmem:[%s2231 + $0x47] sm:$0xff]
      %v2237 = vld [vmem:[%s2231 + $0x4f] sm:$0xff]
      %v2238 = vld [vmem:[%s2231 + $0x67] sm:$0xff]
      %v2239 = vld [vmem:[%s2231 + $0x6f] sm:$0xff]
      %v2240 = vld [vmem:[%s2231 + $0x87] sm:$0xff]
      %v2241 = vld [vmem:[%s2231 + $0x8f] sm:$0xff]
      %v2242 = vld [vmem:[%s2231 + $0xa7] sm:$0xff]
      %v2243 = vld [vmem:[%s2231 + $0xaf] sm:$0xff]
      %v2244 = vld [vmem:[%s2231 + $0xc7] sm:$0xff]
      %v2245 = vld [vmem:[%s2231 + $0xcf] sm:$0xff]
      %v2246 = vld [vmem:[%s2231 + $0xe7] sm:$0xff]
      %v2247 = vld [vmem:[%s2231 + $0xef] sm:$0xff]
      %v2248 = vld [vmem:[%s2231 + $0x107] sm:$0xff]
      %v2249 = vld [vmem:[%s2231 + $0x10f] sm:$0xff]
      %v2250 = vld [vmem:[%s2231 + $0x127] sm:$0xff]
      %v2251 = vld [vmem:[%s2231 + $0x12f] sm:$0xff]
      %v2252 = vld [vmem:[%s2231 + $0x147] sm:$0xff]
      %v2253 = vld [vmem:[%s2231 + $0x14f] sm:$0xff]
      %v2254 = vld [vmem:[%s2231 + $0x167] sm:$0xff]
      %v2255 = vld [vmem:[%s2231 + $0x16f] sm:$0xff]
      %v2256 = vld [vmem:[%s2231 + $0x187] sm:$0xff]
      %v2257 = vld [vmem:[%s2231 + $0x18f] sm:$0xff]
      %v2258 = vld [vmem:[%s2231 + $0x1a7] sm:$0xff]
      %v2259 = vld [vmem:[%s2231 + $0x1af] sm:$0xff]
      %v2260 = vld [vmem:[%s2231 + $0x1c7] sm:$0xff]
      %v2261 = vld [vmem:[%s2231 + $0x1cf] sm:$0xff]
      %v2262 = vld [vmem:[%s2231 + $0x1e7] sm:$0xff]
      %v2263 = vld [vmem:[%s2231 + $0x1ef] sm:$0xff]
      %v2264 = vpack.c.bf16 %v2233, %v2232
      %v2265 = vpack.c.bf16 %v2235, %v2234
      %v2266 = vpack.c.bf16 %v2237, %v2236
      %v2267 = vpack.c.bf16 %v2239, %v2238
      %v2268 = vpack.c.bf16 %v2241, %v2240
      %v2269 = vpack.c.bf16 %v2243, %v2242
      %v2270 = vpack.c.bf16 %v2245, %v2244
      %v2271 = vpack.c.bf16 %v2247, %v2246
      %v2272 = vpack.c.bf16 %v2249, %v2248
      %v2273 = vpack.c.bf16 %v2251, %v2250
      %v2274 = vpack.c.bf16 %v2253, %v2252
      %v2275 = vpack.c.bf16 %v2255, %v2254
      %v2276 = vpack.c.bf16 %v2257, %v2256
      %v2277 = vpack.c.bf16 %v2259, %v2258
      %v2278 = vpack.c.bf16 %v2261, %v2260
      %v2279 = vpack.c.bf16 %v2263, %v2262
      %s2280 = scalar_lea.vmem %s1, 12
      %v2281 = vld [vmem:[%s2280] sm:$0x3]
      %v2283 = vsel %vm393, %v2264, 0
      %v2286 = vsel %vm393, %v2265, 0
      %v2289 = vsel %vm393, %v2266, 0
      %v2292 = vsel %vm393, %v2267, 0
      %v2295 = vsel %vm393, %v2268, 0
      %v2298 = vsel %vm393, %v2269, 0
      %v2301 = vsel %vm393, %v2270, 0
      %v2304 = vsel %vm393, %v2271, 0
      %v2307 = vsel %vm393, %v2272, 0
      %v2310 = vsel %vm393, %v2273, 0
      %v2313 = vsel %vm393, %v2274, 0
      %v2316 = vsel %vm393, %v2275, 0
      %v2319 = vsel %vm393, %v2276, 0
      %v2322 = vsel %vm393, %v2277, 0
      %v2325 = vsel %vm393, %v2278, 0
      %v2328 = vsel %vm393, %v2279, 0
      %v2331 = vsel %vm678, %v2281, 0
      %2333 = vmatprep.subr.bf16.mxu0 0
      %2334 = vmatpush1.bf16.msra.mxu0 %v2331
      %2335 = vmatprep.subr.bf16.mxu0 0
      %2336 = vmatpush1.bf16.msra.mxu0 0
      %2337 = vmatprep.subr.bf16.mxu0 0
      %2338 = vmatpush1.bf16.msra.mxu0 0
      %2339 = vmatprep.subr.bf16.mxu0 0
      %2340 = vmatpush1.bf16.msra.mxu0 0
      %2341 = vmatprep.subr.bf16.mxu0 0
      %2342 = vmatpush1.bf16.msra.mxu0 0
      %2343 = vmatprep.subr.bf16.mxu0 0
      %2344 = vmatpush1.bf16.msra.mxu0 0
      %2345 = vmatprep.subr.bf16.mxu0 0
      %2346 = vmatpush1.bf16.msra.mxu0 0
      %2347 = vmatprep.subr.bf16.mxu0 0
      %2348 = vmatpush1.bf16.msra.mxu0 0
      %2349 = vmatprep.subr.bf16.mxu0 0
      %2350 = vmatpush1.bf16.msra.mxu0 0
      %2351 = vmatprep.subr.bf16.mxu0 0
      %2352 = vmatpush1.bf16.msra.mxu0 0
      %2353 = vmatprep.subr.bf16.mxu0 0
      %2354 = vmatpush1.bf16.msra.mxu0 0
      %2355 = vmatprep.subr.bf16.mxu0 0
      %2356 = vmatpush1.bf16.msra.mxu0 0
      %2357 = vmatprep.subr.bf16.mxu0 0
      %2358 = vmatpush1.bf16.msra.mxu0 0
      %2359 = vmatprep.subr.bf16.mxu0 0
      %2360 = vmatpush1.bf16.msra.mxu0 0
      %2361 = vmatprep.subr.bf16.mxu0 0
      %2362 = vmatpush1.bf16.msra.mxu0 0
      %2363 = vmatprep.subr.bf16.mxu0 0
      %2364 = vmatpush1.bf16.msra.mxu0 0
      %2365 = vmatprep.mubr.bf16.mxu0 0
      %2366 = vmatmul.mubr.bf16.gmra.mrb[0].mxu0 %v2283
      %v2367 = vpop.f32.mrb[0].mxu0
      %v2368 = vadd.f32 0.0, %v2367
      %v2369 = vpop.f32.mrb[0].mxu0
      %v2370 = vpop.f32.mrb[0].mxu0
      %v2371 = vadd.f32 0.0, %v2370
      %v2372 = vpop.f32.mrb[0].mxu0
      %2373 = vmatprep.mubr.bf16.mxu0 0
      %2374 = vmatmul.mubr.bf16.gmra.mrb[0].mxu0 %v2286
      %v2375 = vpop.f32.mrb[0].mxu0
      %v2376 = vadd.f32 0.0, %v2375
      %v2377 = vpop.f32.mrb[0].mxu0
      %v2378 = vpop.f32.mrb[0].mxu0
      %v2379 = vadd.f32 0.0, %v2378
      %v2380 = vpop.f32.mrb[0].mxu0
      %2381 = vmatprep.mubr.bf16.mxu0 0
      %2382 = vmatmul.mubr.bf16.gmra.mrb[0].mxu0 %v2289
      %v2383 = vpop.f32.mrb[0].mxu0
      %v2384 = vadd.f32 0.0, %v2383
      %v2385 = vpop.f32.mrb[0].mxu0
      %v2386 = vpop.f32.mrb[0].mxu0
      %v2387 = vadd.f32 0.0, %v2386
      %v2388 = vpop.f32.mrb[0].mxu0
      %2389 = vmatprep.mubr.bf16.mxu0 0
      %2390 = vmatmul.mubr.bf16.gmra.mrb[0].mxu0 %v2292
      %v2391 = vpop.f32.mrb[0].mxu0
      %v2392 = vadd.f32 0.0, %v2391
      %v2393 = vpop.f32.mrb[0].mxu0
      %v2394 = vpop.f32.mrb[0].mxu0
      %v2395 = vadd.f32 0.0, %v2394
      %v2396 = vpop.f32.mrb[0].mxu0
      %2397 = vmatprep.mubr.bf16.mxu0 0
      %2398 = vmatmul.mubr.bf16.gmra.mrb[0].mxu0 %v2295
      %v2399 = vpop.f32.mrb[0].mxu0
      %v2400 = vadd.f32 0.0, %v2399
      %v2401 = vpop.f32.mrb[0].mxu0
      %v2402 = vpop.f32.mrb[0].mxu0
      %v2403 = vadd.f32 0.0, %v2402
      %v2404 = vpop.f32.mrb[0].mxu0
      %2405 = vmatprep.mubr.bf16.mxu0 0
      %2406 = vmatmul.mubr.bf16.gmra.mrb[0].mxu0 %v2298
      %v2407 = vpop.f32.mrb[0].mxu0
      %v2408 = vadd.f32 0.0, %v2407
      %v2409 = vpop.f32.mrb[0].mxu0
      %v2410 = vpop.f32.mrb[0].mxu0
      %v2411 = vadd.f32 0.0, %v2410
      %v2412 = vpop.f32.mrb[0].mxu0
      %2413 = vmatprep.mubr.bf16.mxu0 0
      %2414 = vmatmul.mubr.bf16.gmra.mrb[0].mxu0 %v2301
      %v2415 = vpop.f32.mrb[0].mxu0
      %v2416 = vadd.f32 0.0, %v2415
      %v2417 = vpop.f32.mrb[0].mxu0
      %v2418 = vpop.f32.mrb[0].mxu0
      %v2419 = vadd.f32 0.0, %v2418
      %v2420 = vpop.f32.mrb[0].mxu0
      %2421 = vmatprep.mubr.bf16.mxu0 0
      %2422 = vmatmul.mubr.bf16.gmra.mrb[0].mxu0 %v2304
      %v2423 = vpop.f32.mrb[0].mxu0
      %v2424 = vadd.f32 0.0, %v2423
      %v2425 = vpop.f32.mrb[0].mxu0
      %v2426 = vpop.f32.mrb[0].mxu0
      %v2427 = vadd.f32 0.0, %v2426
      %v2428 = vpop.f32.mrb[0].mxu0
      %2429 = vmatprep.mubr.bf16.mxu0 0
      %2430 = vmatmul.mubr.bf16.gmra.mrb[0].mxu0 %v2307
      %v2431 = vpop.f32.mrb[0].mxu0
      %v2432 = vadd.f32 0.0, %v2431
      %v2433 = vpop.f32.mrb[0].mxu0
      %v2434 = vpop.f32.mrb[0].mxu0
      %v2435 = vadd.f32 0.0, %v2434
      %v2436 = vpop.f32.mrb[0].mxu0
      %2437 = vmatprep.mubr.bf16.mxu0 0
      %2438 = vmatmul.mubr.bf16.gmra.mrb[0].mxu0 %v2310
      %v2439 = vpop.f32.mrb[0].mxu0
      %v2440 = vadd.f32 0.0, %v2439
      %v2441 = vpop.f32.mrb[0].mxu0
      %v2442 = vpop.f32.mrb[0].mxu0
      %v2443 = vadd.f32 0.0, %v2442
      %v2444 = vpop.f32.mrb[0].mxu0
      %2445 = vmatprep.mubr.bf16.mxu0 0
      %2446 = vmatmul.mubr.bf16.gmra.mrb[0].mxu0 %v2313
      %v2447 = vpop.f32.mrb[0].mxu0
      %v2448 = vadd.f32 0.0, %v2447
      %v2449 = vpop.f32.mrb[0].mxu0
      %v2450 = vpop.f32.mrb[0].mxu0
      %v2451 = vadd.f32 0.0, %v2450
      %v2452 = vpop.f32.mrb[0].mxu0
      %2453 = vmatprep.mubr.bf16.mxu0 0
      %2454 = vmatmul.mubr.bf16.gmra.mrb[0].mxu0 %v2316
      %v2455 = vpop.f32.mrb[0].mxu0
      %v2456 = vadd.f32 0.0, %v2455
      %v2457 = vpop.f32.mrb[0].mxu0
      %v2458 = vpop.f32.mrb[0].mxu0
      %v2459 = vadd.f32 0.0, %v2458
      %v2460 = vpop.f32.mrb[0].mxu0
      %2461 = vmatprep.mubr.bf16.mxu0 0
      %2462 = vmatmul.mubr.bf16.gmra.mrb[0].mxu0 %v2319
      %v2463 = vpop.f32.mrb[0].mxu0
      %v2464 = vadd.f32 0.0, %v2463
      %v2465 = vpop.f32.mrb[0].mxu0
      %v2466 = vpop.f32.mrb[0].mxu0
      %v2467 = vadd.f32 0.0, %v2466
      %v2468 = vpop.f32.mrb[0].mxu0
      %2469 = vmatprep.mubr.bf16.mxu0 0
      %2470 = vmatmul.mubr.bf16.gmra.mrb[0].mxu0 %v2322
      %v2471 = vpop.f32.mrb[0].mxu0
      %v2472 = vadd.f32 0.0, %v2471
      %v2473 = vpop.f32.mrb[0].mxu0
      %v2474 = vpop.f32.mrb[0].mxu0
      %v2475 = vadd.f32 0.0, %v2474
      %v2476 = vpop.f32.mrb[0].mxu0
      %2477 = vmatprep.mubr.bf16.mxu0 0
      %2478 = vmatmul.mubr.bf16.gmra.mrb[0].mxu0 %v2325
      %v2479 = vpop.f32.mrb[0].mxu0
      %v2480 = vadd.f32 0.0, %v2479
      %v2481 = vpop.f32.mrb[0].mxu0
      %v2482 = vpop.f32.mrb[0].mxu0
      %v2483 = vadd.f32 0.0, %v2482
      %v2484 = vpop.f32.mrb[0].mxu0
      %2485 = vmatprep.mubr.bf16.mxu0 0
      %2486 = vmatmul.mubr.bf16.gmra.mrb[0].mxu0 %v2328
      %v2487 = vpop.f32.mrb[0].mxu0
      %v2488 = vadd.f32 0.0, %v2487
      %v2489 = vpop.f32.mrb[0].mxu0
      %v2490 = vpop.f32.mrb[0].mxu0
      %v2491 = vadd.f32 0.0, %v2490
      %v2492 = vpop.f32.mrb[0].mxu0
      %2493 = vdwg.mxu0
      %v2494 = vadd.f32 %v2199, %v2368
      %v2495 = vadd.f32 %v2200, %v2371
      %v2496 = vadd.f32 %v2201, %v2376
      %v2497 = vadd.f32 %v2202, %v2379
      %v2498 = vadd.f32 %v2203, %v2384
      %v2499 = vadd.f32 %v2204, %v2387
      %v2500 = vadd.f32 %v2205, %v2392
      %v2501 = vadd.f32 %v2206, %v2395
      %v2502 = vadd.f32 %v2207, %v2400
      %v2503 = vadd.f32 %v2208, %v2403
      %v2504 = vadd.f32 %v2209, %v2408
      %v2505 = vadd.f32 %v2210, %v2411
      %v2506 = vadd.f32 %v2211, %v2416
      %v2507 = vadd.f32 %v2212, %v2419
      %v2508 = vadd.f32 %v2213, %v2424
      %v2509 = vadd.f32 %v2214, %v2427
      %v2510 = vadd.f32 %v2215, %v2432
      %v2511 = vadd.f32 %v2216, %v2435
      %v2512 = vadd.f32 %v2217, %v2440
      %v2513 = vadd.f32 %v2218, %v2443
      %v2514 = vadd.f32 %v2219, %v2448
      %v2515 = vadd.f32 %v2220, %v2451
      %v2516 = vadd.f32 %v2221, %v2456
      %v2517 = vadd.f32 %v2222, %v2459
      %v2518 = vadd.f32 %v2223, %v2464
      %v2519 = vadd.f32 %v2224, %v2467
      %v2520 = vadd.f32 %v2225, %v2472
      %v2521 = vadd.f32 %v2226, %v2475
      %v2522 = vadd.f32 %v2227, %v2480
      %v2523 = vadd.f32 %v2228, %v2483
      %v2524 = vadd.f32 %v2229, %v2488
      %v2525 = vadd.f32 %v2230, %v2491
      %v2526 = vld [vmem:[%s2231 + $0x8] sm:$0xff]
      %v2527 = vld [vmem:[%s2231 + $0x10] sm:$0xff]
      %v2528 = vld [vmem:[%s2231 + $0x28] sm:$0xff]
      %v2529 = vld [vmem:[%s2231 + $0x30] sm:$0xff]
      %v2530 = vld [vmem:[%s2231 + $0x48] sm:$0xff]
      %v2531 = vld [vmem:[%s2231 + $0x50] sm:$0xff]
      %v2532 = vld [vmem:[%s2231 + $0x68] sm:$0xff]
      %v2533 = vld [vmem:[%s2231 + $0x70] sm:$0xff]
      %v2534 = vld [vmem:[%s2231 + $0x88] sm:$0xff]
      %v2535 = vld [vmem:[%s2231 + $0x90] sm:$0xff]
      %v2536 = vld [vmem:[%s2231 + $0xa8] sm:$0xff]
      %v2537 = vld [vmem:[%s2231 + $0xb0] sm:$0xff]
      %v2538 = vld [vmem:[%s2231 + $0xc8] sm:$0xff]
      %v2539 = vld [vmem:[%s2231 + $0xd0] sm:$0xff]
      %v2540 = vld [vmem:[%s2231 + $0xe8] sm:$0xff]
      %v2541 = vld [vmem:[%s2231 + $0xf0] sm:$0xff]
      %v2542 = vld [vmem:[%s2231 + $0x108] sm:$0xff]
      %v2543 = vld [vmem:[%s2231 + $0x110] sm:$0xff]
      %v2544 = vld [vmem:[%s2231 + $0x128] sm:$0xff]
      %v2545 = vld [vmem:[%s2231 + $0x130] sm:$0xff]
      %v2546 = vld [vmem:[%s2231 + $0x148] sm:$0xff]
      %v2547 = vld [vmem:[%s2231 + $0x150] sm:$0xff]
      %v2548 = vld [vmem:[%s2231 + $0x168] sm:$0xff]
      %v2549 = vld [vmem:[%s2231 + $0x170] sm:$0xff]
      %v2550 = vld [vmem:[%s2231 + $0x188] sm:$0xff]
      %v2551 = vld [vmem:[%s2231 + $0x190] sm:$0xff]
      %v2552 = vld [vmem:[%s2231 + $0x1a8] sm:$0xff]
      %v2553 = vld [vmem:[%s2231 + $0x1b0] sm:$0xff]
      %v2554 = vld [vmem:[%s2231 + $0x1c8] sm:$0xff]
      %v2555 = vld [vmem:[%s2231 + $0x1d0] sm:$0xff]
      %v2556 = vld [vmem:[%s2231 + $0x1e8] sm:$0xff]
      %v2557 = vld [vmem:[%s2231 + $0x1f0] sm:$0xff]
      %v2558 = vpack.c.bf16 %v2527, %v2526
      %v2559 = vpack.c.bf16 %v2529, %v2528
      %v2560 = vpack.c.bf16 %v2531, %v2530
      %v2561 = vpack.c.bf16 %v2533, %v2532
      %v2562 = vpack.c.bf16 %v2535, %v2534
      %v2563 = vpack.c.bf16 %v2537, %v2536
      %v2564 = vpack.c.bf16 %v2539, %v2538
      %v2565 = vpack.c.bf16 %v2541, %v2540
      %v2566 = vpack.c.bf16 %v2543, %v2542
      %v2567 = vpack.c.bf16 %v2545, %v2544
      %v2568 = vpack.c.bf16 %v2547, %v2546
      %v2569 = vpack.c.bf16 %v2549, %v2548
      %v2570 = vpack.c.bf16 %v2551, %v2550
      %v2571 = vpack.c.bf16 %v2553, %v2552
      %v2572 = vpack.c.bf16 %v2555, %v2554
      %v2573 = vpack.c.bf16 %v2557, %v2556
      %s2574 = scalar_lea.vmem %s1, 14
      %v2575 = vld [vmem:[%s2574] sm:$0x3]
      %v2577 = vsel %vm393, %v2558, 0
      %v2580 = vsel %vm393, %v2559, 0
      %v2583 = vsel %vm393, %v2560, 0
      %v2586 = vsel %vm393, %v2561, 0
      %v2589 = vsel %vm393, %v2562, 0
      %v2592 = vsel %vm393, %v2563, 0
      %v2595 = vsel %vm393, %v2564, 0
      %v2598 = vsel %vm393, %v2565, 0
      %v2601 = vsel %vm393, %v2566, 0
      %v2604 = vsel %vm393, %v2567, 0
      %v2607 = vsel %vm393, %v2568, 0
      %v2610 = vsel %vm393, %v2569, 0
      %v2613 = vsel %vm393, %v2570, 0
      %v2616 = vsel %vm393, %v2571, 0
      %v2619 = vsel %vm393, %v2572, 0
      %v2622 = vsel %vm393, %v2573, 0
      %v2625 = vsel %vm678, %v2575, 0
      %2627 = vmatprep.subr.bf16.mxu0 0
      %2628 = vmatpush1.bf16.msra.mxu0 %v2625
      %2629 = vmatprep.subr.bf16.mxu0 0
      %2630 = vmatpush1.bf16.msra.mxu0 0
      %2631 = vmatprep.subr.bf16.mxu0 0
      %2632 = vmatpush1.bf16.msra.mxu0 0
      %2633 = vmatprep.subr.bf16.mxu0 0
      %2634 = vmatpush1.bf16.msra.mxu0 0
      %2635 = vmatprep.subr.bf16.mxu0 0
      %2636 = vmatpush1.bf16.msra.mxu0 0
      %2637 = vmatprep.subr.bf16.mxu0 0
      %2638 = vmatpush1.bf16.msra.mxu0 0
      %2639 = vmatprep.subr.bf16.mxu0 0
      %2640 = vmatpush1.bf16.msra.mxu0 0
      %2641 = vmatprep.subr.bf16.mxu0 0
      %2642 = vmatpush1.bf16.msra.mxu0 0
      %2643 = vmatprep.subr.bf16.mxu0 0
      %2644 = vmatpush1.bf16.msra.mxu0 0
      %2645 = vmatprep.subr.bf16.mxu0 0
      %2646 = vmatpush1.bf16.msra.mxu0 0
      %2647 = vmatprep.subr.bf16.mxu0 0
      %2648 = vmatpush1.bf16.msra.mxu0 0
      %2649 = vmatprep.subr.bf16.mxu0 0
      %2650 = vmatpush1.bf16.msra.mxu0 0
      %2651 = vmatprep.subr.bf16.mxu0 0
      %2652 = vmatpush1.bf16.msra.mxu0 0
      %2653 = vmatprep.subr.bf16.mxu0 0
      %2654 = vmatpush1.bf16.msra.mxu0 0
      %2655 = vmatprep.subr.bf16.mxu0 0
      %2656 = vmatpush1.bf16.msra.mxu0 0
      %2657 = vmatprep.subr.bf16.mxu0 0
      %2658 = vmatpush1.bf16.msra.mxu0 0
      %2659 = vmatprep.mubr.bf16.mxu0 0
      %2660 = vmatmul.mubr.bf16.gmra.mrb[0].mxu0 %v2577
      %v2661 = vpop.f32.mrb[0].mxu0
      %v2662 = vadd.f32 0.0, %v2661
      %v2663 = vpop.f32.mrb[0].mxu0
      %v2664 = vpop.f32.mrb[0].mxu0
      %v2665 = vadd.f32 0.0, %v2664
      %v2666 = vpop.f32.mrb[0].mxu0
      %2667 = vmatprep.mubr.bf16.mxu0 0
      %2668 = vmatmul.mubr.bf16.gmra.mrb[0].mxu0 %v2580
      %v2669 = vpop.f32.mrb[0].mxu0
      %v2670 = vadd.f32 0.0, %v2669
      %v2671 = vpop.f32.mrb[0].mxu0
      %v2672 = vpop.f32.mrb[0].mxu0
      %v2673 = vadd.f32 0.0, %v2672
      %v2674 = vpop.f32.mrb[0].mxu0
      %2675 = vmatprep.mubr.bf16.mxu0 0
      %2676 = vmatmul.mubr.bf16.gmra.mrb[0].mxu0 %v2583
      %v2677 = vpop.f32.mrb[0].mxu0
      %v2678 = vadd.f32 0.0, %v2677
      %v2679 = vpop.f32.mrb[0].mxu0
      %v2680 = vpop.f32.mrb[0].mxu0
      %v2681 = vadd.f32 0.0, %v2680
      %v2682 = vpop.f32.mrb[0].mxu0
      %2683 = vmatprep.mubr.bf16.mxu0 0
      %2684 = vmatmul.mubr.bf16.gmra.mrb[0].mxu0 %v2586
      %v2685 = vpop.f32.mrb[0].mxu0
      %v2686 = vadd.f32 0.0, %v2685
      %v2687 = vpop.f32.mrb[0].mxu0
      %v2688 = vpop.f32.mrb[0].mxu0
      %v2689 = vadd.f32 0.0, %v2688
      %v2690 = vpop.f32.mrb[0].mxu0
      %2691 = vmatprep.mubr.bf16.mxu0 0
      %2692 = vmatmul.mubr.bf16.gmra.mrb[0].mxu0 %v2589
      %v2693 = vpop.f32.mrb[0].mxu0
      %v2694 = vadd.f32 0.0, %v2693
      %v2695 = vpop.f32.mrb[0].mxu0
      %v2696 = vpop.f32.mrb[0].mxu0
      %v2697 = vadd.f32 0.0, %v2696
      %v2698 = vpop.f32.mrb[0].mxu0
      %2699 = vmatprep.mubr.bf16.mxu0 0
      %2700 = vmatmul.mubr.bf16.gmra.mrb[0].mxu0 %v2592
      %v2701 = vpop.f32.mrb[0].mxu0
      %v2702 = vadd.f32 0.0, %v2701
      %v2703 = vpop.f32.mrb[0].mxu0
      %v2704 = vpop.f32.mrb[0].mxu0
      %v2705 = vadd.f32 0.0, %v2704
      %v2706 = vpop.f32.mrb[0].mxu0
      %2707 = vmatprep.mubr.bf16.mxu0 0
      %2708 = vmatmul.mubr.bf16.gmra.mrb[0].mxu0 %v2595
      %v2709 = vpop.f32.mrb[0].mxu0
      %v2710 = vadd.f32 0.0, %v2709
      %v2711 = vpop.f32.mrb[0].mxu0
      %v2712 = vpop.f32.mrb[0].mxu0
      %v2713 = vadd.f32 0.0, %v2712
      %v2714 = vpop.f32.mrb[0].mxu0
      %2715 = vmatprep.mubr.bf16.mxu0 0
      %2716 = vmatmul.mubr.bf16.gmra.mrb[0].mxu0 %v2598
      %v2717 = vpop.f32.mrb[0].mxu0
      %v2718 = vadd.f32 0.0, %v2717
      %v2719 = vpop.f32.mrb[0].mxu0
      %v2720 = vpop.f32.mrb[0].mxu0
      %v2721 = vadd.f32 0.0, %v2720
      %v2722 = vpop.f32.mrb[0].mxu0
      %2723 = vmatprep.mubr.bf16.mxu0 0
      %2724 = vmatmul.mubr.bf16.gmra.mrb[0].mxu0 %v2601
      %v2725 = vpop.f32.mrb[0].mxu0
      %v2726 = vadd.f32 0.0, %v2725
      %v2727 = vpop.f32.mrb[0].mxu0
      %v2728 = vpop.f32.mrb[0].mxu0
      %v2729 = vadd.f32 0.0, %v2728
      %v2730 = vpop.f32.mrb[0].mxu0
      %2731 = vmatprep.mubr.bf16.mxu0 0
      %2732 = vmatmul.mubr.bf16.gmra.mrb[0].mxu0 %v2604
      %v2733 = vpop.f32.mrb[0].mxu0
      %v2734 = vadd.f32 0.0, %v2733
      %v2735 = vpop.f32.mrb[0].mxu0
      %v2736 = vpop.f32.mrb[0].mxu0
      %v2737 = vadd.f32 0.0, %v2736
      %v2738 = vpop.f32.mrb[0].mxu0
      %2739 = vmatprep.mubr.bf16.mxu0 0
      %2740 = vmatmul.mubr.bf16.gmra.mrb[0].mxu0 %v2607
      %v2741 = vpop.f32.mrb[0].mxu0
      %v2742 = vadd.f32 0.0, %v2741
      %v2743 = vpop.f32.mrb[0].mxu0
      %v2744 = vpop.f32.mrb[0].mxu0
      %v2745 = vadd.f32 0.0, %v2744
      %v2746 = vpop.f32.mrb[0].mxu0
      %2747 = vmatprep.mubr.bf16.mxu0 0
      %2748 = vmatmul.mubr.bf16.gmra.mrb[0].mxu0 %v2610
      %v2749 = vpop.f32.mrb[0].mxu0
      %v2750 = vadd.f32 0.0, %v2749
      %v2751 = vpop.f32.mrb[0].mxu0
      %v2752 = vpop.f32.mrb[0].mxu0
      %v2753 = vadd.f32 0.0, %v2752
      %v2754 = vpop.f32.mrb[0].mxu0
      %2755 = vmatprep.mubr.bf16.mxu0 0
      %2756 = vmatmul.mubr.bf16.gmra.mrb[0].mxu0 %v2613
      %v2757 = vpop.f32.mrb[0].mxu0
      %v2758 = vadd.f32 0.0, %v2757
      %v2759 = vpop.f32.mrb[0].mxu0
      %v2760 = vpop.f32.mrb[0].mxu0
      %v2761 = vadd.f32 0.0, %v2760
      %v2762 = vpop.f32.mrb[0].mxu0
      %2763 = vmatprep.mubr.bf16.mxu0 0
      %2764 = vmatmul.mubr.bf16.gmra.mrb[0].mxu0 %v2616
      %v2765 = vpop.f32.mrb[0].mxu0
      %v2766 = vadd.f32 0.0, %v2765
      %v2767 = vpop.f32.mrb[0].mxu0
      %v2768 = vpop.f32.mrb[0].mxu0
      %v2769 = vadd.f32 0.0, %v2768
      %v2770 = vpop.f32.mrb[0].mxu0
      %2771 = vmatprep.mubr.bf16.mxu0 0
      %2772 = vmatmul.mubr.bf16.gmra.mrb[0].mxu0 %v2619
      %v2773 = vpop.f32.mrb[0].mxu0
      %v2774 = vadd.f32 0.0, %v2773
      %v2775 = vpop.f32.mrb[0].mxu0
      %v2776 = vpop.f32.mrb[0].mxu0
      %v2777 = vadd.f32 0.0, %v2776
      %v2778 = vpop.f32.mrb[0].mxu0
      %2779 = vmatprep.mubr.bf16.mxu0 0
      %2780 = vmatmul.mubr.bf16.gmra.mrb[0].mxu0 %v2622
      %v2781 = vpop.f32.mrb[0].mxu0
      %v2782 = vadd.f32 0.0, %v2781
      %v2783 = vpop.f32.mrb[0].mxu0
      %v2784 = vpop.f32.mrb[0].mxu0
      %v2785 = vadd.f32 0.0, %v2784
      %v2786 = vpop.f32.mrb[0].mxu0
      %2787 = vdwg.mxu0
      %v2788 = vadd.f32 %v2494, %v2662
      %v2789 = vadd.f32 %v2495, %v2665
      %v2790 = vadd.f32 %v2496, %v2670
      %v2791 = vadd.f32 %v2497, %v2673
      %v2792 = vadd.f32 %v2498, %v2678
      %v2793 = vadd.f32 %v2499, %v2681
      %v2794 = vadd.f32 %v2500, %v2686
      %v2795 = vadd.f32 %v2501, %v2689
      %v2796 = vadd.f32 %v2502, %v2694
      %v2797 = vadd.f32 %v2503, %v2697
      %v2798 = vadd.f32 %v2504, %v2702
      %v2799 = vadd.f32 %v2505, %v2705
      %v2800 = vadd.f32 %v2506, %v2710
      %v2801 = vadd.f32 %v2507, %v2713
      %v2802 = vadd.f32 %v2508, %v2718
      %v2803 = vadd.f32 %v2509, %v2721
      %v2804 = vadd.f32 %v2510, %v2726
      %v2805 = vadd.f32 %v2511, %v2729
      %v2806 = vadd.f32 %v2512, %v2734
      %v2807 = vadd.f32 %v2513, %v2737
      %v2808 = vadd.f32 %v2514, %v2742
      %v2809 = vadd.f32 %v2515, %v2745
      %v2810 = vadd.f32 %v2516, %v2750
      %v2811 = vadd.f32 %v2517, %v2753
      %v2812 = vadd.f32 %v2518, %v2758
      %v2813 = vadd.f32 %v2519, %v2761
      %v2814 = vadd.f32 %v2520, %v2766
      %v2815 = vadd.f32 %v2521, %v2769
      %v2816 = vadd.f32 %v2522, %v2774
      %v2817 = vadd.f32 %v2523, %v2777
      %v2818 = vadd.f32 %v2524, %v2782
      %v2819 = vadd.f32 %v2525, %v2785
      %v2820 = vld [vmem:[%s2231 + $0x9] sm:$0xff]
      %v2821 = vld [vmem:[%s2231 + $0x11] sm:$0xff]
      %v2822 = vld [vmem:[%s2231 + $0x29] sm:$0xff]
      %v2823 = vld [vmem:[%s2231 + $0x31] sm:$0xff]
      %v2824 = vld [vmem:[%s2231 + $0x49] sm:$0xff]
      %v2825 = vld [vmem:[%s2231 + $0x51] sm:$0xff]
      %v2826 = vld [vmem:[%s2231 + $0x69] sm:$0xff]
      %v2827 = vld [vmem:[%s2231 + $0x71] sm:$0xff]
      %v2828 = vld [vmem:[%s2231 + $0x89] sm:$0xff]
      %v2829 = vld [vmem:[%s2231 + $0x91] sm:$0xff]
      %v2830 = vld [vmem:[%s2231 + $0xa9] sm:$0xff]
      %v2831 = vld [vmem:[%s2231 + $0xb1] sm:$0xff]
      %v2832 = vld [vmem:[%s2231 + $0xc9] sm:$0xff]
      %v2833 = vld [vmem:[%s2231 + $0xd1] sm:$0xff]
      %v2834 = vld [vmem:[%s2231 + $0xe9] sm:$0xff]
      %v2835 = vld [vmem:[%s2231 + $0xf1] sm:$0xff]
      %v2836 = vld [vmem:[%s2231 + $0x109] sm:$0xff]
      %v2837 = vld [vmem:[%s2231 + $0x111] sm:$0xff]
      %v2838 = vld [vmem:[%s2231 + $0x129] sm:$0xff]
      %v2839 = vld [vmem:[%s2231 + $0x131] sm:$0xff]
      %v2840 = vld [vmem:[%s2231 + $0x149] sm:$0xff]
      %v2841 = vld [vmem:[%s2231 + $0x151] sm:$0xff]
      %v2842 = vld [vmem:[%s2231 + $0x169] sm:$0xff]
      %v2843 = vld [vmem:[%s2231 + $0x171] sm:$0xff]
      %v2844 = vld [vmem:[%s2231 + $0x189] sm:$0xff]
      %v2845 = vld [vmem:[%s2231 + $0x191] sm:$0xff]
      %v2846 = vld [vmem:[%s2231 + $0x1a9] sm:$0xff]
      %v2847 = vld [vmem:[%s2231 + $0x1b1] sm:$0xff]
      %v2848 = vld [vmem:[%s2231 + $0x1c9] sm:$0xff]
      %v2849 = vld [vmem:[%s2231 + $0x1d1] sm:$0xff]
      %v2850 = vld [vmem:[%s2231 + $0x1e9] sm:$0xff]
      %v2851 = vld [vmem:[%s2231 + $0x1f1] sm:$0xff]
      %v2852 = vpack.c.bf16 %v2821, %v2820
      %v2853 = vpack.c.bf16 %v2823, %v2822
      %v2854 = vpack.c.bf16 %v2825, %v2824
      %v2855 = vpack.c.bf16 %v2827, %v2826
      %v2856 = vpack.c.bf16 %v2829, %v2828
      %v2857 = vpack.c.bf16 %v2831, %v2830
      %v2858 = vpack.c.bf16 %v2833, %v2832
      %v2859 = vpack.c.bf16 %v2835, %v2834
      %v2860 = vpack.c.bf16 %v2837, %v2836
      %v2861 = vpack.c.bf16 %v2839, %v2838
      %v2862 = vpack.c.bf16 %v2841, %v2840
      %v2863 = vpack.c.bf16 %v2843, %v2842
      %v2864 = vpack.c.bf16 %v2845, %v2844
      %v2865 = vpack.c.bf16 %v2847, %v2846
      %v2866 = vpack.c.bf16 %v2849, %v2848
      %v2867 = vpack.c.bf16 %v2851, %v2850
      %s2868 = scalar_lea.vmem %s1, 16
      %v2869 = vld [vmem:[%s2868] sm:$0x3]
      %v2871 = vsel %vm393, %v2852, 0
      %v2874 = vsel %vm393, %v2853, 0
      %v2877 = vsel %vm393, %v2854, 0
      %v2880 = vsel %vm393, %v2855, 0
      %v2883 = vsel %vm393, %v2856, 0
      %v2886 = vsel %vm393, %v2857, 0
      %v2889 = vsel %vm393, %v2858, 0
      %v2892 = vsel %vm393, %v2859, 0
      %v2895 = vsel %vm393, %v2860, 0
      %v2898 = vsel %vm393, %v2861, 0
      %v2901 = vsel %vm393, %v2862, 0
      %v2904 = vsel %vm393, %v2863, 0
      %v2907 = vsel %vm393, %v2864, 0
      %v2910 = vsel %vm393, %v2865, 0
      %v2913 = vsel %vm393, %v2866, 0
      %v2916 = vsel %vm393, %v2867, 0
      %v2919 = vsel %vm678, %v2869, 0
      %2921 = vmatprep.subr.bf16.mxu0 0
      %2922 = vmatpush1.bf16.msra.mxu0 %v2919
      %2923 = vmatprep.subr.bf16.mxu0 0
      %2924 = vmatpush1.bf16.msra.mxu0 0
      %2925 = vmatprep.subr.bf16.mxu0 0
      %2926 = vmatpush1.bf16.msra.mxu0 0
      %2927 = vmatprep.subr.bf16.mxu0 0
      %2928 = vmatpush1.bf16.msra.mxu0 0
      %2929 = vmatprep.subr.bf16.mxu0 0
      %2930 = vmatpush1.bf16.msra.mxu0 0
      %2931 = vmatprep.subr.bf16.mxu0 0
      %2932 = vmatpush1.bf16.msra.mxu0 0
      %2933 = vmatprep.subr.bf16.mxu0 0
      %2934 = vmatpush1.bf16.msra.mxu0 0
      %2935 = vmatprep.subr.bf16.mxu0 0
      %2936 = vmatpush1.bf16.msra.mxu0 0
      %2937 = vmatprep.subr.bf16.mxu0 0
      %2938 = vmatpush1.bf16.msra.mxu0 0
      %2939 = vmatprep.subr.bf16.mxu0 0
      %2940 = vmatpush1.bf16.msra.mxu0 0
      %2941 = vmatprep.subr.bf16.mxu0 0
      %2942 = vmatpush1.bf16.msra.mxu0 0
      %2943 = vmatprep.subr.bf16.mxu0 0
      %2944 = vmatpush1.bf16.msra.mxu0 0
      %2945 = vmatprep.subr.bf16.mxu0 0
      %2946 = vmatpush1.bf16.msra.mxu0 0
      %2947 = vmatprep.subr.bf16.mxu0 0
      %2948 = vmatpush1.bf16.msra.mxu0 0
      %2949 = vmatprep.subr.bf16.mxu0 0
      %2950 = vmatpush1.bf16.msra.mxu0 0
      %2951 = vmatprep.subr.bf16.mxu0 0
      %2952 = vmatpush1.bf16.msra.mxu0 0
      %2953 = vmatprep.mubr.bf16.mxu0 0
      %2954 = vmatmul.mubr.bf16.gmra.mrb[0].mxu0 %v2871
      %v2955 = vpop.f32.mrb[0].mxu0
      %v2956 = vadd.f32 0.0, %v2955
      %v2957 = vpop.f32.mrb[0].mxu0
      %v2958 = vpop.f32.mrb[0].mxu0
      %v2959 = vadd.f32 0.0, %v2958
      %v2960 = vpop.f32.mrb[0].mxu0
      %2961 = vmatprep.mubr.bf16.mxu0 0
      %2962 = vmatmul.mubr.bf16.gmra.mrb[0].mxu0 %v2874
      %v2963 = vpop.f32.mrb[0].mxu0
      %v2964 = vadd.f32 0.0, %v2963
      %v2965 = vpop.f32.mrb[0].mxu0
      %v2966 = vpop.f32.mrb[0].mxu0
      %v2967 = vadd.f32 0.0, %v2966
      %v2968 = vpop.f32.mrb[0].mxu0
      %2969 = vmatprep.mubr.bf16.mxu0 0
      %2970 = vmatmul.mubr.bf16.gmra.mrb[0].mxu0 %v2877
      %v2971 = vpop.f32.mrb[0].mxu0
      %v2972 = vadd.f32 0.0, %v2971
      %v2973 = vpop.f32.mrb[0].mxu0
      %v2974 = vpop.f32.mrb[0].mxu0
      %v2975 = vadd.f32 0.0, %v2974
      %v2976 = vpop.f32.mrb[0].mxu0
      %2977 = vmatprep.mubr.bf16.mxu0 0
      %2978 = vmatmul.mubr.bf16.gmra.mrb[0].mxu0 %v2880
      %v2979 = vpop.f32.mrb[0].mxu0
      %v2980 = vadd.f32 0.0, %v2979
      %v2981 = vpop.f32.mrb[0].mxu0
      %v2982 = vpop.f32.mrb[0].mxu0
      %v2983 = vadd.f32 0.0, %v2982
      %v2984 = vpop.f32.mrb[0].mxu0
      %2985 = vmatprep.mubr.bf16.mxu0 0
      %2986 = vmatmul.mubr.bf16.gmra.mrb[0].mxu0 %v2883
      %v2987 = vpop.f32.mrb[0].mxu0
      %v2988 = vadd.f32 0.0, %v2987
      %v2989 = vpop.f32.mrb[0].mxu0
      %v2990 = vpop.f32.mrb[0].mxu0
      %v2991 = vadd.f32 0.0, %v2990
      %v2992 = vpop.f32.mrb[0].mxu0
      %2993 = vmatprep.mubr.bf16.mxu0 0
      %2994 = vmatmul.mubr.bf16.gmra.mrb[0].mxu0 %v2886
      %v2995 = vpop.f32.mrb[0].mxu0
      %v2996 = vadd.f32 0.0, %v2995
      %v2997 = vpop.f32.mrb[0].mxu0
      %v2998 = vpop.f32.mrb[0].mxu0
      %v2999 = vadd.f32 0.0, %v2998
      %v3000 = vpop.f32.mrb[0].mxu0
      %3001 = vmatprep.mubr.bf16.mxu0 0
      %3002 = vmatmul.mubr.bf16.gmra.mrb[0].mxu0 %v2889
      %v3003 = vpop.f32.mrb[0].mxu0
      %v3004 = vadd.f32 0.0, %v3003
      %v3005 = vpop.f32.mrb[0].mxu0
      %v3006 = vpop.f32.mrb[0].mxu0
      %v3007 = vadd.f32 0.0, %v3006
      %v3008 = vpop.f32.mrb[0].mxu0
      %3009 = vmatprep.mubr.bf16.mxu0 0
      %3010 = vmatmul.mubr.bf16.gmra.mrb[0].mxu0 %v2892
      %v3011 = vpop.f32.mrb[0].mxu0
      %v3012 = vadd.f32 0.0, %v3011
      %v3013 = vpop.f32.mrb[0].mxu0
      %v3014 = vpop.f32.mrb[0].mxu0
      %v3015 = vadd.f32 0.0, %v3014
      %v3016 = vpop.f32.mrb[0].mxu0
      %3017 = vmatprep.mubr.bf16.mxu0 0
      %3018 = vmatmul.mubr.bf16.gmra.mrb[0].mxu0 %v2895
      %v3019 = vpop.f32.mrb[0].mxu0
      %v3020 = vadd.f32 0.0, %v3019
      %v3021 = vpop.f32.mrb[0].mxu0
      %v3022 = vpop.f32.mrb[0].mxu0
      %v3023 = vadd.f32 0.0, %v3022
      %v3024 = vpop.f32.mrb[0].mxu0
      %3025 = vmatprep.mubr.bf16.mxu0 0
      %3026 = vmatmul.mubr.bf16.gmra.mrb[0].mxu0 %v2898
      %v3027 = vpop.f32.mrb[0].mxu0
      %v3028 = vadd.f32 0.0, %v3027
      %v3029 = vpop.f32.mrb[0].mxu0
      %v3030 = vpop.f32.mrb[0].mxu0
      %v3031 = vadd.f32 0.0, %v3030
      %v3032 = vpop.f32.mrb[0].mxu0
      %3033 = vmatprep.mubr.bf16.mxu0 0
      %3034 = vmatmul.mubr.bf16.gmra.mrb[0].mxu0 %v2901
      %v3035 = vpop.f32.mrb[0].mxu0
      %v3036 = vadd.f32 0.0, %v3035
      %v3037 = vpop.f32.mrb[0].mxu0
      %v3038 = vpop.f32.mrb[0].mxu0
      %v3039 = vadd.f32 0.0, %v3038
      %v3040 = vpop.f32.mrb[0].mxu0
      %3041 = vmatprep.mubr.bf16.mxu0 0
      %3042 = vmatmul.mubr.bf16.gmra.mrb[0].mxu0 %v2904
      %v3043 = vpop.f32.mrb[0].mxu0
      %v3044 = vadd.f32 0.0, %v3043
      %v3045 = vpop.f32.mrb[0].mxu0
      %v3046 = vpop.f32.mrb[0].mxu0
      %v3047 = vadd.f32 0.0, %v3046
      %v3048 = vpop.f32.mrb[0].mxu0
      %3049 = vmatprep.mubr.bf16.mxu0 0
      %3050 = vmatmul.mubr.bf16.gmra.mrb[0].mxu0 %v2907
      %v3051 = vpop.f32.mrb[0].mxu0
      %v3052 = vadd.f32 0.0, %v3051
      %v3053 = vpop.f32.mrb[0].mxu0
      %v3054 = vpop.f32.mrb[0].mxu0
      %v3055 = vadd.f32 0.0, %v3054
      %v3056 = vpop.f32.mrb[0].mxu0
      %3057 = vmatprep.mubr.bf16.mxu0 0
      %3058 = vmatmul.mubr.bf16.gmra.mrb[0].mxu0 %v2910
      %v3059 = vpop.f32.mrb[0].mxu0
      %v3060 = vadd.f32 0.0, %v3059
      %v3061 = vpop.f32.mrb[0].mxu0
      %v3062 = vpop.f32.mrb[0].mxu0
      %v3063 = vadd.f32 0.0, %v3062
      %v3064 = vpop.f32.mrb[0].mxu0
      %3065 = vmatprep.mubr.bf16.mxu0 0
      %3066 = vmatmul.mubr.bf16.gmra.mrb[0].mxu0 %v2913
      %v3067 = vpop.f32.mrb[0].mxu0
      %v3068 = vadd.f32 0.0, %v3067
      %v3069 = vpop.f32.mrb[0].mxu0
      %v3070 = vpop.f32.mrb[0].mxu0
      %v3071 = vadd.f32 0.0, %v3070
      %v3072 = vpop.f32.mrb[0].mxu0
      %3073 = vmatprep.mubr.bf16.mxu0 0
      %3074 = vmatmul.mubr.bf16.gmra.mrb[0].mxu0 %v2916
      %v3075 = vpop.f32.mrb[0].mxu0
      %v3076 = vadd.f32 0.0, %v3075
      %v3077 = vpop.f32.mrb[0].mxu0
      %v3078 = vpop.f32.mrb[0].mxu0
      %v3079 = vadd.f32 0.0, %v3078
      %v3080 = vpop.f32.mrb[0].mxu0
      %3081 = vdwg.mxu0
      %v3082 = vadd.f32 %v2788, %v2956
      %v3083 = vadd.f32 %v2789, %v2959
      %v3084 = vadd.f32 %v2790, %v2964
      %v3085 = vadd.f32 %v2791, %v2967
      %v3086 = vadd.f32 %v2792, %v2972
      %v3087 = vadd.f32 %v2793, %v2975
      %v3088 = vadd.f32 %v2794, %v2980
      %v3089 = vadd.f32 %v2795, %v2983
      %v3090 = vadd.f32 %v2796, %v2988
      %v3091 = vadd.f32 %v2797, %v2991
      %v3092 = vadd.f32 %v2798, %v2996
      %v3093 = vadd.f32 %v2799, %v2999
      %v3094 = vadd.f32 %v2800, %v3004
      %v3095 = vadd.f32 %v2801, %v3007
      %v3096 = vadd.f32 %v2802, %v3012
      %v3097 = vadd.f32 %v2803, %v3015
      %v3098 = vadd.f32 %v2804, %v3020
      %v3099 = vadd.f32 %v2805, %v3023
      %v3100 = vadd.f32 %v2806, %v3028
      %v3101 = vadd.f32 %v2807, %v3031
      %v3102 = vadd.f32 %v2808, %v3036
      %v3103 = vadd.f32 %v2809, %v3039
      %v3104 = vadd.f32 %v2810, %v3044
      %v3105 = vadd.f32 %v2811, %v3047
      %v3106 = vadd.f32 %v2812, %v3052
      %v3107 = vadd.f32 %v2813, %v3055
      %v3108 = vadd.f32 %v2814, %v3060
      %v3109 = vadd.f32 %v2815, %v3063
      %v3110 = vadd.f32 %v2816, %v3068
      %v3111 = vadd.f32 %v2817, %v3071
      %v3112 = vadd.f32 %v2818, %v3076
      %v3113 = vadd.f32 %v2819, %v3079
      %v3114 = vld [vmem:[%s2] sm:$0x1]
      %v3116 = vlaneseq
      %v3117 = vshrl.u32 %v3116, 7
      %v3118 = vsub.s32 0, %v3117
      %v3119 = vrot.slane %v3114, %v3118
      %v3121 = vmul.f32 %v3082, %v3119
      %v3122 = vmul.f32 %v3083, %v3119
      %v3123 = vmul.f32 %v3084, %v3119
      %v3124 = vmul.f32 %v3085, %v3119
      %v3125 = vmul.f32 %v3086, %v3119
      %v3126 = vmul.f32 %v3087, %v3119
      %v3127 = vmul.f32 %v3088, %v3119
      %v3128 = vmul.f32 %v3089, %v3119
      %v3129 = vmul.f32 %v3090, %v3119
      %v3130 = vmul.f32 %v3091, %v3119
      %v3131 = vmul.f32 %v3092, %v3119
      %v3132 = vmul.f32 %v3093, %v3119
      %v3133 = vmul.f32 %v3094, %v3119
      %v3134 = vmul.f32 %v3095, %v3119
      %v3135 = vmul.f32 %v3096, %v3119
      %v3136 = vmul.f32 %v3097, %v3119
      %v3137 = vmul.f32 %v3098, %v3119
      %v3138 = vmul.f32 %v3099, %v3119
      %v3139 = vmul.f32 %v3100, %v3119
      %v3140 = vmul.f32 %v3101, %v3119
      %v3141 = vmul.f32 %v3102, %v3119
      %v3142 = vmul.f32 %v3103, %v3119
      %v3143 = vmul.f32 %v3104, %v3119
      %v3144 = vmul.f32 %v3105, %v3119
      %v3145 = vmul.f32 %v3106, %v3119
      %v3146 = vmul.f32 %v3107, %v3119
      %v3147 = vmul.f32 %v3108, %v3119
      %v3148 = vmul.f32 %v3109, %v3119
      %v3149 = vmul.f32 %v3110, %v3119
      %v3150 = vmul.f32 %v3111, %v3119
      %v3151 = vmul.f32 %v3112, %v3119
      %v3152 = vmul.f32 %v3113, %v3119
      %v3153 = vld [vmem:[%s3] sm:$0x1]
      %v3155 = vlaneseq
      %v3156 = vshrl.u32 %v3155, 7
      %v3157 = vsub.s32 0, %v3156
      %v3158 = vrot.slane %v3153, %v3157
      %v3160 = vadd.f32 %v3121, %v3158
      %v3161 = vadd.f32 %v3122, %v3158
      %v3162 = vadd.f32 %v3123, %v3158
      %v3163 = vadd.f32 %v3124, %v3158
      %v3164 = vadd.f32 %v3125, %v3158
      %v3165 = vadd.f32 %v3126, %v3158
      %v3166 = vadd.f32 %v3127, %v3158
      %v3167 = vadd.f32 %v3128, %v3158
      %v3168 = vadd.f32 %v3129, %v3158
      %v3169 = vadd.f32 %v3130, %v3158
      %v3170 = vadd.f32 %v3131, %v3158
      %v3171 = vadd.f32 %v3132, %v3158
      %v3172 = vadd.f32 %v3133, %v3158
      %v3173 = vadd.f32 %v3134, %v3158
      %v3174 = vadd.f32 %v3135, %v3158
      %v3175 = vadd.f32 %v3136, %v3158
      %v3176 = vadd.f32 %v3137, %v3158
      %v3177 = vadd.f32 %v3138, %v3158
      %v3178 = vadd.f32 %v3139, %v3158
      %v3179 = vadd.f32 %v3140, %v3158
      %v3180 = vadd.f32 %v3141, %v3158
      %v3181 = vadd.f32 %v3142, %v3158
      %v3182 = vadd.f32 %v3143, %v3158
      %v3183 = vadd.f32 %v3144, %v3158
      %v3184 = vadd.f32 %v3145, %v3158
      %v3185 = vadd.f32 %v3146, %v3158
      %v3186 = vadd.f32 %v3147, %v3158
      %v3187 = vadd.f32 %v3148, %v3158
      %v3188 = vadd.f32 %v3149, %v3158
      %v3189 = vadd.f32 %v3150, %v3158
      %v3190 = vadd.f32 %v3151, %v3158
      %v3191 = vadd.f32 %v3152, %v3158
      %v3192 = vmax.f32 %v3160, 0.0
      %v3193 = vmax.f32 %v3161, 0.0
      %v3194 = vmax.f32 %v3162, 0.0
      %v3195 = vmax.f32 %v3163, 0.0
      %v3196 = vmax.f32 %v3164, 0.0
      %v3197 = vmax.f32 %v3165, 0.0
      %v3198 = vmax.f32 %v3166, 0.0
      %v3199 = vmax.f32 %v3167, 0.0
      %v3200 = vmax.f32 %v3168, 0.0
      %v3201 = vmax.f32 %v3169, 0.0
      %v3202 = vmax.f32 %v3170, 0.0
      %v3203 = vmax.f32 %v3171, 0.0
      %v3204 = vmax.f32 %v3172, 0.0
      %v3205 = vmax.f32 %v3173, 0.0
      %v3206 = vmax.f32 %v3174, 0.0
      %v3207 = vmax.f32 %v3175, 0.0
      %v3208 = vmax.f32 %v3176, 0.0
      %v3209 = vmax.f32 %v3177, 0.0
      %v3210 = vmax.f32 %v3178, 0.0
      %v3211 = vmax.f32 %v3179, 0.0
      %v3212 = vmax.f32 %v3180, 0.0
      %v3213 = vmax.f32 %v3181, 0.0
      %v3214 = vmax.f32 %v3182, 0.0
      %v3215 = vmax.f32 %v3183, 0.0
      %v3216 = vmax.f32 %v3184, 0.0
      %v3217 = vmax.f32 %v3185, 0.0
      %v3218 = vmax.f32 %v3186, 0.0
      %v3219 = vmax.f32 %v3187, 0.0
      %v3220 = vmax.f32 %v3188, 0.0
      %v3221 = vmax.f32 %v3189, 0.0
      %v3222 = vmax.f32 %v3190, 0.0
      %v3223 = vmax.f32 %v3191, 0.0
      %3224 = vst [vmem:[#allocation3] sm:$0xff] 0.0
      %3225 = vst [vmem:[#allocation3 + $0x8] sm:$0xff] 0.0
      %3226 = vst [vmem:[#allocation3 + $0x10] sm:$0xff] 0.0
      %3227 = vst [vmem:[#allocation3 + $0x18] sm:$0xff] 0.0
      %3228 = vst [vmem:[#allocation3 + $0x20] sm:$0xff] 0.0
      %3229 = vst [vmem:[#allocation3 + $0x28] sm:$0xff] 0.0
      %3230 = vst [vmem:[#allocation3 + $0x30] sm:$0xff] 0.0
      %3231 = vst [vmem:[#allocation3 + $0x38] sm:$0xff] 0.0
      %3232 = vst [vmem:[#allocation3 + $0x40] sm:$0xff] 0.0
      %3233 = vst [vmem:[#allocation3 + $0x48] sm:$0xff] 0.0
      %3234 = vst [vmem:[#allocation3 + $0x50] sm:$0xff] 0.0
      %3235 = vst [vmem:[#allocation3 + $0x58] sm:$0xff] 0.0
      %3236 = vst [vmem:[#allocation3 + $0x60] sm:$0xff] 0.0
      %3237 = vst [vmem:[#allocation3 + $0x68] sm:$0xff] 0.0
      %3238 = vst [vmem:[#allocation3 + $0x70] sm:$0xff] 0.0
      %3239 = vst [vmem:[#allocation3 + $0x78] sm:$0xff] 0.0
      %3240 = vst [vmem:[#allocation3 + $0x80] sm:$0xff] 0.0
      %3241 = vst [vmem:[#allocation3 + $0x88] sm:$0xff] 0.0
      %3242 = vst [vmem:[#allocation3 + $0x90] sm:$0xff] 0.0
      %3243 = vst [vmem:[#allocation3 + $0x98] sm:$0xff] 0.0
      %3244 = vst [vmem:[#allocation3 + $0xa0] sm:$0xff] 0.0
      %3245 = vst [vmem:[#allocation3 + $0xa8] sm:$0xff] 0.0
      %3246 = vst [vmem:[#allocation3 + $0xb0] sm:$0xff] 0.0
      %3247 = vst [vmem:[#allocation3 + $0xb8] sm:$0xff] 0.0
      %3248 = vst [vmem:[#allocation3 + $0xc0] sm:$0xff] 0.0
      %3249 = vst [vmem:[#allocation3 + $0xc8] sm:$0xff] 0.0
      %3250 = vst [vmem:[#allocation3 + $0xd0] sm:$0xff] 0.0
      %3251 = vst [vmem:[#allocation3 + $0xd8] sm:$0xff] 0.0
      %3252 = vst [vmem:[#allocation3 + $0xe0] sm:$0xff] 0.0
      %3253 = vst [vmem:[#allocation3 + $0xe8] sm:$0xff] 0.0
      %3254 = vst [vmem:[#allocation3 + $0xf0] sm:$0xff] 0.0
      %3255 = vst [vmem:[#allocation3 + $0xf8] sm:$0xff] 0.0
      %3256 = vst [vmem:[#allocation3 + $0x100] sm:$0xff] 0.0
      %3257 = vst [vmem:[#allocation3 + $0x108] sm:$0xff] 0.0
      %3258 = vst [vmem:[#allocation3 + $0x110] sm:$0xff] 0.0
      %3259 = vst [vmem:[#allocation3 + $0x118] sm:$0xff] 0.0
      %3260 = vst [vmem:[#allocation3 + $0x120] sm:$0xff] 0.0
      %3261 = vst [vmem:[#allocation3 + $0x128] sm:$0xff] 0.0
      %3262 = vst [vmem:[#allocation3 + $0x130] sm:$0xff] 0.0
      %3263 = vst [vmem:[#allocation3 + $0x138] sm:$0xff] 0.0
      %3264 = vst [vmem:[#allocation3 + $0x140] sm:$0xff] 0.0
      %3265 = vst [vmem:[#allocation3 + $0x148] sm:$0xff] 0.0
      %3266 = vst [vmem:[#allocation3 + $0x150] sm:$0xff] 0.0
      %3267 = vst [vmem:[#allocation3 + $0x158] sm:$0xff] 0.0
      %3268 = vst [vmem:[#allocation3 + $0x160] sm:$0xff] 0.0
      %3269 = vst [vmem:[#allocation3 + $0x168] sm:$0xff] 0.0
      %3270 = vst [vmem:[#allocation3 + $0x170] sm:$0xff] 0.0
      %3271 = vst [vmem:[#allocation3 + $0x178] sm:$0xff] 0.0
      %3272 = vst [vmem:[#allocation3 + $0x180] sm:$0xff] 0.0
      %3273 = vst [vmem:[#allocation3 + $0x188] sm:$0xff] 0.0
      %3274 = vst [vmem:[#allocation3 + $0x190] sm:$0xff] 0.0
      %3275 = vst [vmem:[#allocation3 + $0x198] sm:$0xff] 0.0
      %3276 = vst [vmem:[#allocation3 + $0x1a0] sm:$0xff] 0.0
      %3277 = vst [vmem:[#allocation3 + $0x1a8] sm:$0xff] 0.0
      %3278 = vst [vmem:[#allocation3 + $0x1b0] sm:$0xff] 0.0
      %3279 = vst [vmem:[#allocation3 + $0x1b8] sm:$0xff] 0.0
      %3280 = vst [vmem:[#allocation3 + $0x1c0] sm:$0xff] 0.0
      %3281 = vst [vmem:[#allocation3 + $0x1c8] sm:$0xff] 0.0
      %3282 = vst [vmem:[#allocation3 + $0x1d0] sm:$0xff] 0.0
      %3283 = vst [vmem:[#allocation3 + $0x1d8] sm:$0xff] 0.0
      %3284 = vst [vmem:[#allocation3 + $0x1e0] sm:$0xff] 0.0
      %3285 = vst [vmem:[#allocation3 + $0x1e8] sm:$0xff] 0.0
      %3286 = vst [vmem:[#allocation3 + $0x1f0] sm:$0xff] 0.0
      %3287 = vst [vmem:[#allocation3 + $0x1f8] sm:$0xff] 0.0
      %3288 = vst [vmem:[#allocation3 + $0x200] sm:$0xff] 0.0
      %3289 = vst [vmem:[#allocation3 + $0x208] sm:$0xff] 0.0
      %3290 = vst [vmem:[#allocation3 + $0x210] sm:$0xff] 0.0
      %3291 = vst [vmem:[#allocation3 + $0x218] sm:$0xff] 0.0
      %3292 = vst [vmem:[#allocation3 + $0x220] sm:$0xff] 0.0
      %3293 = vst [vmem:[#allocation3 + $0x228] sm:$0xff] 0.0
      %3294 = vst [vmem:[#allocation3 + $0x230] sm:$0xff] 0.0
      %3295 = vst [vmem:[#allocation3 + $0x238] sm:$0xff] 0.0
      %s3296 = scalar_lea.vmem [#allocation3], 32
      %3297 = vst [vmem:[%s3296 + $0x8] sm:$0xff] %v3192
      %3298 = vst [vmem:[%s3296 + $0x10] sm:$0xff] %v3193
      %3299 = vst [vmem:[%s3296 + $0x28] sm:$0xff] %v3194
      %3300 = vst [vmem:[%s3296 + $0x30] sm:$0xff] %v3195
      %3301 = vst [vmem:[%s3296 + $0x48] sm:$0xff] %v3196
      %3302 = vst [vmem:[%s3296 + $0x50] sm:$0xff] %v3197
      %3303 = vst [vmem:[%s3296 + $0x68] sm:$0xff] %v3198
      %3304 = vst [vmem:[%s3296 + $0x70] sm:$0xff] %v3199
      %3305 = vst [vmem:[%s3296 + $0x88] sm:$0xff] %v3200
      %3306 = vst [vmem:[%s3296 + $0x90] sm:$0xff] %v3201
      %3307 = vst [vmem:[%s3296 + $0xa8] sm:$0xff] %v3202
      %3308 = vst [vmem:[%s3296 + $0xb0] sm:$0xff] %v3203
      %3309 = vst [vmem:[%s3296 + $0xc8] sm:$0xff] %v3204
      %3310 = vst [vmem:[%s3296 + $0xd0] sm:$0xff] %v3205
      %3311 = vst [vmem:[%s3296 + $0xe8] sm:$0xff] %v3206
      %3312 = vst [vmem:[%s3296 + $0xf0] sm:$0xff] %v3207
      %3313 = vst [vmem:[%s3296 + $0x108] sm:$0xff] %v3208
      %3314 = vst [vmem:[%s3296 + $0x110] sm:$0xff] %v3209
      %3315 = vst [vmem:[%s3296 + $0x128] sm:$0xff] %v3210
      %3316 = vst [vmem:[%s3296 + $0x130] sm:$0xff] %v3211
      %3317 = vst [vmem:[%s3296 + $0x148] sm:$0xff] %v3212
      %3318 = vst [vmem:[%s3296 + $0x150] sm:$0xff] %v3213
      %3319 = vst [vmem:[%s3296 + $0x168] sm:$0xff] %v3214
      %3320 = vst [vmem:[%s3296 + $0x170] sm:$0xff] %v3215
      %3321 = vst [vmem:[%s3296 + $0x188] sm:$0xff] %v3216
      %3322 = vst [vmem:[%s3296 + $0x190] sm:$0xff] %v3217
      %3323 = vst [vmem:[%s3296 + $0x1a8] sm:$0xff] %v3218
      %3324 = vst [vmem:[%s3296 + $0x1b0] sm:$0xff] %v3219
      %3325 = vst [vmem:[%s3296 + $0x1c8] sm:$0xff] %v3220
      %3326 = vst [vmem:[%s3296 + $0x1d0] sm:$0xff] %v3221
      %3327 = vst [vmem:[%s3296 + $0x1e8] sm:$0xff] %v3222
      %3328 = vst [vmem:[%s3296 + $0x1f0] sm:$0xff] %v3223
      %v3329 = vld [vmem:[#allocation3 + $0x7] sm:$0xff]
      %v3330 = vld [vmem:[#allocation3 + $0xf] sm:$0xff]
      %v3331 = vld [vmem:[#allocation3 + $0x27] sm:$0xff]
      %v3332 = vld [vmem:[#allocation3 + $0x2f] sm:$0xff]
      %v3333 = vld [vmem:[#allocation3 + $0x47] sm:$0xff]
      %v3334 = vld [vmem:[#allocation3 + $0x4f] sm:$0xff]
      %v3335 = vld [vmem:[#allocation3 + $0x67] sm:$0xff]
      %v3336 = vld [vmem:[#allocation3 + $0x6f] sm:$0xff]
      %v3337 = vld [vmem:[#allocation3 + $0x87] sm:$0xff]
      %v3338 = vld [vmem:[#allocation3 + $0x8f] sm:$0xff]
      %v3339 = vld [vmem:[#allocation3 + $0xa7] sm:$0xff]
      %v3340 = vld [vmem:[#allocation3 + $0xaf] sm:$0xff]
      %v3341 = vld [vmem:[#allocation3 + $0xc7] sm:$0xff]
      %v3342 = vld [vmem:[#allocation3 + $0xcf] sm:$0xff]
      %v3343 = vld [vmem:[#allocation3 + $0xe7] sm:$0xff]
      %v3344 = vld [vmem:[#allocation3 + $0xef] sm:$0xff]
      %v3345 = vld [vmem:[#allocation3 + $0x107] sm:$0xff]
      %v3346 = vld [vmem:[#allocation3 + $0x10f] sm:$0xff]
      %v3347 = vld [vmem:[#allocation3 + $0x127] sm:$0xff]
      %v3348 = vld [vmem:[#allocation3 + $0x12f] sm:$0xff]
      %v3349 = vld [vmem:[#allocation3 + $0x147] sm:$0xff]
      %v3350 = vld [vmem:[#allocation3 + $0x14f] sm:$0xff]
      %v3351 = vld [vmem:[#allocation3 + $0x167] sm:$0xff]
      %v3352 = vld [vmem:[#allocation3 + $0x16f] sm:$0xff]
      %v3353 = vld [vmem:[#allocation3 + $0x187] sm:$0xff]
      %v3354 = vld [vmem:[#allocation3 + $0x18f] sm:$0xff]
      %v3355 = vld [vmem:[#allocation3 + $0x1a7] sm:$0xff]
      %v3356 = vld [vmem:[#allocation3 + $0x1af] sm:$0xff]
      %v3357 = vld [vmem:[#allocation3 + $0x1c7] sm:$0xff]
      %v3358 = vld [vmem:[#allocation3 + $0x1cf] sm:$0xff]
      %v3359 = vld [vmem:[#allocation3 + $0x1e7] sm:$0xff]
      %v3360 = vld [vmem:[#allocation3 + $0x1ef] sm:$0xff]
      %v3361 = vpack.c.bf16 %v3330, %v3329
      %v3362 = vpack.c.bf16 %v3332, %v3331
      %v3363 = vpack.c.bf16 %v3334, %v3333
      %v3364 = vpack.c.bf16 %v3336, %v3335
      %v3365 = vpack.c.bf16 %v3338, %v3337
      %v3366 = vpack.c.bf16 %v3340, %v3339
      %v3367 = vpack.c.bf16 %v3342, %v3341
      %v3368 = vpack.c.bf16 %v3344, %v3343
      %v3369 = vpack.c.bf16 %v3346, %v3345
      %v3370 = vpack.c.bf16 %v3348, %v3347
      %v3371 = vpack.c.bf16 %v3350, %v3349
      %v3372 = vpack.c.bf16 %v3352, %v3351
      %v3373 = vpack.c.bf16 %v3354, %v3353
      %v3374 = vpack.c.bf16 %v3356, %v3355
      %v3375 = vpack.c.bf16 %v3358, %v3357
      %v3376 = vpack.c.bf16 %v3360, %v3359
      %v3377 = vld [vmem:[%s4] sm:$0xf]
      %v3378 = vld [vmem:[%s4 + $0x4] sm:$0xf]
      %v3379 = vld [vmem:[%s4 + $0x8] sm:$0xf]
      %v3380 = vld [vmem:[%s4 + $0xc] sm:$0xf]
      %v3381 = vld [vmem:[%s4 + $0x10] sm:$0xf]
      %v3382 = vld [vmem:[%s4 + $0x14] sm:$0xf]
      %v3383 = vld [vmem:[%s4 + $0x18] sm:$0xf]
      %v3384 = vld [vmem:[%s4 + $0x1c] sm:$0xf]
      %v3385 = vld [vmem:[%s4 + $0x20] sm:$0xf]
      %v3386 = vld [vmem:[%s4 + $0x24] sm:$0xf]
      %v3387 = vld [vmem:[%s4 + $0x28] sm:$0xf]
      %v3388 = vld [vmem:[%s4 + $0x2c] sm:$0xf]
      %v3389 = vld [vmem:[%s4 + $0x30] sm:$0xf]
      %v3390 = vld [vmem:[%s4 + $0x34] sm:$0xf]
      %v3391 = vld [vmem:[%s4 + $0x38] sm:$0xf]
      %v3392 = vld [vmem:[%s4 + $0x3c] sm:$0xf]
      %v3393 = vld [vmem:[#allocation3 + $0x8] sm:$0xff]
      %v3394 = vld [vmem:[#allocation3 + $0x10] sm:$0xff]
      %v3395 = vld [vmem:[#allocation3 + $0x28] sm:$0xff]
      %v3396 = vld [vmem:[#allocation3 + $0x30] sm:$0xff]
      %v3397 = vld [vmem:[#allocation3 + $0x48] sm:$0xff]
      %v3398 = vld [vmem:[#allocation3 + $0x50] sm:$0xff]
      %v3399 = vld [vmem:[#allocation3 + $0x68] sm:$0xff]
      %v3400 = vld [vmem:[#allocation3 + $0x70] sm:$0xff]
      %v3401 = vld [vmem:[#allocation3 + $0x88] sm:$0xff]
      %v3402 = vld [vmem:[#allocation3 + $0x90] sm:$0xff]
      %v3403 = vld [vmem:[#allocation3 + $0xa8] sm:$0xff]
      %v3404 = vld [vmem:[#allocation3 + $0xb0] sm:$0xff]
      %v3405 = vld [vmem:[#allocation3 + $0xc8] sm:$0xff]
      %v3406 = vld [vmem:[#allocation3 + $0xd0] sm:$0xff]
      %v3407 = vld [vmem:[#allocation3 + $0xe8] sm:$0xff]
      %v3408 = vld [vmem:[#allocation3 + $0xf0] sm:$0xff]
      %v3409 = vld [vmem:[#allocation3 + $0x108] sm:$0xff]
      %v3410 = vld [vmem:[#allocation3 + $0x110] sm:$0xff]
      %v3411 = vld [vmem:[#allocation3 + $0x128] sm:$0xff]
      %v3412 = vld [vmem:[#allocation3 + $0x130] sm:$0xff]
      %v3413 = vld [vmem:[#allocation3 + $0x148] sm:$0xff]
      %v3414 = vld [vmem:[#allocation3 + $0x150] sm:$0xff]
      %v3415 = vld [vmem:[#allocation3 + $0x168] sm:$0xff]
      %v3416 = vld [vmem:[#allocation3 + $0x170] sm:$0xff]
      %v3417 = vld [vmem:[#allocation3 + $0x188] sm:$0xff]
      %v3418 = vld [vmem:[#allocation3 + $0x190] sm:$0xff]
      %v3419 = vld [vmem:[#allocation3 + $0x1a8] sm:$0xff]
      %v3420 = vld [vmem:[#allocation3 + $0x1b0] sm:$0xff]
      %v3421 = vld [vmem:[#allocation3 + $0x1c8] sm:$0xff]
      %v3422 = vld [vmem:[#allocation3 + $0x1d0] sm:$0xff]
      %v3423 = vld [vmem:[#allocation3 + $0x1e8] sm:$0xff]
      %v3424 = vld [vmem:[#allocation3 + $0x1f0] sm:$0xff]
      %v3425 = vpack.c.bf16 %v3394, %v3393
      %v3426 = vpack.c.bf16 %v3396, %v3395
      %v3427 = vpack.c.bf16 %v3398, %v3397
      %v3428 = vpack.c.bf16 %v3400, %v3399
      %v3429 = vpack.c.bf16 %v3402, %v3401
      %v3430 = vpack.c.bf16 %v3404, %v3403
      %v3431 = vpack.c.bf16 %v3406, %v3405
      %v3432 = vpack.c.bf16 %v3408, %v3407
      %v3433 = vpack.c.bf16 %v3410, %v3409
      %v3434 = vpack.c.bf16 %v3412, %v3411
      %v3435 = vpack.c.bf16 %v3414, %v3413
      %v3436 = vpack.c.bf16 %v3416, %v3415
      %v3437 = vpack.c.bf16 %v3418, %v3417
      %v3438 = vpack.c.bf16 %v3420, %v3419
      %v3439 = vpack.c.bf16 %v3422, %v3421
      %v3440 = vpack.c.bf16 %v3424, %v3423
      %s3441 = scalar_lea.vmem %s4, 64
      %v3442 = vld [vmem:[%s3441] sm:$0xf]
      %v3443 = vld [vmem:[%s3441 + $0x4] sm:$0xf]
      %v3444 = vld [vmem:[%s3441 + $0x8] sm:$0xf]
      %v3445 = vld [vmem:[%s3441 + $0xc] sm:$0xf]
      %v3446 = vld [vmem:[%s3441 + $0x10] sm:$0xf]
      %v3447 = vld [vmem:[%s3441 + $0x14] sm:$0xf]
      %v3448 = vld [vmem:[%s3441 + $0x18] sm:$0xf]
      %v3449 = vld [vmem:[%s3441 + $0x1c] sm:$0xf]
      %v3450 = vld [vmem:[%s3441 + $0x20] sm:$0xf]
      %v3451 = vld [vmem:[%s3441 + $0x24] sm:$0xf]
      %v3452 = vld [vmem:[%s3441 + $0x28] sm:$0xf]
      %v3453 = vld [vmem:[%s3441 + $0x2c] sm:$0xf]
      %v3454 = vld [vmem:[%s3441 + $0x30] sm:$0xf]
      %v3455 = vld [vmem:[%s3441 + $0x34] sm:$0xf]
      %v3456 = vld [vmem:[%s3441 + $0x38] sm:$0xf]
      %v3457 = vld [vmem:[%s3441 + $0x3c] sm:$0xf]
      %v3474 = vunpack.c.l.b16 %v3442
      %v3475 = vunpack.c.l.b16 %v3443
      %v3476 = vunpack.c.l.b16 %v3444
      %v3477 = vunpack.c.l.b16 %v3445
      %v3478 = vunpack.c.l.b16 %v3446
      %v3479 = vunpack.c.l.b16 %v3447
      %v3480 = vunpack.c.l.b16 %v3448
      %v3481 = vunpack.c.l.b16 %v3449
      %v3482 = vunpack.c.l.b16 %v3450
      %v3483 = vunpack.c.l.b16 %v3451
      %v3484 = vunpack.c.l.b16 %v3452
      %v3485 = vunpack.c.l.b16 %v3453
      %v3486 = vunpack.c.l.b16 %v3454
      %v3487 = vunpack.c.l.b16 %v3455
      %v3488 = vunpack.c.l.b16 %v3456
      %v3489 = vunpack.c.l.b16 %v3457
      %v3490 = vpack.c.b16 %v3475, %v3474
      %v3491 = vpack.c.b16 %v3477, %v3476
      %v3492 = vpack.c.b16 %v3479, %v3478
      %v3493 = vpack.c.b16 %v3481, %v3480
      %v3494 = vpack.c.b16 %v3483, %v3482
      %v3495 = vpack.c.b16 %v3485, %v3484
      %v3496 = vpack.c.b16 %v3487, %v3486
      %v3497 = vpack.c.b16 %v3489, %v3488
      %3506 = vmatprep.subr.bf16.mxu0 0
      %3507 = vmatpush1.bf16.msra.mxu0 %v3490
      %3508 = vmatprep.subr.bf16.mxu0 0
      %3509 = vmatpush1.bf16.msra.mxu0 %v3491
      %3510 = vmatprep.subr.bf16.mxu0 0
      %3511 = vmatpush1.bf16.msra.mxu0 %v3492
      %3512 = vmatprep.subr.bf16.mxu0 0
      %3513 = vmatpush1.bf16.msra.mxu0 %v3493
      %3514 = vmatprep.subr.bf16.mxu0 0
      %3515 = vmatpush1.bf16.msra.mxu0 %v3494
      %3516 = vmatprep.subr.bf16.mxu0 0
      %3517 = vmatpush1.bf16.msra.mxu0 %v3495
      %3518 = vmatprep.subr.bf16.mxu0 0
      %3519 = vmatpush1.bf16.msra.mxu0 %v3496
      %3520 = vmatprep.subr.bf16.mxu0 0
      %3521 = vmatpush1.bf16.msra.mxu0 %v3497
      %3522 = vmatprep.subr.bf16.mxu0 0
      %3523 = vmatpush1.bf16.msra.mxu0 0
      %3524 = vmatprep.subr.bf16.mxu0 0
      %3525 = vmatpush1.bf16.msra.mxu0 0
      %3526 = vmatprep.subr.bf16.mxu0 0
      %3527 = vmatpush1.bf16.msra.mxu0 0
      %3528 = vmatprep.subr.bf16.mxu0 0
      %3529 = vmatpush1.bf16.msra.mxu0 0
      %3530 = vmatprep.subr.bf16.mxu0 0
      %3531 = vmatpush1.bf16.msra.mxu0 0
      %3532 = vmatprep.subr.bf16.mxu0 0
      %3533 = vmatpush1.bf16.msra.mxu0 0
      %3534 = vmatprep.subr.bf16.mxu0 0
      %3535 = vmatpush1.bf16.msra.mxu0 0
      %3536 = vmatprep.subr.bf16.mxu0 0
      %3537 = vmatpush1.bf16.msra.mxu0 0
      %3538 = vmatprep.mubr.bf16.mxu0 0
      %3539 = vmatmul.mubr.bf16.gmra.mrb[0].mxu0 %v3425
      %v3540 = vpop.f32.mrb[0].mxu0
      %v3541 = vadd.f32 0.0, %v3540
      %v3542 = vpop.f32.mrb[0].mxu0
      %v3543 = vpop.f32.mrb[0].mxu0
      %v3544 = vadd.f32 0.0, %v3543
      %v3545 = vpop.f32.mrb[0].mxu0
      %3546 = vmatprep.mubr.bf16.mxu0 0
      %3547 = vmatmul.mubr.bf16.gmra.mrb[0].mxu0 %v3426
      %v3548 = vpop.f32.mrb[0].mxu0
      %v3549 = vadd.f32 0.0, %v3548
      %v3550 = vpop.f32.mrb[0].mxu0
      %v3551 = vpop.f32.mrb[0].mxu0
      %v3552 = vadd.f32 0.0, %v3551
      %v3553 = vpop.f32.mrb[0].mxu0
      %3554 = vmatprep.mubr.bf16.mxu0 0
      %3555 = vmatmul.mubr.bf16.gmra.mrb[0].mxu0 %v3427
      %v3556 = vpop.f32.mrb[0].mxu0
      %v3557 = vadd.f32 0.0, %v3556
      %v3558 = vpop.f32.mrb[0].mxu0
      %v3559 = vpop.f32.mrb[0].mxu0
      %v3560 = vadd.f32 0.0, %v3559
      %v3561 = vpop.f32.mrb[0].mxu0
      %3562 = vmatprep.mubr.bf16.mxu0 0
      %3563 = vmatmul.mubr.bf16.gmra.mrb[0].mxu0 %v3428
      %v3564 = vpop.f32.mrb[0].mxu0
      %v3565 = vadd.f32 0.0, %v3564
      %v3566 = vpop.f32.mrb[0].mxu0
      %v3567 = vpop.f32.mrb[0].mxu0
      %v3568 = vadd.f32 0.0, %v3567
      %v3569 = vpop.f32.mrb[0].mxu0
      %3570 = vmatprep.mubr.bf16.mxu0 0
      %3571 = vmatmul.mubr.bf16.gmra.mrb[0].mxu0 %v3429
      %v3572 = vpop.f32.mrb[0].mxu0
      %v3573 = vadd.f32 0.0, %v3572
      %v3574 = vpop.f32.mrb[0].mxu0
      %v3575 = vpop.f32.mrb[0].mxu0
      %v3576 = vadd.f32 0.0, %v3575
      %v3577 = vpop.f32.mrb[0].mxu0
      %3578 = vmatprep.mubr.bf16.mxu0 0
      %3579 = vmatmul.mubr.bf16.gmra.mrb[0].mxu0 %v3430
      %v3580 = vpop.f32.mrb[0].mxu0
      %v3581 = vadd.f32 0.0, %v3580
      %v3582 = vpop.f32.mrb[0].mxu0
      %v3583 = vpop.f32.mrb[0].mxu0
      %v3584 = vadd.f32 0.0, %v3583
      %v3585 = vpop.f32.mrb[0].mxu0
      %3586 = vmatprep.mubr.bf16.mxu0 0
      %3587 = vmatmul.mubr.bf16.gmra.mrb[0].mxu0 %v3431
      %v3588 = vpop.f32.mrb[0].mxu0
      %v3589 = vadd.f32 0.0, %v3588
      %v3590 = vpop.f32.mrb[0].mxu0
      %v3591 = vpop.f32.mrb[0].mxu0
      %v3592 = vadd.f32 0.0, %v3591
      %v3593 = vpop.f32.mrb[0].mxu0
      %3594 = vmatprep.mubr.bf16.mxu0 0
      %3595 = vmatmul.mubr.bf16.gmra.mrb[0].mxu0 %v3432
      %v3596 = vpop.f32.mrb[0].mxu0
      %v3597 = vadd.f32 0.0, %v3596
      %v3598 = vpop.f32.mrb[0].mxu0
      %v3599 = vpop.f32.mrb[0].mxu0
      %v3600 = vadd.f32 0.0, %v3599
      %v3601 = vpop.f32.mrb[0].mxu0
      %3602 = vmatprep.mubr.bf16.mxu0 0
      %3603 = vmatmul.mubr.bf16.gmra.mrb[0].mxu0 %v3433
      %v3604 = vpop.f32.mrb[0].mxu0
      %v3605 = vadd.f32 0.0, %v3604
      %v3606 = vpop.f32.mrb[0].mxu0
      %v3607 = vpop.f32.mrb[0].mxu0
      %v3608 = vadd.f32 0.0, %v3607
      %v3609 = vpop.f32.mrb[0].mxu0
      %3610 = vmatprep.mubr.bf16.mxu0 0
      %3611 = vmatmul.mubr.bf16.gmra.mrb[0].mxu0 %v3434
      %v3612 = vpop.f32.mrb[0].mxu0
      %v3613 = vadd.f32 0.0, %v3612
      %v3614 = vpop.f32.mrb[0].mxu0
      %v3615 = vpop.f32.mrb[0].mxu0
      %v3616 = vadd.f32 0.0, %v3615
      %v3617 = vpop.f32.mrb[0].mxu0
      %3618 = vmatprep.mubr.bf16.mxu0 0
      %3619 = vmatmul.mubr.bf16.gmra.mrb[0].mxu0 %v3435
      %v3620 = vpop.f32.mrb[0].mxu0
      %v3621 = vadd.f32 0.0, %v3620
      %v3622 = vpop.f32.mrb[0].mxu0
      %v3623 = vpop.f32.mrb[0].mxu0
      %v3624 = vadd.f32 0.0, %v3623
      %v3625 = vpop.f32.mrb[0].mxu0
      %3626 = vmatprep.mubr.bf16.mxu0 0
      %3627 = vmatmul.mubr.bf16.gmra.mrb[0].mxu0 %v3436
      %v3628 = vpop.f32.mrb[0].mxu0
      %v3629 = vadd.f32 0.0, %v3628
      %v3630 = vpop.f32.mrb[0].mxu0
      %v3631 = vpop.f32.mrb[0].mxu0
      %v3632 = vadd.f32 0.0, %v3631
      %v3633 = vpop.f32.mrb[0].mxu0
      %3634 = vmatprep.mubr.bf16.mxu0 0
      %3635 = vmatmul.mubr.bf16.gmra.mrb[0].mxu0 %v3437
      %v3636 = vpop.f32.mrb[0].mxu0
      %v3637 = vadd.f32 0.0, %v3636
      %v3638 = vpop.f32.mrb[0].mxu0
      %v3639 = vpop.f32.mrb[0].mxu0
      %v3640 = vadd.f32 0.0, %v3639
      %v3641 = vpop.f32.mrb[0].mxu0
      %3642 = vmatprep.mubr.bf16.mxu0 0
      %3643 = vmatmul.mubr.bf16.gmra.mrb[0].mxu0 %v3438
      %v3644 = vpop.f32.mrb[0].mxu0
      %v3645 = vadd.f32 0.0, %v3644
      %v3646 = vpop.f32.mrb[0].mxu0
      %v3647 = vpop.f32.mrb[0].mxu0
      %v3648 = vadd.f32 0.0, %v3647
      %v3649 = vpop.f32.mrb[0].mxu0
      %3650 = vmatprep.mubr.bf16.mxu0 0
      %3651 = vmatmul.mubr.bf16.gmra.mrb[0].mxu0 %v3439
      %v3652 = vpop.f32.mrb[0].mxu0
      %v3653 = vadd.f32 0.0, %v3652
      %v3654 = vpop.f32.mrb[0].mxu0
      %v3655 = vpop.f32.mrb[0].mxu0
      %v3656 = vadd.f32 0.0, %v3655
      %v3657 = vpop.f32.mrb[0].mxu0
      %3658 = vmatprep.mubr.bf16.mxu0 0
      %3659 = vmatmul.mubr.bf16.gmra.mrb[0].mxu0 %v3440
      %v3660 = vpop.f32.mrb[0].mxu0
      %v3661 = vadd.f32 0.0, %v3660
      %v3662 = vpop.f32.mrb[0].mxu0
      %v3663 = vpop.f32.mrb[0].mxu0
      %v3664 = vadd.f32 0.0, %v3663
      %v3665 = vpop.f32.mrb[0].mxu0
      %3666 = vdwg.mxu0
      %v3683 = vunpack.c.l.b16 %v3377
      %v3684 = vunpack.c.l.b16 %v3378
      %v3685 = vunpack.c.l.b16 %v3379
      %v3686 = vunpack.c.l.b16 %v3380
      %v3687 = vunpack.c.l.b16 %v3381
      %v3688 = vunpack.c.l.b16 %v3382
      %v3689 = vunpack.c.l.b16 %v3383
      %v3690 = vunpack.c.l.b16 %v3384
      %v3691 = vunpack.c.l.b16 %v3385
      %v3692 = vunpack.c.l.b16 %v3386
      %v3693 = vunpack.c.l.b16 %v3387
      %v3694 = vunpack.c.l.b16 %v3388
      %v3695 = vunpack.c.l.b16 %v3389
      %v3696 = vunpack.c.l.b16 %v3390
      %v3697 = vunpack.c.l.b16 %v3391
      %v3698 = vunpack.c.l.b16 %v3392
      %v3699 = vpack.c.b16 %v3684, %v3683
      %v3700 = vpack.c.b16 %v3686, %v3685
      %v3701 = vpack.c.b16 %v3688, %v3687
      %v3702 = vpack.c.b16 %v3690, %v3689
      %v3703 = vpack.c.b16 %v3692, %v3691
      %v3704 = vpack.c.b16 %v3694, %v3693
      %v3705 = vpack.c.b16 %v3696, %v3695
      %v3706 = vpack.c.b16 %v3698, %v3697
      %3715 = vmatprep.subr.bf16.mxu0 0
      %3716 = vmatpush1.bf16.msra.mxu0 %v3699
      %3717 = vmatprep.subr.bf16.mxu0 0
      %3718 = vmatpush1.bf16.msra.mxu0 %v3700
      %3719 = vmatprep.subr.bf16.mxu0 0
      %3720 = vmatpush1.bf16.msra.mxu0 %v3701
      %3721 = vmatprep.subr.bf16.mxu0 0
      %3722 = vmatpush1.bf16.msra.mxu0 %v3702
      %3723 = vmatprep.subr.bf16.mxu0 0
      %3724 = vmatpush1.bf16.msra.mxu0 %v3703
      %3725 = vmatprep.subr.bf16.mxu0 0
      %3726 = vmatpush1.bf16.msra.mxu0 %v3704
      %3727 = vmatprep.subr.bf16.mxu0 0
      %3728 = vmatpush1.bf16.msra.mxu0 %v3705
      %3729 = vmatprep.subr.bf16.mxu0 0
      %3730 = vmatpush1.bf16.msra.mxu0 %v3706
      %3731 = vmatprep.subr.bf16.mxu0 0
      %3732 = vmatpush1.bf16.msra.mxu0 0
      %3733 = vmatprep.subr.bf16.mxu0 0
      %3734 = vmatpush1.bf16.msra.mxu0 0
      %3735 = vmatprep.subr.bf16.mxu0 0
      %3736 = vmatpush1.bf16.msra.mxu0 0
      %3737 = vmatprep.subr.bf16.mxu0 0
      %3738 = vmatpush1.bf16.msra.mxu0 0
      %3739 = vmatprep.subr.bf16.mxu0 0
      %3740 = vmatpush1.bf16.msra.mxu0 0
      %3741 = vmatprep.subr.bf16.mxu0 0
      %3742 = vmatpush1.bf16.msra.mxu0 0
      %3743 = vmatprep.subr.bf16.mxu0 0
      %3744 = vmatpush1.bf16.msra.mxu0 0
      %3745 = vmatprep.subr.bf16.mxu0 0
      %3746 = vmatpush1.bf16.msra.mxu0 0
      %3747 = vmatprep.mubr.bf16.mxu0 0
      %3748 = vmatmul.mubr.bf16.gmra.mrb[0].mxu0 %v3361
      %v3749 = vpop.f32.mrb[0].mxu0
      %v3750 = vadd.f32 %v3541, %v3749
      %v3751 = vpop.f32.mrb[0].mxu0
      %v3752 = vpop.f32.mrb[0].mxu0
      %v3753 = vadd.f32 %v3544, %v3752
      %v3754 = vpop.f32.mrb[0].mxu0
      %3755 = vmatprep.mubr.bf16.mxu0 0
      %3756 = vmatmul.mubr.bf16.gmra.mrb[0].mxu0 %v3362
      %v3757 = vpop.f32.mrb[0].mxu0
      %v3758 = vadd.f32 %v3549, %v3757
      %v3759 = vpop.f32.mrb[0].mxu0
      %v3760 = vpop.f32.mrb[0].mxu0
      %v3761 = vadd.f32 %v3552, %v3760
      %v3762 = vpop.f32.mrb[0].mxu0
      %3763 = vmatprep.mubr.bf16.mxu0 0
      %3764 = vmatmul.mubr.bf16.gmra.mrb[0].mxu0 %v3363
      %v3765 = vpop.f32.mrb[0].mxu0
      %v3766 = vadd.f32 %v3557, %v3765
      %v3767 = vpop.f32.mrb[0].mxu0
      %v3768 = vpop.f32.mrb[0].mxu0
      %v3769 = vadd.f32 %v3560, %v3768
      %v3770 = vpop.f32.mrb[0].mxu0
      %3771 = vmatprep.mubr.bf16.mxu0 0
      %3772 = vmatmul.mubr.bf16.gmra.mrb[0].mxu0 %v3364
      %v3773 = vpop.f32.mrb[0].mxu0
      %v3774 = vadd.f32 %v3565, %v3773
      %v3775 = vpop.f32.mrb[0].mxu0
      %v3776 = vpop.f32.mrb[0].mxu0
      %v3777 = vadd.f32 %v3568, %v3776
      %v3778 = vpop.f32.mrb[0].mxu0
      %3779 = vmatprep.mubr.bf16.mxu0 0
      %3780 = vmatmul.mubr.bf16.gmra.mrb[0].mxu0 %v3365
      %v3781 = vpop.f32.mrb[0].mxu0
      %v3782 = vadd.f32 %v3573, %v3781
      %v3783 = vpop.f32.mrb[0].mxu0
      %v3784 = vpop.f32.mrb[0].mxu0
      %v3785 = vadd.f32 %v3576, %v3784
      %v3786 = vpop.f32.mrb[0].mxu0
      %3787 = vmatprep.mubr.bf16.mxu0 0
      %3788 = vmatmul.mubr.bf16.gmra.mrb[0].mxu0 %v3366
      %v3789 = vpop.f32.mrb[0].mxu0
      %v3790 = vadd.f32 %v3581, %v3789
      %v3791 = vpop.f32.mrb[0].mxu0
      %v3792 = vpop.f32.mrb[0].mxu0
      %v3793 = vadd.f32 %v3584, %v3792
      %v3794 = vpop.f32.mrb[0].mxu0
      %3795 = vmatprep.mubr.bf16.mxu0 0
      %3796 = vmatmul.mubr.bf16.gmra.mrb[0].mxu0 %v3367
      %v3797 = vpop.f32.mrb[0].mxu0
      %v3798 = vadd.f32 %v3589, %v3797
      %v3799 = vpop.f32.mrb[0].mxu0
      %v3800 = vpop.f32.mrb[0].mxu0
      %v3801 = vadd.f32 %v3592, %v3800
      %v3802 = vpop.f32.mrb[0].mxu0
      %3803 = vmatprep.mubr.bf16.mxu0 0
      %3804 = vmatmul.mubr.bf16.gmra.mrb[0].mxu0 %v3368
      %v3805 = vpop.f32.mrb[0].mxu0
      %v3806 = vadd.f32 %v3597, %v3805
      %v3807 = vpop.f32.mrb[0].mxu0
      %v3808 = vpop.f32.mrb[0].mxu0
      %v3809 = vadd.f32 %v3600, %v3808
      %v3810 = vpop.f32.mrb[0].mxu0
      %3811 = vmatprep.mubr.bf16.mxu0 0
      %3812 = vmatmul.mubr.bf16.gmra.mrb[0].mxu0 %v3369
      %v3813 = vpop.f32.mrb[0].mxu0
      %v3814 = vadd.f32 %v3605, %v3813
      %v3815 = vpop.f32.mrb[0].mxu0
      %v3816 = vpop.f32.mrb[0].mxu0
      %v3817 = vadd.f32 %v3608, %v3816
      %v3818 = vpop.f32.mrb[0].mxu0
      %3819 = vmatprep.mubr.bf16.mxu0 0
      %3820 = vmatmul.mubr.bf16.gmra.mrb[0].mxu0 %v3370
      %v3821 = vpop.f32.mrb[0].mxu0
      %v3822 = vadd.f32 %v3613, %v3821
      %v3823 = vpop.f32.mrb[0].mxu0
      %v3824 = vpop.f32.mrb[0].mxu0
      %v3825 = vadd.f32 %v3616, %v3824
      %v3826 = vpop.f32.mrb[0].mxu0
      %3827 = vmatprep.mubr.bf16.mxu0 0
      %3828 = vmatmul.mubr.bf16.gmra.mrb[0].mxu0 %v3371
      %v3829 = vpop.f32.mrb[0].mxu0
      %v3830 = vadd.f32 %v3621, %v3829
      %v3831 = vpop.f32.mrb[0].mxu0
      %v3832 = vpop.f32.mrb[0].mxu0
      %v3833 = vadd.f32 %v3624, %v3832
      %v3834 = vpop.f32.mrb[0].mxu0
      %3835 = vmatprep.mubr.bf16.mxu0 0
      %3836 = vmatmul.mubr.bf16.gmra.mrb[0].mxu0 %v3372
      %v3837 = vpop.f32.mrb[0].mxu0
      %v3838 = vadd.f32 %v3629, %v3837
      %v3839 = vpop.f32.mrb[0].mxu0
      %v3840 = vpop.f32.mrb[0].mxu0
      %v3841 = vadd.f32 %v3632, %v3840
      %v3842 = vpop.f32.mrb[0].mxu0
      %3843 = vmatprep.mubr.bf16.mxu0 0
      %3844 = vmatmul.mubr.bf16.gmra.mrb[0].mxu0 %v3373
      %v3845 = vpop.f32.mrb[0].mxu0
      %v3846 = vadd.f32 %v3637, %v3845
      %v3847 = vpop.f32.mrb[0].mxu0
      %v3848 = vpop.f32.mrb[0].mxu0
      %v3849 = vadd.f32 %v3640, %v3848
      %v3850 = vpop.f32.mrb[0].mxu0
      %3851 = vmatprep.mubr.bf16.mxu0 0
      %3852 = vmatmul.mubr.bf16.gmra.mrb[0].mxu0 %v3374
      %v3853 = vpop.f32.mrb[0].mxu0
      %v3854 = vadd.f32 %v3645, %v3853
      %v3855 = vpop.f32.mrb[0].mxu0
      %v3856 = vpop.f32.mrb[0].mxu0
      %v3857 = vadd.f32 %v3648, %v3856
      %v3858 = vpop.f32.mrb[0].mxu0
      %3859 = vmatprep.mubr.bf16.mxu0 0
      %3860 = vmatmul.mubr.bf16.gmra.mrb[0].mxu0 %v3375
      %v3861 = vpop.f32.mrb[0].mxu0
      %v3862 = vadd.f32 %v3653, %v3861
      %v3863 = vpop.f32.mrb[0].mxu0
      %v3864 = vpop.f32.mrb[0].mxu0
      %v3865 = vadd.f32 %v3656, %v3864
      %v3866 = vpop.f32.mrb[0].mxu0
      %3867 = vmatprep.mubr.bf16.mxu0 0
      %3868 = vmatmul.mubr.bf16.gmra.mrb[0].mxu0 %v3376
      %v3869 = vpop.f32.mrb[0].mxu0
      %v3870 = vadd.f32 %v3661, %v3869
      %v3871 = vpop.f32.mrb[0].mxu0
      %v3872 = vpop.f32.mrb[0].mxu0
      %v3873 = vadd.f32 %v3664, %v3872
      %v3874 = vpop.f32.mrb[0].mxu0
      %3875 = vdwg.mxu0
      %v3876 = vld [vmem:[#allocation3 + $0x9] sm:$0xff]
      %v3877 = vld [vmem:[#allocation3 + $0x11] sm:$0xff]
      %v3878 = vld [vmem:[#allocation3 + $0x29] sm:$0xff]
      %v3879 = vld [vmem:[#allocation3 + $0x31] sm:$0xff]
      %v3880 = vld [vmem:[#allocation3 + $0x49] sm:$0xff]
      %v3881 = vld [vmem:[#allocation3 + $0x51] sm:$0xff]
      %v3882 = vld [vmem:[#allocation3 + $0x69] sm:$0xff]
      %v3883 = vld [vmem:[#allocation3 + $0x71] sm:$0xff]
      %v3884 = vld [vmem:[#allocation3 + $0x89] sm:$0xff]
      %v3885 = vld [vmem:[#allocation3 + $0x91] sm:$0xff]
      %v3886 = vld [vmem:[#allocation3 + $0xa9] sm:$0xff]
      %v3887 = vld [vmem:[#allocation3 + $0xb1] sm:$0xff]
      %v3888 = vld [vmem:[#allocation3 + $0xc9] sm:$0xff]
      %v3889 = vld [vmem:[#allocation3 + $0xd1] sm:$0xff]
      %v3890 = vld [vmem:[#allocation3 + $0xe9] sm:$0xff]
      %v3891 = vld [vmem:[#allocation3 + $0xf1] sm:$0xff]
      %v3892 = vld [vmem:[#allocation3 + $0x109] sm:$0xff]
      %v3893 = vld [vmem:[#allocation3 + $0x111] sm:$0xff]
      %v3894 = vld [vmem:[#allocation3 + $0x129] sm:$0xff]
      %v3895 = vld [vmem:[#allocation3 + $0x131] sm:$0xff]
      %v3896 = vld [vmem:[#allocation3 + $0x149] sm:$0xff]
      %v3897 = vld [vmem:[#allocation3 + $0x151] sm:$0xff]
      %v3898 = vld [vmem:[#allocation3 + $0x169] sm:$0xff]
      %v3899 = vld [vmem:[#allocation3 + $0x171] sm:$0xff]
      %v3900 = vld [vmem:[#allocation3 + $0x189] sm:$0xff]
      %v3901 = vld [vmem:[#allocation3 + $0x191] sm:$0xff]
      %v3902 = vld [vmem:[#allocation3 + $0x1a9] sm:$0xff]
      %v3903 = vld [vmem:[#allocation3 + $0x1b1] sm:$0xff]
      %v3904 = vld [vmem:[#allocation3 + $0x1c9] sm:$0xff]
      %v3905 = vld [vmem:[#allocation3 + $0x1d1] sm:$0xff]
      %v3906 = vld [vmem:[#allocation3 + $0x1e9] sm:$0xff]
      %v3907 = vld [vmem:[#allocation3 + $0x1f1] sm:$0xff]
      %v3908 = vpack.c.bf16 %v3877, %v3876
      %v3909 = vpack.c.bf16 %v3879, %v3878
      %v3910 = vpack.c.bf16 %v3881, %v3880
      %v3911 = vpack.c.bf16 %v3883, %v3882
      %v3912 = vpack.c.bf16 %v3885, %v3884
      %v3913 = vpack.c.bf16 %v3887, %v3886
      %v3914 = vpack.c.bf16 %v3889, %v3888
      %v3915 = vpack.c.bf16 %v3891, %v3890
      %v3916 = vpack.c.bf16 %v3893, %v3892
      %v3917 = vpack.c.bf16 %v3895, %v3894
      %v3918 = vpack.c.bf16 %v3897, %v3896
      %v3919 = vpack.c.bf16 %v3899, %v3898
      %v3920 = vpack.c.bf16 %v3901, %v3900
      %v3921 = vpack.c.bf16 %v3903, %v3902
      %v3922 = vpack.c.bf16 %v3905, %v3904
      %v3923 = vpack.c.bf16 %v3907, %v3906
      %s3924 = scalar_lea.vmem %s4, 128
      %v3925 = vld [vmem:[%s3924] sm:$0xf]
      %v3926 = vld [vmem:[%s3924 + $0x4] sm:$0xf]
      %v3927 = vld [vmem:[%s3924 + $0x8] sm:$0xf]
      %v3928 = vld [vmem:[%s3924 + $0xc] sm:$0xf]
      %v3929 = vld [vmem:[%s3924 + $0x10] sm:$0xf]
      %v3930 = vld [vmem:[%s3924 + $0x14] sm:$0xf]
      %v3931 = vld [vmem:[%s3924 + $0x18] sm:$0xf]
      %v3932 = vld [vmem:[%s3924 + $0x1c] sm:$0xf]
      %v3933 = vld [vmem:[%s3924 + $0x20] sm:$0xf]
      %v3934 = vld [vmem:[%s3924 + $0x24] sm:$0xf]
      %v3935 = vld [vmem:[%s3924 + $0x28] sm:$0xf]
      %v3936 = vld [vmem:[%s3924 + $0x2c] sm:$0xf]
      %v3937 = vld [vmem:[%s3924 + $0x30] sm:$0xf]
      %v3938 = vld [vmem:[%s3924 + $0x34] sm:$0xf]
      %v3939 = vld [vmem:[%s3924 + $0x38] sm:$0xf]
      %v3940 = vld [vmem:[%s3924 + $0x3c] sm:$0xf]
      %v3957 = vunpack.c.l.b16 %v3925
      %v3958 = vunpack.c.l.b16 %v3926
      %v3959 = vunpack.c.l.b16 %v3927
      %v3960 = vunpack.c.l.b16 %v3928
      %v3961 = vunpack.c.l.b16 %v3929
      %v3962 = vunpack.c.l.b16 %v3930
      %v3963 = vunpack.c.l.b16 %v3931
      %v3964 = vunpack.c.l.b16 %v3932
      %v3965 = vunpack.c.l.b16 %v3933
      %v3966 = vunpack.c.l.b16 %v3934
      %v3967 = vunpack.c.l.b16 %v3935
      %v3968 = vunpack.c.l.b16 %v3936
      %v3969 = vunpack.c.l.b16 %v3937
      %v3970 = vunpack.c.l.b16 %v3938
      %v3971 = vunpack.c.l.b16 %v3939
      %v3972 = vunpack.c.l.b16 %v3940
      %v3973 = vpack.c.b16 %v3958, %v3957
      %v3974 = vpack.c.b16 %v3960, %v3959
      %v3975 = vpack.c.b16 %v3962, %v3961
      %v3976 = vpack.c.b16 %v3964, %v3963
      %v3977 = vpack.c.b16 %v3966, %v3965
      %v3978 = vpack.c.b16 %v3968, %v3967
      %v3979 = vpack.c.b16 %v3970, %v3969
      %v3980 = vpack.c.b16 %v3972, %v3971
      %3989 = vmatprep.subr.bf16.mxu0 0
      %3990 = vmatpush1.bf16.msra.mxu0 %v3973
      %3991 = vmatprep.subr.bf16.mxu0 0
      %3992 = vmatpush1.bf16.msra.mxu0 %v3974
      %3993 = vmatprep.subr.bf16.mxu0 0
      %3994 = vmatpush1.bf16.msra.mxu0 %v3975
      %3995 = vmatprep.subr.bf16.mxu0 0
      %3996 = vmatpush1.bf16.msra.mxu0 %v3976
      %3997 = vmatprep.subr.bf16.mxu0 0
      %3998 = vmatpush1.bf16.msra.mxu0 %v3977
      %3999 = vmatprep.subr.bf16.mxu0 0
      %4000 = vmatpush1.bf16.msra.mxu0 %v3978
      %4001 = vmatprep.subr.bf16.mxu0 0
      %4002 = vmatpush1.bf16.msra.mxu0 %v3979
      %4003 = vmatprep.subr.bf16.mxu0 0
      %4004 = vmatpush1.bf16.msra.mxu0 %v3980
      %4005 = vmatprep.subr.bf16.mxu0 0
      %4006 = vmatpush1.bf16.msra.mxu0 0
      %4007 = vmatprep.subr.bf16.mxu0 0
      %4008 = vmatpush1.bf16.msra.mxu0 0
      %4009 = vmatprep.subr.bf16.mxu0 0
      %4010 = vmatpush1.bf16.msra.mxu0 0
      %4011 = vmatprep.subr.bf16.mxu0 0
      %4012 = vmatpush1.bf16.msra.mxu0 0
      %4013 = vmatprep.subr.bf16.mxu0 0
      %4014 = vmatpush1.bf16.msra.mxu0 0
      %4015 = vmatprep.subr.bf16.mxu0 0
      %4016 = vmatpush1.bf16.msra.mxu0 0
      %4017 = vmatprep.subr.bf16.mxu0 0
      %4018 = vmatpush1.bf16.msra.mxu0 0
      %4019 = vmatprep.subr.bf16.mxu0 0
      %4020 = vmatpush1.bf16.msra.mxu0 0
      %4021 = vmatprep.mubr.bf16.mxu0 0
      %4022 = vmatmul.mubr.bf16.gmra.mrb[0].mxu0 %v3908
      %v4023 = vpop.f32.mrb[0].mxu0
      %v4024 = vadd.f32 0.0, %v4023
      %v4025 = vpop.f32.mrb[0].mxu0
      %v4026 = vpop.f32.mrb[0].mxu0
      %v4027 = vadd.f32 0.0, %v4026
      %v4028 = vpop.f32.mrb[0].mxu0
      %4029 = vmatprep.mubr.bf16.mxu0 0
      %4030 = vmatmul.mubr.bf16.gmra.mrb[0].mxu0 %v3909
      %v4031 = vpop.f32.mrb[0].mxu0
      %v4032 = vadd.f32 0.0, %v4031
      %v4033 = vpop.f32.mrb[0].mxu0
      %v4034 = vpop.f32.mrb[0].mxu0
      %v4035 = vadd.f32 0.0, %v4034
      %v4036 = vpop.f32.mrb[0].mxu0
      %4037 = vmatprep.mubr.bf16.mxu0 0
      %4038 = vmatmul.mubr.bf16.gmra.mrb[0].mxu0 %v3910
      %v4039 = vpop.f32.mrb[0].mxu0
      %v4040 = vadd.f32 0.0, %v4039
      %v4041 = vpop.f32.mrb[0].mxu0
      %v4042 = vpop.f32.mrb[0].mxu0
      %v4043 = vadd.f32 0.0, %v4042
      %v4044 = vpop.f32.mrb[0].mxu0
      %4045 = vmatprep.mubr.bf16.mxu0 0
      %4046 = vmatmul.mubr.bf16.gmra.mrb[0].mxu0 %v3911
      %v4047 = vpop.f32.mrb[0].mxu0
      %v4048 = vadd.f32 0.0, %v4047
      %v4049 = vpop.f32.mrb[0].mxu0
      %v4050 = vpop.f32.mrb[0].mxu0
      %v4051 = vadd.f32 0.0, %v4050
      %v4052 = vpop.f32.mrb[0].mxu0
      %4053 = vmatprep.mubr.bf16.mxu0 0
      %4054 = vmatmul.mubr.bf16.gmra.mrb[0].mxu0 %v3912
      %v4055 = vpop.f32.mrb[0].mxu0
      %v4056 = vadd.f32 0.0, %v4055
      %v4057 = vpop.f32.mrb[0].mxu0
      %v4058 = vpop.f32.mrb[0].mxu0
      %v4059 = vadd.f32 0.0, %v4058
      %v4060 = vpop.f32.mrb[0].mxu0
      %4061 = vmatprep.mubr.bf16.mxu0 0
      %4062 = vmatmul.mubr.bf16.gmra.mrb[0].mxu0 %v3913
      %v4063 = vpop.f32.mrb[0].mxu0
      %v4064 = vadd.f32 0.0, %v4063
      %v4065 = vpop.f32.mrb[0].mxu0
      %v4066 = vpop.f32.mrb[0].mxu0
      %v4067 = vadd.f32 0.0, %v4066
      %v4068 = vpop.f32.mrb[0].mxu0
      %4069 = vmatprep.mubr.bf16.mxu0 0
      %4070 = vmatmul.mubr.bf16.gmra.mrb[0].mxu0 %v3914
      %v4071 = vpop.f32.mrb[0].mxu0
      %v4072 = vadd.f32 0.0, %v4071
      %v4073 = vpop.f32.mrb[0].mxu0
      %v4074 = vpop.f32.mrb[0].mxu0
      %v4075 = vadd.f32 0.0, %v4074
      %v4076 = vpop.f32.mrb[0].mxu0
      %4077 = vmatprep.mubr.bf16.mxu0 0
      %4078 = vmatmul.mubr.bf16.gmra.mrb[0].mxu0 %v3915
      %v4079 = vpop.f32.mrb[0].mxu0
      %v4080 = vadd.f32 0.0, %v4079
      %v4081 = vpop.f32.mrb[0].mxu0
      %v4082 = vpop.f32.mrb[0].mxu0
      %v4083 = vadd.f32 0.0, %v4082
      %v4084 = vpop.f32.mrb[0].mxu0
      %4085 = vmatprep.mubr.bf16.mxu0 0
      %4086 = vmatmul.mubr.bf16.gmra.mrb[0].mxu0 %v3916
      %v4087 = vpop.f32.mrb[0].mxu0
      %v4088 = vadd.f32 0.0, %v4087
      %v4089 = vpop.f32.mrb[0].mxu0
      %v4090 = vpop.f32.mrb[0].mxu0
      %v4091 = vadd.f32 0.0, %v4090
      %v4092 = vpop.f32.mrb[0].mxu0
      %4093 = vmatprep.mubr.bf16.mxu0 0
      %4094 = vmatmul.mubr.bf16.gmra.mrb[0].mxu0 %v3917
      %v4095 = vpop.f32.mrb[0].mxu0
      %v4096 = vadd.f32 0.0, %v4095
      %v4097 = vpop.f32.mrb[0].mxu0
      %v4098 = vpop.f32.mrb[0].mxu0
      %v4099 = vadd.f32 0.0, %v4098
      %v4100 = vpop.f32.mrb[0].mxu0
      %4101 = vmatprep.mubr.bf16.mxu0 0
      %4102 = vmatmul.mubr.bf16.gmra.mrb[0].mxu0 %v3918
      %v4103 = vpop.f32.mrb[0].mxu0
      %v4104 = vadd.f32 0.0, %v4103
      %v4105 = vpop.f32.mrb[0].mxu0
      %v4106 = vpop.f32.mrb[0].mxu0
      %v4107 = vadd.f32 0.0, %v4106
      %v4108 = vpop.f32.mrb[0].mxu0
      %4109 = vmatprep.mubr.bf16.mxu0 0
      %4110 = vmatmul.mubr.bf16.gmra.mrb[0].mxu0 %v3919
      %v4111 = vpop.f32.mrb[0].mxu0
      %v4112 = vadd.f32 0.0, %v4111
      %v4113 = vpop.f32.mrb[0].mxu0
      %v4114 = vpop.f32.mrb[0].mxu0
      %v4115 = vadd.f32 0.0, %v4114
      %v4116 = vpop.f32.mrb[0].mxu0
      %4117 = vmatprep.mubr.bf16.mxu0 0
      %4118 = vmatmul.mubr.bf16.gmra.mrb[0].mxu0 %v3920
      %v4119 = vpop.f32.mrb[0].mxu0
      %v4120 = vadd.f32 0.0, %v4119
      %v4121 = vpop.f32.mrb[0].mxu0
      %v4122 = vpop.f32.mrb[0].mxu0
      %v4123 = vadd.f32 0.0, %v4122
      %v4124 = vpop.f32.mrb[0].mxu0
      %4125 = vmatprep.mubr.bf16.mxu0 0
      %4126 = vmatmul.mubr.bf16.gmra.mrb[0].mxu0 %v3921
      %v4127 = vpop.f32.mrb[0].mxu0
      %v4128 = vadd.f32 0.0, %v4127
      %v4129 = vpop.f32.mrb[0].mxu0
      %v4130 = vpop.f32.mrb[0].mxu0
      %v4131 = vadd.f32 0.0, %v4130
      %v4132 = vpop.f32.mrb[0].mxu0
      %4133 = vmatprep.mubr.bf16.mxu0 0
      %4134 = vmatmul.mubr.bf16.gmra.mrb[0].mxu0 %v3922
      %v4135 = vpop.f32.mrb[0].mxu0
      %v4136 = vadd.f32 0.0, %v4135
      %v4137 = vpop.f32.mrb[0].mxu0
      %v4138 = vpop.f32.mrb[0].mxu0
      %v4139 = vadd.f32 0.0, %v4138
      %v4140 = vpop.f32.mrb[0].mxu0
      %4141 = vmatprep.mubr.bf16.mxu0 0
      %4142 = vmatmul.mubr.bf16.gmra.mrb[0].mxu0 %v3923
      %v4143 = vpop.f32.mrb[0].mxu0
      %v4144 = vadd.f32 0.0, %v4143
      %v4145 = vpop.f32.mrb[0].mxu0
      %v4146 = vpop.f32.mrb[0].mxu0
      %v4147 = vadd.f32 0.0, %v4146
      %v4148 = vpop.f32.mrb[0].mxu0
      %4149 = vdwg.mxu0
      %v4150 = vadd.f32 %v3750, %v4024
      %v4151 = vadd.f32 %v3753, %v4027
      %v4152 = vadd.f32 %v3758, %v4032
      %v4153 = vadd.f32 %v3761, %v4035
      %v4154 = vadd.f32 %v3766, %v4040
      %v4155 = vadd.f32 %v3769, %v4043
      %v4156 = vadd.f32 %v3774, %v4048
      %v4157 = vadd.f32 %v3777, %v4051
      %v4158 = vadd.f32 %v3782, %v4056
      %v4159 = vadd.f32 %v3785, %v4059
      %v4160 = vadd.f32 %v3790, %v4064
      %v4161 = vadd.f32 %v3793, %v4067
      %v4162 = vadd.f32 %v3798, %v4072
      %v4163 = vadd.f32 %v3801, %v4075
      %v4164 = vadd.f32 %v3806, %v4080
      %v4165 = vadd.f32 %v3809, %v4083
      %v4166 = vadd.f32 %v3814, %v4088
      %v4167 = vadd.f32 %v3817, %v4091
      %v4168 = vadd.f32 %v3822, %v4096
      %v4169 = vadd.f32 %v3825, %v4099
      %v4170 = vadd.f32 %v3830, %v4104
      %v4171 = vadd.f32 %v3833, %v4107
      %v4172 = vadd.f32 %v3838, %v4112
      %v4173 = vadd.f32 %v3841, %v4115
      %v4174 = vadd.f32 %v3846, %v4120
      %v4175 = vadd.f32 %v3849, %v4123
      %v4176 = vadd.f32 %v3854, %v4128
      %v4177 = vadd.f32 %v3857, %v4131
      %v4178 = vadd.f32 %v3862, %v4136
      %v4179 = vadd.f32 %v3865, %v4139
      %v4180 = vadd.f32 %v3870, %v4144
      %v4181 = vadd.f32 %v3873, %v4147
      %v4182 = vld [vmem:[%s3296 + $0x7] sm:$0xff]
      %v4183 = vld [vmem:[%s3296 + $0xf] sm:$0xff]
      %v4184 = vld [vmem:[%s3296 + $0x27] sm:$0xff]
      %v4185 = vld [vmem:[%s3296 + $0x2f] sm:$0xff]
      %v4186 = vld [vmem:[%s3296 + $0x47] sm:$0xff]
      %v4187 = vld [vmem:[%s3296 + $0x4f] sm:$0xff]
      %v4188 = vld [vmem:[%s3296 + $0x67] sm:$0xff]
      %v4189 = vld [vmem:[%s3296 + $0x6f] sm:$0xff]
      %v4190 = vld [vmem:[%s3296 + $0x87] sm:$0xff]
      %v4191 = vld [vmem:[%s3296 + $0x8f] sm:$0xff]
      %v4192 = vld [vmem:[%s3296 + $0xa7] sm:$0xff]
      %v4193 = vld [vmem:[%s3296 + $0xaf] sm:$0xff]
      %v4194 = vld [vmem:[%s3296 + $0xc7] sm:$0xff]
      %v4195 = vld [vmem:[%s3296 + $0xcf] sm:$0xff]
      %v4196 = vld [vmem:[%s3296 + $0xe7] sm:$0xff]
      %v4197 = vld [vmem:[%s3296 + $0xef] sm:$0xff]
      %v4198 = vld [vmem:[%s3296 + $0x107] sm:$0xff]
      %v4199 = vld [vmem:[%s3296 + $0x10f] sm:$0xff]
      %v4200 = vld [vmem:[%s3296 + $0x127] sm:$0xff]
      %v4201 = vld [vmem:[%s3296 + $0x12f] sm:$0xff]
      %v4202 = vld [vmem:[%s3296 + $0x147] sm:$0xff]
      %v4203 = vld [vmem:[%s3296 + $0x14f] sm:$0xff]
      %v4204 = vld [vmem:[%s3296 + $0x167] sm:$0xff]
      %v4205 = vld [vmem:[%s3296 + $0x16f] sm:$0xff]
      %v4206 = vld [vmem:[%s3296 + $0x187] sm:$0xff]
      %v4207 = vld [vmem:[%s3296 + $0x18f] sm:$0xff]
      %v4208 = vld [vmem:[%s3296 + $0x1a7] sm:$0xff]
      %v4209 = vld [vmem:[%s3296 + $0x1af] sm:$0xff]
      %v4210 = vld [vmem:[%s3296 + $0x1c7] sm:$0xff]
      %v4211 = vld [vmem:[%s3296 + $0x1cf] sm:$0xff]
      %v4212 = vld [vmem:[%s3296 + $0x1e7] sm:$0xff]
      %v4213 = vld [vmem:[%s3296 + $0x1ef] sm:$0xff]
      %v4214 = vpack.c.bf16 %v4183, %v4182
      %v4215 = vpack.c.bf16 %v4185, %v4184
      %v4216 = vpack.c.bf16 %v4187, %v4186
      %v4217 = vpack.c.bf16 %v4189, %v4188
      %v4218 = vpack.c.bf16 %v4191, %v4190
      %v4219 = vpack.c.bf16 %v4193, %v4192
      %v4220 = vpack.c.bf16 %v4195, %v4194
      %v4221 = vpack.c.bf16 %v4197, %v4196
      %v4222 = vpack.c.bf16 %v4199, %v4198
      %v4223 = vpack.c.bf16 %v4201, %v4200
      %v4224 = vpack.c.bf16 %v4203, %v4202
      %v4225 = vpack.c.bf16 %v4205, %v4204
      %v4226 = vpack.c.bf16 %v4207, %v4206
      %v4227 = vpack.c.bf16 %v4209, %v4208
      %v4228 = vpack.c.bf16 %v4211, %v4210
      %v4229 = vpack.c.bf16 %v4213, %v4212
      %s4230 = scalar_lea.vmem %s4, 192
      %v4231 = vld [vmem:[%s4230] sm:$0xf]
      %v4232 = vld [vmem:[%s4230 + $0x4] sm:$0xf]
      %v4233 = vld [vmem:[%s4230 + $0x8] sm:$0xf]
      %v4234 = vld [vmem:[%s4230 + $0xc] sm:$0xf]
      %v4235 = vld [vmem:[%s4230 + $0x10] sm:$0xf]
      %v4236 = vld [vmem:[%s4230 + $0x14] sm:$0xf]
      %v4237 = vld [vmem:[%s4230 + $0x18] sm:$0xf]
      %v4238 = vld [vmem:[%s4230 + $0x1c] sm:$0xf]
      %v4239 = vld [vmem:[%s4230 + $0x20] sm:$0xf]
      %v4240 = vld [vmem:[%s4230 + $0x24] sm:$0xf]
      %v4241 = vld [vmem:[%s4230 + $0x28] sm:$0xf]
      %v4242 = vld [vmem:[%s4230 + $0x2c] sm:$0xf]
      %v4243 = vld [vmem:[%s4230 + $0x30] sm:$0xf]
      %v4244 = vld [vmem:[%s4230 + $0x34] sm:$0xf]
      %v4245 = vld [vmem:[%s4230 + $0x38] sm:$0xf]
      %v4246 = vld [vmem:[%s4230 + $0x3c] sm:$0xf]
      %v4263 = vunpack.c.l.b16 %v4231
      %v4264 = vunpack.c.l.b16 %v4232
      %v4265 = vunpack.c.l.b16 %v4233
      %v4266 = vunpack.c.l.b16 %v4234
      %v4267 = vunpack.c.l.b16 %v4235
      %v4268 = vunpack.c.l.b16 %v4236
      %v4269 = vunpack.c.l.b16 %v4237
      %v4270 = vunpack.c.l.b16 %v4238
      %v4271 = vunpack.c.l.b16 %v4239
      %v4272 = vunpack.c.l.b16 %v4240
      %v4273 = vunpack.c.l.b16 %v4241
      %v4274 = vunpack.c.l.b16 %v4242
      %v4275 = vunpack.c.l.b16 %v4243
      %v4276 = vunpack.c.l.b16 %v4244
      %v4277 = vunpack.c.l.b16 %v4245
      %v4278 = vunpack.c.l.b16 %v4246
      %v4279 = vpack.c.b16 %v4264, %v4263
      %v4280 = vpack.c.b16 %v4266, %v4265
      %v4281 = vpack.c.b16 %v4268, %v4267
      %v4282 = vpack.c.b16 %v4270, %v4269
      %v4283 = vpack.c.b16 %v4272, %v4271
      %v4284 = vpack.c.b16 %v4274, %v4273
      %v4285 = vpack.c.b16 %v4276, %v4275
      %v4286 = vpack.c.b16 %v4278, %v4277
      %4295 = vmatprep.subr.bf16.mxu0 0
      %4296 = vmatpush1.bf16.msra.mxu0 %v4279
      %4297 = vmatprep.subr.bf16.mxu0 0
      %4298 = vmatpush1.bf16.msra.mxu0 %v4280
      %4299 = vmatprep.subr.bf16.mxu0 0
      %4300 = vmatpush1.bf16.msra.mxu0 %v4281
      %4301 = vmatprep.subr.bf16.mxu0 0
      %4302 = vmatpush1.bf16.msra.mxu0 %v4282
      %4303 = vmatprep.subr.bf16.mxu0 0
      %4304 = vmatpush1.bf16.msra.mxu0 %v4283
      %4305 = vmatprep.subr.bf16.mxu0 0
      %4306 = vmatpush1.bf16.msra.mxu0 %v4284
      %4307 = vmatprep.subr.bf16.mxu0 0
      %4308 = vmatpush1.bf16.msra.mxu0 %v4285
      %4309 = vmatprep.subr.bf16.mxu0 0
      %4310 = vmatpush1.bf16.msra.mxu0 %v4286
      %4311 = vmatprep.subr.bf16.mxu0 0
      %4312 = vmatpush1.bf16.msra.mxu0 0
      %4313 = vmatprep.subr.bf16.mxu0 0
      %4314 = vmatpush1.bf16.msra.mxu0 0
      %4315 = vmatprep.subr.bf16.mxu0 0
      %4316 = vmatpush1.bf16.msra.mxu0 0
      %4317 = vmatprep.subr.bf16.mxu0 0
      %4318 = vmatpush1.bf16.msra.mxu0 0
      %4319 = vmatprep.subr.bf16.mxu0 0
      %4320 = vmatpush1.bf16.msra.mxu0 0
      %4321 = vmatprep.subr.bf16.mxu0 0
      %4322 = vmatpush1.bf16.msra.mxu0 0
      %4323 = vmatprep.subr.bf16.mxu0 0
      %4324 = vmatpush1.bf16.msra.mxu0 0
      %4325 = vmatprep.subr.bf16.mxu0 0
      %4326 = vmatpush1.bf16.msra.mxu0 0
      %4327 = vmatprep.mubr.bf16.mxu0 0
      %4328 = vmatmul.mubr.bf16.gmra.mrb[0].mxu0 %v4214
      %v4329 = vpop.f32.mrb[0].mxu0
      %v4330 = vadd.f32 0.0, %v4329
      %v4331 = vpop.f32.mrb[0].mxu0
      %v4332 = vpop.f32.mrb[0].mxu0
      %v4333 = vadd.f32 0.0, %v4332
      %v4334 = vpop.f32.mrb[0].mxu0
      %4335 = vmatprep.mubr.bf16.mxu0 0
      %4336 = vmatmul.mubr.bf16.gmra.mrb[0].mxu0 %v4215
      %v4337 = vpop.f32.mrb[0].mxu0
      %v4338 = vadd.f32 0.0, %v4337
      %v4339 = vpop.f32.mrb[0].mxu0
      %v4340 = vpop.f32.mrb[0].mxu0
      %v4341 = vadd.f32 0.0, %v4340
      %v4342 = vpop.f32.mrb[0].mxu0
      %4343 = vmatprep.mubr.bf16.mxu0 0
      %4344 = vmatmul.mubr.bf16.gmra.mrb[0].mxu0 %v4216
      %v4345 = vpop.f32.mrb[0].mxu0
      %v4346 = vadd.f32 0.0, %v4345
      %v4347 = vpop.f32.mrb[0].mxu0
      %v4348 = vpop.f32.mrb[0].mxu0
      %v4349 = vadd.f32 0.0, %v4348
      %v4350 = vpop.f32.mrb[0].mxu0
      %4351 = vmatprep.mubr.bf16.mxu0 0
      %4352 = vmatmul.mubr.bf16.gmra.mrb[0].mxu0 %v4217
      %v4353 = vpop.f32.mrb[0].mxu0
      %v4354 = vadd.f32 0.0, %v4353
      %v4355 = vpop.f32.mrb[0].mxu0
      %v4356 = vpop.f32.mrb[0].mxu0
      %v4357 = vadd.f32 0.0, %v4356
      %v4358 = vpop.f32.mrb[0].mxu0
      %4359 = vmatprep.mubr.bf16.mxu0 0
      %4360 = vmatmul.mubr.bf16.gmra.mrb[0].mxu0 %v4218
      %v4361 = vpop.f32.mrb[0].mxu0
      %v4362 = vadd.f32 0.0, %v4361
      %v4363 = vpop.f32.mrb[0].mxu0
      %v4364 = vpop.f32.mrb[0].mxu0
      %v4365 = vadd.f32 0.0, %v4364
      %v4366 = vpop.f32.mrb[0].mxu0
      %4367 = vmatprep.mubr.bf16.mxu0 0
      %4368 = vmatmul.mubr.bf16.gmra.mrb[0].mxu0 %v4219
      %v4369 = vpop.f32.mrb[0].mxu0
      %v4370 = vadd.f32 0.0, %v4369
      %v4371 = vpop.f32.mrb[0].mxu0
      %v4372 = vpop.f32.mrb[0].mxu0
      %v4373 = vadd.f32 0.0, %v4372
      %v4374 = vpop.f32.mrb[0].mxu0
      %4375 = vmatprep.mubr.bf16.mxu0 0
      %4376 = vmatmul.mubr.bf16.gmra.mrb[0].mxu0 %v4220
      %v4377 = vpop.f32.mrb[0].mxu0
      %v4378 = vadd.f32 0.0, %v4377
      %v4379 = vpop.f32.mrb[0].mxu0
      %v4380 = vpop.f32.mrb[0].mxu0
      %v4381 = vadd.f32 0.0, %v4380
      %v4382 = vpop.f32.mrb[0].mxu0
      %4383 = vmatprep.mubr.bf16.mxu0 0
      %4384 = vmatmul.mubr.bf16.gmra.mrb[0].mxu0 %v4221
      %v4385 = vpop.f32.mrb[0].mxu0
      %v4386 = vadd.f32 0.0, %v4385
      %v4387 = vpop.f32.mrb[0].mxu0
      %v4388 = vpop.f32.mrb[0].mxu0
      %v4389 = vadd.f32 0.0, %v4388
      %v4390 = vpop.f32.mrb[0].mxu0
      %4391 = vmatprep.mubr.bf16.mxu0 0
      %4392 = vmatmul.mubr.bf16.gmra.mrb[0].mxu0 %v4222
      %v4393 = vpop.f32.mrb[0].mxu0
      %v4394 = vadd.f32 0.0, %v4393
      %v4395 = vpop.f32.mrb[0].mxu0
      %v4396 = vpop.f32.mrb[0].mxu0
      %v4397 = vadd.f32 0.0, %v4396
      %v4398 = vpop.f32.mrb[0].mxu0
      %4399 = vmatprep.mubr.bf16.mxu0 0
      %4400 = vmatmul.mubr.bf16.gmra.mrb[0].mxu0 %v4223
      %v4401 = vpop.f32.mrb[0].mxu0
      %v4402 = vadd.f32 0.0, %v4401
      %v4403 = vpop.f32.mrb[0].mxu0
      %v4404 = vpop.f32.mrb[0].mxu0
      %v4405 = vadd.f32 0.0, %v4404
      %v4406 = vpop.f32.mrb[0].mxu0
      %4407 = vmatprep.mubr.bf16.mxu0 0
      %4408 = vmatmul.mubr.bf16.gmra.mrb[0].mxu0 %v4224
      %v4409 = vpop.f32.mrb[0].mxu0
      %v4410 = vadd.f32 0.0, %v4409
      %v4411 = vpop.f32.mrb[0].mxu0
      %v4412 = vpop.f32.mrb[0].mxu0
      %v4413 = vadd.f32 0.0, %v4412
      %v4414 = vpop.f32.mrb[0].mxu0
      %4415 = vmatprep.mubr.bf16.mxu0 0
      %4416 = vmatmul.mubr.bf16.gmra.mrb[0].mxu0 %v4225
      %v4417 = vpop.f32.mrb[0].mxu0
      %v4418 = vadd.f32 0.0, %v4417
      %v4419 = vpop.f32.mrb[0].mxu0
      %v4420 = vpop.f32.mrb[0].mxu0
      %v4421 = vadd.f32 0.0, %v4420
      %v4422 = vpop.f32.mrb[0].mxu0
      %4423 = vmatprep.mubr.bf16.mxu0 0
      %4424 = vmatmul.mubr.bf16.gmra.mrb[0].mxu0 %v4226
      %v4425 = vpop.f32.mrb[0].mxu0
      %v4426 = vadd.f32 0.0, %v4425
      %v4427 = vpop.f32.mrb[0].mxu0
      %v4428 = vpop.f32.mrb[0].mxu0
      %v4429 = vadd.f32 0.0, %v4428
      %v4430 = vpop.f32.mrb[0].mxu0
      %4431 = vmatprep.mubr.bf16.mxu0 0
      %4432 = vmatmul.mubr.bf16.gmra.mrb[0].mxu0 %v4227
      %v4433 = vpop.f32.mrb[0].mxu0
      %v4434 = vadd.f32 0.0, %v4433
      %v4435 = vpop.f32.mrb[0].mxu0
      %v4436 = vpop.f32.mrb[0].mxu0
      %v4437 = vadd.f32 0.0, %v4436
      %v4438 = vpop.f32.mrb[0].mxu0
      %4439 = vmatprep.mubr.bf16.mxu0 0
      %4440 = vmatmul.mubr.bf16.gmra.mrb[0].mxu0 %v4228
      %v4441 = vpop.f32.mrb[0].mxu0
      %v4442 = vadd.f32 0.0, %v4441
      %v4443 = vpop.f32.mrb[0].mxu0
      %v4444 = vpop.f32.mrb[0].mxu0
      %v4445 = vadd.f32 0.0, %v4444
      %v4446 = vpop.f32.mrb[0].mxu0
      %4447 = vmatprep.mubr.bf16.mxu0 0
      %4448 = vmatmul.mubr.bf16.gmra.mrb[0].mxu0 %v4229
      %v4449 = vpop.f32.mrb[0].mxu0
      %v4450 = vadd.f32 0.0, %v4449
      %v4451 = vpop.f32.mrb[0].mxu0
      %v4452 = vpop.f32.mrb[0].mxu0
      %v4453 = vadd.f32 0.0, %v4452
      %v4454 = vpop.f32.mrb[0].mxu0
      %4455 = vdwg.mxu0
      %v4456 = vadd.f32 %v4150, %v4330
      %v4457 = vadd.f32 %v4151, %v4333
      %v4458 = vadd.f32 %v4152, %v4338
      %v4459 = vadd.f32 %v4153, %v4341
      %v4460 = vadd.f32 %v4154, %v4346
      %v4461 = vadd.f32 %v4155, %v4349
      %v4462 = vadd.f32 %v4156, %v4354
      %v4463 = vadd.f32 %v4157, %v4357
      %v4464 = vadd.f32 %v4158, %v4362
      %v4465 = vadd.f32 %v4159, %v4365
      %v4466 = vadd.f32 %v4160, %v4370
      %v4467 = vadd.f32 %v4161, %v4373
      %v4468 = vadd.f32 %v4162, %v4378
      %v4469 = vadd.f32 %v4163, %v4381
      %v4470 = vadd.f32 %v4164, %v4386
      %v4471 = vadd.f32 %v4165, %v4389
      %v4472 = vadd.f32 %v4166, %v4394
      %v4473 = vadd.f32 %v4167, %v4397
      %v4474 = vadd.f32 %v4168, %v4402
      %v4475 = vadd.f32 %v4169, %v4405
      %v4476 = vadd.f32 %v4170, %v4410
      %v4477 = vadd.f32 %v4171, %v4413
      %v4478 = vadd.f32 %v4172, %v4418
      %v4479 = vadd.f32 %v4173, %v4421
      %v4480 = vadd.f32 %v4174, %v4426
      %v4481 = vadd.f32 %v4175, %v4429
      %v4482 = vadd.f32 %v4176, %v4434
      %v4483 = vadd.f32 %v4177, %v4437
      %v4484 = vadd.f32 %v4178, %v4442
      %v4485 = vadd.f32 %v4179, %v4445
      %v4486 = vadd.f32 %v4180, %v4450
      %v4487 = vadd.f32 %v4181, %v4453
      %v4488 = vld [vmem:[%s3296 + $0x8] sm:$0xff]
      %v4489 = vld [vmem:[%s3296 + $0x10] sm:$0xff]
      %v4490 = vld [vmem:[%s3296 + $0x28] sm:$0xff]
      %v4491 = vld [vmem:[%s3296 + $0x30] sm:$0xff]
      %v4492 = vld [vmem:[%s3296 + $0x48] sm:$0xff]
      %v4493 = vld [vmem:[%s3296 + $0x50] sm:$0xff]
      %v4494 = vld [vmem:[%s3296 + $0x68] sm:$0xff]
      %v4495 = vld [vmem:[%s3296 + $0x70] sm:$0xff]
      %v4496 = vld [vmem:[%s3296 + $0x88] sm:$0xff]
      %v4497 = vld [vmem:[%s3296 + $0x90] sm:$0xff]
      %v4498 = vld [vmem:[%s3296 + $0xa8] sm:$0xff]
      %v4499 = vld [vmem:[%s3296 + $0xb0] sm:$0xff]
      %v4500 = vld [vmem:[%s3296 + $0xc8] sm:$0xff]
      %v4501 = vld [vmem:[%s3296 + $0xd0] sm:$0xff]
      %v4502 = vld [vmem:[%s3296 + $0xe8] sm:$0xff]
      %v4503 = vld [vmem:[%s3296 + $0xf0] sm:$0xff]
      %v4504 = vld [vmem:[%s3296 + $0x108] sm:$0xff]
      %v4505 = vld [vmem:[%s3296 + $0x110] sm:$0xff]
      %v4506 = vld [vmem:[%s3296 + $0x128] sm:$0xff]
      %v4507 = vld [vmem:[%s3296 + $0x130] sm:$0xff]
      %v4508 = vld [vmem:[%s3296 + $0x148] sm:$0xff]
      %v4509 = vld [vmem:[%s3296 + $0x150] sm:$0xff]
      %v4510 = vld [vmem:[%s3296 + $0x168] sm:$0xff]
      %v4511 = vld [vmem:[%s3296 + $0x170] sm:$0xff]
      %v4512 = vld [vmem:[%s3296 + $0x188] sm:$0xff]
      %v4513 = vld [vmem:[%s3296 + $0x190] sm:$0xff]
      %v4514 = vld [vmem:[%s3296 + $0x1a8] sm:$0xff]
      %v4515 = vld [vmem:[%s3296 + $0x1b0] sm:$0xff]
      %v4516 = vld [vmem:[%s3296 + $0x1c8] sm:$0xff]
      %v4517 = vld [vmem:[%s3296 + $0x1d0] sm:$0xff]
      %v4518 = vld [vmem:[%s3296 + $0x1e8] sm:$0xff]
      %v4519 = vld [vmem:[%s3296 + $0x1f0] sm:$0xff]
      %v4520 = vpack.c.bf16 %v4489, %v4488
      %v4521 = vpack.c.bf16 %v4491, %v4490
      %v4522 = vpack.c.bf16 %v4493, %v4492
      %v4523 = vpack.c.bf16 %v4495, %v4494
      %v4524 = vpack.c.bf16 %v4497, %v4496
      %v4525 = vpack.c.bf16 %v4499, %v4498
      %v4526 = vpack.c.bf16 %v4501, %v4500
      %v4527 = vpack.c.bf16 %v4503, %v4502
      %v4528 = vpack.c.bf16 %v4505, %v4504
      %v4529 = vpack.c.bf16 %v4507, %v4506
      %v4530 = vpack.c.bf16 %v4509, %v4508
      %v4531 = vpack.c.bf16 %v4511, %v4510
      %v4532 = vpack.c.bf16 %v4513, %v4512
      %v4533 = vpack.c.bf16 %v4515, %v4514
      %v4534 = vpack.c.bf16 %v4517, %v4516
      %v4535 = vpack.c.bf16 %v4519, %v4518
      %s4536 = scalar_lea.vmem %s4, 256
      %v4537 = vld [vmem:[%s4536] sm:$0xf]
      %v4538 = vld [vmem:[%s4536 + $0x4] sm:$0xf]
      %v4539 = vld [vmem:[%s4536 + $0x8] sm:$0xf]
      %v4540 = vld [vmem:[%s4536 + $0xc] sm:$0xf]
      %v4541 = vld [vmem:[%s4536 + $0x10] sm:$0xf]
      %v4542 = vld [vmem:[%s4536 + $0x14] sm:$0xf]
      %v4543 = vld [vmem:[%s4536 + $0x18] sm:$0xf]
      %v4544 = vld [vmem:[%s4536 + $0x1c] sm:$0xf]
      %v4545 = vld [vmem:[%s4536 + $0x20] sm:$0xf]
      %v4546 = vld [vmem:[%s4536 + $0x24] sm:$0xf]
      %v4547 = vld [vmem:[%s4536 + $0x28] sm:$0xf]
      %v4548 = vld [vmem:[%s4536 + $0x2c] sm:$0xf]
      %v4549 = vld [vmem:[%s4536 + $0x30] sm:$0xf]
      %v4550 = vld [vmem:[%s4536 + $0x34] sm:$0xf]
      %v4551 = vld [vmem:[%s4536 + $0x38] sm:$0xf]
      %v4552 = vld [vmem:[%s4536 + $0x3c] sm:$0xf]
      %v4569 = vunpack.c.l.b16 %v4537
      %v4570 = vunpack.c.l.b16 %v4538
      %v4571 = vunpack.c.l.b16 %v4539
      %v4572 = vunpack.c.l.b16 %v4540
      %v4573 = vunpack.c.l.b16 %v4541
      %v4574 = vunpack.c.l.b16 %v4542
      %v4575 = vunpack.c.l.b16 %v4543
      %v4576 = vunpack.c.l.b16 %v4544
      %v4577 = vunpack.c.l.b16 %v4545
      %v4578 = vunpack.c.l.b16 %v4546
      %v4579 = vunpack.c.l.b16 %v4547
      %v4580 = vunpack.c.l.b16 %v4548
      %v4581 = vunpack.c.l.b16 %v4549
      %v4582 = vunpack.c.l.b16 %v4550
      %v4583 = vunpack.c.l.b16 %v4551
      %v4584 = vunpack.c.l.b16 %v4552
      %v4585 = vpack.c.b16 %v4570, %v4569
      %v4586 = vpack.c.b16 %v4572, %v4571
      %v4587 = vpack.c.b16 %v4574, %v4573
      %v4588 = vpack.c.b16 %v4576, %v4575
      %v4589 = vpack.c.b16 %v4578, %v4577
      %v4590 = vpack.c.b16 %v4580, %v4579
      %v4591 = vpack.c.b16 %v4582, %v4581
      %v4592 = vpack.c.b16 %v4584, %v4583
      %4601 = vmatprep.subr.bf16.mxu0 0
      %4602 = vmatpush1.bf16.msra.mxu0 %v4585
      %4603 = vmatprep.subr.bf16.mxu0 0
      %4604 = vmatpush1.bf16.msra.mxu0 %v4586
      %4605 = vmatprep.subr.bf16.mxu0 0
      %4606 = vmatpush1.bf16.msra.mxu0 %v4587
      %4607 = vmatprep.subr.bf16.mxu0 0
      %4608 = vmatpush1.bf16.msra.mxu0 %v4588
      %4609 = vmatprep.subr.bf16.mxu0 0
      %4610 = vmatpush1.bf16.msra.mxu0 %v4589
      %4611 = vmatprep.subr.bf16.mxu0 0
      %4612 = vmatpush1.bf16.msra.mxu0 %v4590
      %4613 = vmatprep.subr.bf16.mxu0 0
      %4614 = vmatpush1.bf16.msra.mxu0 %v4591
      %4615 = vmatprep.subr.bf16.mxu0 0
      %4616 = vmatpush1.bf16.msra.mxu0 %v4592
      %4617 = vmatprep.subr.bf16.mxu0 0
      %4618 = vmatpush1.bf16.msra.mxu0 0
      %4619 = vmatprep.subr.bf16.mxu0 0
      %4620 = vmatpush1.bf16.msra.mxu0 0
      %4621 = vmatprep.subr.bf16.mxu0 0
      %4622 = vmatpush1.bf16.msra.mxu0 0
      %4623 = vmatprep.subr.bf16.mxu0 0
      %4624 = vmatpush1.bf16.msra.mxu0 0
      %4625 = vmatprep.subr.bf16.mxu0 0
      %4626 = vmatpush1.bf16.msra.mxu0 0
      %4627 = vmatprep.subr.bf16.mxu0 0
      %4628 = vmatpush1.bf16.msra.mxu0 0
      %4629 = vmatprep.subr.bf16.mxu0 0
      %4630 = vmatpush1.bf16.msra.mxu0 0
      %4631 = vmatprep.subr.bf16.mxu0 0
      %4632 = vmatpush1.bf16.msra.mxu0 0
      %4633 = vmatprep.mubr.bf16.mxu0 0
      %4634 = vmatmul.mubr.bf16.gmra.mrb[0].mxu0 %v4520
      %v4635 = vpop.f32.mrb[0].mxu0
      %v4636 = vadd.f32 0.0, %v4635
      %v4637 = vpop.f32.mrb[0].mxu0
      %v4638 = vpop.f32.mrb[0].mxu0
      %v4639 = vadd.f32 0.0, %v4638
      %v4640 = vpop.f32.mrb[0].mxu0
      %4641 = vmatprep.mubr.bf16.mxu0 0
      %4642 = vmatmul.mubr.bf16.gmra.mrb[0].mxu0 %v4521
      %v4643 = vpop.f32.mrb[0].mxu0
      %v4644 = vadd.f32 0.0, %v4643
      %v4645 = vpop.f32.mrb[0].mxu0
      %v4646 = vpop.f32.mrb[0].mxu0
      %v4647 = vadd.f32 0.0, %v4646
      %v4648 = vpop.f32.mrb[0].mxu0
      %4649 = vmatprep.mubr.bf16.mxu0 0
      %4650 = vmatmul.mubr.bf16.gmra.mrb[0].mxu0 %v4522
      %v4651 = vpop.f32.mrb[0].mxu0
      %v4652 = vadd.f32 0.0, %v4651
      %v4653 = vpop.f32.mrb[0].mxu0
      %v4654 = vpop.f32.mrb[0].mxu0
      %v4655 = vadd.f32 0.0, %v4654
      %v4656 = vpop.f32.mrb[0].mxu0
      %4657 = vmatprep.mubr.bf16.mxu0 0
      %4658 = vmatmul.mubr.bf16.gmra.mrb[0].mxu0 %v4523
      %v4659 = vpop.f32.mrb[0].mxu0
      %v4660 = vadd.f32 0.0, %v4659
      %v4661 = vpop.f32.mrb[0].mxu0
      %v4662 = vpop.f32.mrb[0].mxu0
      %v4663 = vadd.f32 0.0, %v4662
      %v4664 = vpop.f32.mrb[0].mxu0
      %4665 = vmatprep.mubr.bf16.mxu0 0
      %4666 = vmatmul.mubr.bf16.gmra.mrb[0].mxu0 %v4524
      %v4667 = vpop.f32.mrb[0].mxu0
      %v4668 = vadd.f32 0.0, %v4667
      %v4669 = vpop.f32.mrb[0].mxu0
      %v4670 = vpop.f32.mrb[0].mxu0
      %v4671 = vadd.f32 0.0, %v4670
      %v4672 = vpop.f32.mrb[0].mxu0
      %4673 = vmatprep.mubr.bf16.mxu0 0
      %4674 = vmatmul.mubr.bf16.gmra.mrb[0].mxu0 %v4525
      %v4675 = vpop.f32.mrb[0].mxu0
      %v4676 = vadd.f32 0.0, %v4675
      %v4677 = vpop.f32.mrb[0].mxu0
      %v4678 = vpop.f32.mrb[0].mxu0
      %v4679 = vadd.f32 0.0, %v4678
      %v4680 = vpop.f32.mrb[0].mxu0
      %4681 = vmatprep.mubr.bf16.mxu0 0
      %4682 = vmatmul.mubr.bf16.gmra.mrb[0].mxu0 %v4526
      %v4683 = vpop.f32.mrb[0].mxu0
      %v4684 = vadd.f32 0.0, %v4683
      %v4685 = vpop.f32.mrb[0].mxu0
      %v4686 = vpop.f32.mrb[0].mxu0
      %v4687 = vadd.f32 0.0, %v4686
      %v4688 = vpop.f32.mrb[0].mxu0
      %4689 = vmatprep.mubr.bf16.mxu0 0
      %4690 = vmatmul.mubr.bf16.gmra.mrb[0].mxu0 %v4527
      %v4691 = vpop.f32.mrb[0].mxu0
      %v4692 = vadd.f32 0.0, %v4691
      %v4693 = vpop.f32.mrb[0].mxu0
      %v4694 = vpop.f32.mrb[0].mxu0
      %v4695 = vadd.f32 0.0, %v4694
      %v4696 = vpop.f32.mrb[0].mxu0
      %4697 = vmatprep.mubr.bf16.mxu0 0
      %4698 = vmatmul.mubr.bf16.gmra.mrb[0].mxu0 %v4528
      %v4699 = vpop.f32.mrb[0].mxu0
      %v4700 = vadd.f32 0.0, %v4699
      %v4701 = vpop.f32.mrb[0].mxu0
      %v4702 = vpop.f32.mrb[0].mxu0
      %v4703 = vadd.f32 0.0, %v4702
      %v4704 = vpop.f32.mrb[0].mxu0
      %4705 = vmatprep.mubr.bf16.mxu0 0
      %4706 = vmatmul.mubr.bf16.gmra.mrb[0].mxu0 %v4529
      %v4707 = vpop.f32.mrb[0].mxu0
      %v4708 = vadd.f32 0.0, %v4707
      %v4709 = vpop.f32.mrb[0].mxu0
      %v4710 = vpop.f32.mrb[0].mxu0
      %v4711 = vadd.f32 0.0, %v4710
      %v4712 = vpop.f32.mrb[0].mxu0
      %4713 = vmatprep.mubr.bf16.mxu0 0
      %4714 = vmatmul.mubr.bf16.gmra.mrb[0].mxu0 %v4530
      %v4715 = vpop.f32.mrb[0].mxu0
      %v4716 = vadd.f32 0.0, %v4715
      %v4717 = vpop.f32.mrb[0].mxu0
      %v4718 = vpop.f32.mrb[0].mxu0
      %v4719 = vadd.f32 0.0, %v4718
      %v4720 = vpop.f32.mrb[0].mxu0
      %4721 = vmatprep.mubr.bf16.mxu0 0
      %4722 = vmatmul.mubr.bf16.gmra.mrb[0].mxu0 %v4531
      %v4723 = vpop.f32.mrb[0].mxu0
      %v4724 = vadd.f32 0.0, %v4723
      %v4725 = vpop.f32.mrb[0].mxu0
      %v4726 = vpop.f32.mrb[0].mxu0
      %v4727 = vadd.f32 0.0, %v4726
      %v4728 = vpop.f32.mrb[0].mxu0
      %4729 = vmatprep.mubr.bf16.mxu0 0
      %4730 = vmatmul.mubr.bf16.gmra.mrb[0].mxu0 %v4532
      %v4731 = vpop.f32.mrb[0].mxu0
      %v4732 = vadd.f32 0.0, %v4731
      %v4733 = vpop.f32.mrb[0].mxu0
      %v4734 = vpop.f32.mrb[0].mxu0
      %v4735 = vadd.f32 0.0, %v4734
      %v4736 = vpop.f32.mrb[0].mxu0
      %4737 = vmatprep.mubr.bf16.mxu0 0
      %4738 = vmatmul.mubr.bf16.gmra.mrb[0].mxu0 %v4533
      %v4739 = vpop.f32.mrb[0].mxu0
      %v4740 = vadd.f32 0.0, %v4739
      %v4741 = vpop.f32.mrb[0].mxu0
      %v4742 = vpop.f32.mrb[0].mxu0
      %v4743 = vadd.f32 0.0, %v4742
      %v4744 = vpop.f32.mrb[0].mxu0
      %4745 = vmatprep.mubr.bf16.mxu0 0
      %4746 = vmatmul.mubr.bf16.gmra.mrb[0].mxu0 %v4534
      %v4747 = vpop.f32.mrb[0].mxu0
      %v4748 = vadd.f32 0.0, %v4747
      %v4749 = vpop.f32.mrb[0].mxu0
      %v4750 = vpop.f32.mrb[0].mxu0
      %v4751 = vadd.f32 0.0, %v4750
      %v4752 = vpop.f32.mrb[0].mxu0
      %4753 = vmatprep.mubr.bf16.mxu0 0
      %4754 = vmatmul.mubr.bf16.gmra.mrb[0].mxu0 %v4535
      %v4755 = vpop.f32.mrb[0].mxu0
      %v4756 = vadd.f32 0.0, %v4755
      %v4757 = vpop.f32.mrb[0].mxu0
      %v4758 = vpop.f32.mrb[0].mxu0
      %v4759 = vadd.f32 0.0, %v4758
      %v4760 = vpop.f32.mrb[0].mxu0
      %4761 = vdwg.mxu0
      %v4762 = vadd.f32 %v4456, %v4636
      %v4763 = vadd.f32 %v4457, %v4639
      %v4764 = vadd.f32 %v4458, %v4644
      %v4765 = vadd.f32 %v4459, %v4647
      %v4766 = vadd.f32 %v4460, %v4652
      %v4767 = vadd.f32 %v4461, %v4655
      %v4768 = vadd.f32 %v4462, %v4660
      %v4769 = vadd.f32 %v4463, %v4663
      %v4770 = vadd.f32 %v4464, %v4668
      %v4771 = vadd.f32 %v4465, %v4671
      %v4772 = vadd.f32 %v4466, %v4676
      %v4773 = vadd.f32 %v4467, %v4679
      %v4774 = vadd.f32 %v4468, %v4684
      %v4775 = vadd.f32 %v4469, %v4687
      %v4776 = vadd.f32 %v4470, %v4692
      %v4777 = vadd.f32 %v4471, %v4695
      %v4778 = vadd.f32 %v4472, %v4700
      %v4779 = vadd.f32 %v4473, %v4703
      %v4780 = vadd.f32 %v4474, %v4708
      %v4781 = vadd.f32 %v4475, %v4711
      %v4782 = vadd.f32 %v4476, %v4716
      %v4783 = vadd.f32 %v4477, %v4719
      %v4784 = vadd.f32 %v4478, %v4724
      %v4785 = vadd.f32 %v4479, %v4727
      %v4786 = vadd.f32 %v4480, %v4732
      %v4787 = vadd.f32 %v4481, %v4735
      %v4788 = vadd.f32 %v4482, %v4740
      %v4789 = vadd.f32 %v4483, %v4743
      %v4790 = vadd.f32 %v4484, %v4748
      %v4791 = vadd.f32 %v4485, %v4751
      %v4792 = vadd.f32 %v4486, %v4756
      %v4793 = vadd.f32 %v4487, %v4759
      %v4794 = vld [vmem:[%s3296 + $0x9] sm:$0xff]
      %v4795 = vld [vmem:[%s3296 + $0x11] sm:$0xff]
      %v4796 = vld [vmem:[%s3296 + $0x29] sm:$0xff]
      %v4797 = vld [vmem:[%s3296 + $0x31] sm:$0xff]
      %v4798 = vld [vmem:[%s3296 + $0x49] sm:$0xff]
      %v4799 = vld [vmem:[%s3296 + $0x51] sm:$0xff]
      %v4800 = vld [vmem:[%s3296 + $0x69] sm:$0xff]
      %v4801 = vld [vmem:[%s3296 + $0x71] sm:$0xff]
      %v4802 = vld [vmem:[%s3296 + $0x89] sm:$0xff]
      %v4803 = vld [vmem:[%s3296 + $0x91] sm:$0xff]
      %v4804 = vld [vmem:[%s3296 + $0xa9] sm:$0xff]
      %v4805 = vld [vmem:[%s3296 + $0xb1] sm:$0xff]
      %v4806 = vld [vmem:[%s3296 + $0xc9] sm:$0xff]
      %v4807 = vld [vmem:[%s3296 + $0xd1] sm:$0xff]
      %v4808 = vld [vmem:[%s3296 + $0xe9] sm:$0xff]
      %v4809 = vld [vmem:[%s3296 + $0xf1] sm:$0xff]
      %v4810 = vld [vmem:[%s3296 + $0x109] sm:$0xff]
      %v4811 = vld [vmem:[%s3296 + $0x111] sm:$0xff]
      %v4812 = vld [vmem:[%s3296 + $0x129] sm:$0xff]
      %v4813 = vld [vmem:[%s3296 + $0x131] sm:$0xff]
      %v4814 = vld [vmem:[%s3296 + $0x149] sm:$0xff]
      %v4815 = vld [vmem:[%s3296 + $0x151] sm:$0xff]
      %v4816 = vld [vmem:[%s3296 + $0x169] sm:$0xff]
      %v4817 = vld [vmem:[%s3296 + $0x171] sm:$0xff]
      %v4818 = vld [vmem:[%s3296 + $0x189] sm:$0xff]
      %v4819 = vld [vmem:[%s3296 + $0x191] sm:$0xff]
      %v4820 = vld [vmem:[%s3296 + $0x1a9] sm:$0xff]
      %v4821 = vld [vmem:[%s3296 + $0x1b1] sm:$0xff]
      %v4822 = vld [vmem:[%s3296 + $0x1c9] sm:$0xff]
      %v4823 = vld [vmem:[%s3296 + $0x1d1] sm:$0xff]
      %v4824 = vld [vmem:[%s3296 + $0x1e9] sm:$0xff]
      %v4825 = vld [vmem:[%s3296 + $0x1f1] sm:$0xff]
      %v4826 = vpack.c.bf16 %v4795, %v4794
      %v4827 = vpack.c.bf16 %v4797, %v4796
      %v4828 = vpack.c.bf16 %v4799, %v4798
      %v4829 = vpack.c.bf16 %v4801, %v4800
      %v4830 = vpack.c.bf16 %v4803, %v4802
      %v4831 = vpack.c.bf16 %v4805, %v4804
      %v4832 = vpack.c.bf16 %v4807, %v4806
      %v4833 = vpack.c.bf16 %v4809, %v4808
      %v4834 = vpack.c.bf16 %v4811, %v4810
      %v4835 = vpack.c.bf16 %v4813, %v4812
      %v4836 = vpack.c.bf16 %v4815, %v4814
      %v4837 = vpack.c.bf16 %v4817, %v4816
      %v4838 = vpack.c.bf16 %v4819, %v4818
      %v4839 = vpack.c.bf16 %v4821, %v4820
      %v4840 = vpack.c.bf16 %v4823, %v4822
      %v4841 = vpack.c.bf16 %v4825, %v4824
      %s4842 = scalar_lea.vmem %s4, 320
      %v4843 = vld [vmem:[%s4842] sm:$0xf]
      %v4844 = vld [vmem:[%s4842 + $0x4] sm:$0xf]
      %v4845 = vld [vmem:[%s4842 + $0x8] sm:$0xf]
      %v4846 = vld [vmem:[%s4842 + $0xc] sm:$0xf]
      %v4847 = vld [vmem:[%s4842 + $0x10] sm:$0xf]
      %v4848 = vld [vmem:[%s4842 + $0x14] sm:$0xf]
      %v4849 = vld [vmem:[%s4842 + $0x18] sm:$0xf]
      %v4850 = vld [vmem:[%s4842 + $0x1c] sm:$0xf]
      %v4851 = vld [vmem:[%s4842 + $0x20] sm:$0xf]
      %v4852 = vld [vmem:[%s4842 + $0x24] sm:$0xf]
      %v4853 = vld [vmem:[%s4842 + $0x28] sm:$0xf]
      %v4854 = vld [vmem:[%s4842 + $0x2c] sm:$0xf]
      %v4855 = vld [vmem:[%s4842 + $0x30] sm:$0xf]
      %v4856 = vld [vmem:[%s4842 + $0x34] sm:$0xf]
      %v4857 = vld [vmem:[%s4842 + $0x38] sm:$0xf]
      %v4858 = vld [vmem:[%s4842 + $0x3c] sm:$0xf]
      %v4875 = vunpack.c.l.b16 %v4843
      %v4876 = vunpack.c.l.b16 %v4844
      %v4877 = vunpack.c.l.b16 %v4845
      %v4878 = vunpack.c.l.b16 %v4846
      %v4879 = vunpack.c.l.b16 %v4847
      %v4880 = vunpack.c.l.b16 %v4848
      %v4881 = vunpack.c.l.b16 %v4849
      %v4882 = vunpack.c.l.b16 %v4850
      %v4883 = vunpack.c.l.b16 %v4851
      %v4884 = vunpack.c.l.b16 %v4852
      %v4885 = vunpack.c.l.b16 %v4853
      %v4886 = vunpack.c.l.b16 %v4854
      %v4887 = vunpack.c.l.b16 %v4855
      %v4888 = vunpack.c.l.b16 %v4856
      %v4889 = vunpack.c.l.b16 %v4857
      %v4890 = vunpack.c.l.b16 %v4858
      %v4891 = vpack.c.b16 %v4876, %v4875
      %v4892 = vpack.c.b16 %v4878, %v4877
      %v4893 = vpack.c.b16 %v4880, %v4879
      %v4894 = vpack.c.b16 %v4882, %v4881
      %v4895 = vpack.c.b16 %v4884, %v4883
      %v4896 = vpack.c.b16 %v4886, %v4885
      %v4897 = vpack.c.b16 %v4888, %v4887
      %v4898 = vpack.c.b16 %v4890, %v4889
      %4907 = vmatprep.subr.bf16.mxu0 0
      %4908 = vmatpush1.bf16.msra.mxu0 %v4891
      %4909 = vmatprep.subr.bf16.mxu0 0
      %4910 = vmatpush1.bf16.msra.mxu0 %v4892
      %4911 = vmatprep.subr.bf16.mxu0 0
      %4912 = vmatpush1.bf16.msra.mxu0 %v4893
      %4913 = vmatprep.subr.bf16.mxu0 0
      %4914 = vmatpush1.bf16.msra.mxu0 %v4894
      %4915 = vmatprep.subr.bf16.mxu0 0
      %4916 = vmatpush1.bf16.msra.mxu0 %v4895
      %4917 = vmatprep.subr.bf16.mxu0 0
      %4918 = vmatpush1.bf16.msra.mxu0 %v4896
      %4919 = vmatprep.subr.bf16.mxu0 0
      %4920 = vmatpush1.bf16.msra.mxu0 %v4897
      %4921 = vmatprep.subr.bf16.mxu0 0
      %4922 = vmatpush1.bf16.msra.mxu0 %v4898
      %4923 = vmatprep.subr.bf16.mxu0 0
      %4924 = vmatpush1.bf16.msra.mxu0 0
      %4925 = vmatprep.subr.bf16.mxu0 0
      %4926 = vmatpush1.bf16.msra.mxu0 0
      %4927 = vmatprep.subr.bf16.mxu0 0
      %4928 = vmatpush1.bf16.msra.mxu0 0
      %4929 = vmatprep.subr.bf16.mxu0 0
      %4930 = vmatpush1.bf16.msra.mxu0 0
      %4931 = vmatprep.subr.bf16.mxu0 0
      %4932 = vmatpush1.bf16.msra.mxu0 0
      %4933 = vmatprep.subr.bf16.mxu0 0
      %4934 = vmatpush1.bf16.msra.mxu0 0
      %4935 = vmatprep.subr.bf16.mxu0 0
      %4936 = vmatpush1.bf16.msra.mxu0 0
      %4937 = vmatprep.subr.bf16.mxu0 0
      %4938 = vmatpush1.bf16.msra.mxu0 0
      %4939 = vmatprep.mubr.bf16.mxu0 0
      %4940 = vmatmul.mubr.bf16.gmra.mrb[0].mxu0 %v4826
      %v4941 = vpop.f32.mrb[0].mxu0
      %v4942 = vadd.f32 0.0, %v4941
      %v4943 = vpop.f32.mrb[0].mxu0
      %v4944 = vpop.f32.mrb[0].mxu0
      %v4945 = vadd.f32 0.0, %v4944
      %v4946 = vpop.f32.mrb[0].mxu0
      %4947 = vmatprep.mubr.bf16.mxu0 0
      %4948 = vmatmul.mubr.bf16.gmra.mrb[0].mxu0 %v4827
      %v4949 = vpop.f32.mrb[0].mxu0
      %v4950 = vadd.f32 0.0, %v4949
      %v4951 = vpop.f32.mrb[0].mxu0
      %v4952 = vpop.f32.mrb[0].mxu0
      %v4953 = vadd.f32 0.0, %v4952
      %v4954 = vpop.f32.mrb[0].mxu0
      %4955 = vmatprep.mubr.bf16.mxu0 0
      %4956 = vmatmul.mubr.bf16.gmra.mrb[0].mxu0 %v4828
      %v4957 = vpop.f32.mrb[0].mxu0
      %v4958 = vadd.f32 0.0, %v4957
      %v4959 = vpop.f32.mrb[0].mxu0
      %v4960 = vpop.f32.mrb[0].mxu0
      %v4961 = vadd.f32 0.0, %v4960
      %v4962 = vpop.f32.mrb[0].mxu0
      %4963 = vmatprep.mubr.bf16.mxu0 0
      %4964 = vmatmul.mubr.bf16.gmra.mrb[0].mxu0 %v4829
      %v4965 = vpop.f32.mrb[0].mxu0
      %v4966 = vadd.f32 0.0, %v4965
      %v4967 = vpop.f32.mrb[0].mxu0
      %v4968 = vpop.f32.mrb[0].mxu0
      %v4969 = vadd.f32 0.0, %v4968
      %v4970 = vpop.f32.mrb[0].mxu0
      %4971 = vmatprep.mubr.bf16.mxu0 0
      %4972 = vmatmul.mubr.bf16.gmra.mrb[0].mxu0 %v4830
      %v4973 = vpop.f32.mrb[0].mxu0
      %v4974 = vadd.f32 0.0, %v4973
      %v4975 = vpop.f32.mrb[0].mxu0
      %v4976 = vpop.f32.mrb[0].mxu0
      %v4977 = vadd.f32 0.0, %v4976
      %v4978 = vpop.f32.mrb[0].mxu0
      %4979 = vmatprep.mubr.bf16.mxu0 0
      %4980 = vmatmul.mubr.bf16.gmra.mrb[0].mxu0 %v4831
      %v4981 = vpop.f32.mrb[0].mxu0
      %v4982 = vadd.f32 0.0, %v4981
      %v4983 = vpop.f32.mrb[0].mxu0
      %v4984 = vpop.f32.mrb[0].mxu0
      %v4985 = vadd.f32 0.0, %v4984
      %v4986 = vpop.f32.mrb[0].mxu0
      %4987 = vmatprep.mubr.bf16.mxu0 0
      %4988 = vmatmul.mubr.bf16.gmra.mrb[0].mxu0 %v4832
      %v4989 = vpop.f32.mrb[0].mxu0
      %v4990 = vadd.f32 0.0, %v4989
      %v4991 = vpop.f32.mrb[0].mxu0
      %v4992 = vpop.f32.mrb[0].mxu0
      %v4993 = vadd.f32 0.0, %v4992
      %v4994 = vpop.f32.mrb[0].mxu0
      %4995 = vmatprep.mubr.bf16.mxu0 0
      %4996 = vmatmul.mubr.bf16.gmra.mrb[0].mxu0 %v4833
      %v4997 = vpop.f32.mrb[0].mxu0
      %v4998 = vadd.f32 0.0, %v4997
      %v4999 = vpop.f32.mrb[0].mxu0
      %v5000 = vpop.f32.mrb[0].mxu0
      %v5001 = vadd.f32 0.0, %v5000
      %v5002 = vpop.f32.mrb[0].mxu0
      %5003 = vmatprep.mubr.bf16.mxu0 0
      %5004 = vmatmul.mubr.bf16.gmra.mrb[0].mxu0 %v4834
      %v5005 = vpop.f32.mrb[0].mxu0
      %v5006 = vadd.f32 0.0, %v5005
      %v5007 = vpop.f32.mrb[0].mxu0
      %v5008 = vpop.f32.mrb[0].mxu0
      %v5009 = vadd.f32 0.0, %v5008
      %v5010 = vpop.f32.mrb[0].mxu0
      %5011 = vmatprep.mubr.bf16.mxu0 0
      %5012 = vmatmul.mubr.bf16.gmra.mrb[0].mxu0 %v4835
      %v5013 = vpop.f32.mrb[0].mxu0
      %v5014 = vadd.f32 0.0, %v5013
      %v5015 = vpop.f32.mrb[0].mxu0
      %v5016 = vpop.f32.mrb[0].mxu0
      %v5017 = vadd.f32 0.0, %v5016
      %v5018 = vpop.f32.mrb[0].mxu0
      %5019 = vmatprep.mubr.bf16.mxu0 0
      %5020 = vmatmul.mubr.bf16.gmra.mrb[0].mxu0 %v4836
      %v5021 = vpop.f32.mrb[0].mxu0
      %v5022 = vadd.f32 0.0, %v5021
      %v5023 = vpop.f32.mrb[0].mxu0
      %v5024 = vpop.f32.mrb[0].mxu0
      %v5025 = vadd.f32 0.0, %v5024
      %v5026 = vpop.f32.mrb[0].mxu0
      %5027 = vmatprep.mubr.bf16.mxu0 0
      %5028 = vmatmul.mubr.bf16.gmra.mrb[0].mxu0 %v4837
      %v5029 = vpop.f32.mrb[0].mxu0
      %v5030 = vadd.f32 0.0, %v5029
      %v5031 = vpop.f32.mrb[0].mxu0
      %v5032 = vpop.f32.mrb[0].mxu0
      %v5033 = vadd.f32 0.0, %v5032
      %v5034 = vpop.f32.mrb[0].mxu0
      %5035 = vmatprep.mubr.bf16.mxu0 0
      %5036 = vmatmul.mubr.bf16.gmra.mrb[0].mxu0 %v4838
      %v5037 = vpop.f32.mrb[0].mxu0
      %v5038 = vadd.f32 0.0, %v5037
      %v5039 = vpop.f32.mrb[0].mxu0
      %v5040 = vpop.f32.mrb[0].mxu0
      %v5041 = vadd.f32 0.0, %v5040
      %v5042 = vpop.f32.mrb[0].mxu0
      %5043 = vmatprep.mubr.bf16.mxu0 0
      %5044 = vmatmul.mubr.bf16.gmra.mrb[0].mxu0 %v4839
      %v5045 = vpop.f32.mrb[0].mxu0
      %v5046 = vadd.f32 0.0, %v5045
      %v5047 = vpop.f32.mrb[0].mxu0
      %v5048 = vpop.f32.mrb[0].mxu0
      %v5049 = vadd.f32 0.0, %v5048
      %v5050 = vpop.f32.mrb[0].mxu0
      %5051 = vmatprep.mubr.bf16.mxu0 0
      %5052 = vmatmul.mubr.bf16.gmra.mrb[0].mxu0 %v4840
      %v5053 = vpop.f32.mrb[0].mxu0
      %v5054 = vadd.f32 0.0, %v5053
      %v5055 = vpop.f32.mrb[0].mxu0
      %v5056 = vpop.f32.mrb[0].mxu0
      %v5057 = vadd.f32 0.0, %v5056
      %v5058 = vpop.f32.mrb[0].mxu0
      %5059 = vmatprep.mubr.bf16.mxu0 0
      %5060 = vmatmul.mubr.bf16.gmra.mrb[0].mxu0 %v4841
      %v5061 = vpop.f32.mrb[0].mxu0
      %v5062 = vadd.f32 0.0, %v5061
      %v5063 = vpop.f32.mrb[0].mxu0
      %v5064 = vpop.f32.mrb[0].mxu0
      %v5065 = vadd.f32 0.0, %v5064
      %v5066 = vpop.f32.mrb[0].mxu0
      %5067 = vdwg.mxu0
      %v5068 = vadd.f32 %v4762, %v4942
      %v5069 = vadd.f32 %v4763, %v4945
      %v5070 = vadd.f32 %v4764, %v4950
      %v5071 = vadd.f32 %v4765, %v4953
      %v5072 = vadd.f32 %v4766, %v4958
      %v5073 = vadd.f32 %v4767, %v4961
      %v5074 = vadd.f32 %v4768, %v4966
      %v5075 = vadd.f32 %v4769, %v4969
      %v5076 = vadd.f32 %v4770, %v4974
      %v5077 = vadd.f32 %v4771, %v4977
      %v5078 = vadd.f32 %v4772, %v4982
      %v5079 = vadd.f32 %v4773, %v4985
      %v5080 = vadd.f32 %v4774, %v4990
      %v5081 = vadd.f32 %v4775, %v4993
      %v5082 = vadd.f32 %v4776, %v4998
      %v5083 = vadd.f32 %v4777, %v5001
      %v5084 = vadd.f32 %v4778, %v5006
      %v5085 = vadd.f32 %v4779, %v5009
      %v5086 = vadd.f32 %v4780, %v5014
      %v5087 = vadd.f32 %v4781, %v5017
      %v5088 = vadd.f32 %v4782, %v5022
      %v5089 = vadd.f32 %v4783, %v5025
      %v5090 = vadd.f32 %v4784, %v5030
      %v5091 = vadd.f32 %v4785, %v5033
      %v5092 = vadd.f32 %v4786, %v5038
      %v5093 = vadd.f32 %v4787, %v5041
      %v5094 = vadd.f32 %v4788, %v5046
      %v5095 = vadd.f32 %v4789, %v5049
      %v5096 = vadd.f32 %v4790, %v5054
      %v5097 = vadd.f32 %v4791, %v5057
      %v5098 = vadd.f32 %v4792, %v5062
      %v5099 = vadd.f32 %v4793, %v5065
      %s5100 = scalar_lea.vmem [#allocation3], 64
      %v5101 = vld [vmem:[%s5100 + $0x7] sm:$0xff]
      %v5102 = vld [vmem:[%s5100 + $0xf] sm:$0xff]
      %v5103 = vld [vmem:[%s5100 + $0x27] sm:$0xff]
      %v5104 = vld [vmem:[%s5100 + $0x2f] sm:$0xff]
      %v5105 = vld [vmem:[%s5100 + $0x47] sm:$0xff]
      %v5106 = vld [vmem:[%s5100 + $0x4f] sm:$0xff]
      %v5107 = vld [vmem:[%s5100 + $0x67] sm:$0xff]
      %v5108 = vld [vmem:[%s5100 + $0x6f] sm:$0xff]
      %v5109 = vld [vmem:[%s5100 + $0x87] sm:$0xff]
      %v5110 = vld [vmem:[%s5100 + $0x8f] sm:$0xff]
      %v5111 = vld [vmem:[%s5100 + $0xa7] sm:$0xff]
      %v5112 = vld [vmem:[%s5100 + $0xaf] sm:$0xff]
      %v5113 = vld [vmem:[%s5100 + $0xc7] sm:$0xff]
      %v5114 = vld [vmem:[%s5100 + $0xcf] sm:$0xff]
      %v5115 = vld [vmem:[%s5100 + $0xe7] sm:$0xff]
      %v5116 = vld [vmem:[%s5100 + $0xef] sm:$0xff]
      %v5117 = vld [vmem:[%s5100 + $0x107] sm:$0xff]
      %v5118 = vld [vmem:[%s5100 + $0x10f] sm:$0xff]
      %v5119 = vld [vmem:[%s5100 + $0x127] sm:$0xff]
      %v5120 = vld [vmem:[%s5100 + $0x12f] sm:$0xff]
      %v5121 = vld [vmem:[%s5100 + $0x147] sm:$0xff]
      %v5122 = vld [vmem:[%s5100 + $0x14f] sm:$0xff]
      %v5123 = vld [vmem:[%s5100 + $0x167] sm:$0xff]
      %v5124 = vld [vmem:[%s5100 + $0x16f] sm:$0xff]
      %v5125 = vld [vmem:[%s5100 + $0x187] sm:$0xff]
      %v5126 = vld [vmem:[%s5100 + $0x18f] sm:$0xff]
      %v5127 = vld [vmem:[%s5100 + $0x1a7] sm:$0xff]
      %v5128 = vld [vmem:[%s5100 + $0x1af] sm:$0xff]
      %v5129 = vld [vmem:[%s5100 + $0x1c7] sm:$0xff]
      %v5130 = vld [vmem:[%s5100 + $0x1cf] sm:$0xff]
      %v5131 = vld [vmem:[%s5100 + $0x1e7] sm:$0xff]
      %v5132 = vld [vmem:[%s5100 + $0x1ef] sm:$0xff]
      %v5133 = vpack.c.bf16 %v5102, %v5101
      %v5134 = vpack.c.bf16 %v5104, %v5103
      %v5135 = vpack.c.bf16 %v5106, %v5105
      %v5136 = vpack.c.bf16 %v5108, %v5107
      %v5137 = vpack.c.bf16 %v5110, %v5109
      %v5138 = vpack.c.bf16 %v5112, %v5111
      %v5139 = vpack.c.bf16 %v5114, %v5113
      %v5140 = vpack.c.bf16 %v5116, %v5115
      %v5141 = vpack.c.bf16 %v5118, %v5117
      %v5142 = vpack.c.bf16 %v5120, %v5119
      %v5143 = vpack.c.bf16 %v5122, %v5121
      %v5144 = vpack.c.bf16 %v5124, %v5123
      %v5145 = vpack.c.bf16 %v5126, %v5125
      %v5146 = vpack.c.bf16 %v5128, %v5127
      %v5147 = vpack.c.bf16 %v5130, %v5129
      %v5148 = vpack.c.bf16 %v5132, %v5131
      %s5149 = scalar_lea.vmem %s4, 384
      %v5150 = vld [vmem:[%s5149] sm:$0xf]
      %v5151 = vld [vmem:[%s5149 + $0x4] sm:$0xf]
      %v5152 = vld [vmem:[%s5149 + $0x8] sm:$0xf]
      %v5153 = vld [vmem:[%s5149 + $0xc] sm:$0xf]
      %v5154 = vld [vmem:[%s5149 + $0x10] sm:$0xf]
      %v5155 = vld [vmem:[%s5149 + $0x14] sm:$0xf]
      %v5156 = vld [vmem:[%s5149 + $0x18] sm:$0xf]
      %v5157 = vld [vmem:[%s5149 + $0x1c] sm:$0xf]
      %v5158 = vld [vmem:[%s5149 + $0x20] sm:$0xf]
      %v5159 = vld [vmem:[%s5149 + $0x24] sm:$0xf]
      %v5160 = vld [vmem:[%s5149 + $0x28] sm:$0xf]
      %v5161 = vld [vmem:[%s5149 + $0x2c] sm:$0xf]
      %v5162 = vld [vmem:[%s5149 + $0x30] sm:$0xf]
      %v5163 = vld [vmem:[%s5149 + $0x34] sm:$0xf]
      %v5164 = vld [vmem:[%s5149 + $0x38] sm:$0xf]
      %v5165 = vld [vmem:[%s5149 + $0x3c] sm:$0xf]
      %v5182 = vunpack.c.l.b16 %v5150
      %v5183 = vunpack.c.l.b16 %v5151
      %v5184 = vunpack.c.l.b16 %v5152
      %v5185 = vunpack.c.l.b16 %v5153
      %v5186 = vunpack.c.l.b16 %v5154
      %v5187 = vunpack.c.l.b16 %v5155
      %v5188 = vunpack.c.l.b16 %v5156
      %v5189 = vunpack.c.l.b16 %v5157
      %v5190 = vunpack.c.l.b16 %v5158
      %v5191 = vunpack.c.l.b16 %v5159
      %v5192 = vunpack.c.l.b16 %v5160
      %v5193 = vunpack.c.l.b16 %v5161
      %v5194 = vunpack.c.l.b16 %v5162
      %v5195 = vunpack.c.l.b16 %v5163
      %v5196 = vunpack.c.l.b16 %v5164
      %v5197 = vunpack.c.l.b16 %v5165
      %v5198 = vpack.c.b16 %v5183, %v5182
      %v5199 = vpack.c.b16 %v5185, %v5184
      %v5200 = vpack.c.b16 %v5187, %v5186
      %v5201 = vpack.c.b16 %v5189, %v5188
      %v5202 = vpack.c.b16 %v5191, %v5190
      %v5203 = vpack.c.b16 %v5193, %v5192
      %v5204 = vpack.c.b16 %v5195, %v5194
      %v5205 = vpack.c.b16 %v5197, %v5196
      %5214 = vmatprep.subr.bf16.mxu0 0
      %5215 = vmatpush1.bf16.msra.mxu0 %v5198
      %5216 = vmatprep.subr.bf16.mxu0 0
      %5217 = vmatpush1.bf16.msra.mxu0 %v5199
      %5218 = vmatprep.subr.bf16.mxu0 0
      %5219 = vmatpush1.bf16.msra.mxu0 %v5200
      %5220 = vmatprep.subr.bf16.mxu0 0
      %5221 = vmatpush1.bf16.msra.mxu0 %v5201
      %5222 = vmatprep.subr.bf16.mxu0 0
      %5223 = vmatpush1.bf16.msra.mxu0 %v5202
      %5224 = vmatprep.subr.bf16.mxu0 0
      %5225 = vmatpush1.bf16.msra.mxu0 %v5203
      %5226 = vmatprep.subr.bf16.mxu0 0
      %5227 = vmatpush1.bf16.msra.mxu0 %v5204
      %5228 = vmatprep.subr.bf16.mxu0 0
      %5229 = vmatpush1.bf16.msra.mxu0 %v5205
      %5230 = vmatprep.subr.bf16.mxu0 0
      %5231 = vmatpush1.bf16.msra.mxu0 0
      %5232 = vmatprep.subr.bf16.mxu0 0
      %5233 = vmatpush1.bf16.msra.mxu0 0
      %5234 = vmatprep.subr.bf16.mxu0 0
      %5235 = vmatpush1.bf16.msra.mxu0 0
      %5236 = vmatprep.subr.bf16.mxu0 0
      %5237 = vmatpush1.bf16.msra.mxu0 0
      %5238 = vmatprep.subr.bf16.mxu0 0
      %5239 = vmatpush1.bf16.msra.mxu0 0
      %5240 = vmatprep.subr.bf16.mxu0 0
      %5241 = vmatpush1.bf16.msra.mxu0 0
      %5242 = vmatprep.subr.bf16.mxu0 0
      %5243 = vmatpush1.bf16.msra.mxu0 0
      %5244 = vmatprep.subr.bf16.mxu0 0
      %5245 = vmatpush1.bf16.msra.mxu0 0
      %5246 = vmatprep.mubr.bf16.mxu0 0
      %5247 = vmatmul.mubr.bf16.gmra.mrb[0].mxu0 %v5133
      %v5248 = vpop.f32.mrb[0].mxu0
      %v5249 = vadd.f32 0.0, %v5248
      %v5250 = vpop.f32.mrb[0].mxu0
      %v5251 = vpop.f32.mrb[0].mxu0
      %v5252 = vadd.f32 0.0, %v5251
      %v5253 = vpop.f32.mrb[0].mxu0
      %5254 = vmatprep.mubr.bf16.mxu0 0
      %5255 = vmatmul.mubr.bf16.gmra.mrb[0].mxu0 %v5134
      %v5256 = vpop.f32.mrb[0].mxu0
      %v5257 = vadd.f32 0.0, %v5256
      %v5258 = vpop.f32.mrb[0].mxu0
      %v5259 = vpop.f32.mrb[0].mxu0
      %v5260 = vadd.f32 0.0, %v5259
      %v5261 = vpop.f32.mrb[0].mxu0
      %5262 = vmatprep.mubr.bf16.mxu0 0
      %5263 = vmatmul.mubr.bf16.gmra.mrb[0].mxu0 %v5135
      %v5264 = vpop.f32.mrb[0].mxu0
      %v5265 = vadd.f32 0.0, %v5264
      %v5266 = vpop.f32.mrb[0].mxu0
      %v5267 = vpop.f32.mrb[0].mxu0
      %v5268 = vadd.f32 0.0, %v5267
      %v5269 = vpop.f32.mrb[0].mxu0
      %5270 = vmatprep.mubr.bf16.mxu0 0
      %5271 = vmatmul.mubr.bf16.gmra.mrb[0].mxu0 %v5136
      %v5272 = vpop.f32.mrb[0].mxu0
      %v5273 = vadd.f32 0.0, %v5272
      %v5274 = vpop.f32.mrb[0].mxu0
      %v5275 = vpop.f32.mrb[0].mxu0
      %v5276 = vadd.f32 0.0, %v5275
      %v5277 = vpop.f32.mrb[0].mxu0
      %5278 = vmatprep.mubr.bf16.mxu0 0
      %5279 = vmatmul.mubr.bf16.gmra.mrb[0].mxu0 %v5137
      %v5280 = vpop.f32.mrb[0].mxu0
      %v5281 = vadd.f32 0.0, %v5280
      %v5282 = vpop.f32.mrb[0].mxu0
      %v5283 = vpop.f32.mrb[0].mxu0
      %v5284 = vadd.f32 0.0, %v5283
      %v5285 = vpop.f32.mrb[0].mxu0
      %5286 = vmatprep.mubr.bf16.mxu0 0
      %5287 = vmatmul.mubr.bf16.gmra.mrb[0].mxu0 %v5138
      %v5288 = vpop.f32.mrb[0].mxu0
      %v5289 = vadd.f32 0.0, %v5288
      %v5290 = vpop.f32.mrb[0].mxu0
      %v5291 = vpop.f32.mrb[0].mxu0
      %v5292 = vadd.f32 0.0, %v5291
      %v5293 = vpop.f32.mrb[0].mxu0
      %5294 = vmatprep.mubr.bf16.mxu0 0
      %5295 = vmatmul.mubr.bf16.gmra.mrb[0].mxu0 %v5139
      %v5296 = vpop.f32.mrb[0].mxu0
      %v5297 = vadd.f32 0.0, %v5296
      %v5298 = vpop.f32.mrb[0].mxu0
      %v5299 = vpop.f32.mrb[0].mxu0
      %v5300 = vadd.f32 0.0, %v5299
      %v5301 = vpop.f32.mrb[0].mxu0
      %5302 = vmatprep.mubr.bf16.mxu0 0
      %5303 = vmatmul.mubr.bf16.gmra.mrb[0].mxu0 %v5140
      %v5304 = vpop.f32.mrb[0].mxu0
      %v5305 = vadd.f32 0.0, %v5304
      %v5306 = vpop.f32.mrb[0].mxu0
      %v5307 = vpop.f32.mrb[0].mxu0
      %v5308 = vadd.f32 0.0, %v5307
      %v5309 = vpop.f32.mrb[0].mxu0
      %5310 = vmatprep.mubr.bf16.mxu0 0
      %5311 = vmatmul.mubr.bf16.gmra.mrb[0].mxu0 %v5141
      %v5312 = vpop.f32.mrb[0].mxu0
      %v5313 = vadd.f32 0.0, %v5312
      %v5314 = vpop.f32.mrb[0].mxu0
      %v5315 = vpop.f32.mrb[0].mxu0
      %v5316 = vadd.f32 0.0, %v5315
      %v5317 = vpop.f32.mrb[0].mxu0
      %5318 = vmatprep.mubr.bf16.mxu0 0
      %5319 = vmatmul.mubr.bf16.gmra.mrb[0].mxu0 %v5142
      %v5320 = vpop.f32.mrb[0].mxu0
      %v5321 = vadd.f32 0.0, %v5320
      %v5322 = vpop.f32.mrb[0].mxu0
      %v5323 = vpop.f32.mrb[0].mxu0
      %v5324 = vadd.f32 0.0, %v5323
      %v5325 = vpop.f32.mrb[0].mxu0
      %5326 = vmatprep.mubr.bf16.mxu0 0
      %5327 = vmatmul.mubr.bf16.gmra.mrb[0].mxu0 %v5143
      %v5328 = vpop.f32.mrb[0].mxu0
      %v5329 = vadd.f32 0.0, %v5328
      %v5330 = vpop.f32.mrb[0].mxu0
      %v5331 = vpop.f32.mrb[0].mxu0
      %v5332 = vadd.f32 0.0, %v5331
      %v5333 = vpop.f32.mrb[0].mxu0
      %5334 = vmatprep.mubr.bf16.mxu0 0
      %5335 = vmatmul.mubr.bf16.gmra.mrb[0].mxu0 %v5144
      %v5336 = vpop.f32.mrb[0].mxu0
      %v5337 = vadd.f32 0.0, %v5336
      %v5338 = vpop.f32.mrb[0].mxu0
      %v5339 = vpop.f32.mrb[0].mxu0
      %v5340 = vadd.f32 0.0, %v5339
      %v5341 = vpop.f32.mrb[0].mxu0
      %5342 = vmatprep.mubr.bf16.mxu0 0
      %5343 = vmatmul.mubr.bf16.gmra.mrb[0].mxu0 %v5145
      %v5344 = vpop.f32.mrb[0].mxu0
      %v5345 = vadd.f32 0.0, %v5344
      %v5346 = vpop.f32.mrb[0].mxu0
      %v5347 = vpop.f32.mrb[0].mxu0
      %v5348 = vadd.f32 0.0, %v5347
      %v5349 = vpop.f32.mrb[0].mxu0
      %5350 = vmatprep.mubr.bf16.mxu0 0
      %5351 = vmatmul.mubr.bf16.gmra.mrb[0].mxu0 %v5146
      %v5352 = vpop.f32.mrb[0].mxu0
      %v5353 = vadd.f32 0.0, %v5352
      %v5354 = vpop.f32.mrb[0].mxu0
      %v5355 = vpop.f32.mrb[0].mxu0
      %v5356 = vadd.f32 0.0, %v5355
      %v5357 = vpop.f32.mrb[0].mxu0
      %5358 = vmatprep.mubr.bf16.mxu0 0
      %5359 = vmatmul.mubr.bf16.gmra.mrb[0].mxu0 %v5147
      %v5360 = vpop.f32.mrb[0].mxu0
      %v5361 = vadd.f32 0.0, %v5360
      %v5362 = vpop.f32.mrb[0].mxu0
      %v5363 = vpop.f32.mrb[0].mxu0
      %v5364 = vadd.f32 0.0, %v5363
      %v5365 = vpop.f32.mrb[0].mxu0
      %5366 = vmatprep.mubr.bf16.mxu0 0
      %5367 = vmatmul.mubr.bf16.gmra.mrb[0].mxu0 %v5148
      %v5368 = vpop.f32.mrb[0].mxu0
      %v5369 = vadd.f32 0.0, %v5368
      %v5370 = vpop.f32.mrb[0].mxu0
      %v5371 = vpop.f32.mrb[0].mxu0
      %v5372 = vadd.f32 0.0, %v5371
      %v5373 = vpop.f32.mrb[0].mxu0
      %5374 = vdwg.mxu0
      %v5375 = vadd.f32 %v5068, %v5249
      %v5376 = vadd.f32 %v5069, %v5252
      %v5377 = vadd.f32 %v5070, %v5257
      %v5378 = vadd.f32 %v5071, %v5260
      %v5379 = vadd.f32 %v5072, %v5265
      %v5380 = vadd.f32 %v5073, %v5268
      %v5381 = vadd.f32 %v5074, %v5273
      %v5382 = vadd.f32 %v5075, %v5276
      %v5383 = vadd.f32 %v5076, %v5281
      %v5384 = vadd.f32 %v5077, %v5284
      %v5385 = vadd.f32 %v5078, %v5289
      %v5386 = vadd.f32 %v5079, %v5292
      %v5387 = vadd.f32 %v5080, %v5297
      %v5388 = vadd.f32 %v5081, %v5300
      %v5389 = vadd.f32 %v5082, %v5305
      %v5390 = vadd.f32 %v5083, %v5308
      %v5391 = vadd.f32 %v5084, %v5313
      %v5392 = vadd.f32 %v5085, %v5316
      %v5393 = vadd.f32 %v5086, %v5321
      %v5394 = vadd.f32 %v5087, %v5324
      %v5395 = vadd.f32 %v5088, %v5329
      %v5396 = vadd.f32 %v5089, %v5332
      %v5397 = vadd.f32 %v5090, %v5337
      %v5398 = vadd.f32 %v5091, %v5340
      %v5399 = vadd.f32 %v5092, %v5345
      %v5400 = vadd.f32 %v5093, %v5348
      %v5401 = vadd.f32 %v5094, %v5353
      %v5402 = vadd.f32 %v5095, %v5356
      %v5403 = vadd.f32 %v5096, %v5361
      %v5404 = vadd.f32 %v5097, %v5364
      %v5405 = vadd.f32 %v5098, %v5369
      %v5406 = vadd.f32 %v5099, %v5372
      %v5407 = vld [vmem:[%s5100 + $0x8] sm:$0xff]
      %v5408 = vld [vmem:[%s5100 + $0x10] sm:$0xff]
      %v5409 = vld [vmem:[%s5100 + $0x28] sm:$0xff]
      %v5410 = vld [vmem:[%s5100 + $0x30] sm:$0xff]
      %v5411 = vld [vmem:[%s5100 + $0x48] sm:$0xff]
      %v5412 = vld [vmem:[%s5100 + $0x50] sm:$0xff]
      %v5413 = vld [vmem:[%s5100 + $0x68] sm:$0xff]
      %v5414 = vld [vmem:[%s5100 + $0x70] sm:$0xff]
      %v5415 = vld [vmem:[%s5100 + $0x88] sm:$0xff]
      %v5416 = vld [vmem:[%s5100 + $0x90] sm:$0xff]
      %v5417 = vld [vmem:[%s5100 + $0xa8] sm:$0xff]
      %v5418 = vld [vmem:[%s5100 + $0xb0] sm:$0xff]
      %v5419 = vld [vmem:[%s5100 + $0xc8] sm:$0xff]
      %v5420 = vld [vmem:[%s5100 + $0xd0] sm:$0xff]
      %v5421 = vld [vmem:[%s5100 + $0xe8] sm:$0xff]
      %v5422 = vld [vmem:[%s5100 + $0xf0] sm:$0xff]
      %v5423 = vld [vmem:[%s5100 + $0x108] sm:$0xff]
      %v5424 = vld [vmem:[%s5100 + $0x110] sm:$0xff]
      %v5425 = vld [vmem:[%s5100 + $0x128] sm:$0xff]
      %v5426 = vld [vmem:[%s5100 + $0x130] sm:$0xff]
      %v5427 = vld [vmem:[%s5100 + $0x148] sm:$0xff]
      %v5428 = vld [vmem:[%s5100 + $0x150] sm:$0xff]
      %v5429 = vld [vmem:[%s5100 + $0x168] sm:$0xff]
      %v5430 = vld [vmem:[%s5100 + $0x170] sm:$0xff]
      %v5431 = vld [vmem:[%s5100 + $0x188] sm:$0xff]
      %v5432 = vld [vmem:[%s5100 + $0x190] sm:$0xff]
      %v5433 = vld [vmem:[%s5100 + $0x1a8] sm:$0xff]
      %v5434 = vld [vmem:[%s5100 + $0x1b0] sm:$0xff]
      %v5435 = vld [vmem:[%s5100 + $0x1c8] sm:$0xff]
      %v5436 = vld [vmem:[%s5100 + $0x1d0] sm:$0xff]
      %v5437 = vld [vmem:[%s5100 + $0x1e8] sm:$0xff]
      %v5438 = vld [vmem:[%s5100 + $0x1f0] sm:$0xff]
      %v5439 = vpack.c.bf16 %v5408, %v5407
      %v5440 = vpack.c.bf16 %v5410, %v5409
      %v5441 = vpack.c.bf16 %v5412, %v5411
      %v5442 = vpack.c.bf16 %v5414, %v5413
      %v5443 = vpack.c.bf16 %v5416, %v5415
      %v5444 = vpack.c.bf16 %v5418, %v5417
      %v5445 = vpack.c.bf16 %v5420, %v5419
      %v5446 = vpack.c.bf16 %v5422, %v5421
      %v5447 = vpack.c.bf16 %v5424, %v5423
      %v5448 = vpack.c.bf16 %v5426, %v5425
      %v5449 = vpack.c.bf16 %v5428, %v5427
      %v5450 = vpack.c.bf16 %v5430, %v5429
      %v5451 = vpack.c.bf16 %v5432, %v5431
      %v5452 = vpack.c.bf16 %v5434, %v5433
      %v5453 = vpack.c.bf16 %v5436, %v5435
      %v5454 = vpack.c.bf16 %v5438, %v5437
      %s5455 = scalar_lea.vmem %s4, 448
      %v5456 = vld [vmem:[%s5455] sm:$0xf]
      %v5457 = vld [vmem:[%s5455 + $0x4] sm:$0xf]
      %v5458 = vld [vmem:[%s5455 + $0x8] sm:$0xf]
      %v5459 = vld [vmem:[%s5455 + $0xc] sm:$0xf]
      %v5460 = vld [vmem:[%s5455 + $0x10] sm:$0xf]
      %v5461 = vld [vmem:[%s5455 + $0x14] sm:$0xf]
      %v5462 = vld [vmem:[%s5455 + $0x18] sm:$0xf]
      %v5463 = vld [vmem:[%s5455 + $0x1c] sm:$0xf]
      %v5464 = vld [vmem:[%s5455 + $0x20] sm:$0xf]
      %v5465 = vld [vmem:[%s5455 + $0x24] sm:$0xf]
      %v5466 = vld [vmem:[%s5455 + $0x28] sm:$0xf]
      %v5467 = vld [vmem:[%s5455 + $0x2c] sm:$0xf]
      %v5468 = vld [vmem:[%s5455 + $0x30] sm:$0xf]
      %v5469 = vld [vmem:[%s5455 + $0x34] sm:$0xf]
      %v5470 = vld [vmem:[%s5455 + $0x38] sm:$0xf]
      %v5471 = vld [vmem:[%s5455 + $0x3c] sm:$0xf]
      %v5488 = vunpack.c.l.b16 %v5456
      %v5489 = vunpack.c.l.b16 %v5457
      %v5490 = vunpack.c.l.b16 %v5458
      %v5491 = vunpack.c.l.b16 %v5459
      %v5492 = vunpack.c.l.b16 %v5460
      %v5493 = vunpack.c.l.b16 %v5461
      %v5494 = vunpack.c.l.b16 %v5462
      %v5495 = vunpack.c.l.b16 %v5463
      %v5496 = vunpack.c.l.b16 %v5464
      %v5497 = vunpack.c.l.b16 %v5465
      %v5498 = vunpack.c.l.b16 %v5466
      %v5499 = vunpack.c.l.b16 %v5467
      %v5500 = vunpack.c.l.b16 %v5468
      %v5501 = vunpack.c.l.b16 %v5469
      %v5502 = vunpack.c.l.b16 %v5470
      %v5503 = vunpack.c.l.b16 %v5471
      %v5504 = vpack.c.b16 %v5489, %v5488
      %v5505 = vpack.c.b16 %v5491, %v5490
      %v5506 = vpack.c.b16 %v5493, %v5492
      %v5507 = vpack.c.b16 %v5495, %v5494
      %v5508 = vpack.c.b16 %v5497, %v5496
      %v5509 = vpack.c.b16 %v5499, %v5498
      %v5510 = vpack.c.b16 %v5501, %v5500
      %v5511 = vpack.c.b16 %v5503, %v5502
      %5520 = vmatprep.subr.bf16.mxu0 0
      %5521 = vmatpush1.bf16.msra.mxu0 %v5504
      %5522 = vmatprep.subr.bf16.mxu0 0
      %5523 = vmatpush1.bf16.msra.mxu0 %v5505
      %5524 = vmatprep.subr.bf16.mxu0 0
      %5525 = vmatpush1.bf16.msra.mxu0 %v5506
      %5526 = vmatprep.subr.bf16.mxu0 0
      %5527 = vmatpush1.bf16.msra.mxu0 %v5507
      %5528 = vmatprep.subr.bf16.mxu0 0
      %5529 = vmatpush1.bf16.msra.mxu0 %v5508
      %5530 = vmatprep.subr.bf16.mxu0 0
      %5531 = vmatpush1.bf16.msra.mxu0 %v5509
      %5532 = vmatprep.subr.bf16.mxu0 0
      %5533 = vmatpush1.bf16.msra.mxu0 %v5510
      %5534 = vmatprep.subr.bf16.mxu0 0
      %5535 = vmatpush1.bf16.msra.mxu0 %v5511
      %5536 = vmatprep.subr.bf16.mxu0 0
      %5537 = vmatpush1.bf16.msra.mxu0 0
      %5538 = vmatprep.subr.bf16.mxu0 0
      %5539 = vmatpush1.bf16.msra.mxu0 0
      %5540 = vmatprep.subr.bf16.mxu0 0
      %5541 = vmatpush1.bf16.msra.mxu0 0
      %5542 = vmatprep.subr.bf16.mxu0 0
      %5543 = vmatpush1.bf16.msra.mxu0 0
      %5544 = vmatprep.subr.bf16.mxu0 0
      %5545 = vmatpush1.bf16.msra.mxu0 0
      %5546 = vmatprep.subr.bf16.mxu0 0
      %5547 = vmatpush1.bf16.msra.mxu0 0
      %5548 = vmatprep.subr.bf16.mxu0 0
      %5549 = vmatpush1.bf16.msra.mxu0 0
      %5550 = vmatprep.subr.bf16.mxu0 0
      %5551 = vmatpush1.bf16.msra.mxu0 0
      %5552 = vmatprep.mubr.bf16.mxu0 0
      %5553 = vmatmul.mubr.bf16.gmra.mrb[0].mxu0 %v5439
      %v5554 = vpop.f32.mrb[0].mxu0
      %v5555 = vadd.f32 0.0, %v5554
      %v5556 = vpop.f32.mrb[0].mxu0
      %v5557 = vpop.f32.mrb[0].mxu0
      %v5558 = vadd.f32 0.0, %v5557
      %v5559 = vpop.f32.mrb[0].mxu0
      %5560 = vmatprep.mubr.bf16.mxu0 0
      %5561 = vmatmul.mubr.bf16.gmra.mrb[0].mxu0 %v5440
      %v5562 = vpop.f32.mrb[0].mxu0
      %v5563 = vadd.f32 0.0, %v5562
      %v5564 = vpop.f32.mrb[0].mxu0
      %v5565 = vpop.f32.mrb[0].mxu0
      %v5566 = vadd.f32 0.0, %v5565
      %v5567 = vpop.f32.mrb[0].mxu0
      %5568 = vmatprep.mubr.bf16.mxu0 0
      %5569 = vmatmul.mubr.bf16.gmra.mrb[0].mxu0 %v5441
      %v5570 = vpop.f32.mrb[0].mxu0
      %v5571 = vadd.f32 0.0, %v5570
      %v5572 = vpop.f32.mrb[0].mxu0
      %v5573 = vpop.f32.mrb[0].mxu0
      %v5574 = vadd.f32 0.0, %v5573
      %v5575 = vpop.f32.mrb[0].mxu0
      %5576 = vmatprep.mubr.bf16.mxu0 0
      %5577 = vmatmul.mubr.bf16.gmra.mrb[0].mxu0 %v5442
      %v5578 = vpop.f32.mrb[0].mxu0
      %v5579 = vadd.f32 0.0, %v5578
      %v5580 = vpop.f32.mrb[0].mxu0
      %v5581 = vpop.f32.mrb[0].mxu0
      %v5582 = vadd.f32 0.0, %v5581
      %v5583 = vpop.f32.mrb[0].mxu0
      %5584 = vmatprep.mubr.bf16.mxu0 0
      %5585 = vmatmul.mubr.bf16.gmra.mrb[0].mxu0 %v5443
      %v5586 = vpop.f32.mrb[0].mxu0
      %v5587 = vadd.f32 0.0, %v5586
      %v5588 = vpop.f32.mrb[0].mxu0
      %v5589 = vpop.f32.mrb[0].mxu0
      %v5590 = vadd.f32 0.0, %v5589
      %v5591 = vpop.f32.mrb[0].mxu0
      %5592 = vmatprep.mubr.bf16.mxu0 0
      %5593 = vmatmul.mubr.bf16.gmra.mrb[0].mxu0 %v5444
      %v5594 = vpop.f32.mrb[0].mxu0
      %v5595 = vadd.f32 0.0, %v5594
      %v5596 = vpop.f32.mrb[0].mxu0
      %v5597 = vpop.f32.mrb[0].mxu0
      %v5598 = vadd.f32 0.0, %v5597
      %v5599 = vpop.f32.mrb[0].mxu0
      %5600 = vmatprep.mubr.bf16.mxu0 0
      %5601 = vmatmul.mubr.bf16.gmra.mrb[0].mxu0 %v5445
      %v5602 = vpop.f32.mrb[0].mxu0
      %v5603 = vadd.f32 0.0, %v5602
      %v5604 = vpop.f32.mrb[0].mxu0
      %v5605 = vpop.f32.mrb[0].mxu0
      %v5606 = vadd.f32 0.0, %v5605
      %v5607 = vpop.f32.mrb[0].mxu0
      %5608 = vmatprep.mubr.bf16.mxu0 0
      %5609 = vmatmul.mubr.bf16.gmra.mrb[0].mxu0 %v5446
      %v5610 = vpop.f32.mrb[0].mxu0
      %v5611 = vadd.f32 0.0, %v5610
      %v5612 = vpop.f32.mrb[0].mxu0
      %v5613 = vpop.f32.mrb[0].mxu0
      %v5614 = vadd.f32 0.0, %v5613
      %v5615 = vpop.f32.mrb[0].mxu0
      %5616 = vmatprep.mubr.bf16.mxu0 0
      %5617 = vmatmul.mubr.bf16.gmra.mrb[0].mxu0 %v5447
      %v5618 = vpop.f32.mrb[0].mxu0
      %v5619 = vadd.f32 0.0, %v5618
      %v5620 = vpop.f32.mrb[0].mxu0
      %v5621 = vpop.f32.mrb[0].mxu0
      %v5622 = vadd.f32 0.0, %v5621
      %v5623 = vpop.f32.mrb[0].mxu0
      %5624 = vmatprep.mubr.bf16.mxu0 0
      %5625 = vmatmul.mubr.bf16.gmra.mrb[0].mxu0 %v5448
      %v5626 = vpop.f32.mrb[0].mxu0
      %v5627 = vadd.f32 0.0, %v5626
      %v5628 = vpop.f32.mrb[0].mxu0
      %v5629 = vpop.f32.mrb[0].mxu0
      %v5630 = vadd.f32 0.0, %v5629
      %v5631 = vpop.f32.mrb[0].mxu0
      %5632 = vmatprep.mubr.bf16.mxu0 0
      %5633 = vmatmul.mubr.bf16.gmra.mrb[0].mxu0 %v5449
      %v5634 = vpop.f32.mrb[0].mxu0
      %v5635 = vadd.f32 0.0, %v5634
      %v5636 = vpop.f32.mrb[0].mxu0
      %v5637 = vpop.f32.mrb[0].mxu0
      %v5638 = vadd.f32 0.0, %v5637
      %v5639 = vpop.f32.mrb[0].mxu0
      %5640 = vmatprep.mubr.bf16.mxu0 0
      %5641 = vmatmul.mubr.bf16.gmra.mrb[0].mxu0 %v5450
      %v5642 = vpop.f32.mrb[0].mxu0
      %v5643 = vadd.f32 0.0, %v5642
      %v5644 = vpop.f32.mrb[0].mxu0
      %v5645 = vpop.f32.mrb[0].mxu0
      %v5646 = vadd.f32 0.0, %v5645
      %v5647 = vpop.f32.mrb[0].mxu0
      %5648 = vmatprep.mubr.bf16.mxu0 0
      %5649 = vmatmul.mubr.bf16.gmra.mrb[0].mxu0 %v5451
      %v5650 = vpop.f32.mrb[0].mxu0
      %v5651 = vadd.f32 0.0, %v5650
      %v5652 = vpop.f32.mrb[0].mxu0
      %v5653 = vpop.f32.mrb[0].mxu0
      %v5654 = vadd.f32 0.0, %v5653
      %v5655 = vpop.f32.mrb[0].mxu0
      %5656 = vmatprep.mubr.bf16.mxu0 0
      %5657 = vmatmul.mubr.bf16.gmra.mrb[0].mxu0 %v5452
      %v5658 = vpop.f32.mrb[0].mxu0
      %v5659 = vadd.f32 0.0, %v5658
      %v5660 = vpop.f32.mrb[0].mxu0
      %v5661 = vpop.f32.mrb[0].mxu0
      %v5662 = vadd.f32 0.0, %v5661
      %v5663 = vpop.f32.mrb[0].mxu0
      %5664 = vmatprep.mubr.bf16.mxu0 0
      %5665 = vmatmul.mubr.bf16.gmra.mrb[0].mxu0 %v5453
      %v5666 = vpop.f32.mrb[0].mxu0
      %v5667 = vadd.f32 0.0, %v5666
      %v5668 = vpop.f32.mrb[0].mxu0
      %v5669 = vpop.f32.mrb[0].mxu0
      %v5670 = vadd.f32 0.0, %v5669
      %v5671 = vpop.f32.mrb[0].mxu0
      %5672 = vmatprep.mubr.bf16.mxu0 0
      %5673 = vmatmul.mubr.bf16.gmra.mrb[0].mxu0 %v5454
      %v5674 = vpop.f32.mrb[0].mxu0
      %v5675 = vadd.f32 0.0, %v5674
      %v5676 = vpop.f32.mrb[0].mxu0
      %v5677 = vpop.f32.mrb[0].mxu0
      %v5678 = vadd.f32 0.0, %v5677
      %v5679 = vpop.f32.mrb[0].mxu0
      %5680 = vdwg.mxu0
      %v5681 = vadd.f32 %v5375, %v5555
      %v5682 = vadd.f32 %v5376, %v5558
      %v5683 = vadd.f32 %v5377, %v5563
      %v5684 = vadd.f32 %v5378, %v5566
      %v5685 = vadd.f32 %v5379, %v5571
      %v5686 = vadd.f32 %v5380, %v5574
      %v5687 = vadd.f32 %v5381, %v5579
      %v5688 = vadd.f32 %v5382, %v5582
      %v5689 = vadd.f32 %v5383, %v5587
      %v5690 = vadd.f32 %v5384, %v5590
      %v5691 = vadd.f32 %v5385, %v5595
      %v5692 = vadd.f32 %v5386, %v5598
      %v5693 = vadd.f32 %v5387, %v5603
      %v5694 = vadd.f32 %v5388, %v5606
      %v5695 = vadd.f32 %v5389, %v5611
      %v5696 = vadd.f32 %v5390, %v5614
      %v5697 = vadd.f32 %v5391, %v5619
      %v5698 = vadd.f32 %v5392, %v5622
      %v5699 = vadd.f32 %v5393, %v5627
      %v5700 = vadd.f32 %v5394, %v5630
      %v5701 = vadd.f32 %v5395, %v5635
      %v5702 = vadd.f32 %v5396, %v5638
      %v5703 = vadd.f32 %v5397, %v5643
      %v5704 = vadd.f32 %v5398, %v5646
      %v5705 = vadd.f32 %v5399, %v5651
      %v5706 = vadd.f32 %v5400, %v5654
      %v5707 = vadd.f32 %v5401, %v5659
      %v5708 = vadd.f32 %v5402, %v5662
      %v5709 = vadd.f32 %v5403, %v5667
      %v5710 = vadd.f32 %v5404, %v5670
      %v5711 = vadd.f32 %v5405, %v5675
      %v5712 = vadd.f32 %v5406, %v5678
      %v5713 = vld [vmem:[%s5100 + $0x9] sm:$0xff]
      %v5714 = vld [vmem:[%s5100 + $0x11] sm:$0xff]
      %v5715 = vld [vmem:[%s5100 + $0x29] sm:$0xff]
      %v5716 = vld [vmem:[%s5100 + $0x31] sm:$0xff]
      %v5717 = vld [vmem:[%s5100 + $0x49] sm:$0xff]
      %v5718 = vld [vmem:[%s5100 + $0x51] sm:$0xff]
      %v5719 = vld [vmem:[%s5100 + $0x69] sm:$0xff]
      %v5720 = vld [vmem:[%s5100 + $0x71] sm:$0xff]
      %v5721 = vld [vmem:[%s5100 + $0x89] sm:$0xff]
      %v5722 = vld [vmem:[%s5100 + $0x91] sm:$0xff]
      %v5723 = vld [vmem:[%s5100 + $0xa9] sm:$0xff]
      %v5724 = vld [vmem:[%s5100 + $0xb1] sm:$0xff]
      %v5725 = vld [vmem:[%s5100 + $0xc9] sm:$0xff]
      %v5726 = vld [vmem:[%s5100 + $0xd1] sm:$0xff]
      %v5727 = vld [vmem:[%s5100 + $0xe9] sm:$0xff]
      %v5728 = vld [vmem:[%s5100 + $0xf1] sm:$0xff]
      %v5729 = vld [vmem:[%s5100 + $0x109] sm:$0xff]
      %v5730 = vld [vmem:[%s5100 + $0x111] sm:$0xff]
      %v5731 = vld [vmem:[%s5100 + $0x129] sm:$0xff]
      %v5732 = vld [vmem:[%s5100 + $0x131] sm:$0xff]
      %v5733 = vld [vmem:[%s5100 + $0x149] sm:$0xff]
      %v5734 = vld [vmem:[%s5100 + $0x151] sm:$0xff]
      %v5735 = vld [vmem:[%s5100 + $0x169] sm:$0xff]
      %v5736 = vld [vmem:[%s5100 + $0x171] sm:$0xff]
      %v5737 = vld [vmem:[%s5100 + $0x189] sm:$0xff]
      %v5738 = vld [vmem:[%s5100 + $0x191] sm:$0xff]
      %v5739 = vld [vmem:[%s5100 + $0x1a9] sm:$0xff]
      %v5740 = vld [vmem:[%s5100 + $0x1b1] sm:$0xff]
      %v5741 = vld [vmem:[%s5100 + $0x1c9] sm:$0xff]
      %v5742 = vld [vmem:[%s5100 + $0x1d1] sm:$0xff]
      %v5743 = vld [vmem:[%s5100 + $0x1e9] sm:$0xff]
      %v5744 = vld [vmem:[%s5100 + $0x1f1] sm:$0xff]
      %v5745 = vpack.c.bf16 %v5714, %v5713
      %v5746 = vpack.c.bf16 %v5716, %v5715
      %v5747 = vpack.c.bf16 %v5718, %v5717
      %v5748 = vpack.c.bf16 %v5720, %v5719
      %v5749 = vpack.c.bf16 %v5722, %v5721
      %v5750 = vpack.c.bf16 %v5724, %v5723
      %v5751 = vpack.c.bf16 %v5726, %v5725
      %v5752 = vpack.c.bf16 %v5728, %v5727
      %v5753 = vpack.c.bf16 %v5730, %v5729
      %v5754 = vpack.c.bf16 %v5732, %v5731
      %v5755 = vpack.c.bf16 %v5734, %v5733
      %v5756 = vpack.c.bf16 %v5736, %v5735
      %v5757 = vpack.c.bf16 %v5738, %v5737
      %v5758 = vpack.c.bf16 %v5740, %v5739
      %v5759 = vpack.c.bf16 %v5742, %v5741
      %v5760 = vpack.c.bf16 %v5744, %v5743
      %s5761 = scalar_lea.vmem %s4, 512
      %v5762 = vld [vmem:[%s5761] sm:$0xf]
      %v5763 = vld [vmem:[%s5761 + $0x4] sm:$0xf]
      %v5764 = vld [vmem:[%s5761 + $0x8] sm:$0xf]
      %v5765 = vld [vmem:[%s5761 + $0xc] sm:$0xf]
      %v5766 = vld [vmem:[%s5761 + $0x10] sm:$0xf]
      %v5767 = vld [vmem:[%s5761 + $0x14] sm:$0xf]
      %v5768 = vld [vmem:[%s5761 + $0x18] sm:$0xf]
      %v5769 = vld [vmem:[%s5761 + $0x1c] sm:$0xf]
      %v5770 = vld [vmem:[%s5761 + $0x20] sm:$0xf]
      %v5771 = vld [vmem:[%s5761 + $0x24] sm:$0xf]
      %v5772 = vld [vmem:[%s5761 + $0x28] sm:$0xf]
      %v5773 = vld [vmem:[%s5761 + $0x2c] sm:$0xf]
      %v5774 = vld [vmem:[%s5761 + $0x30] sm:$0xf]
      %v5775 = vld [vmem:[%s5761 + $0x34] sm:$0xf]
      %v5776 = vld [vmem:[%s5761 + $0x38] sm:$0xf]
      %v5777 = vld [vmem:[%s5761 + $0x3c] sm:$0xf]
      %v5794 = vunpack.c.l.b16 %v5762
      %v5795 = vunpack.c.l.b16 %v5763
      %v5796 = vunpack.c.l.b16 %v5764
      %v5797 = vunpack.c.l.b16 %v5765
      %v5798 = vunpack.c.l.b16 %v5766
      %v5799 = vunpack.c.l.b16 %v5767
      %v5800 = vunpack.c.l.b16 %v5768
      %v5801 = vunpack.c.l.b16 %v5769
      %v5802 = vunpack.c.l.b16 %v5770
      %v5803 = vunpack.c.l.b16 %v5771
      %v5804 = vunpack.c.l.b16 %v5772
      %v5805 = vunpack.c.l.b16 %v5773
      %v5806 = vunpack.c.l.b16 %v5774
      %v5807 = vunpack.c.l.b16 %v5775
      %v5808 = vunpack.c.l.b16 %v5776
      %v5809 = vunpack.c.l.b16 %v5777
      %v5810 = vpack.c.b16 %v5795, %v5794
      %v5811 = vpack.c.b16 %v5797, %v5796
      %v5812 = vpack.c.b16 %v5799, %v5798
      %v5813 = vpack.c.b16 %v5801, %v5800
      %v5814 = vpack.c.b16 %v5803, %v5802
      %v5815 = vpack.c.b16 %v5805, %v5804
      %v5816 = vpack.c.b16 %v5807, %v5806
      %v5817 = vpack.c.b16 %v5809, %v5808
      %5826 = vmatprep.subr.bf16.mxu0 0
      %5827 = vmatpush1.bf16.msra.mxu0 %v5810
      %5828 = vmatprep.subr.bf16.mxu0 0
      %5829 = vmatpush1.bf16.msra.mxu0 %v5811
      %5830 = vmatprep.subr.bf16.mxu0 0
      %5831 = vmatpush1.bf16.msra.mxu0 %v5812
      %5832 = vmatprep.subr.bf16.mxu0 0
      %5833 = vmatpush1.bf16.msra.mxu0 %v5813
      %5834 = vmatprep.subr.bf16.mxu0 0
      %5835 = vmatpush1.bf16.msra.mxu0 %v5814
      %5836 = vmatprep.subr.bf16.mxu0 0
      %5837 = vmatpush1.bf16.msra.mxu0 %v5815
      %5838 = vmatprep.subr.bf16.mxu0 0
      %5839 = vmatpush1.bf16.msra.mxu0 %v5816
      %5840 = vmatprep.subr.bf16.mxu0 0
      %5841 = vmatpush1.bf16.msra.mxu0 %v5817
      %5842 = vmatprep.subr.bf16.mxu0 0
      %5843 = vmatpush1.bf16.msra.mxu0 0
      %5844 = vmatprep.subr.bf16.mxu0 0
      %5845 = vmatpush1.bf16.msra.mxu0 0
      %5846 = vmatprep.subr.bf16.mxu0 0
      %5847 = vmatpush1.bf16.msra.mxu0 0
      %5848 = vmatprep.subr.bf16.mxu0 0
      %5849 = vmatpush1.bf16.msra.mxu0 0
      %5850 = vmatprep.subr.bf16.mxu0 0
      %5851 = vmatpush1.bf16.msra.mxu0 0
      %5852 = vmatprep.subr.bf16.mxu0 0
      %5853 = vmatpush1.bf16.msra.mxu0 0
      %5854 = vmatprep.subr.bf16.mxu0 0
      %5855 = vmatpush1.bf16.msra.mxu0 0
      %5856 = vmatprep.subr.bf16.mxu0 0
      %5857 = vmatpush1.bf16.msra.mxu0 0
      %5858 = vmatprep.mubr.bf16.mxu0 0
      %5859 = vmatmul.mubr.bf16.gmra.mrb[0].mxu0 %v5745
      %v5860 = vpop.f32.mrb[0].mxu0
      %v5861 = vadd.f32 0.0, %v5860
      %v5862 = vpop.f32.mrb[0].mxu0
      %v5863 = vpop.f32.mrb[0].mxu0
      %v5864 = vadd.f32 0.0, %v5863
      %v5865 = vpop.f32.mrb[0].mxu0
      %5866 = vmatprep.mubr.bf16.mxu0 0
      %5867 = vmatmul.mubr.bf16.gmra.mrb[0].mxu0 %v5746
      %v5868 = vpop.f32.mrb[0].mxu0
      %v5869 = vadd.f32 0.0, %v5868
      %v5870 = vpop.f32.mrb[0].mxu0
      %v5871 = vpop.f32.mrb[0].mxu0
      %v5872 = vadd.f32 0.0, %v5871
      %v5873 = vpop.f32.mrb[0].mxu0
      %5874 = vmatprep.mubr.bf16.mxu0 0
      %5875 = vmatmul.mubr.bf16.gmra.mrb[0].mxu0 %v5747
      %v5876 = vpop.f32.mrb[0].mxu0
      %v5877 = vadd.f32 0.0, %v5876
      %v5878 = vpop.f32.mrb[0].mxu0
      %v5879 = vpop.f32.mrb[0].mxu0
      %v5880 = vadd.f32 0.0, %v5879
      %v5881 = vpop.f32.mrb[0].mxu0
      %5882 = vmatprep.mubr.bf16.mxu0 0
      %5883 = vmatmul.mubr.bf16.gmra.mrb[0].mxu0 %v5748
      %v5884 = vpop.f32.mrb[0].mxu0
      %v5885 = vadd.f32 0.0, %v5884
      %v5886 = vpop.f32.mrb[0].mxu0
      %v5887 = vpop.f32.mrb[0].mxu0
      %v5888 = vadd.f32 0.0, %v5887
      %v5889 = vpop.f32.mrb[0].mxu0
      %5890 = vmatprep.mubr.bf16.mxu0 0
      %5891 = vmatmul.mubr.bf16.gmra.mrb[0].mxu0 %v5749
      %v5892 = vpop.f32.mrb[0].mxu0
      %v5893 = vadd.f32 0.0, %v5892
      %v5894 = vpop.f32.mrb[0].mxu0
      %v5895 = vpop.f32.mrb[0].mxu0
      %v5896 = vadd.f32 0.0, %v5895
      %v5897 = vpop.f32.mrb[0].mxu0
      %5898 = vmatprep.mubr.bf16.mxu0 0
      %5899 = vmatmul.mubr.bf16.gmra.mrb[0].mxu0 %v5750
      %v5900 = vpop.f32.mrb[0].mxu0
      %v5901 = vadd.f32 0.0, %v5900
      %v5902 = vpop.f32.mrb[0].mxu0
      %v5903 = vpop.f32.mrb[0].mxu0
      %v5904 = vadd.f32 0.0, %v5903
      %v5905 = vpop.f32.mrb[0].mxu0
      %5906 = vmatprep.mubr.bf16.mxu0 0
      %5907 = vmatmul.mubr.bf16.gmra.mrb[0].mxu0 %v5751
      %v5908 = vpop.f32.mrb[0].mxu0
      %v5909 = vadd.f32 0.0, %v5908
      %v5910 = vpop.f32.mrb[0].mxu0
      %v5911 = vpop.f32.mrb[0].mxu0
      %v5912 = vadd.f32 0.0, %v5911
      %v5913 = vpop.f32.mrb[0].mxu0
      %5914 = vmatprep.mubr.bf16.mxu0 0
      %5915 = vmatmul.mubr.bf16.gmra.mrb[0].mxu0 %v5752
      %v5916 = vpop.f32.mrb[0].mxu0
      %v5917 = vadd.f32 0.0, %v5916
      %v5918 = vpop.f32.mrb[0].mxu0
      %v5919 = vpop.f32.mrb[0].mxu0
      %v5920 = vadd.f32 0.0, %v5919
      %v5921 = vpop.f32.mrb[0].mxu0
      %5922 = vmatprep.mubr.bf16.mxu0 0
      %5923 = vmatmul.mubr.bf16.gmra.mrb[0].mxu0 %v5753
      %v5924 = vpop.f32.mrb[0].mxu0
      %v5925 = vadd.f32 0.0, %v5924
      %v5926 = vpop.f32.mrb[0].mxu0
      %v5927 = vpop.f32.mrb[0].mxu0
      %v5928 = vadd.f32 0.0, %v5927
      %v5929 = vpop.f32.mrb[0].mxu0
      %5930 = vmatprep.mubr.bf16.mxu0 0
      %5931 = vmatmul.mubr.bf16.gmra.mrb[0].mxu0 %v5754
      %v5932 = vpop.f32.mrb[0].mxu0
      %v5933 = vadd.f32 0.0, %v5932
      %v5934 = vpop.f32.mrb[0].mxu0
      %v5935 = vpop.f32.mrb[0].mxu0
      %v5936 = vadd.f32 0.0, %v5935
      %v5937 = vpop.f32.mrb[0].mxu0
      %5938 = vmatprep.mubr.bf16.mxu0 0
      %5939 = vmatmul.mubr.bf16.gmra.mrb[0].mxu0 %v5755
      %v5940 = vpop.f32.mrb[0].mxu0
      %v5941 = vadd.f32 0.0, %v5940
      %v5942 = vpop.f32.mrb[0].mxu0
      %v5943 = vpop.f32.mrb[0].mxu0
      %v5944 = vadd.f32 0.0, %v5943
      %v5945 = vpop.f32.mrb[0].mxu0
      %5946 = vmatprep.mubr.bf16.mxu0 0
      %5947 = vmatmul.mubr.bf16.gmra.mrb[0].mxu0 %v5756
      %v5948 = vpop.f32.mrb[0].mxu0
      %v5949 = vadd.f32 0.0, %v5948
      %v5950 = vpop.f32.mrb[0].mxu0
      %v5951 = vpop.f32.mrb[0].mxu0
      %v5952 = vadd.f32 0.0, %v5951
      %v5953 = vpop.f32.mrb[0].mxu0
      %5954 = vmatprep.mubr.bf16.mxu0 0
      %5955 = vmatmul.mubr.bf16.gmra.mrb[0].mxu0 %v5757
      %v5956 = vpop.f32.mrb[0].mxu0
      %v5957 = vadd.f32 0.0, %v5956
      %v5958 = vpop.f32.mrb[0].mxu0
      %v5959 = vpop.f32.mrb[0].mxu0
      %v5960 = vadd.f32 0.0, %v5959
      %v5961 = vpop.f32.mrb[0].mxu0
      %5962 = vmatprep.mubr.bf16.mxu0 0
      %5963 = vmatmul.mubr.bf16.gmra.mrb[0].mxu0 %v5758
      %v5964 = vpop.f32.mrb[0].mxu0
      %v5965 = vadd.f32 0.0, %v5964
      %v5966 = vpop.f32.mrb[0].mxu0
      %v5967 = vpop.f32.mrb[0].mxu0
      %v5968 = vadd.f32 0.0, %v5967
      %v5969 = vpop.f32.mrb[0].mxu0
      %5970 = vmatprep.mubr.bf16.mxu0 0
      %5971 = vmatmul.mubr.bf16.gmra.mrb[0].mxu0 %v5759
      %v5972 = vpop.f32.mrb[0].mxu0
      %v5973 = vadd.f32 0.0, %v5972
      %v5974 = vpop.f32.mrb[0].mxu0
      %v5975 = vpop.f32.mrb[0].mxu0
      %v5976 = vadd.f32 0.0, %v5975
      %v5977 = vpop.f32.mrb[0].mxu0
      %5978 = vmatprep.mubr.bf16.mxu0 0
      %5979 = vmatmul.mubr.bf16.gmra.mrb[0].mxu0 %v5760
      %v5980 = vpop.f32.mrb[0].mxu0
      %v5981 = vadd.f32 0.0, %v5980
      %v5982 = vpop.f32.mrb[0].mxu0
      %v5983 = vpop.f32.mrb[0].mxu0
      %v5984 = vadd.f32 0.0, %v5983
      %v5985 = vpop.f32.mrb[0].mxu0
      %5986 = vdwg.mxu0
      %v5987 = vadd.f32 %v5681, %v5861
      %v5988 = vadd.f32 %v5682, %v5864
      %v5989 = vadd.f32 %v5683, %v5869
      %v5990 = vadd.f32 %v5684, %v5872
      %v5991 = vadd.f32 %v5685, %v5877
      %v5992 = vadd.f32 %v5686, %v5880
      %v5993 = vadd.f32 %v5687, %v5885
      %v5994 = vadd.f32 %v5688, %v5888
      %v5995 = vadd.f32 %v5689, %v5893
      %v5996 = vadd.f32 %v5690, %v5896
      %v5997 = vadd.f32 %v5691, %v5901
      %v5998 = vadd.f32 %v5692, %v5904
      %v5999 = vadd.f32 %v5693, %v5909
      %v6000 = vadd.f32 %v5694, %v5912
      %v6001 = vadd.f32 %v5695, %v5917
      %v6002 = vadd.f32 %v5696, %v5920
      %v6003 = vadd.f32 %v5697, %v5925
      %v6004 = vadd.f32 %v5698, %v5928
      %v6005 = vadd.f32 %v5699, %v5933
      %v6006 = vadd.f32 %v5700, %v5936
      %v6007 = vadd.f32 %v5701, %v5941
      %v6008 = vadd.f32 %v5702, %v5944
      %v6009 = vadd.f32 %v5703, %v5949
      %v6010 = vadd.f32 %v5704, %v5952
      %v6011 = vadd.f32 %v5705, %v5957
      %v6012 = vadd.f32 %v5706, %v5960
      %v6013 = vadd.f32 %v5707, %v5965
      %v6014 = vadd.f32 %v5708, %v5968
      %v6015 = vadd.f32 %v5709, %v5973
      %v6016 = vadd.f32 %v5710, %v5976
      %v6017 = vadd.f32 %v5711, %v5981
      %v6018 = vadd.f32 %v5712, %v5984
      %v6019 = vld [vmem:[%s5] sm:$0x1]
      %v6021 = vlaneseq
      %v6022 = vshrl.u32 %v6021, 7
      %v6023 = vsub.s32 0, %v6022
      %v6024 = vrot.slane %v6019, %v6023
      %v6026 = vmul.f32 %v5987, %v6024
      %v6027 = vmul.f32 %v5988, %v6024
      %v6028 = vmul.f32 %v5989, %v6024
      %v6029 = vmul.f32 %v5990, %v6024
      %v6030 = vmul.f32 %v5991, %v6024
      %v6031 = vmul.f32 %v5992, %v6024
      %v6032 = vmul.f32 %v5993, %v6024
      %v6033 = vmul.f32 %v5994, %v6024
      %v6034 = vmul.f32 %v5995, %v6024
      %v6035 = vmul.f32 %v5996, %v6024
      %v6036 = vmul.f32 %v5997, %v6024
      %v6037 = vmul.f32 %v5998, %v6024
      %v6038 = vmul.f32 %v5999, %v6024
      %v6039 = vmul.f32 %v6000, %v6024
      %v6040 = vmul.f32 %v6001, %v6024
      %v6041 = vmul.f32 %v6002, %v6024
      %v6042 = vmul.f32 %v6003, %v6024
      %v6043 = vmul.f32 %v6004, %v6024
      %v6044 = vmul.f32 %v6005, %v6024
      %v6045 = vmul.f32 %v6006, %v6024
      %v6046 = vmul.f32 %v6007, %v6024
      %v6047 = vmul.f32 %v6008, %v6024
      %v6048 = vmul.f32 %v6009, %v6024
      %v6049 = vmul.f32 %v6010, %v6024
      %v6050 = vmul.f32 %v6011, %v6024
      %v6051 = vmul.f32 %v6012, %v6024
      %v6052 = vmul.f32 %v6013, %v6024
      %v6053 = vmul.f32 %v6014, %v6024
      %v6054 = vmul.f32 %v6015, %v6024
      %v6055 = vmul.f32 %v6016, %v6024
      %v6056 = vmul.f32 %v6017, %v6024
      %v6057 = vmul.f32 %v6018, %v6024
      %v6058 = vld [vmem:[%s6] sm:$0x1]
      %v6060 = vlaneseq
      %v6061 = vshrl.u32 %v6060, 7
      %v6062 = vsub.s32 0, %v6061
      %v6063 = vrot.slane %v6058, %v6062
      %v6065 = vadd.f32 %v6026, %v6063
      %v6066 = vadd.f32 %v6027, %v6063
      %v6067 = vadd.f32 %v6028, %v6063
      %v6068 = vadd.f32 %v6029, %v6063
      %v6069 = vadd.f32 %v6030, %v6063
      %v6070 = vadd.f32 %v6031, %v6063
      %v6071 = vadd.f32 %v6032, %v6063
      %v6072 = vadd.f32 %v6033, %v6063
      %v6073 = vadd.f32 %v6034, %v6063
      %v6074 = vadd.f32 %v6035, %v6063
      %v6075 = vadd.f32 %v6036, %v6063
      %v6076 = vadd.f32 %v6037, %v6063
      %v6077 = vadd.f32 %v6038, %v6063
      %v6078 = vadd.f32 %v6039, %v6063
      %v6079 = vadd.f32 %v6040, %v6063
      %v6080 = vadd.f32 %v6041, %v6063
      %v6081 = vadd.f32 %v6042, %v6063
      %v6082 = vadd.f32 %v6043, %v6063
      %v6083 = vadd.f32 %v6044, %v6063
      %v6084 = vadd.f32 %v6045, %v6063
      %v6085 = vadd.f32 %v6046, %v6063
      %v6086 = vadd.f32 %v6047, %v6063
      %v6087 = vadd.f32 %v6048, %v6063
      %v6088 = vadd.f32 %v6049, %v6063
      %v6089 = vadd.f32 %v6050, %v6063
      %v6090 = vadd.f32 %v6051, %v6063
      %v6091 = vadd.f32 %v6052, %v6063
      %v6092 = vadd.f32 %v6053, %v6063
      %v6093 = vadd.f32 %v6054, %v6063
      %v6094 = vadd.f32 %v6055, %v6063
      %v6095 = vadd.f32 %v6056, %v6063
      %v6096 = vadd.f32 %v6057, %v6063
      %v6097 = vld [vmem:[%s7] sm:$0x3]
      %v6130 = vunpack.c.l.b16 %v361
      %v6131 = vunpack.c.l.b16 %v362
      %v6132 = vunpack.c.l.b16 %v363
      %v6133 = vunpack.c.l.b16 %v364
      %v6134 = vunpack.c.l.b16 %v365
      %v6135 = vunpack.c.l.b16 %v366
      %v6136 = vunpack.c.l.b16 %v367
      %v6137 = vunpack.c.l.b16 %v368
      %v6138 = vunpack.c.l.b16 %v369
      %v6139 = vunpack.c.l.b16 %v370
      %v6140 = vunpack.c.l.b16 %v371
      %v6141 = vunpack.c.l.b16 %v372
      %v6142 = vunpack.c.l.b16 %v373
      %v6143 = vunpack.c.l.b16 %v374
      %v6144 = vunpack.c.l.b16 %v375
      %v6145 = vunpack.c.l.b16 %v376
      %v6146 = vunpack.c.l.b16 %v377
      %v6147 = vunpack.c.l.b16 %v378
      %v6148 = vunpack.c.l.b16 %v379
      %v6149 = vunpack.c.l.b16 %v380
      %v6150 = vunpack.c.l.b16 %v381
      %v6151 = vunpack.c.l.b16 %v382
      %v6152 = vunpack.c.l.b16 %v383
      %v6153 = vunpack.c.l.b16 %v384
      %v6154 = vunpack.c.l.b16 %v385
      %v6155 = vunpack.c.l.b16 %v386
      %v6156 = vunpack.c.l.b16 %v387
      %v6157 = vunpack.c.l.b16 %v388
      %v6158 = vunpack.c.l.b16 %v389
      %v6159 = vunpack.c.l.b16 %v390
      %v6160 = vunpack.c.l.b16 %v391
      %v6161 = vunpack.c.l.b16 %v392
      %v6162 = vpack.c.b16 %v6131, %v6130
      %v6163 = vpack.c.b16 %v6133, %v6132
      %v6164 = vpack.c.b16 %v6135, %v6134
      %v6165 = vpack.c.b16 %v6137, %v6136
      %v6166 = vpack.c.b16 %v6139, %v6138
      %v6167 = vpack.c.b16 %v6141, %v6140
      %v6168 = vpack.c.b16 %v6143, %v6142
      %v6169 = vpack.c.b16 %v6145, %v6144
      %v6170 = vpack.c.b16 %v6147, %v6146
      %v6171 = vpack.c.b16 %v6149, %v6148
      %v6172 = vpack.c.b16 %v6151, %v6150
      %v6173 = vpack.c.b16 %v6153, %v6152
      %v6174 = vpack.c.b16 %v6155, %v6154
      %v6175 = vpack.c.b16 %v6157, %v6156
      %v6176 = vpack.c.b16 %v6159, %v6158
      %v6177 = vpack.c.b16 %v6161, %v6160
      %v6179 = vsel %vm393, %v6162, 0
      %v6182 = vsel %vm393, %v6163, 0
      %v6185 = vsel %vm393, %v6164, 0
      %v6188 = vsel %vm393, %v6165, 0
      %v6191 = vsel %vm393, %v6166, 0
      %v6194 = vsel %vm393, %v6167, 0
      %v6197 = vsel %vm393, %v6168, 0
      %v6200 = vsel %vm393, %v6169, 0
      %v6203 = vsel %vm393, %v6170, 0
      %v6206 = vsel %vm393, %v6171, 0
      %v6209 = vsel %vm393, %v6172, 0
      %v6212 = vsel %vm393, %v6173, 0
      %v6215 = vsel %vm393, %v6174, 0
      %v6218 = vsel %vm393, %v6175, 0
      %v6221 = vsel %vm393, %v6176, 0
      %v6224 = vsel %vm393, %v6177, 0
      %v6227 = vsel %vm678, %v6097, 0
      %6229 = vmatprep.subr.bf16.mxu0 0
      %6230 = vmatpush1.bf16.msra.mxu0 %v6227
      %6231 = vmatprep.subr.bf16.mxu0 0
      %6232 = vmatpush1.bf16.msra.mxu0 0
      %6233 = vmatprep.subr.bf16.mxu0 0
      %6234 = vmatpush1.bf16.msra.mxu0 0
      %6235 = vmatprep.subr.bf16.mxu0 0
      %6236 = vmatpush1.bf16.msra.mxu0 0
      %6237 = vmatprep.subr.bf16.mxu0 0
      %6238 = vmatpush1.bf16.msra.mxu0 0
      %6239 = vmatprep.subr.bf16.mxu0 0
      %6240 = vmatpush1.bf16.msra.mxu0 0
      %6241 = vmatprep.subr.bf16.mxu0 0
      %6242 = vmatpush1.bf16.msra.mxu0 0
      %6243 = vmatprep.subr.bf16.mxu0 0
      %6244 = vmatpush1.bf16.msra.mxu0 0
      %6245 = vmatprep.subr.bf16.mxu0 0
      %6246 = vmatpush1.bf16.msra.mxu0 0
      %6247 = vmatprep.subr.bf16.mxu0 0
      %6248 = vmatpush1.bf16.msra.mxu0 0
      %6249 = vmatprep.subr.bf16.mxu0 0
      %6250 = vmatpush1.bf16.msra.mxu0 0
      %6251 = vmatprep.subr.bf16.mxu0 0
      %6252 = vmatpush1.bf16.msra.mxu0 0
      %6253 = vmatprep.subr.bf16.mxu0 0
      %6254 = vmatpush1.bf16.msra.mxu0 0
      %6255 = vmatprep.subr.bf16.mxu0 0
      %6256 = vmatpush1.bf16.msra.mxu0 0
      %6257 = vmatprep.subr.bf16.mxu0 0
      %6258 = vmatpush1.bf16.msra.mxu0 0
      %6259 = vmatprep.subr.bf16.mxu0 0
      %6260 = vmatpush1.bf16.msra.mxu0 0
      %6261 = vmatprep.mubr.bf16.mxu0 0
      %6262 = vmatmul.mubr.bf16.gmra.mrb[0].mxu0 %v6179
      %v6263 = vpop.f32.mrb[0].mxu0
      %v6264 = vadd.f32 0.0, %v6263
      %v6265 = vpop.f32.mrb[0].mxu0
      %v6266 = vpop.f32.mrb[0].mxu0
      %v6267 = vadd.f32 0.0, %v6266
      %v6268 = vpop.f32.mrb[0].mxu0
      %6269 = vmatprep.mubr.bf16.mxu0 0
      %6270 = vmatmul.mubr.bf16.gmra.mrb[0].mxu0 %v6182
      %v6271 = vpop.f32.mrb[0].mxu0
      %v6272 = vadd.f32 0.0, %v6271
      %v6273 = vpop.f32.mrb[0].mxu0
      %v6274 = vpop.f32.mrb[0].mxu0
      %v6275 = vadd.f32 0.0, %v6274
      %v6276 = vpop.f32.mrb[0].mxu0
      %6277 = vmatprep.mubr.bf16.mxu0 0
      %6278 = vmatmul.mubr.bf16.gmra.mrb[0].mxu0 %v6185
      %v6279 = vpop.f32.mrb[0].mxu0
      %v6280 = vadd.f32 0.0, %v6279
      %v6281 = vpop.f32.mrb[0].mxu0
      %v6282 = vpop.f32.mrb[0].mxu0
      %v6283 = vadd.f32 0.0, %v6282
      %v6284 = vpop.f32.mrb[0].mxu0
      %6285 = vmatprep.mubr.bf16.mxu0 0
      %6286 = vmatmul.mubr.bf16.gmra.mrb[0].mxu0 %v6188
      %v6287 = vpop.f32.mrb[0].mxu0
      %v6288 = vadd.f32 0.0, %v6287
      %v6289 = vpop.f32.mrb[0].mxu0
      %v6290 = vpop.f32.mrb[0].mxu0
      %v6291 = vadd.f32 0.0, %v6290
      %v6292 = vpop.f32.mrb[0].mxu0
      %6293 = vmatprep.mubr.bf16.mxu0 0
      %6294 = vmatmul.mubr.bf16.gmra.mrb[0].mxu0 %v6191
      %v6295 = vpop.f32.mrb[0].mxu0
      %v6296 = vadd.f32 0.0, %v6295
      %v6297 = vpop.f32.mrb[0].mxu0
      %v6298 = vpop.f32.mrb[0].mxu0
      %v6299 = vadd.f32 0.0, %v6298
      %v6300 = vpop.f32.mrb[0].mxu0
      %6301 = vmatprep.mubr.bf16.mxu0 0
      %6302 = vmatmul.mubr.bf16.gmra.mrb[0].mxu0 %v6194
      %v6303 = vpop.f32.mrb[0].mxu0
      %v6304 = vadd.f32 0.0, %v6303
      %v6305 = vpop.f32.mrb[0].mxu0
      %v6306 = vpop.f32.mrb[0].mxu0
      %v6307 = vadd.f32 0.0, %v6306
      %v6308 = vpop.f32.mrb[0].mxu0
      %6309 = vmatprep.mubr.bf16.mxu0 0
      %6310 = vmatmul.mubr.bf16.gmra.mrb[0].mxu0 %v6197
      %v6311 = vpop.f32.mrb[0].mxu0
      %v6312 = vadd.f32 0.0, %v6311
      %v6313 = vpop.f32.mrb[0].mxu0
      %v6314 = vpop.f32.mrb[0].mxu0
      %v6315 = vadd.f32 0.0, %v6314
      %v6316 = vpop.f32.mrb[0].mxu0
      %6317 = vmatprep.mubr.bf16.mxu0 0
      %6318 = vmatmul.mubr.bf16.gmra.mrb[0].mxu0 %v6200
      %v6319 = vpop.f32.mrb[0].mxu0
      %v6320 = vadd.f32 0.0, %v6319
      %v6321 = vpop.f32.mrb[0].mxu0
      %v6322 = vpop.f32.mrb[0].mxu0
      %v6323 = vadd.f32 0.0, %v6322
      %v6324 = vpop.f32.mrb[0].mxu0
      %6325 = vmatprep.mubr.bf16.mxu0 0
      %6326 = vmatmul.mubr.bf16.gmra.mrb[0].mxu0 %v6203
      %v6327 = vpop.f32.mrb[0].mxu0
      %v6328 = vadd.f32 0.0, %v6327
      %v6329 = vpop.f32.mrb[0].mxu0
      %v6330 = vpop.f32.mrb[0].mxu0
      %v6331 = vadd.f32 0.0, %v6330
      %v6332 = vpop.f32.mrb[0].mxu0
      %6333 = vmatprep.mubr.bf16.mxu0 0
      %6334 = vmatmul.mubr.bf16.gmra.mrb[0].mxu0 %v6206
      %v6335 = vpop.f32.mrb[0].mxu0
      %v6336 = vadd.f32 0.0, %v6335
      %v6337 = vpop.f32.mrb[0].mxu0
      %v6338 = vpop.f32.mrb[0].mxu0
      %v6339 = vadd.f32 0.0, %v6338
      %v6340 = vpop.f32.mrb[0].mxu0
      %6341 = vmatprep.mubr.bf16.mxu0 0
      %6342 = vmatmul.mubr.bf16.gmra.mrb[0].mxu0 %v6209
      %v6343 = vpop.f32.mrb[0].mxu0
      %v6344 = vadd.f32 0.0, %v6343
      %v6345 = vpop.f32.mrb[0].mxu0
      %v6346 = vpop.f32.mrb[0].mxu0
      %v6347 = vadd.f32 0.0, %v6346
      %v6348 = vpop.f32.mrb[0].mxu0
      %6349 = vmatprep.mubr.bf16.mxu0 0
      %6350 = vmatmul.mubr.bf16.gmra.mrb[0].mxu0 %v6212
      %v6351 = vpop.f32.mrb[0].mxu0
      %v6352 = vadd.f32 0.0, %v6351
      %v6353 = vpop.f32.mrb[0].mxu0
      %v6354 = vpop.f32.mrb[0].mxu0
      %v6355 = vadd.f32 0.0, %v6354
      %v6356 = vpop.f32.mrb[0].mxu0
      %6357 = vmatprep.mubr.bf16.mxu0 0
      %6358 = vmatmul.mubr.bf16.gmra.mrb[0].mxu0 %v6215
      %v6359 = vpop.f32.mrb[0].mxu0
      %v6360 = vadd.f32 0.0, %v6359
      %v6361 = vpop.f32.mrb[0].mxu0
      %v6362 = vpop.f32.mrb[0].mxu0
      %v6363 = vadd.f32 0.0, %v6362
      %v6364 = vpop.f32.mrb[0].mxu0
      %6365 = vmatprep.mubr.bf16.mxu0 0
      %6366 = vmatmul.mubr.bf16.gmra.mrb[0].mxu0 %v6218
      %v6367 = vpop.f32.mrb[0].mxu0
      %v6368 = vadd.f32 0.0, %v6367
      %v6369 = vpop.f32.mrb[0].mxu0
      %v6370 = vpop.f32.mrb[0].mxu0
      %v6371 = vadd.f32 0.0, %v6370
      %v6372 = vpop.f32.mrb[0].mxu0
      %6373 = vmatprep.mubr.bf16.mxu0 0
      %6374 = vmatmul.mubr.bf16.gmra.mrb[0].mxu0 %v6221
      %v6375 = vpop.f32.mrb[0].mxu0
      %v6376 = vadd.f32 0.0, %v6375
      %v6377 = vpop.f32.mrb[0].mxu0
      %v6378 = vpop.f32.mrb[0].mxu0
      %v6379 = vadd.f32 0.0, %v6378
      %v6380 = vpop.f32.mrb[0].mxu0
      %6381 = vmatprep.mubr.bf16.mxu0 0
      %6382 = vmatmul.mubr.bf16.gmra.mrb[0].mxu0 %v6224
      %v6383 = vpop.f32.mrb[0].mxu0
      %v6384 = vadd.f32 0.0, %v6383
      %v6385 = vpop.f32.mrb[0].mxu0
      %v6386 = vpop.f32.mrb[0].mxu0
      %v6387 = vadd.f32 0.0, %v6386
      %v6388 = vpop.f32.mrb[0].mxu0
      %6389 = vdwg.mxu0
      %v6390 = vld [vmem:[%s8] sm:$0x1]
      %v6392 = vlaneseq
      %v6393 = vshrl.u32 %v6392, 7
      %v6394 = vsub.s32 0, %v6393
      %v6395 = vrot.slane %v6390, %v6394
      %v6397 = vmul.f32 %v6264, %v6395
      %v6398 = vmul.f32 %v6267, %v6395
      %v6399 = vmul.f32 %v6272, %v6395
      %v6400 = vmul.f32 %v6275, %v6395
      %v6401 = vmul.f32 %v6280, %v6395
      %v6402 = vmul.f32 %v6283, %v6395
      %v6403 = vmul.f32 %v6288, %v6395
      %v6404 = vmul.f32 %v6291, %v6395
      %v6405 = vmul.f32 %v6296, %v6395
      %v6406 = vmul.f32 %v6299, %v6395
      %v6407 = vmul.f32 %v6304, %v6395
      %v6408 = vmul.f32 %v6307, %v6395
      %v6409 = vmul.f32 %v6312, %v6395
      %v6410 = vmul.f32 %v6315, %v6395
      %v6411 = vmul.f32 %v6320, %v6395
      %v6412 = vmul.f32 %v6323, %v6395
      %v6413 = vmul.f32 %v6328, %v6395
      %v6414 = vmul.f32 %v6331, %v6395
      %v6415 = vmul.f32 %v6336, %v6395
      %v6416 = vmul.f32 %v6339, %v6395
      %v6417 = vmul.f32 %v6344, %v6395
      %v6418 = vmul.f32 %v6347, %v6395
      %v6419 = vmul.f32 %v6352, %v6395
      %v6420 = vmul.f32 %v6355, %v6395
      %v6421 = vmul.f32 %v6360, %v6395
      %v6422 = vmul.f32 %v6363, %v6395
      %v6423 = vmul.f32 %v6368, %v6395
      %v6424 = vmul.f32 %v6371, %v6395
      %v6425 = vmul.f32 %v6376, %v6395
      %v6426 = vmul.f32 %v6379, %v6395
      %v6427 = vmul.f32 %v6384, %v6395
      %v6428 = vmul.f32 %v6387, %v6395
      %v6429 = vld [vmem:[%s9] sm:$0x1]
      %v6431 = vlaneseq
      %v6432 = vshrl.u32 %v6431, 7
      %v6433 = vsub.s32 0, %v6432
      %v6434 = vrot.slane %v6429, %v6433
      %v6436 = vadd.f32 %v6397, %v6434
      %v6437 = vadd.f32 %v6398, %v6434
      %v6438 = vadd.f32 %v6399, %v6434
      %v6439 = vadd.f32 %v6400, %v6434
      %v6440 = vadd.f32 %v6401, %v6434
      %v6441 = vadd.f32 %v6402, %v6434
      %v6442 = vadd.f32 %v6403, %v6434
      %v6443 = vadd.f32 %v6404, %v6434
      %v6444 = vadd.f32 %v6405, %v6434
      %v6445 = vadd.f32 %v6406, %v6434
      %v6446 = vadd.f32 %v6407, %v6434
      %v6447 = vadd.f32 %v6408, %v6434
      %v6448 = vadd.f32 %v6409, %v6434
      %v6449 = vadd.f32 %v6410, %v6434
      %v6450 = vadd.f32 %v6411, %v6434
      %v6451 = vadd.f32 %v6412, %v6434
      %v6452 = vadd.f32 %v6413, %v6434
      %v6453 = vadd.f32 %v6414, %v6434
      %v6454 = vadd.f32 %v6415, %v6434
      %v6455 = vadd.f32 %v6416, %v6434
      %v6456 = vadd.f32 %v6417, %v6434
      %v6457 = vadd.f32 %v6418, %v6434
      %v6458 = vadd.f32 %v6419, %v6434
      %v6459 = vadd.f32 %v6420, %v6434
      %v6460 = vadd.f32 %v6421, %v6434
      %v6461 = vadd.f32 %v6422, %v6434
      %v6462 = vadd.f32 %v6423, %v6434
      %v6463 = vadd.f32 %v6424, %v6434
      %v6464 = vadd.f32 %v6425, %v6434
      %v6465 = vadd.f32 %v6426, %v6434
      %v6466 = vadd.f32 %v6427, %v6434
      %v6467 = vadd.f32 %v6428, %v6434
      %v6468 = vadd.f32 %v6065, %v6436
      %v6469 = vadd.f32 %v6066, %v6437
      %v6470 = vadd.f32 %v6067, %v6438
      %v6471 = vadd.f32 %v6068, %v6439
      %v6472 = vadd.f32 %v6069, %v6440
      %v6473 = vadd.f32 %v6070, %v6441
      %v6474 = vadd.f32 %v6071, %v6442
      %v6475 = vadd.f32 %v6072, %v6443
      %v6476 = vadd.f32 %v6073, %v6444
      %v6477 = vadd.f32 %v6074, %v6445
      %v6478 = vadd.f32 %v6075, %v6446
      %v6479 = vadd.f32 %v6076, %v6447
      %v6480 = vadd.f32 %v6077, %v6448
      %v6481 = vadd.f32 %v6078, %v6449
      %v6482 = vadd.f32 %v6079, %v6450
      %v6483 = vadd.f32 %v6080, %v6451
      %v6484 = vadd.f32 %v6081, %v6452
      %v6485 = vadd.f32 %v6082, %v6453
      %v6486 = vadd.f32 %v6083, %v6454
      %v6487 = vadd.f32 %v6084, %v6455
      %v6488 = vadd.f32 %v6085, %v6456
      %v6489 = vadd.f32 %v6086, %v6457
      %v6490 = vadd.f32 %v6087, %v6458
      %v6491 = vadd.f32 %v6088, %v6459
      %v6492 = vadd.f32 %v6089, %v6460
      %v6493 = vadd.f32 %v6090, %v6461
      %v6494 = vadd.f32 %v6091, %v6462
      %v6495 = vadd.f32 %v6092, %v6463
      %v6496 = vadd.f32 %v6093, %v6464
      %v6497 = vadd.f32 %v6094, %v6465
      %v6498 = vadd.f32 %v6095, %v6466
      %v6499 = vadd.f32 %v6096, %v6467
      %v6500 = vmax.f32 %v6468, 0.0
      %v6501 = vmax.f32 %v6469, 0.0
      %v6502 = vmax.f32 %v6470, 0.0
      %v6503 = vmax.f32 %v6471, 0.0
      %v6504 = vmax.f32 %v6472, 0.0
      %v6505 = vmax.f32 %v6473, 0.0
      %v6506 = vmax.f32 %v6474, 0.0
      %v6507 = vmax.f32 %v6475, 0.0
      %v6508 = vmax.f32 %v6476, 0.0
      %v6509 = vmax.f32 %v6477, 0.0
      %v6510 = vmax.f32 %v6478, 0.0
      %v6511 = vmax.f32 %v6479, 0.0
      %v6512 = vmax.f32 %v6480, 0.0
      %v6513 = vmax.f32 %v6481, 0.0
      %v6514 = vmax.f32 %v6482, 0.0
      %v6515 = vmax.f32 %v6483, 0.0
      %v6516 = vmax.f32 %v6484, 0.0
      %v6517 = vmax.f32 %v6485, 0.0
      %v6518 = vmax.f32 %v6486, 0.0
      %v6519 = vmax.f32 %v6487, 0.0
      %v6520 = vmax.f32 %v6488, 0.0
      %v6521 = vmax.f32 %v6489, 0.0
      %v6522 = vmax.f32 %v6490, 0.0
      %v6523 = vmax.f32 %v6491, 0.0
      %v6524 = vmax.f32 %v6492, 0.0
      %v6525 = vmax.f32 %v6493, 0.0
      %v6526 = vmax.f32 %v6494, 0.0
      %v6527 = vmax.f32 %v6495, 0.0
      %v6528 = vmax.f32 %v6496, 0.0
      %v6529 = vmax.f32 %v6497, 0.0
      %v6530 = vmax.f32 %v6498, 0.0
      %v6531 = vmax.f32 %v6499, 0.0
      %v6532 = vpack.c.bf16 %v6501, %v6500
      %v6533 = vpack.c.bf16 %v6503, %v6502
      %v6534 = vpack.c.bf16 %v6505, %v6504
      %v6535 = vpack.c.bf16 %v6507, %v6506
      %v6536 = vpack.c.bf16 %v6509, %v6508
      %v6537 = vpack.c.bf16 %v6511, %v6510
      %v6538 = vpack.c.bf16 %v6513, %v6512
      %v6539 = vpack.c.bf16 %v6515, %v6514
      %v6540 = vpack.c.bf16 %v6517, %v6516
      %v6541 = vpack.c.bf16 %v6519, %v6518
      %v6542 = vpack.c.bf16 %v6521, %v6520
      %v6543 = vpack.c.bf16 %v6523, %v6522
      %v6544 = vpack.c.bf16 %v6525, %v6524
      %v6545 = vpack.c.bf16 %v6527, %v6526
      %v6546 = vpack.c.bf16 %v6529, %v6528
      %v6547 = vpack.c.bf16 %v6531, %v6530
      %v6564 = vunpack.c.l.b16 %v6532
      %v6565 = vunpack.c.h.b16 %v6532
      %v6566 = vunpack.c.l.b16 %v6533
      %v6567 = vunpack.c.h.b16 %v6533
      %v6568 = vunpack.c.l.b16 %v6534
      %v6569 = vunpack.c.h.b16 %v6534
      %v6570 = vunpack.c.l.b16 %v6535
      %v6571 = vunpack.c.h.b16 %v6535
      %v6572 = vunpack.c.l.b16 %v6536
      %v6573 = vunpack.c.h.b16 %v6536
      %v6574 = vunpack.c.l.b16 %v6537
      %v6575 = vunpack.c.h.b16 %v6537
      %v6576 = vunpack.c.l.b16 %v6538
      %v6577 = vunpack.c.h.b16 %v6538
      %v6578 = vunpack.c.l.b16 %v6539
      %v6579 = vunpack.c.h.b16 %v6539
      %v6580 = vunpack.c.l.b16 %v6540
      %v6581 = vunpack.c.h.b16 %v6540
      %v6582 = vunpack.c.l.b16 %v6541
      %v6583 = vunpack.c.h.b16 %v6541
      %v6584 = vunpack.c.l.b16 %v6542
      %v6585 = vunpack.c.h.b16 %v6542
      %v6586 = vunpack.c.l.b16 %v6543
      %v6587 = vunpack.c.h.b16 %v6543
      %v6588 = vunpack.c.l.b16 %v6544
      %v6589 = vunpack.c.h.b16 %v6544
      %v6590 = vunpack.c.l.b16 %v6545
      %v6591 = vunpack.c.h.b16 %v6545
      %v6592 = vunpack.c.l.b16 %v6546
      %v6593 = vunpack.c.h.b16 %v6546
      %v6594 = vunpack.c.l.b16 %v6547
      %v6595 = vunpack.c.h.b16 %v6547
      %v6596 = vpack.c.b16 %v6564, %v6564
      %v6597 = vpack.c.b16 %v6565, %v6565
      %v6598 = vpack.c.b16 %v6566, %v6566
      %v6599 = vpack.c.b16 %v6567, %v6567
      %v6600 = vpack.c.b16 %v6568, %v6568
      %v6601 = vpack.c.b16 %v6569, %v6569
      %v6602 = vpack.c.b16 %v6570, %v6570
      %v6603 = vpack.c.b16 %v6571, %v6571
      %v6604 = vpack.c.b16 %v6572, %v6572
      %v6605 = vpack.c.b16 %v6573, %v6573
      %v6606 = vpack.c.b16 %v6574, %v6574
      %v6607 = vpack.c.b16 %v6575, %v6575
      %v6608 = vpack.c.b16 %v6576, %v6576
      %v6609 = vpack.c.b16 %v6577, %v6577
      %v6610 = vpack.c.b16 %v6578, %v6578
      %v6611 = vpack.c.b16 %v6579, %v6579
      %v6612 = vpack.c.b16 %v6580, %v6580
      %v6613 = vpack.c.b16 %v6581, %v6581
      %v6614 = vpack.c.b16 %v6582, %v6582
      %v6615 = vpack.c.b16 %v6583, %v6583
      %v6616 = vpack.c.b16 %v6584, %v6584
      %v6617 = vpack.c.b16 %v6585, %v6585
      %v6618 = vpack.c.b16 %v6586, %v6586
      %v6619 = vpack.c.b16 %v6587, %v6587
      %v6620 = vpack.c.b16 %v6588, %v6588
      %v6621 = vpack.c.b16 %v6589, %v6589
      %v6622 = vpack.c.b16 %v6590, %v6590
      %v6623 = vpack.c.b16 %v6591, %v6591
      %v6624 = vpack.c.b16 %v6592, %v6592
      %v6625 = vpack.c.b16 %v6593, %v6593
      %v6626 = vpack.c.b16 %v6594, %v6594
      %v6627 = vpack.c.b16 %v6595, %v6595
      %6660 = vst [vmem:[%s359] sm:$0xf] %v6596
      %6661 = vst [vmem:[%s359 + $0x4] sm:$0xf] %v6597
      %6662 = vst [vmem:[%s359 + $0x8] sm:$0xf] %v6598
      %6663 = vst [vmem:[%s359 + $0xc] sm:$0xf] %v6599
      %6664 = vst [vmem:[%s359 + $0x10] sm:$0xf] %v6600
      %6665 = vst [vmem:[%s359 + $0x14] sm:$0xf] %v6601
      %6666 = vst [vmem:[%s359 + $0x18] sm:$0xf] %v6602
      %6667 = vst [vmem:[%s359 + $0x1c] sm:$0xf] %v6603
      %6668 = vst [vmem:[%s359 + $0x20] sm:$0xf] %v6604
      %6669 = vst [vmem:[%s359 + $0x24] sm:$0xf] %v6605
      %6670 = vst [vmem:[%s359 + $0x28] sm:$0xf] %v6606
      %6671 = vst [vmem:[%s359 + $0x2c] sm:$0xf] %v6607
      %6672 = vst [vmem:[%s359 + $0x30] sm:$0xf] %v6608
      %6673 = vst [vmem:[%s359 + $0x34] sm:$0xf] %v6609
      %6674 = vst [vmem:[%s359 + $0x38] sm:$0xf] %v6610
      %6675 = vst [vmem:[%s359 + $0x3c] sm:$0xf] %v6611
      %6676 = vst [vmem:[%s359 + $0x40] sm:$0xf] %v6612
      %6677 = vst [vmem:[%s359 + $0x44] sm:$0xf] %v6613
      %6678 = vst [vmem:[%s359 + $0x48] sm:$0xf] %v6614
      %6679 = vst [vmem:[%s359 + $0x4c] sm:$0xf] %v6615
      %6680 = vst [vmem:[%s359 + $0x50] sm:$0xf] %v6616
      %6681 = vst [vmem:[%s359 + $0x54] sm:$0xf] %v6617
      %6682 = vst [vmem:[%s359 + $0x58] sm:$0xf] %v6618
      %6683 = vst [vmem:[%s359 + $0x5c] sm:$0xf] %v6619
      %6684 = vst [vmem:[%s359 + $0x60] sm:$0xf] %v6620
      %6685 = vst [vmem:[%s359 + $0x64] sm:$0xf] %v6621
      %6686 = vst [vmem:[%s359 + $0x68] sm:$0xf] %v6622
      %6687 = vst [vmem:[%s359 + $0x6c] sm:$0xf] %v6623
      %6688 = vst [vmem:[%s359 + $0x70] sm:$0xf] %v6624
      %6689 = vst [vmem:[%s359 + $0x74] sm:$0xf] %v6625
      %6690 = vst [vmem:[%s359 + $0x78] sm:$0xf] %v6626
      %6691 = vst [vmem:[%s359 + $0x7c] sm:$0xf] %v6627
      %p6692 = scmp.lt.s32.totalorder %s21, 7
      %s6693 = scalar_select %p6692, %s21, 7
      %s6694 = smul.addr %s6693, 32
      %s6695 = smul.addr %s6694, 4
      %s6696 = scalar_lea.vmem %s10, %s6695
      // Predicated region
      $region61: #{residual_block_forward.1} parent=59 // pred_check
        %p6697 = pneg %p254
      $region62: #{residual_block_forward.1} parent=59 // pred_check_branch
        %6699 = sbr.rel (%p6697) target = $region64
      $region63: #{residual_block_forward.1} parent=59 // pred_region
        _
      $region64: #{residual_block_forward.1} parent=59 // pred_fallthru
        _
    $region60: #{residual_block_forward.1} parent=5 // pred_fallthru
      _
    %p6700 = scmp.le.s32.totalorder 2, %s16
    // Predicated region
    $region65: #{residual_block_forward.1} parent=5 // pred_check
      %p6701 = pneg %p6700
    $region66: #{residual_block_forward.1} parent=5 // pred_check_branch
      %6703 = sbr.rel (%p6701) target = $region68
    $region67: #{residual_block_forward.1} parent=5 // pred_region
      %s6704 = ssub.s32 %s16, 2
      // Predicated region
      $region69: #{residual_block_forward.1} parent=67 // pred_check
        %p6705 = pneg %p260
      $region70: #{residual_block_forward.1} parent=67 // pred_check_branch
        %6707 = sbr.rel (%p6705) target = $region72
      $region71: #{residual_block_forward.1} parent=67 // pred_region
        %p6708 = scmp.lt.s32.totalorder %s22, 7
        %s6709 = scalar_select %p6708, %s22, 7
        %s6710 = smul.addr %s6709, 32
        %s6711 = smul.addr %s6710, 4
        %s6712 = scalar_lea.vmem %s10, %s6711
      $region72: #{residual_block_forward.1} parent=67 // pred_fallthru
        _
    $region68: #{residual_block_forward.1} parent=5 // pred_fallthru
      _
  $region6: #{residual_block_forward.1} parent=0 // loop_footer
    %s20 = sadd.s32 1, %s16
  $region7: #{residual_block_forward.1} parent=0 // loop_footer_branch
    %15 = sbr.rel target = $region3
  $region8: #{residual_block_forward.1} parent=0 // loop_exit
    _

</llo_original>
